<compile_context>
chip_gen: v5e
topology: v5e:2x2
jax: 0.10.0
libtpu: 0.0.40
codegen_flags: <defaults>
</compile_context>

<pallas_src>
import jax
import jax.numpy as jnp
from jax import lax
from jax.experimental import pallas as pl
from jax.experimental.pallas import tpu as pltpu  # noqa: F401  (TPU backend)

NUM_SHOT = 8
D_MODEL = 32
NHEAD = 4
HEAD_DIM = D_MODEL // NHEAD
NUM_LAYERS = 2
DIM_FF = 2048          # nn.Transformer default dim_feedforward
LN_EPS = 1e-5          # nn.Transformer default layer_norm_eps

N_ATTN = 3 * NUM_LAYERS            # 2 enc self + 2 dec self + 2 dec cross = 6
N_FFN = 2 * NUM_LAYERS             # 4
N_LN = 2 * NUM_LAYERS + 1 + 3 * NUM_LAYERS + 1   # 12


# ----------------------------- fused Pallas kernel -----------------------------

def _fused_forward_kernel(x_ref,
                          attn_in_w_ref, attn_in_b_ref, attn_out_w_ref, attn_out_b_ref,
                          ffn_w1_ref, ffn_b1_ref, ffn_w2_ref, ffn_b2_ref,
                          ln_g_ref, ln_b_ref,
                          cos_ref, attn_ref):
    """Whole MyTransformer forward in one kernel; all intermediates stay in VMEM."""

    idx = {'attn': 0, 'ffn': 0, 'ln': 0}
    scale = HEAD_DIM ** -0.5

    def dot_t(a, b):
        # a @ b.T with f32 accumulation, no explicit transpose.
        return lax.dot_general(a, b, (((1,), (1,)), ((), ())),
                               preferred_element_type=jnp.float32)

    def layer_norm(y):
        i = idx['ln']; idx['ln'] += 1
        g = ln_g_ref[i:i + 1, :]                     # (1, 32)
        b = ln_b_ref[i:i + 1, :]                     # (1, 32)
        mu = jnp.mean(y, axis=-1, keepdims=True)
        ms = jnp.mean(y * y, axis=-1, keepdims=True)  # independent of mu -> overlaps on XLU
        var = ms - mu * mu
        return (y - mu) * lax.rsqrt(var + LN_EPS) * g + b

    def softmax(s):
        m = jnp.max(s, axis=-1, keepdims=True)
        p = jnp.exp(s - m)
        return p * pl.reciprocal(jnp.sum(p, axis=-1, keepdims=True), approx=False)

    def mha(q_in, kv_in, is_self):
        i = idx['attn']; idx['attn'] += 1
        in_w = attn_in_w_ref[i]       # (32, 96)  (pre-transposed, lane-dense)
        in_b = attn_in_b_ref[i]       # (1, 96)
        out_w = attn_out_w_ref[i]     # (32, 32)
        out_b = attn_out_b_ref[i]     # (1, 32)
        if is_self:
            # Single fused QKV matmul -> (S, 3D) slab, sliced in-kernel.
            qkv = jnp.dot(q_in, in_w, preferred_element_type=jnp.float32) + in_b
            q = qkv[:, :D_MODEL]
            k = qkv[:, D_MODEL:2 * D_MODEL]
            v = qkv[:, 2 * D_MODEL:]
        else:
            q = (jnp.dot(q_in, in_w[:, :D_MODEL],
                         preferred_element_type=jnp.float32) + in_b[:, :D_MODEL])
            kv = (jnp.dot(kv_in, in_w[:, D_MODEL:],
                          preferred_element_type=jnp.float32) + in_b[:, D_MODEL:])
            k = kv[:, :D_MODEL]
            v = kv[:, D_MODEL:]
        # Per-head output-projection accumulation: no lane concat of head outputs.
        acc = None
        for h in range(NHEAD):
            sl = slice(h * HEAD_DIM, (h + 1) * HEAD_DIM)
            s = dot_t(q[:, sl], k[:, sl]) * scale
            head = jnp.dot(softmax(s), v[:, sl], preferred_element_type=jnp.float32)
            contrib = jnp.dot(head, out_w[sl, :], preferred_element_type=jnp.float32)
            acc = contrib if acc is None else acc + contrib
        return acc + out_b

    def ffn(x):
        i = idx['ffn']; idx['ffn'] += 1
        w1 = ffn_w1_ref[i]                                    # (32, 2048) bf16
        b1 = ffn_b1_ref[i]                                    # (1, 2048)  f32
        w2 = ffn_w2_ref[:, i * D_MODEL:(i + 1) * D_MODEL]     # (2048, 32) bf16 lane slice
        b2 = ffn_b2_ref[i]                                    # (1, 32)    f32
        h = jnp.dot(x.astype(jnp.bfloat16), w1,
                    preferred_element_type=jnp.float32) + b1
        h = jnp.maximum(h, 0.0)
        return jnp.dot(h.astype(jnp.bfloat16), w2,
                       preferred_element_type=jnp.float32) + b2

    x = x_ref[...]

    # ---------------- encoder (post-norm layers) ----------------
    s = x
    for _ in range(NUM_LAYERS):
        s = layer_norm(s + mha(s, s, True))    # norm1
        s = layer_norm(s + ffn(s))             # norm2
    memory = layer_norm(s)                     # encoder final norm

    # ---------------- decoder ----------------
    t = x
    for _ in range(NUM_LAYERS):
        t = layer_norm(t + mha(t, t, True))        # norm1 (self-attn)
        t = layer_norm(t + mha(t, memory, False))  # norm2 (cross-attn)
        t = layer_norm(t + ffn(t))                 # norm3
    a = layer_norm(t)                              # decoder final norm

    # trace-time sanity check that packed parameter ordering matches consumption
    assert idx['attn'] == N_ATTN and idx['ffn'] == N_FFN and idx['ln'] == N_LN

    attn_ref[...] = a

    # Cosine similarity: normalize rows first, then one gram matmul (no (8,1) transpose).
    inv = lax.rsqrt(jnp.sum(a * a, axis=-1, keepdims=True))
    an = a * inv
    cos_ref[...] = dot_t(an, an)


# ----------------------------- forward wrapper ------------------------------

@jax.jit
def my_transformer_forward(shot_feature, packed_params):
    # PyTorch: view(num_shot, 1, d_model); batch=1 squeezed to a (S, d_model) slab.
    x = shot_feature.reshape(NUM_SHOT, D_MODEL).astype(jnp.float32)
    final_result, attention_out = pl.pallas_call(
        _fused_forward_kernel,
        out_shape=(jax.ShapeDtypeStruct((NUM_SHOT, NUM_SHOT), jnp.float32),
                   jax.ShapeDtypeStruct((NUM_SHOT, D_MODEL), jnp.float32)),
        cost_estimate=pl.CostEstimate(flops=8_500_000,
                                      bytes_accessed=1_400_000,
                                      transcendentals=600),
    )(x, *packed_params)
    # TODO(synk): PyTorch builds `result` as float64 numpy; TPU has no f64 — returns f32.
    return final_result, attention_out


# --------------- one-time parameter packing (outside jit) -------------------

def prepare_packed_params(params):
    """Pack all weights into a handful of lane-dense slabs, in kernel consumption order."""
    enc = params['encoder_layers']
    dec = params['decoder_layers']

    # Attention blocks in consumption order: enc0 self, enc1 self,
    # dec0 self, dec0 cross, dec1 self, dec1 cross.
    attn_blocks = ([l['self_attn'] for l in enc]
                   + [blk for l in dec for blk in (l['self_attn'], l['cross_attn'])])
    attn_in_w = jnp.stack([b['in_proj_w'].T for b in attn_blocks]).astype(jnp.float32)        # (6,32,96)
    attn_in_b = jnp.stack([b['in_proj_b'].reshape(1, -1) for b in attn_blocks]).astype(jnp.float32)  # (6,1,96)
    attn_out_w = jnp.stack([b['out_w'].T for b in attn_blocks]).astype(jnp.float32)            # (6,32,32)
    attn_out_b = jnp.stack([b['out_b'].reshape(1, -1) for b in attn_blocks]).astype(jnp.float32)     # (6,1,32)

    # FFN blocks in order: enc0, enc1, dec0, dec1.  w1/w2 stored bf16 (halved HBM traffic),
    # w2 lane-packed side-by-side into one (2048, 128) lane-dense slab.
    ffn_layers = list(enc) + list(dec)
    ffn_w1 = jnp.stack([l['lin1_w'].T for l in ffn_layers]).astype(jnp.bfloat16)               # (4,32,2048)
    ffn_b1 = jnp.stack([l['lin1_b'].reshape(1, -1) for l in ffn_layers]).astype(jnp.float32)   # (4,1,2048)
    ffn_w2 = jnp.concatenate([l['lin2_w'].T for l in ffn_layers], axis=1).astype(jnp.bfloat16)  # (2048,128)
    ffn_b2 = jnp.stack([l['lin2_b'].reshape(1, -1) for l in ffn_layers]).astype(jnp.float32)   # (4,1,32)

    # LayerNorms in consumption order (12 total).
    ln_pairs = []
    for l in enc:
        ln_pairs += [(l['norm1_g'], l['norm1_b']), (l['norm2_g'], l['norm2_b'])]
    ln_pairs += [(params['enc_norm_g'], params['enc_norm_b'])]
    for l in dec:
        ln_pairs += [(l['norm1_g'], l['norm1_b']), (l['norm2_g'], l['norm2_b']),
                     (l['norm3_g'], l['norm3_b'])]
    ln_pairs += [(params['dec_norm_g'], params['dec_norm_b'])]
    assert len(ln_pairs) == N_LN
    ln_g = jnp.stack([g for g, _ in ln_pairs]).astype(jnp.float32)    # (12, 32)
    ln_b = jnp.stack([b for _, b in ln_pairs]).astype(jnp.float32)    # (12, 32)

    return (attn_in_w, attn_in_b, attn_out_w, attn_out_b,
            ffn_w1, ffn_b1, ffn_w2, ffn_b2, ln_g, ln_b)


# ------------------------- deterministic parameters ------------------------

def _init_mha(key):
    k1, k2 = jax.random.split(key)
    s = 1.0 / jnp.sqrt(jnp.float32(D_MODEL))
    return dict(
        in_proj_w=jax.random.normal(k1, (3 * D_MODEL, D_MODEL), jnp.float32) * s,
        in_proj_b=jnp.zeros((3 * D_MODEL,), jnp.float32),
        out_w=jax.random.normal(k2, (D_MODEL, D_MODEL), jnp.float32) * s,
        out_b=jnp.zeros((D_MODEL,), jnp.float32),
    )


def _init_enc_layer(key):
    k1, k2, k3 = jax.random.split(key, 3)
    return dict(
        self_attn=_init_mha(k1),
        lin1_w=jax.random.normal(k2, (DIM_FF, D_MODEL), jnp.float32) / jnp.sqrt(jnp.float32(D_MODEL)),
        lin1_b=jnp.zeros((DIM_FF,), jnp.float32),
        lin2_w=jax.random.normal(k3, (D_MODEL, DIM_FF), jnp.float32) / jnp.sqrt(jnp.float32(DIM_FF)),
        lin2_b=jnp.zeros((D_MODEL,), jnp.float32),
        norm1_g=jnp.ones((D_MODEL,), jnp.float32), norm1_b=jnp.zeros((D_MODEL,), jnp.float32),
        norm2_g=jnp.ones((D_MODEL,), jnp.float32), norm2_b=jnp.zeros((D_MODEL,), jnp.float32),
    )


def _init_dec_layer(key):
    k1, k2, _, _ = jax.random.split(key, 4)
    p = _init_enc_layer(jax.random.fold_in(key, 99))
    p['self_attn'] = _init_mha(k1)
    p['cross_attn'] = _init_mha(k2)
    p['norm3_g'] = jnp.ones((D_MODEL,), jnp.float32)
    p['norm3_b'] = jnp.zeros((D_MODEL,), jnp.float32)
    return p


def init_params(key):
    keys = jax.random.split(key, 2 * NUM_LAYERS)
    return dict(
        encoder_layers=[_init_enc_layer(keys[i]) for i in range(NUM_LAYERS)],
        decoder_layers=[_init_dec_layer(keys[NUM_LAYERS + i]) for i in range(NUM_LAYERS)],
        enc_norm_g=jnp.ones((D_MODEL,), jnp.float32),
        enc_norm_b=jnp.zeros((D_MODEL,), jnp.float32),
        dec_norm_g=jnp.ones((D_MODEL,), jnp.float32),
        dec_norm_b=jnp.zeros((D_MODEL,), jnp.float32),
    )


# ---------------------------------- main -----------------------------------

if __name__ == "__main__":
    key = jax.random.PRNGKey(0)
    k_in, k_par = jax.random.split(key)
    shot_feature = jax.random.normal(k_in, (NUM_SHOT, D_MODEL), jnp.float32)
    params = init_params(k_par)
    packed_params = prepare_packed_params(params)   # transposes / packing happen once, outside jit

    final_result, attention_out = my_transformer_forward(shot_feature, packed_params)
    jax.block_until_ready((final_result, attention_out))

    assert final_result.shape == (NUM_SHOT, NUM_SHOT)
    assert attention_out.shape == (NUM_SHOT, D_MODEL)
    assert bool(jnp.all(jnp.isfinite(final_result)))
    assert bool(jnp.all(jnp.isfinite(attention_out)))
    print("KERNEL_OK")
</pallas_src>

<mosaic_0001>
module attributes {stable_mosaic.version = 11 : i64} {
  func.func @_fused_forward_kernel(%arg0: memref<8x32xf32, #tpu.memory_space<vmem>>, %arg1: memref<6x32x96xf32, #tpu.memory_space<vmem>>, %arg2: memref<6x1x96xf32, #tpu.memory_space<vmem>>, %arg3: memref<6x32x32xf32, #tpu.memory_space<vmem>>, %arg4: memref<6x1x32xf32, #tpu.memory_space<vmem>>, %arg5: memref<4x32x2048xbf16, #tpu.memory_space<vmem>>, %arg6: memref<4x1x2048xf32, #tpu.memory_space<vmem>>, %arg7: memref<2048x128xbf16, #tpu.memory_space<vmem>>, %arg8: memref<4x1x32xf32, #tpu.memory_space<vmem>>, %arg9: memref<12x32xf32, #tpu.memory_space<vmem>>, %arg10: memref<12x32xf32, #tpu.memory_space<vmem>>, %arg11: memref<8x8xf32, #tpu.memory_space<vmem>>, %arg12: memref<8x32xf32, #tpu.memory_space<vmem>>) attributes {dimension_semantics = [], scalar_prefetch = 0 : i64, scratch_operands = 0 : i64, tpu.core_type = #tpu.core_type<tc>} {
    %c0 = arith.constant 0 : index
    %c0_0 = arith.constant 0 : index
    %0 = vector.load %arg0[%c0, %c0_0] : memref<8x32xf32, #tpu.memory_space<vmem>>, vector<8x32xf32>
    %c0_1 = arith.constant 0 : index
    %c0_2 = arith.constant 0 : index
    %c0_3 = arith.constant 0 : index
    %1 = vector.load %arg1[%c0_1, %c0_2, %c0_3] : memref<6x32x96xf32, #tpu.memory_space<vmem>>, vector<1x32x96xf32>
    %2 = vector.shape_cast %1 : vector<1x32x96xf32> to vector<32x96xf32>
    %c0_4 = arith.constant 0 : index
    %c0_5 = arith.constant 0 : index
    %c0_6 = arith.constant 0 : index
    %3 = vector.load %arg2[%c0_4, %c0_5, %c0_6] : memref<6x1x96xf32, #tpu.memory_space<vmem>>, vector<1x1x96xf32>
    %4 = vector.shape_cast %3 : vector<1x1x96xf32> to vector<1x96xf32>
    %c0_7 = arith.constant 0 : index
    %c0_8 = arith.constant 0 : index
    %c0_9 = arith.constant 0 : index
    %5 = vector.load %arg3[%c0_7, %c0_8, %c0_9] : memref<6x32x32xf32, #tpu.memory_space<vmem>>, vector<1x32x32xf32>
    %6 = vector.shape_cast %5 : vector<1x32x32xf32> to vector<32x32xf32>
    %c0_10 = arith.constant 0 : index
    %c0_11 = arith.constant 0 : index
    %c0_12 = arith.constant 0 : index
    %7 = vector.load %arg4[%c0_10, %c0_11, %c0_12] : memref<6x1x32xf32, #tpu.memory_space<vmem>>, vector<1x1x32xf32>
    %8 = vector.shape_cast %7 : vector<1x1x32xf32> to vector<1x32xf32>
    %cst = arith.constant dense<0.000000e+00> : vector<8x96xf32>
    %9 = tpu.matmul %0, %2, %cst {dimension_numbers = #tpu.dot_dimension_numbers<[1], [0], [0], [1], [0, 0, 1, 1], [], []>} : vector<8x32xf32>, vector<32x96xf32>, vector<8x96xf32> -> vector<8x96xf32>
    %10 = vector.broadcast %4 : vector<1x96xf32> to vector<8x96xf32>
    %11 = arith.addf %9, %10 : vector<8x96xf32>
    %12 = vector.extract_strided_slice %11 {offsets = [0, 0], sizes = [8, 32], strides = [1, 1]} : vector<8x96xf32> to vector<8x32xf32>
    %13 = vector.extract_strided_slice %11 {offsets = [0, 32], sizes = [8, 32], strides = [1, 1]} : vector<8x96xf32> to vector<8x32xf32>
    %14 = vector.extract_strided_slice %11 {offsets = [0, 64], sizes = [8, 32], strides = [1, 1]} : vector<8x96xf32> to vector<8x32xf32>
    %15 = vector.extract_strided_slice %12 {offsets = [0, 0], sizes = [8, 8], strides = [1, 1]} : vector<8x32xf32> to vector<8x8xf32>
    %16 = vector.extract_strided_slice %13 {offsets = [0, 0], sizes = [8, 8], strides = [1, 1]} : vector<8x32xf32> to vector<8x8xf32>
    %cst_13 = arith.constant dense<0.000000e+00> : vector<8x8xf32>
    %17 = tpu.matmul %15, %16, %cst_13 {dimension_numbers = #tpu.dot_dimension_numbers<[1], [1], [0], [0], [0, 0, 1, 0], [], []>} : vector<8x8xf32>, vector<8x8xf32>, vector<8x8xf32> -> vector<8x8xf32>
    %cst_14 = arith.constant 0.353553385 : f32
    %18 = vector.broadcast %cst_14 : f32 to vector<8x8xf32>
    %19 = arith.mulf %17, %18 : vector<8x8xf32>
    %cst_15 = arith.constant dense<0xFF800000> : vector<8xf32>
    %20 = vector.multi_reduction <maximumf>, %19, %cst_15 [1] : vector<8x8xf32> to vector<8xf32>
    %21 = vector.shape_cast %20 : vector<8xf32> to vector<8x1xf32>
    %22 = vector.broadcast %21 : vector<8x1xf32> to vector<8x8xf32>
    %23 = arith.subf %19, %22 : vector<8x8xf32>
    %24 = math.exp %23 : vector<8x8xf32>
    %cst_16 = arith.constant dense<0.000000e+00> : vector<8xf32>
    %25 = vector.multi_reduction <add>, %24, %cst_16 [1] : vector<8x8xf32> to vector<8xf32>
    %26 = vector.shape_cast %25 : vector<8xf32> to vector<8x1xf32>
    %27 = tpu.reciprocal %26 : vector<8x1xf32> -> vector<8x1xf32>
    %28 = vector.broadcast %27 : vector<8x1xf32> to vector<8x8xf32>
    %29 = arith.mulf %24, %28 : vector<8x8xf32>
    %30 = vector.extract_strided_slice %14 {offsets = [0, 0], sizes = [8, 8], strides = [1, 1]} : vector<8x32xf32> to vector<8x8xf32>
    %cst_17 = arith.constant dense<0.000000e+00> : vector<8x8xf32>
    %31 = tpu.matmul %29, %30, %cst_17 {dimension_numbers = #tpu.dot_dimension_numbers<[1], [0], [0], [1], [0, 0, 1, 1], [], []>} : vector<8x8xf32>, vector<8x8xf32>, vector<8x8xf32> -> vector<8x8xf32>
    %32 = vector.extract_strided_slice %6 {offsets = [0, 0], sizes = [8, 32], strides = [1, 1]} : vector<32x32xf32> to vector<8x32xf32>
    %cst_18 = arith.constant dense<0.000000e+00> : vector<8x32xf32>
    %33 = tpu.matmul %31, %32, %cst_18 {dimension_numbers = #tpu.dot_dimension_numbers<[1], [0], [0], [1], [0, 0, 1, 1], [], []>} : vector<8x8xf32>, vector<8x32xf32>, vector<8x32xf32> -> vector<8x32xf32>
    %34 = vector.extract_strided_slice %12 {offsets = [0, 8], sizes = [8, 8], strides = [1, 1]} : vector<8x32xf32> to vector<8x8xf32>
    %35 = vector.extract_strided_slice %13 {offsets = [0, 8], sizes = [8, 8], strides = [1, 1]} : vector<8x32xf32> to vector<8x8xf32>
    %cst_19 = arith.constant dense<0.000000e+00> : vector<8x8xf32>
    %36 = tpu.matmul %34, %35, %cst_19 {dimension_numbers = #tpu.dot_dimension_numbers<[1], [1], [0], [0], [0, 0, 1, 0], [], []>} : vector<8x8xf32>, vector<8x8xf32>, vector<8x8xf32> -> vector<8x8xf32>
    %cst_20 = arith.constant 0.353553385 : f32
    %37 = vector.broadcast %cst_20 : f32 to vector<8x8xf32>
    %38 = arith.mulf %36, %37 : vector<8x8xf32>
    %cst_21 = arith.constant dense<0xFF800000> : vector<8xf32>
    %39 = vector.multi_reduction <maximumf>, %38, %cst_21 [1] : vector<8x8xf32> to vector<8xf32>
    %40 = vector.shape_cast %39 : vector<8xf32> to vector<8x1xf32>
    %41 = vector.broadcast %40 : vector<8x1xf32> to vector<8x8xf32>
    %42 = arith.subf %38, %41 : vector<8x8xf32>
    %43 = math.exp %42 : vector<8x8xf32>
    %cst_22 = arith.constant dense<0.000000e+00> : vector<8xf32>
    %44 = vector.multi_reduction <add>, %43, %cst_22 [1] : vector<8x8xf32> to vector<8xf32>
    %45 = vector.shape_cast %44 : vector<8xf32> to vector<8x1xf32>
    %46 = tpu.reciprocal %45 : vector<8x1xf32> -> vector<8x1xf32>
    %47 = vector.broadcast %46 : vector<8x1xf32> to vector<8x8xf32>
    %48 = arith.mulf %43, %47 : vector<8x8xf32>
    %49 = vector.extract_strided_slice %14 {offsets = [0, 8], sizes = [8, 8], strides = [1, 1]} : vector<8x32xf32> to vector<8x8xf32>
    %cst_23 = arith.constant dense<0.000000e+00> : vector<8x8xf32>
    %50 = tpu.matmul %48, %49, %cst_23 {dimension_numbers = #tpu.dot_dimension_numbers<[1], [0], [0], [1], [0, 0, 1, 1], [], []>} : vector<8x8xf32>, vector<8x8xf32>, vector<8x8xf32> -> vector<8x8xf32>
    %51 = vector.extract_strided_slice %6 {offsets = [8, 0], sizes = [8, 32], strides = [1, 1]} : vector<32x32xf32> to vector<8x32xf32>
    %cst_24 = arith.constant dense<0.000000e+00> : vector<8x32xf32>
    %52 = tpu.matmul %50, %51, %cst_24 {dimension_numbers = #tpu.dot_dimension_numbers<[1], [0], [0], [1], [0, 0, 1, 1], [], []>} : vector<8x8xf32>, vector<8x32xf32>, vector<8x32xf32> -> vector<8x32xf32>
    %53 = arith.addf %33, %52 : vector<8x32xf32>
    %54 = vector.extract_strided_slice %12 {offsets = [0, 16], sizes = [8, 8], strides = [1, 1]} : vector<8x32xf32> to vector<8x8xf32>
    %55 = vector.extract_strided_slice %13 {offsets = [0, 16], sizes = [8, 8], strides = [1, 1]} : vector<8x32xf32> to vector<8x8xf32>
    %cst_25 = arith.constant dense<0.000000e+00> : vector<8x8xf32>
    %56 = tpu.matmul %54, %55, %cst_25 {dimension_numbers = #tpu.dot_dimension_numbers<[1], [1], [0], [0], [0, 0, 1, 0], [], []>} : vector<8x8xf32>, vector<8x8xf32>, vector<8x8xf32> -> vector<8x8xf32>
    %cst_26 = arith.constant 0.353553385 : f32
    %57 = vector.broadcast %cst_26 : f32 to vector<8x8xf32>
    %58 = arith.mulf %56, %57 : vector<8x8xf32>
    %cst_27 = arith.constant dense<0xFF800000> : vector<8xf32>
    %59 = vector.multi_reduction <maximumf>, %58, %cst_27 [1] : vector<8x8xf32> to vector<8xf32>
    %60 = vector.shape_cast %59 : vector<8xf32> to vector<8x1xf32>
    %61 = vector.broadcast %60 : vector<8x1xf32> to vector<8x8xf32>
    %62 = arith.subf %58, %61 : vector<8x8xf32>
    %63 = math.exp %62 : vector<8x8xf32>
    %cst_28 = arith.constant dense<0.000000e+00> : vector<8xf32>
    %64 = vector.multi_reduction <add>, %63, %cst_28 [1] : vector<8x8xf32> to vector<8xf32>
    %65 = vector.shape_cast %64 : vector<8xf32> to vector<8x1xf32>
    %66 = tpu.reciprocal %65 : vector<8x1xf32> -> vector<8x1xf32>
    %67 = vector.broadcast %66 : vector<8x1xf32> to vector<8x8xf32>
    %68 = arith.mulf %63, %67 : vector<8x8xf32>
    %69 = vector.extract_strided_slice %14 {offsets = [0, 16], sizes = [8, 8], strides = [1, 1]} : vector<8x32xf32> to vector<8x8xf32>
    %cst_29 = arith.constant dense<0.000000e+00> : vector<8x8xf32>
    %70 = tpu.matmul %68, %69, %cst_29 {dimension_numbers = #tpu.dot_dimension_numbers<[1], [0], [0], [1], [0, 0, 1, 1], [], []>} : vector<8x8xf32>, vector<8x8xf32>, vector<8x8xf32> -> vector<8x8xf32>
    %71 = vector.extract_strided_slice %6 {offsets = [16, 0], sizes = [8, 32], strides = [1, 1]} : vector<32x32xf32> to vector<8x32xf32>
    %cst_30 = arith.constant dense<0.000000e+00> : vector<8x32xf32>
    %72 = tpu.matmul %70, %71, %cst_30 {dimension_numbers = #tpu.dot_dimension_numbers<[1], [0], [0], [1], [0, 0, 1, 1], [], []>} : vector<8x8xf32>, vector<8x32xf32>, vector<8x32xf32> -> vector<8x32xf32>
    %73 = arith.addf %53, %72 : vector<8x32xf32>
    %74 = vector.extract_strided_slice %12 {offsets = [0, 24], sizes = [8, 8], strides = [1, 1]} : vector<8x32xf32> to vector<8x8xf32>
    %75 = vector.extract_strided_slice %13 {offsets = [0, 24], sizes = [8, 8], strides = [1, 1]} : vector<8x32xf32> to vector<8x8xf32>
    %cst_31 = arith.constant dense<0.000000e+00> : vector<8x8xf32>
    %76 = tpu.matmul %74, %75, %cst_31 {dimension_numbers = #tpu.dot_dimension_numbers<[1], [1], [0], [0], [0, 0, 1, 0], [], []>} : vector<8x8xf32>, vector<8x8xf32>, vector<8x8xf32> -> vector<8x8xf32>
    %cst_32 = arith.constant 0.353553385 : f32
    %77 = vector.broadcast %cst_32 : f32 to vector<8x8xf32>
    %78 = arith.mulf %76, %77 : vector<8x8xf32>
    %cst_33 = arith.constant dense<0xFF800000> : vector<8xf32>
    %79 = vector.multi_reduction <maximumf>, %78, %cst_33 [1] : vector<8x8xf32> to vector<8xf32>
    %80 = vector.shape_cast %79 : vector<8xf32> to vector<8x1xf32>
    %81 = vector.broadcast %80 : vector<8x1xf32> to vector<8x8xf32>
    %82 = arith.subf %78, %81 : vector<8x8xf32>
    %83 = math.exp %82 : vector<8x8xf32>
    %cst_34 = arith.constant dense<0.000000e+00> : vector<8xf32>
    %84 = vector.multi_reduction <add>, %83, %cst_34 [1] : vector<8x8xf32> to vector<8xf32>
    %85 = vector.shape_cast %84 : vector<8xf32> to vector<8x1xf32>
    %86 = tpu.reciprocal %85 : vector<8x1xf32> -> vector<8x1xf32>
    %87 = vector.broadcast %86 : vector<8x1xf32> to vector<8x8xf32>
    %88 = arith.mulf %83, %87 : vector<8x8xf32>
    %89 = vector.extract_strided_slice %14 {offsets = [0, 24], sizes = [8, 8], strides = [1, 1]} : vector<8x32xf32> to vector<8x8xf32>
    %cst_35 = arith.constant dense<0.000000e+00> : vector<8x8xf32>
    %90 = tpu.matmul %88, %89, %cst_35 {dimension_numbers = #tpu.dot_dimension_numbers<[1], [0], [0], [1], [0, 0, 1, 1], [], []>} : vector<8x8xf32>, vector<8x8xf32>, vector<8x8xf32> -> vector<8x8xf32>
    %91 = vector.extract_strided_slice %6 {offsets = [24, 0], sizes = [8, 32], strides = [1, 1]} : vector<32x32xf32> to vector<8x32xf32>
    %cst_36 = arith.constant dense<0.000000e+00> : vector<8x32xf32>
    %92 = tpu.matmul %90, %91, %cst_36 {dimension_numbers = #tpu.dot_dimension_numbers<[1], [0], [0], [1], [0, 0, 1, 1], [], []>} : vector<8x8xf32>, vector<8x32xf32>, vector<8x32xf32> -> vector<8x32xf32>
    %93 = arith.addf %73, %92 : vector<8x32xf32>
    %94 = vector.broadcast %8 : vector<1x32xf32> to vector<8x32xf32>
    %95 = arith.addf %93, %94 : vector<8x32xf32>
    %96 = arith.addf %0, %95 : vector<8x32xf32>
    %c0_37 = arith.constant 0 : index
    %c0_38 = arith.constant 0 : index
    %97 = vector.load %arg9[%c0_37, %c0_38] : memref<12x32xf32, #tpu.memory_space<vmem>>, vector<1x32xf32>
    %c0_39 = arith.constant 0 : index
    %c0_40 = arith.constant 0 : index
    %98 = vector.load %arg10[%c0_39, %c0_40] : memref<12x32xf32, #tpu.memory_space<vmem>>, vector<1x32xf32>
    %cst_41 = arith.constant dense<0.000000e+00> : vector<8xf32>
    %99 = vector.multi_reduction <add>, %96, %cst_41 [1] : vector<8x32xf32> to vector<8xf32>
    %100 = vector.shape_cast %99 : vector<8xf32> to vector<8x1xf32>
    %cst_42 = arith.constant 3.200000e+01 : f32
    %101 = vector.broadcast %cst_42 : f32 to vector<8x1xf32>
    %102 = arith.divf %100, %101 : vector<8x1xf32>
    %103 = arith.mulf %96, %96 : vector<8x32xf32>
    %cst_43 = arith.constant dense<0.000000e+00> : vector<8xf32>
    %104 = vector.multi_reduction <add>, %103, %cst_43 [1] : vector<8x32xf32> to vector<8xf32>
    %105 = vector.shape_cast %104 : vector<8xf32> to vector<8x1xf32>
    %cst_44 = arith.constant 3.200000e+01 : f32
    %106 = vector.broadcast %cst_44 : f32 to vector<8x1xf32>
    %107 = arith.divf %105, %106 : vector<8x1xf32>
    %108 = arith.mulf %102, %102 : vector<8x1xf32>
    %109 = arith.subf %107, %108 : vector<8x1xf32>
    %110 = vector.broadcast %102 : vector<8x1xf32> to vector<8x32xf32>
    %111 = arith.subf %96, %110 : vector<8x32xf32>
    %cst_45 = arith.constant 9.99999974E-6 : f32
    %112 = vector.broadcast %cst_45 : f32 to vector<8x1xf32>
    %113 = arith.addf %109, %112 : vector<8x1xf32>
    %114 = math.rsqrt %113 : vector<8x1xf32>
    %115 = vector.broadcast %114 : vector<8x1xf32> to vector<8x32xf32>
    %116 = arith.mulf %111, %115 : vector<8x32xf32>
    %117 = vector.broadcast %97 : vector<1x32xf32> to vector<8x32xf32>
    %118 = arith.mulf %116, %117 : vector<8x32xf32>
    %119 = vector.broadcast %98 : vector<1x32xf32> to vector<8x32xf32>
    %120 = arith.addf %118, %119 : vector<8x32xf32>
    %c0_46 = arith.constant 0 : index
    %c0_47 = arith.constant 0 : index
    %c0_48 = arith.constant 0 : index
    %121 = vector.load %arg5[%c0_46, %c0_47, %c0_48] : memref<4x32x2048xbf16, #tpu.memory_space<vmem>>, vector<1x32x2048xbf16>
    %122 = vector.shape_cast %121 : vector<1x32x2048xbf16> to vector<32x2048xbf16>
    %c0_49 = arith.constant 0 : index
    %c0_50 = arith.constant 0 : index
    %c0_51 = arith.constant 0 : index
    %123 = vector.load %arg6[%c0_49, %c0_50, %c0_51] : memref<4x1x2048xf32, #tpu.memory_space<vmem>>, vector<1x1x2048xf32>
    %124 = vector.shape_cast %123 : vector<1x1x2048xf32> to vector<1x2048xf32>
    %c0_52 = arith.constant 0 : index
    %c0_53 = arith.constant 0 : index
    %125 = vector.load %arg7[%c0_52, %c0_53] : memref<2048x128xbf16, #tpu.memory_space<vmem>>, vector<2048x32xbf16>
    %c0_54 = arith.constant 0 : index
    %c0_55 = arith.constant 0 : index
    %c0_56 = arith.constant 0 : index
    %126 = vector.load %arg8[%c0_54, %c0_55, %c0_56] : memref<4x1x32xf32, #tpu.memory_space<vmem>>, vector<1x1x32xf32>
    %127 = vector.shape_cast %126 : vector<1x1x32xf32> to vector<1x32xf32>
    %128 = arith.truncf %120 : vector<8x32xf32> to vector<8x32xbf16>
    %cst_57 = arith.constant dense<0.000000e+00> : vector<8x2048xf32>
    %129 = tpu.matmul %128, %122, %cst_57 {dimension_numbers = #tpu.dot_dimension_numbers<[1], [0], [0], [1], [0, 0, 1, 1], [], []>} : vector<8x32xbf16>, vector<32x2048xbf16>, vector<8x2048xf32> -> vector<8x2048xf32>
    %130 = vector.broadcast %124 : vector<1x2048xf32> to vector<8x2048xf32>
    %131 = arith.addf %129, %130 : vector<8x2048xf32>
    %cst_58 = arith.constant 0.000000e+00 : f32
    %132 = vector.broadcast %cst_58 : f32 to vector<8x2048xf32>
    %133 = arith.maximumf %131, %132 : vector<8x2048xf32>
    %134 = arith.truncf %133 : vector<8x2048xf32> to vector<8x2048xbf16>
    %cst_59 = arith.constant dense<0.000000e+00> : vector<8x32xf32>
    %135 = tpu.matmul %134, %125, %cst_59 {dimension_numbers = #tpu.dot_dimension_numbers<[1], [0], [0], [1], [0, 0, 1, 1], [], []>} : vector<8x2048xbf16>, vector<2048x32xbf16>, vector<8x32xf32> -> vector<8x32xf32>
    %136 = vector.broadcast %127 : vector<1x32xf32> to vector<8x32xf32>
    %137 = arith.addf %135, %136 : vector<8x32xf32>
    %138 = arith.addf %120, %137 : vector<8x32xf32>
    %c1 = arith.constant 1 : index
    %c0_60 = arith.constant 0 : index
    %139 = vector.load %arg9[%c1, %c0_60] : memref<12x32xf32, #tpu.memory_space<vmem>>, vector<1x32xf32>
    %c1_61 = arith.constant 1 : index
    %c0_62 = arith.constant 0 : index
    %140 = vector.load %arg10[%c1_61, %c0_62] : memref<12x32xf32, #tpu.memory_space<vmem>>, vector<1x32xf32>
    %cst_63 = arith.constant dense<0.000000e+00> : vector<8xf32>
    %141 = vector.multi_reduction <add>, %138, %cst_63 [1] : vector<8x32xf32> to vector<8xf32>
    %142 = vector.shape_cast %141 : vector<8xf32> to vector<8x1xf32>
    %cst_64 = arith.constant 3.200000e+01 : f32
    %143 = vector.broadcast %cst_64 : f32 to vector<8x1xf32>
    %144 = arith.divf %142, %143 : vector<8x1xf32>
    %145 = arith.mulf %138, %138 : vector<8x32xf32>
    %cst_65 = arith.constant dense<0.000000e+00> : vector<8xf32>
    %146 = vector.multi_reduction <add>, %145, %cst_65 [1] : vector<8x32xf32> to vector<8xf32>
    %147 = vector.shape_cast %146 : vector<8xf32> to vector<8x1xf32>
    %cst_66 = arith.constant 3.200000e+01 : f32
    %148 = vector.broadcast %cst_66 : f32 to vector<8x1xf32>
    %149 = arith.divf %147, %148 : vector<8x1xf32>
    %150 = arith.mulf %144, %144 : vector<8x1xf32>
    %151 = arith.subf %149, %150 : vector<8x1xf32>
    %152 = vector.broadcast %144 : vector<8x1xf32> to vector<8x32xf32>
    %153 = arith.subf %138, %152 : vector<8x32xf32>
    %cst_67 = arith.constant 9.99999974E-6 : f32
    %154 = vector.broadcast %cst_67 : f32 to vector<8x1xf32>
    %155 = arith.addf %151, %154 : vector<8x1xf32>
    %156 = math.rsqrt %155 : vector<8x1xf32>
    %157 = vector.broadcast %156 : vector<8x1xf32> to vector<8x32xf32>
    %158 = arith.mulf %153, %157 : vector<8x32xf32>
    %159 = vector.broadcast %139 : vector<1x32xf32> to vector<8x32xf32>
    %160 = arith.mulf %158, %159 : vector<8x32xf32>
    %161 = vector.broadcast %140 : vector<1x32xf32> to vector<8x32xf32>
    %162 = arith.addf %160, %161 : vector<8x32xf32>
    %c1_68 = arith.constant 1 : index
    %c0_69 = arith.constant 0 : index
    %c0_70 = arith.constant 0 : index
    %163 = vector.load %arg1[%c1_68, %c0_69, %c0_70] : memref<6x32x96xf32, #tpu.memory_space<vmem>>, vector<1x32x96xf32>
    %164 = vector.shape_cast %163 : vector<1x32x96xf32> to vector<32x96xf32>
    %c1_71 = arith.constant 1 : index
    %c0_72 = arith.constant 0 : index
    %c0_73 = arith.constant 0 : index
    %165 = vector.load %arg2[%c1_71, %c0_72, %c0_73] : memref<6x1x96xf32, #tpu.memory_space<vmem>>, vector<1x1x96xf32>
    %166 = vector.shape_cast %165 : vector<1x1x96xf32> to vector<1x96xf32>
    %c1_74 = arith.constant 1 : index
    %c0_75 = arith.constant 0 : index
    %c0_76 = arith.constant 0 : index
    %167 = vector.load %arg3[%c1_74, %c0_75, %c0_76] : memref<6x32x32xf32, #tpu.memory_space<vmem>>, vector<1x32x32xf32>
    %168 = vector.shape_cast %167 : vector<1x32x32xf32> to vector<32x32xf32>
    %c1_77 = arith.constant 1 : index
    %c0_78 = arith.constant 0 : index
    %c0_79 = arith.constant 0 : index
    %169 = vector.load %arg4[%c1_77, %c0_78, %c0_79] : memref<6x1x32xf32, #tpu.memory_space<vmem>>, vector<1x1x32xf32>
    %170 = vector.shape_cast %169 : vector<1x1x32xf32> to vector<1x32xf32>
    %cst_80 = arith.constant dense<0.000000e+00> : vector<8x96xf32>
    %171 = tpu.matmul %162, %164, %cst_80 {dimension_numbers = #tpu.dot_dimension_numbers<[1], [0], [0], [1], [0, 0, 1, 1], [], []>} : vector<8x32xf32>, vector<32x96xf32>, vector<8x96xf32> -> vector<8x96xf32>
    %172 = vector.broadcast %166 : vector<1x96xf32> to vector<8x96xf32>
    %173 = arith.addf %171, %172 : vector<8x96xf32>
    %174 = vector.extract_strided_slice %173 {offsets = [0, 0], sizes = [8, 32], strides = [1, 1]} : vector<8x96xf32> to vector<8x32xf32>
    %175 = vector.extract_strided_slice %173 {offsets = [0, 32], sizes = [8, 32], strides = [1, 1]} : vector<8x96xf32> to vector<8x32xf32>
    %176 = vector.extract_strided_slice %173 {offsets = [0, 64], sizes = [8, 32], strides = [1, 1]} : vector<8x96xf32> to vector<8x32xf32>
    %177 = vector.extract_strided_slice %174 {offsets = [0, 0], sizes = [8, 8], strides = [1, 1]} : vector<8x32xf32> to vector<8x8xf32>
    %178 = vector.extract_strided_slice %175 {offsets = [0, 0], sizes = [8, 8], strides = [1, 1]} : vector<8x32xf32> to vector<8x8xf32>
    %cst_81 = arith.constant dense<0.000000e+00> : vector<8x8xf32>
    %179 = tpu.matmul %177, %178, %cst_81 {dimension_numbers = #tpu.dot_dimension_numbers<[1], [1], [0], [0], [0, 0, 1, 0], [], []>} : vector<8x8xf32>, vector<8x8xf32>, vector<8x8xf32> -> vector<8x8xf32>
    %cst_82 = arith.constant 0.353553385 : f32
    %180 = vector.broadcast %cst_82 : f32 to vector<8x8xf32>
    %181 = arith.mulf %179, %180 : vector<8x8xf32>
    %cst_83 = arith.constant dense<0xFF800000> : vector<8xf32>
    %182 = vector.multi_reduction <maximumf>, %181, %cst_83 [1] : vector<8x8xf32> to vector<8xf32>
    %183 = vector.shape_cast %182 : vector<8xf32> to vector<8x1xf32>
    %184 = vector.broadcast %183 : vector<8x1xf32> to vector<8x8xf32>
    %185 = arith.subf %181, %184 : vector<8x8xf32>
    %186 = math.exp %185 : vector<8x8xf32>
    %cst_84 = arith.constant dense<0.000000e+00> : vector<8xf32>
    %187 = vector.multi_reduction <add>, %186, %cst_84 [1] : vector<8x8xf32> to vector<8xf32>
    %188 = vector.shape_cast %187 : vector<8xf32> to vector<8x1xf32>
    %189 = tpu.reciprocal %188 : vector<8x1xf32> -> vector<8x1xf32>
    %190 = vector.broadcast %189 : vector<8x1xf32> to vector<8x8xf32>
    %191 = arith.mulf %186, %190 : vector<8x8xf32>
    %192 = vector.extract_strided_slice %176 {offsets = [0, 0], sizes = [8, 8], strides = [1, 1]} : vector<8x32xf32> to vector<8x8xf32>
    %cst_85 = arith.constant dense<0.000000e+00> : vector<8x8xf32>
    %193 = tpu.matmul %191, %192, %cst_85 {dimension_numbers = #tpu.dot_dimension_numbers<[1], [0], [0], [1], [0, 0, 1, 1], [], []>} : vector<8x8xf32>, vector<8x8xf32>, vector<8x8xf32> -> vector<8x8xf32>
    %194 = vector.extract_strided_slice %168 {offsets = [0, 0], sizes = [8, 32], strides = [1, 1]} : vector<32x32xf32> to vector<8x32xf32>
    %cst_86 = arith.constant dense<0.000000e+00> : vector<8x32xf32>
    %195 = tpu.matmul %193, %194, %cst_86 {dimension_numbers = #tpu.dot_dimension_numbers<[1], [0], [0], [1], [0, 0, 1, 1], [], []>} : vector<8x8xf32>, vector<8x32xf32>, vector<8x32xf32> -> vector<8x32xf32>
    %196 = vector.extract_strided_slice %174 {offsets = [0, 8], sizes = [8, 8], strides = [1, 1]} : vector<8x32xf32> to vector<8x8xf32>
    %197 = vector.extract_strided_slice %175 {offsets = [0, 8], sizes = [8, 8], strides = [1, 1]} : vector<8x32xf32> to vector<8x8xf32>
    %cst_87 = arith.constant dense<0.000000e+00> : vector<8x8xf32>
    %198 = tpu.matmul %196, %197, %cst_87 {dimension_numbers = #tpu.dot_dimension_numbers<[1], [1], [0], [0], [0, 0, 1, 0], [], []>} : vector<8x8xf32>, vector<8x8xf32>, vector<8x8xf32> -> vector<8x8xf32>
    %cst_88 = arith.constant 0.353553385 : f32
    %199 = vector.broadcast %cst_88 : f32 to vector<8x8xf32>
    %200 = arith.mulf %198, %199 : vector<8x8xf32>
    %cst_89 = arith.constant dense<0xFF800000> : vector<8xf32>
    %201 = vector.multi_reduction <maximumf>, %200, %cst_89 [1] : vector<8x8xf32> to vector<8xf32>
    %202 = vector.shape_cast %201 : vector<8xf32> to vector<8x1xf32>
    %203 = vector.broadcast %202 : vector<8x1xf32> to vector<8x8xf32>
    %204 = arith.subf %200, %203 : vector<8x8xf32>
    %205 = math.exp %204 : vector<8x8xf32>
    %cst_90 = arith.constant dense<0.000000e+00> : vector<8xf32>
    %206 = vector.multi_reduction <add>, %205, %cst_90 [1] : vector<8x8xf32> to vector<8xf32>
    %207 = vector.shape_cast %206 : vector<8xf32> to vector<8x1xf32>
    %208 = tpu.reciprocal %207 : vector<8x1xf32> -> vector<8x1xf32>
    %209 = vector.broadcast %208 : vector<8x1xf32> to vector<8x8xf32>
    %210 = arith.mulf %205, %209 : vector<8x8xf32>
    %211 = vector.extract_strided_slice %176 {offsets = [0, 8], sizes = [8, 8], strides = [1, 1]} : vector<8x32xf32> to vector<8x8xf32>
    %cst_91 = arith.constant dense<0.000000e+00> : vector<8x8xf32>
    %212 = tpu.matmul %210, %211, %cst_91 {dimension_numbers = #tpu.dot_dimension_numbers<[1], [0], [0], [1], [0, 0, 1, 1], [], []>} : vector<8x8xf32>, vector<8x8xf32>, vector<8x8xf32> -> vector<8x8xf32>
    %213 = vector.extract_strided_slice %168 {offsets = [8, 0], sizes = [8, 32], strides = [1, 1]} : vector<32x32xf32> to vector<8x32xf32>
    %cst_92 = arith.constant dense<0.000000e+00> : vector<8x32xf32>
    %214 = tpu.matmul %212, %213, %cst_92 {dimension_numbers = #tpu.dot_dimension_numbers<[1], [0], [0], [1], [0, 0, 1, 1], [], []>} : vector<8x8xf32>, vector<8x32xf32>, vector<8x32xf32> -> vector<8x32xf32>
    %215 = arith.addf %195, %214 : vector<8x32xf32>
    %216 = vector.extract_strided_slice %174 {offsets = [0, 16], sizes = [8, 8], strides = [1, 1]} : vector<8x32xf32> to vector<8x8xf32>
    %217 = vector.extract_strided_slice %175 {offsets = [0, 16], sizes = [8, 8], strides = [1, 1]} : vector<8x32xf32> to vector<8x8xf32>
    %cst_93 = arith.constant dense<0.000000e+00> : vector<8x8xf32>
    %218 = tpu.matmul %216, %217, %cst_93 {dimension_numbers = #tpu.dot_dimension_numbers<[1], [1], [0], [0], [0, 0, 1, 0], [], []>} : vector<8x8xf32>, vector<8x8xf32>, vector<8x8xf32> -> vector<8x8xf32>
    %cst_94 = arith.constant 0.353553385 : f32
    %219 = vector.broadcast %cst_94 : f32 to vector<8x8xf32>
    %220 = arith.mulf %218, %219 : vector<8x8xf32>
    %cst_95 = arith.constant dense<0xFF800000> : vector<8xf32>
    %221 = vector.multi_reduction <maximumf>, %220, %cst_95 [1] : vector<8x8xf32> to vector<8xf32>
    %222 = vector.shape_cast %221 : vector<8xf32> to vector<8x1xf32>
    %223 = vector.broadcast %222 : vector<8x1xf32> to vector<8x8xf32>
    %224 = arith.subf %220, %223 : vector<8x8xf32>
    %225 = math.exp %224 : vector<8x8xf32>
    %cst_96 = arith.constant dense<0.000000e+00> : vector<8xf32>
    %226 = vector.multi_reduction <add>, %225, %cst_96 [1] : vector<8x8xf32> to vector<8xf32>
    %227 = vector.shape_cast %226 : vector<8xf32> to vector<8x1xf32>
    %228 = tpu.reciprocal %227 : vector<8x1xf32> -> vector<8x1xf32>
    %229 = vector.broadcast %228 : vector<8x1xf32> to vector<8x8xf32>
    %230 = arith.mulf %225, %229 : vector<8x8xf32>
    %231 = vector.extract_strided_slice %176 {offsets = [0, 16], sizes = [8, 8], strides = [1, 1]} : vector<8x32xf32> to vector<8x8xf32>
    %cst_97 = arith.constant dense<0.000000e+00> : vector<8x8xf32>
    %232 = tpu.matmul %230, %231, %cst_97 {dimension_numbers = #tpu.dot_dimension_numbers<[1], [0], [0], [1], [0, 0, 1, 1], [], []>} : vector<8x8xf32>, vector<8x8xf32>, vector<8x8xf32> -> vector<8x8xf32>
    %233 = vector.extract_strided_slice %168 {offsets = [16, 0], sizes = [8, 32], strides = [1, 1]} : vector<32x32xf32> to vector<8x32xf32>
    %cst_98 = arith.constant dense<0.000000e+00> : vector<8x32xf32>
    %234 = tpu.matmul %232, %233, %cst_98 {dimension_numbers = #tpu.dot_dimension_numbers<[1], [0], [0], [1], [0, 0, 1, 1], [], []>} : vector<8x8xf32>, vector<8x32xf32>, vector<8x32xf32> -> vector<8x32xf32>
    %235 = arith.addf %215, %234 : vector<8x32xf32>
    %236 = vector.extract_strided_slice %174 {offsets = [0, 24], sizes = [8, 8], strides = [1, 1]} : vector<8x32xf32> to vector<8x8xf32>
    %237 = vector.extract_strided_slice %175 {offsets = [0, 24], sizes = [8, 8], strides = [1, 1]} : vector<8x32xf32> to vector<8x8xf32>
    %cst_99 = arith.constant dense<0.000000e+00> : vector<8x8xf32>
    %238 = tpu.matmul %236, %237, %cst_99 {dimension_numbers = #tpu.dot_dimension_numbers<[1], [1], [0], [0], [0, 0, 1, 0], [], []>} : vector<8x8xf32>, vector<8x8xf32>, vector<8x8xf32> -> vector<8x8xf32>
    %cst_100 = arith.constant 0.353553385 : f32
    %239 = vector.broadcast %cst_100 : f32 to vector<8x8xf32>
    %240 = arith.mulf %238, %239 : vector<8x8xf32>
    %cst_101 = arith.constant dense<0xFF800000> : vector<8xf32>
    %241 = vector.multi_reduction <maximumf>, %240, %cst_101 [1] : vector<8x8xf32> to vector<8xf32>
    %242 = vector.shape_cast %241 : vector<8xf32> to vector<8x1xf32>
    %243 = vector.broadcast %242 : vector<8x1xf32> to vector<8x8xf32>
    %244 = arith.subf %240, %243 : vector<8x8xf32>
    %245 = math.exp %244 : vector<8x8xf32>
    %cst_102 = arith.constant dense<0.000000e+00> : vector<8xf32>
    %246 = vector.multi_reduction <add>, %245, %cst_102 [1] : vector<8x8xf32> to vector<8xf32>
    %247 = vector.shape_cast %246 : vector<8xf32> to vector<8x1xf32>
    %248 = tpu.reciprocal %247 : vector<8x1xf32> -> vector<8x1xf32>
    %249 = vector.broadcast %248 : vector<8x1xf32> to vector<8x8xf32>
    %250 = arith.mulf %245, %249 : vector<8x8xf32>
    %251 = vector.extract_strided_slice %176 {offsets = [0, 24], sizes = [8, 8], strides = [1, 1]} : vector<8x32xf32> to vector<8x8xf32>
    %cst_103 = arith.constant dense<0.000000e+00> : vector<8x8xf32>
    %252 = tpu.matmul %250, %251, %cst_103 {dimension_numbers = #tpu.dot_dimension_numbers<[1], [0], [0], [1], [0, 0, 1, 1], [], []>} : vector<8x8xf32>, vector<8x8xf32>, vector<8x8xf32> -> vector<8x8xf32>
    %253 = vector.extract_strided_slice %168 {offsets = [24, 0], sizes = [8, 32], strides = [1, 1]} : vector<32x32xf32> to vector<8x32xf32>
    %cst_104 = arith.constant dense<0.000000e+00> : vector<8x32xf32>
    %254 = tpu.matmul %252, %253, %cst_104 {dimension_numbers = #tpu.dot_dimension_numbers<[1], [0], [0], [1], [0, 0, 1, 1], [], []>} : vector<8x8xf32>, vector<8x32xf32>, vector<8x32xf32> -> vector<8x32xf32>
    %255 = arith.addf %235, %254 : vector<8x32xf32>
    %256 = vector.broadcast %170 : vector<1x32xf32> to vector<8x32xf32>
    %257 = arith.addf %255, %256 : vector<8x32xf32>
    %258 = arith.addf %162, %257 : vector<8x32xf32>
    %c2 = arith.constant 2 : index
    %c0_105 = arith.constant 0 : index
    %259 = vector.load %arg9[%c2, %c0_105] : memref<12x32xf32, #tpu.memory_space<vmem>>, vector<1x32xf32>
    %c2_106 = arith.constant 2 : index
    %c0_107 = arith.constant 0 : index
    %260 = vector.load %arg10[%c2_106, %c0_107] : memref<12x32xf32, #tpu.memory_space<vmem>>, vector<1x32xf32>
    %cst_108 = arith.constant dense<0.000000e+00> : vector<8xf32>
    %261 = vector.multi_reduction <add>, %258, %cst_108 [1] : vector<8x32xf32> to vector<8xf32>
    %262 = vector.shape_cast %261 : vector<8xf32> to vector<8x1xf32>
    %cst_109 = arith.constant 3.200000e+01 : f32
    %263 = vector.broadcast %cst_109 : f32 to vector<8x1xf32>
    %264 = arith.divf %262, %263 : vector<8x1xf32>
    %265 = arith.mulf %258, %258 : vector<8x32xf32>
    %cst_110 = arith.constant dense<0.000000e+00> : vector<8xf32>
    %266 = vector.multi_reduction <add>, %265, %cst_110 [1] : vector<8x32xf32> to vector<8xf32>
    %267 = vector.shape_cast %266 : vector<8xf32> to vector<8x1xf32>
    %cst_111 = arith.constant 3.200000e+01 : f32
    %268 = vector.broadcast %cst_111 : f32 to vector<8x1xf32>
    %269 = arith.divf %267, %268 : vector<8x1xf32>
    %270 = arith.mulf %264, %264 : vector<8x1xf32>
    %271 = arith.subf %269, %270 : vector<8x1xf32>
    %272 = vector.broadcast %264 : vector<8x1xf32> to vector<8x32xf32>
    %273 = arith.subf %258, %272 : vector<8x32xf32>
    %cst_112 = arith.constant 9.99999974E-6 : f32
    %274 = vector.broadcast %cst_112 : f32 to vector<8x1xf32>
    %275 = arith.addf %271, %274 : vector<8x1xf32>
    %276 = math.rsqrt %275 : vector<8x1xf32>
    %277 = vector.broadcast %276 : vector<8x1xf32> to vector<8x32xf32>
    %278 = arith.mulf %273, %277 : vector<8x32xf32>
    %279 = vector.broadcast %259 : vector<1x32xf32> to vector<8x32xf32>
    %280 = arith.mulf %278, %279 : vector<8x32xf32>
    %281 = vector.broadcast %260 : vector<1x32xf32> to vector<8x32xf32>
    %282 = arith.addf %280, %281 : vector<8x32xf32>
    %c1_113 = arith.constant 1 : index
    %c0_114 = arith.constant 0 : index
    %c0_115 = arith.constant 0 : index
    %283 = vector.load %arg5[%c1_113, %c0_114, %c0_115] : memref<4x32x2048xbf16, #tpu.memory_space<vmem>>, vector<1x32x2048xbf16>
    %284 = vector.shape_cast %283 : vector<1x32x2048xbf16> to vector<32x2048xbf16>
    %c1_116 = arith.constant 1 : index
    %c0_117 = arith.constant 0 : index
    %c0_118 = arith.constant 0 : index
    %285 = vector.load %arg6[%c1_116, %c0_117, %c0_118] : memref<4x1x2048xf32, #tpu.memory_space<vmem>>, vector<1x1x2048xf32>
    %286 = vector.shape_cast %285 : vector<1x1x2048xf32> to vector<1x2048xf32>
    %c0_119 = arith.constant 0 : index
    %c32 = arith.constant 32 : index
    %287 = vector.load %arg7[%c0_119, %c32] : memref<2048x128xbf16, #tpu.memory_space<vmem>>, vector<2048x32xbf16>
    %c1_120 = arith.constant 1 : index
    %c0_121 = arith.constant 0 : index
    %c0_122 = arith.constant 0 : index
    %288 = vector.load %arg8[%c1_120, %c0_121, %c0_122] : memref<4x1x32xf32, #tpu.memory_space<vmem>>, vector<1x1x32xf32>
    %289 = vector.shape_cast %288 : vector<1x1x32xf32> to vector<1x32xf32>
    %290 = arith.truncf %282 : vector<8x32xf32> to vector<8x32xbf16>
    %cst_123 = arith.constant dense<0.000000e+00> : vector<8x2048xf32>
    %291 = tpu.matmul %290, %284, %cst_123 {dimension_numbers = #tpu.dot_dimension_numbers<[1], [0], [0], [1], [0, 0, 1, 1], [], []>} : vector<8x32xbf16>, vector<32x2048xbf16>, vector<8x2048xf32> -> vector<8x2048xf32>
    %292 = vector.broadcast %286 : vector<1x2048xf32> to vector<8x2048xf32>
    %293 = arith.addf %291, %292 : vector<8x2048xf32>
    %cst_124 = arith.constant 0.000000e+00 : f32
    %294 = vector.broadcast %cst_124 : f32 to vector<8x2048xf32>
    %295 = arith.maximumf %293, %294 : vector<8x2048xf32>
    %296 = arith.truncf %295 : vector<8x2048xf32> to vector<8x2048xbf16>
    %cst_125 = arith.constant dense<0.000000e+00> : vector<8x32xf32>
    %297 = tpu.matmul %296, %287, %cst_125 {dimension_numbers = #tpu.dot_dimension_numbers<[1], [0], [0], [1], [0, 0, 1, 1], [], []>} : vector<8x2048xbf16>, vector<2048x32xbf16>, vector<8x32xf32> -> vector<8x32xf32>
    %298 = vector.broadcast %289 : vector<1x32xf32> to vector<8x32xf32>
    %299 = arith.addf %297, %298 : vector<8x32xf32>
    %300 = arith.addf %282, %299 : vector<8x32xf32>
    %c3 = arith.constant 3 : index
    %c0_126 = arith.constant 0 : index
    %301 = vector.load %arg9[%c3, %c0_126] : memref<12x32xf32, #tpu.memory_space<vmem>>, vector<1x32xf32>
    %c3_127 = arith.constant 3 : index
    %c0_128 = arith.constant 0 : index
    %302 = vector.load %arg10[%c3_127, %c0_128] : memref<12x32xf32, #tpu.memory_space<vmem>>, vector<1x32xf32>
    %cst_129 = arith.constant dense<0.000000e+00> : vector<8xf32>
    %303 = vector.multi_reduction <add>, %300, %cst_129 [1] : vector<8x32xf32> to vector<8xf32>
    %304 = vector.shape_cast %303 : vector<8xf32> to vector<8x1xf32>
    %cst_130 = arith.constant 3.200000e+01 : f32
    %305 = vector.broadcast %cst_130 : f32 to vector<8x1xf32>
    %306 = arith.divf %304, %305 : vector<8x1xf32>
    %307 = arith.mulf %300, %300 : vector<8x32xf32>
    %cst_131 = arith.constant dense<0.000000e+00> : vector<8xf32>
    %308 = vector.multi_reduction <add>, %307, %cst_131 [1] : vector<8x32xf32> to vector<8xf32>
    %309 = vector.shape_cast %308 : vector<8xf32> to vector<8x1xf32>
    %cst_132 = arith.constant 3.200000e+01 : f32
    %310 = vector.broadcast %cst_132 : f32 to vector<8x1xf32>
    %311 = arith.divf %309, %310 : vector<8x1xf32>
    %312 = arith.mulf %306, %306 : vector<8x1xf32>
    %313 = arith.subf %311, %312 : vector<8x1xf32>
    %314 = vector.broadcast %306 : vector<8x1xf32> to vector<8x32xf32>
    %315 = arith.subf %300, %314 : vector<8x32xf32>
    %cst_133 = arith.constant 9.99999974E-6 : f32
    %316 = vector.broadcast %cst_133 : f32 to vector<8x1xf32>
    %317 = arith.addf %313, %316 : vector<8x1xf32>
    %318 = math.rsqrt %317 : vector<8x1xf32>
    %319 = vector.broadcast %318 : vector<8x1xf32> to vector<8x32xf32>
    %320 = arith.mulf %315, %319 : vector<8x32xf32>
    %321 = vector.broadcast %301 : vector<1x32xf32> to vector<8x32xf32>
    %322 = arith.mulf %320, %321 : vector<8x32xf32>
    %323 = vector.broadcast %302 : vector<1x32xf32> to vector<8x32xf32>
    %324 = arith.addf %322, %323 : vector<8x32xf32>
    %c4 = arith.constant 4 : index
    %c0_134 = arith.constant 0 : index
    %325 = vector.load %arg9[%c4, %c0_134] : memref<12x32xf32, #tpu.memory_space<vmem>>, vector<1x32xf32>
    %c4_135 = arith.constant 4 : index
    %c0_136 = arith.constant 0 : index
    %326 = vector.load %arg10[%c4_135, %c0_136] : memref<12x32xf32, #tpu.memory_space<vmem>>, vector<1x32xf32>
    %cst_137 = arith.constant dense<0.000000e+00> : vector<8xf32>
    %327 = vector.multi_reduction <add>, %324, %cst_137 [1] : vector<8x32xf32> to vector<8xf32>
    %328 = vector.shape_cast %327 : vector<8xf32> to vector<8x1xf32>
    %cst_138 = arith.constant 3.200000e+01 : f32
    %329 = vector.broadcast %cst_138 : f32 to vector<8x1xf32>
    %330 = arith.divf %328, %329 : vector<8x1xf32>
    %331 = arith.mulf %324, %324 : vector<8x32xf32>
    %cst_139 = arith.constant dense<0.000000e+00> : vector<8xf32>
    %332 = vector.multi_reduction <add>, %331, %cst_139 [1] : vector<8x32xf32> to vector<8xf32>
    %333 = vector.shape_cast %332 : vector<8xf32> to vector<8x1xf32>
    %cst_140 = arith.constant 3.200000e+01 : f32
    %334 = vector.broadcast %cst_140 : f32 to vector<8x1xf32>
    %335 = arith.divf %333, %334 : vector<8x1xf32>
    %336 = arith.mulf %330, %330 : vector<8x1xf32>
    %337 = arith.subf %335, %336 : vector<8x1xf32>
    %338 = vector.broadcast %330 : vector<8x1xf32> to vector<8x32xf32>
    %339 = arith.subf %324, %338 : vector<8x32xf32>
    %cst_141 = arith.constant 9.99999974E-6 : f32
    %340 = vector.broadcast %cst_141 : f32 to vector<8x1xf32>
    %341 = arith.addf %337, %340 : vector<8x1xf32>
    %342 = math.rsqrt %341 : vector<8x1xf32>
    %343 = vector.broadcast %342 : vector<8x1xf32> to vector<8x32xf32>
    %344 = arith.mulf %339, %343 : vector<8x32xf32>
    %345 = vector.broadcast %325 : vector<1x32xf32> to vector<8x32xf32>
    %346 = arith.mulf %344, %345 : vector<8x32xf32>
    %347 = vector.broadcast %326 : vector<1x32xf32> to vector<8x32xf32>
    %348 = arith.addf %346, %347 : vector<8x32xf32>
    %c2_142 = arith.constant 2 : index
    %c0_143 = arith.constant 0 : index
    %c0_144 = arith.constant 0 : index
    %349 = vector.load %arg1[%c2_142, %c0_143, %c0_144] : memref<6x32x96xf32, #tpu.memory_space<vmem>>, vector<1x32x96xf32>
    %350 = vector.shape_cast %349 : vector<1x32x96xf32> to vector<32x96xf32>
    %c2_145 = arith.constant 2 : index
    %c0_146 = arith.constant 0 : index
    %c0_147 = arith.constant 0 : index
    %351 = vector.load %arg2[%c2_145, %c0_146, %c0_147] : memref<6x1x96xf32, #tpu.memory_space<vmem>>, vector<1x1x96xf32>
    %352 = vector.shape_cast %351 : vector<1x1x96xf32> to vector<1x96xf32>
    %c2_148 = arith.constant 2 : index
    %c0_149 = arith.constant 0 : index
    %c0_150 = arith.constant 0 : index
    %353 = vector.load %arg3[%c2_148, %c0_149, %c0_150] : memref<6x32x32xf32, #tpu.memory_space<vmem>>, vector<1x32x32xf32>
    %354 = vector.shape_cast %353 : vector<1x32x32xf32> to vector<32x32xf32>
    %c2_151 = arith.constant 2 : index
    %c0_152 = arith.constant 0 : index
    %c0_153 = arith.constant 0 : index
    %355 = vector.load %arg4[%c2_151, %c0_152, %c0_153] : memref<6x1x32xf32, #tpu.memory_space<vmem>>, vector<1x1x32xf32>
    %356 = vector.shape_cast %355 : vector<1x1x32xf32> to vector<1x32xf32>
    %cst_154 = arith.constant dense<0.000000e+00> : vector<8x96xf32>
    %357 = tpu.matmul %0, %350, %cst_154 {dimension_numbers = #tpu.dot_dimension_numbers<[1], [0], [0], [1], [0, 0, 1, 1], [], []>} : vector<8x32xf32>, vector<32x96xf32>, vector<8x96xf32> -> vector<8x96xf32>
    %358 = vector.broadcast %352 : vector<1x96xf32> to vector<8x96xf32>
    %359 = arith.addf %357, %358 : vector<8x96xf32>
    %360 = vector.extract_strided_slice %359 {offsets = [0, 0], sizes = [8, 32], strides = [1, 1]} : vector<8x96xf32> to vector<8x32xf32>
    %361 = vector.extract_strided_slice %359 {offsets = [0, 32], sizes = [8, 32], strides = [1, 1]} : vector<8x96xf32> to vector<8x32xf32>
    %362 = vector.extract_strided_slice %359 {offsets = [0, 64], sizes = [8, 32], strides = [1, 1]} : vector<8x96xf32> to vector<8x32xf32>
    %363 = vector.extract_strided_slice %360 {offsets = [0, 0], sizes = [8, 8], strides = [1, 1]} : vector<8x32xf32> to vector<8x8xf32>
    %364 = vector.extract_strided_slice %361 {offsets = [0, 0], sizes = [8, 8], strides = [1, 1]} : vector<8x32xf32> to vector<8x8xf32>
    %cst_155 = arith.constant dense<0.000000e+00> : vector<8x8xf32>
    %365 = tpu.matmul %363, %364, %cst_155 {dimension_numbers = #tpu.dot_dimension_numbers<[1], [1], [0], [0], [0, 0, 1, 0], [], []>} : vector<8x8xf32>, vector<8x8xf32>, vector<8x8xf32> -> vector<8x8xf32>
    %cst_156 = arith.constant 0.353553385 : f32
    %366 = vector.broadcast %cst_156 : f32 to vector<8x8xf32>
    %367 = arith.mulf %365, %366 : vector<8x8xf32>
    %cst_157 = arith.constant dense<0xFF800000> : vector<8xf32>
    %368 = vector.multi_reduction <maximumf>, %367, %cst_157 [1] : vector<8x8xf32> to vector<8xf32>
    %369 = vector.shape_cast %368 : vector<8xf32> to vector<8x1xf32>
    %370 = vector.broadcast %369 : vector<8x1xf32> to vector<8x8xf32>
    %371 = arith.subf %367, %370 : vector<8x8xf32>
    %372 = math.exp %371 : vector<8x8xf32>
    %cst_158 = arith.constant dense<0.000000e+00> : vector<8xf32>
    %373 = vector.multi_reduction <add>, %372, %cst_158 [1] : vector<8x8xf32> to vector<8xf32>
    %374 = vector.shape_cast %373 : vector<8xf32> to vector<8x1xf32>
    %375 = tpu.reciprocal %374 : vector<8x1xf32> -> vector<8x1xf32>
    %376 = vector.broadcast %375 : vector<8x1xf32> to vector<8x8xf32>
    %377 = arith.mulf %372, %376 : vector<8x8xf32>
    %378 = vector.extract_strided_slice %362 {offsets = [0, 0], sizes = [8, 8], strides = [1, 1]} : vector<8x32xf32> to vector<8x8xf32>
    %cst_159 = arith.constant dense<0.000000e+00> : vector<8x8xf32>
    %379 = tpu.matmul %377, %378, %cst_159 {dimension_numbers = #tpu.dot_dimension_numbers<[1], [0], [0], [1], [0, 0, 1, 1], [], []>} : vector<8x8xf32>, vector<8x8xf32>, vector<8x8xf32> -> vector<8x8xf32>
    %380 = vector.extract_strided_slice %354 {offsets = [0, 0], sizes = [8, 32], strides = [1, 1]} : vector<32x32xf32> to vector<8x32xf32>
    %cst_160 = arith.constant dense<0.000000e+00> : vector<8x32xf32>
    %381 = tpu.matmul %379, %380, %cst_160 {dimension_numbers = #tpu.dot_dimension_numbers<[1], [0], [0], [1], [0, 0, 1, 1], [], []>} : vector<8x8xf32>, vector<8x32xf32>, vector<8x32xf32> -> vector<8x32xf32>
    %382 = vector.extract_strided_slice %360 {offsets = [0, 8], sizes = [8, 8], strides = [1, 1]} : vector<8x32xf32> to vector<8x8xf32>
    %383 = vector.extract_strided_slice %361 {offsets = [0, 8], sizes = [8, 8], strides = [1, 1]} : vector<8x32xf32> to vector<8x8xf32>
    %cst_161 = arith.constant dense<0.000000e+00> : vector<8x8xf32>
    %384 = tpu.matmul %382, %383, %cst_161 {dimension_numbers = #tpu.dot_dimension_numbers<[1], [1], [0], [0], [0, 0, 1, 0], [], []>} : vector<8x8xf32>, vector<8x8xf32>, vector<8x8xf32> -> vector<8x8xf32>
    %cst_162 = arith.constant 0.353553385 : f32
    %385 = vector.broadcast %cst_162 : f32 to vector<8x8xf32>
    %386 = arith.mulf %384, %385 : vector<8x8xf32>
    %cst_163 = arith.constant dense<0xFF800000> : vector<8xf32>
    %387 = vector.multi_reduction <maximumf>, %386, %cst_163 [1] : vector<8x8xf32> to vector<8xf32>
    %388 = vector.shape_cast %387 : vector<8xf32> to vector<8x1xf32>
    %389 = vector.broadcast %388 : vector<8x1xf32> to vector<8x8xf32>
    %390 = arith.subf %386, %389 : vector<8x8xf32>
    %391 = math.exp %390 : vector<8x8xf32>
    %cst_164 = arith.constant dense<0.000000e+00> : vector<8xf32>
    %392 = vector.multi_reduction <add>, %391, %cst_164 [1] : vector<8x8xf32> to vector<8xf32>
    %393 = vector.shape_cast %392 : vector<8xf32> to vector<8x1xf32>
    %394 = tpu.reciprocal %393 : vector<8x1xf32> -> vector<8x1xf32>
    %395 = vector.broadcast %394 : vector<8x1xf32> to vector<8x8xf32>
    %396 = arith.mulf %391, %395 : vector<8x8xf32>
    %397 = vector.extract_strided_slice %362 {offsets = [0, 8], sizes = [8, 8], strides = [1, 1]} : vector<8x32xf32> to vector<8x8xf32>
    %cst_165 = arith.constant dense<0.000000e+00> : vector<8x8xf32>
    %398 = tpu.matmul %396, %397, %cst_165 {dimension_numbers = #tpu.dot_dimension_numbers<[1], [0], [0], [1], [0, 0, 1, 1], [], []>} : vector<8x8xf32>, vector<8x8xf32>, vector<8x8xf32> -> vector<8x8xf32>
    %399 = vector.extract_strided_slice %354 {offsets = [8, 0], sizes = [8, 32], strides = [1, 1]} : vector<32x32xf32> to vector<8x32xf32>
    %cst_166 = arith.constant dense<0.000000e+00> : vector<8x32xf32>
    %400 = tpu.matmul %398, %399, %cst_166 {dimension_numbers = #tpu.dot_dimension_numbers<[1], [0], [0], [1], [0, 0, 1, 1], [], []>} : vector<8x8xf32>, vector<8x32xf32>, vector<8x32xf32> -> vector<8x32xf32>
    %401 = arith.addf %381, %400 : vector<8x32xf32>
    %402 = vector.extract_strided_slice %360 {offsets = [0, 16], sizes = [8, 8], strides = [1, 1]} : vector<8x32xf32> to vector<8x8xf32>
    %403 = vector.extract_strided_slice %361 {offsets = [0, 16], sizes = [8, 8], strides = [1, 1]} : vector<8x32xf32> to vector<8x8xf32>
    %cst_167 = arith.constant dense<0.000000e+00> : vector<8x8xf32>
    %404 = tpu.matmul %402, %403, %cst_167 {dimension_numbers = #tpu.dot_dimension_numbers<[1], [1], [0], [0], [0, 0, 1, 0], [], []>} : vector<8x8xf32>, vector<8x8xf32>, vector<8x8xf32> -> vector<8x8xf32>
    %cst_168 = arith.constant 0.353553385 : f32
    %405 = vector.broadcast %cst_168 : f32 to vector<8x8xf32>
    %406 = arith.mulf %404, %405 : vector<8x8xf32>
    %cst_169 = arith.constant dense<0xFF800000> : vector<8xf32>
    %407 = vector.multi_reduction <maximumf>, %406, %cst_169 [1] : vector<8x8xf32> to vector<8xf32>
    %408 = vector.shape_cast %407 : vector<8xf32> to vector<8x1xf32>
    %409 = vector.broadcast %408 : vector<8x1xf32> to vector<8x8xf32>
    %410 = arith.subf %406, %409 : vector<8x8xf32>
    %411 = math.exp %410 : vector<8x8xf32>
    %cst_170 = arith.constant dense<0.000000e+00> : vector<8xf32>
    %412 = vector.multi_reduction <add>, %411, %cst_170 [1] : vector<8x8xf32> to vector<8xf32>
    %413 = vector.shape_cast %412 : vector<8xf32> to vector<8x1xf32>
    %414 = tpu.reciprocal %413 : vector<8x1xf32> -> vector<8x1xf32>
    %415 = vector.broadcast %414 : vector<8x1xf32> to vector<8x8xf32>
    %416 = arith.mulf %411, %415 : vector<8x8xf32>
    %417 = vector.extract_strided_slice %362 {offsets = [0, 16], sizes = [8, 8], strides = [1, 1]} : vector<8x32xf32> to vector<8x8xf32>
    %cst_171 = arith.constant dense<0.000000e+00> : vector<8x8xf32>
    %418 = tpu.matmul %416, %417, %cst_171 {dimension_numbers = #tpu.dot_dimension_numbers<[1], [0], [0], [1], [0, 0, 1, 1], [], []>} : vector<8x8xf32>, vector<8x8xf32>, vector<8x8xf32> -> vector<8x8xf32>
    %419 = vector.extract_strided_slice %354 {offsets = [16, 0], sizes = [8, 32], strides = [1, 1]} : vector<32x32xf32> to vector<8x32xf32>
    %cst_172 = arith.constant dense<0.000000e+00> : vector<8x32xf32>
    %420 = tpu.matmul %418, %419, %cst_172 {dimension_numbers = #tpu.dot_dimension_numbers<[1], [0], [0], [1], [0, 0, 1, 1], [], []>} : vector<8x8xf32>, vector<8x32xf32>, vector<8x32xf32> -> vector<8x32xf32>
    %421 = arith.addf %401, %420 : vector<8x32xf32>
    %422 = vector.extract_strided_slice %360 {offsets = [0, 24], sizes = [8, 8], strides = [1, 1]} : vector<8x32xf32> to vector<8x8xf32>
    %423 = vector.extract_strided_slice %361 {offsets = [0, 24], sizes = [8, 8], strides = [1, 1]} : vector<8x32xf32> to vector<8x8xf32>
    %cst_173 = arith.constant dense<0.000000e+00> : vector<8x8xf32>
    %424 = tpu.matmul %422, %423, %cst_173 {dimension_numbers = #tpu.dot_dimension_numbers<[1], [1], [0], [0], [0, 0, 1, 0], [], []>} : vector<8x8xf32>, vector<8x8xf32>, vector<8x8xf32> -> vector<8x8xf32>
    %cst_174 = arith.constant 0.353553385 : f32
    %425 = vector.broadcast %cst_174 : f32 to vector<8x8xf32>
    %426 = arith.mulf %424, %425 : vector<8x8xf32>
    %cst_175 = arith.constant dense<0xFF800000> : vector<8xf32>
    %427 = vector.multi_reduction <maximumf>, %426, %cst_175 [1] : vector<8x8xf32> to vector<8xf32>
    %428 = vector.shape_cast %427 : vector<8xf32> to vector<8x1xf32>
    %429 = vector.broadcast %428 : vector<8x1xf32> to vector<8x8xf32>
    %430 = arith.subf %426, %429 : vector<8x8xf32>
    %431 = math.exp %430 : vector<8x8xf32>
    %cst_176 = arith.constant dense<0.000000e+00> : vector<8xf32>
    %432 = vector.multi_reduction <add>, %431, %cst_176 [1] : vector<8x8xf32> to vector<8xf32>
    %433 = vector.shape_cast %432 : vector<8xf32> to vector<8x1xf32>
    %434 = tpu.reciprocal %433 : vector<8x1xf32> -> vector<8x1xf32>
    %435 = vector.broadcast %434 : vector<8x1xf32> to vector<8x8xf32>
    %436 = arith.mulf %431, %435 : vector<8x8xf32>
    %437 = vector.extract_strided_slice %362 {offsets = [0, 24], sizes = [8, 8], strides = [1, 1]} : vector<8x32xf32> to vector<8x8xf32>
    %cst_177 = arith.constant dense<0.000000e+00> : vector<8x8xf32>
    %438 = tpu.matmul %436, %437, %cst_177 {dimension_numbers = #tpu.dot_dimension_numbers<[1], [0], [0], [1], [0, 0, 1, 1], [], []>} : vector<8x8xf32>, vector<8x8xf32>, vector<8x8xf32> -> vector<8x8xf32>
    %439 = vector.extract_strided_slice %354 {offsets = [24, 0], sizes = [8, 32], strides = [1, 1]} : vector<32x32xf32> to vector<8x32xf32>
    %cst_178 = arith.constant dense<0.000000e+00> : vector<8x32xf32>
    %440 = tpu.matmul %438, %439, %cst_178 {dimension_numbers = #tpu.dot_dimension_numbers<[1], [0], [0], [1], [0, 0, 1, 1], [], []>} : vector<8x8xf32>, vector<8x32xf32>, vector<8x32xf32> -> vector<8x32xf32>
    %441 = arith.addf %421, %440 : vector<8x32xf32>
    %442 = vector.broadcast %356 : vector<1x32xf32> to vector<8x32xf32>
    %443 = arith.addf %441, %442 : vector<8x32xf32>
    %444 = arith.addf %0, %443 : vector<8x32xf32>
    %c5 = arith.constant 5 : index
    %c0_179 = arith.constant 0 : index
    %445 = vector.load %arg9[%c5, %c0_179] : memref<12x32xf32, #tpu.memory_space<vmem>>, vector<1x32xf32>
    %c5_180 = arith.constant 5 : index
    %c0_181 = arith.constant 0 : index
    %446 = vector.load %arg10[%c5_180, %c0_181] : memref<12x32xf32, #tpu.memory_space<vmem>>, vector<1x32xf32>
    %cst_182 = arith.constant dense<0.000000e+00> : vector<8xf32>
    %447 = vector.multi_reduction <add>, %444, %cst_182 [1] : vector<8x32xf32> to vector<8xf32>
    %448 = vector.shape_cast %447 : vector<8xf32> to vector<8x1xf32>
    %cst_183 = arith.constant 3.200000e+01 : f32
    %449 = vector.broadcast %cst_183 : f32 to vector<8x1xf32>
    %450 = arith.divf %448, %449 : vector<8x1xf32>
    %451 = arith.mulf %444, %444 : vector<8x32xf32>
    %cst_184 = arith.constant dense<0.000000e+00> : vector<8xf32>
    %452 = vector.multi_reduction <add>, %451, %cst_184 [1] : vector<8x32xf32> to vector<8xf32>
    %453 = vector.shape_cast %452 : vector<8xf32> to vector<8x1xf32>
    %cst_185 = arith.constant 3.200000e+01 : f32
    %454 = vector.broadcast %cst_185 : f32 to vector<8x1xf32>
    %455 = arith.divf %453, %454 : vector<8x1xf32>
    %456 = arith.mulf %450, %450 : vector<8x1xf32>
    %457 = arith.subf %455, %456 : vector<8x1xf32>
    %458 = vector.broadcast %450 : vector<8x1xf32> to vector<8x32xf32>
    %459 = arith.subf %444, %458 : vector<8x32xf32>
    %cst_186 = arith.constant 9.99999974E-6 : f32
    %460 = vector.broadcast %cst_186 : f32 to vector<8x1xf32>
    %461 = arith.addf %457, %460 : vector<8x1xf32>
    %462 = math.rsqrt %461 : vector<8x1xf32>
    %463 = vector.broadcast %462 : vector<8x1xf32> to vector<8x32xf32>
    %464 = arith.mulf %459, %463 : vector<8x32xf32>
    %465 = vector.broadcast %445 : vector<1x32xf32> to vector<8x32xf32>
    %466 = arith.mulf %464, %465 : vector<8x32xf32>
    %467 = vector.broadcast %446 : vector<1x32xf32> to vector<8x32xf32>
    %468 = arith.addf %466, %467 : vector<8x32xf32>
    %c3_187 = arith.constant 3 : index
    %c0_188 = arith.constant 0 : index
    %c0_189 = arith.constant 0 : index
    %469 = vector.load %arg1[%c3_187, %c0_188, %c0_189] : memref<6x32x96xf32, #tpu.memory_space<vmem>>, vector<1x32x96xf32>
    %470 = vector.shape_cast %469 : vector<1x32x96xf32> to vector<32x96xf32>
    %c3_190 = arith.constant 3 : index
    %c0_191 = arith.constant 0 : index
    %c0_192 = arith.constant 0 : index
    %471 = vector.load %arg2[%c3_190, %c0_191, %c0_192] : memref<6x1x96xf32, #tpu.memory_space<vmem>>, vector<1x1x96xf32>
    %472 = vector.shape_cast %471 : vector<1x1x96xf32> to vector<1x96xf32>
    %c3_193 = arith.constant 3 : index
    %c0_194 = arith.constant 0 : index
    %c0_195 = arith.constant 0 : index
    %473 = vector.load %arg3[%c3_193, %c0_194, %c0_195] : memref<6x32x32xf32, #tpu.memory_space<vmem>>, vector<1x32x32xf32>
    %474 = vector.shape_cast %473 : vector<1x32x32xf32> to vector<32x32xf32>
    %c3_196 = arith.constant 3 : index
    %c0_197 = arith.constant 0 : index
    %c0_198 = arith.constant 0 : index
    %475 = vector.load %arg4[%c3_196, %c0_197, %c0_198] : memref<6x1x32xf32, #tpu.memory_space<vmem>>, vector<1x1x32xf32>
    %476 = vector.shape_cast %475 : vector<1x1x32xf32> to vector<1x32xf32>
    %477 = vector.extract_strided_slice %470 {offsets = [0, 0], sizes = [32, 32], strides = [1, 1]} : vector<32x96xf32> to vector<32x32xf32>
    %cst_199 = arith.constant dense<0.000000e+00> : vector<8x32xf32>
    %478 = tpu.matmul %468, %477, %cst_199 {dimension_numbers = #tpu.dot_dimension_numbers<[1], [0], [0], [1], [0, 0, 1, 1], [], []>} : vector<8x32xf32>, vector<32x32xf32>, vector<8x32xf32> -> vector<8x32xf32>
    %479 = vector.extract_strided_slice %472 {offsets = [0, 0], sizes = [1, 32], strides = [1, 1]} : vector<1x96xf32> to vector<1x32xf32>
    %480 = vector.broadcast %479 : vector<1x32xf32> to vector<8x32xf32>
    %481 = arith.addf %478, %480 : vector<8x32xf32>
    %482 = vector.extract_strided_slice %470 {offsets = [0, 32], sizes = [32, 64], strides = [1, 1]} : vector<32x96xf32> to vector<32x64xf32>
    %cst_200 = arith.constant dense<0.000000e+00> : vector<8x64xf32>
    %483 = tpu.matmul %348, %482, %cst_200 {dimension_numbers = #tpu.dot_dimension_numbers<[1], [0], [0], [1], [0, 0, 1, 1], [], []>} : vector<8x32xf32>, vector<32x64xf32>, vector<8x64xf32> -> vector<8x64xf32>
    %484 = vector.extract_strided_slice %472 {offsets = [0, 32], sizes = [1, 64], strides = [1, 1]} : vector<1x96xf32> to vector<1x64xf32>
    %485 = vector.broadcast %484 : vector<1x64xf32> to vector<8x64xf32>
    %486 = arith.addf %483, %485 : vector<8x64xf32>
    %487 = vector.extract_strided_slice %486 {offsets = [0, 0], sizes = [8, 32], strides = [1, 1]} : vector<8x64xf32> to vector<8x32xf32>
    %488 = vector.extract_strided_slice %486 {offsets = [0, 32], sizes = [8, 32], strides = [1, 1]} : vector<8x64xf32> to vector<8x32xf32>
    %489 = vector.extract_strided_slice %481 {offsets = [0, 0], sizes = [8, 8], strides = [1, 1]} : vector<8x32xf32> to vector<8x8xf32>
    %490 = vector.extract_strided_slice %487 {offsets = [0, 0], sizes = [8, 8], strides = [1, 1]} : vector<8x32xf32> to vector<8x8xf32>
    %cst_201 = arith.constant dense<0.000000e+00> : vector<8x8xf32>
    %491 = tpu.matmul %489, %490, %cst_201 {dimension_numbers = #tpu.dot_dimension_numbers<[1], [1], [0], [0], [0, 0, 1, 0], [], []>} : vector<8x8xf32>, vector<8x8xf32>, vector<8x8xf32> -> vector<8x8xf32>
    %cst_202 = arith.constant 0.353553385 : f32
    %492 = vector.broadcast %cst_202 : f32 to vector<8x8xf32>
    %493 = arith.mulf %491, %492 : vector<8x8xf32>
    %cst_203 = arith.constant dense<0xFF800000> : vector<8xf32>
    %494 = vector.multi_reduction <maximumf>, %493, %cst_203 [1] : vector<8x8xf32> to vector<8xf32>
    %495 = vector.shape_cast %494 : vector<8xf32> to vector<8x1xf32>
    %496 = vector.broadcast %495 : vector<8x1xf32> to vector<8x8xf32>
    %497 = arith.subf %493, %496 : vector<8x8xf32>
    %498 = math.exp %497 : vector<8x8xf32>
    %cst_204 = arith.constant dense<0.000000e+00> : vector<8xf32>
    %499 = vector.multi_reduction <add>, %498, %cst_204 [1] : vector<8x8xf32> to vector<8xf32>
    %500 = vector.shape_cast %499 : vector<8xf32> to vector<8x1xf32>
    %501 = tpu.reciprocal %500 : vector<8x1xf32> -> vector<8x1xf32>
    %502 = vector.broadcast %501 : vector<8x1xf32> to vector<8x8xf32>
    %503 = arith.mulf %498, %502 : vector<8x8xf32>
    %504 = vector.extract_strided_slice %488 {offsets = [0, 0], sizes = [8, 8], strides = [1, 1]} : vector<8x32xf32> to vector<8x8xf32>
    %cst_205 = arith.constant dense<0.000000e+00> : vector<8x8xf32>
    %505 = tpu.matmul %503, %504, %cst_205 {dimension_numbers = #tpu.dot_dimension_numbers<[1], [0], [0], [1], [0, 0, 1, 1], [], []>} : vector<8x8xf32>, vector<8x8xf32>, vector<8x8xf32> -> vector<8x8xf32>
    %506 = vector.extract_strided_slice %474 {offsets = [0, 0], sizes = [8, 32], strides = [1, 1]} : vector<32x32xf32> to vector<8x32xf32>
    %cst_206 = arith.constant dense<0.000000e+00> : vector<8x32xf32>
    %507 = tpu.matmul %505, %506, %cst_206 {dimension_numbers = #tpu.dot_dimension_numbers<[1], [0], [0], [1], [0, 0, 1, 1], [], []>} : vector<8x8xf32>, vector<8x32xf32>, vector<8x32xf32> -> vector<8x32xf32>
    %508 = vector.extract_strided_slice %481 {offsets = [0, 8], sizes = [8, 8], strides = [1, 1]} : vector<8x32xf32> to vector<8x8xf32>
    %509 = vector.extract_strided_slice %487 {offsets = [0, 8], sizes = [8, 8], strides = [1, 1]} : vector<8x32xf32> to vector<8x8xf32>
    %cst_207 = arith.constant dense<0.000000e+00> : vector<8x8xf32>
    %510 = tpu.matmul %508, %509, %cst_207 {dimension_numbers = #tpu.dot_dimension_numbers<[1], [1], [0], [0], [0, 0, 1, 0], [], []>} : vector<8x8xf32>, vector<8x8xf32>, vector<8x8xf32> -> vector<8x8xf32>
    %cst_208 = arith.constant 0.353553385 : f32
    %511 = vector.broadcast %cst_208 : f32 to vector<8x8xf32>
    %512 = arith.mulf %510, %511 : vector<8x8xf32>
    %cst_209 = arith.constant dense<0xFF800000> : vector<8xf32>
    %513 = vector.multi_reduction <maximumf>, %512, %cst_209 [1] : vector<8x8xf32> to vector<8xf32>
    %514 = vector.shape_cast %513 : vector<8xf32> to vector<8x1xf32>
    %515 = vector.broadcast %514 : vector<8x1xf32> to vector<8x8xf32>
    %516 = arith.subf %512, %515 : vector<8x8xf32>
    %517 = math.exp %516 : vector<8x8xf32>
    %cst_210 = arith.constant dense<0.000000e+00> : vector<8xf32>
    %518 = vector.multi_reduction <add>, %517, %cst_210 [1] : vector<8x8xf32> to vector<8xf32>
    %519 = vector.shape_cast %518 : vector<8xf32> to vector<8x1xf32>
    %520 = tpu.reciprocal %519 : vector<8x1xf32> -> vector<8x1xf32>
    %521 = vector.broadcast %520 : vector<8x1xf32> to vector<8x8xf32>
    %522 = arith.mulf %517, %521 : vector<8x8xf32>
    %523 = vector.extract_strided_slice %488 {offsets = [0, 8], sizes = [8, 8], strides = [1, 1]} : vector<8x32xf32> to vector<8x8xf32>
    %cst_211 = arith.constant dense<0.000000e+00> : vector<8x8xf32>
    %524 = tpu.matmul %522, %523, %cst_211 {dimension_numbers = #tpu.dot_dimension_numbers<[1], [0], [0], [1], [0, 0, 1, 1], [], []>} : vector<8x8xf32>, vector<8x8xf32>, vector<8x8xf32> -> vector<8x8xf32>
    %525 = vector.extract_strided_slice %474 {offsets = [8, 0], sizes = [8, 32], strides = [1, 1]} : vector<32x32xf32> to vector<8x32xf32>
    %cst_212 = arith.constant dense<0.000000e+00> : vector<8x32xf32>
    %526 = tpu.matmul %524, %525, %cst_212 {dimension_numbers = #tpu.dot_dimension_numbers<[1], [0], [0], [1], [0, 0, 1, 1], [], []>} : vector<8x8xf32>, vector<8x32xf32>, vector<8x32xf32> -> vector<8x32xf32>
    %527 = arith.addf %507, %526 : vector<8x32xf32>
    %528 = vector.extract_strided_slice %481 {offsets = [0, 16], sizes = [8, 8], strides = [1, 1]} : vector<8x32xf32> to vector<8x8xf32>
    %529 = vector.extract_strided_slice %487 {offsets = [0, 16], sizes = [8, 8], strides = [1, 1]} : vector<8x32xf32> to vector<8x8xf32>
    %cst_213 = arith.constant dense<0.000000e+00> : vector<8x8xf32>
    %530 = tpu.matmul %528, %529, %cst_213 {dimension_numbers = #tpu.dot_dimension_numbers<[1], [1], [0], [0], [0, 0, 1, 0], [], []>} : vector<8x8xf32>, vector<8x8xf32>, vector<8x8xf32> -> vector<8x8xf32>
    %cst_214 = arith.constant 0.353553385 : f32
    %531 = vector.broadcast %cst_214 : f32 to vector<8x8xf32>
    %532 = arith.mulf %530, %531 : vector<8x8xf32>
    %cst_215 = arith.constant dense<0xFF800000> : vector<8xf32>
    %533 = vector.multi_reduction <maximumf>, %532, %cst_215 [1] : vector<8x8xf32> to vector<8xf32>
    %534 = vector.shape_cast %533 : vector<8xf32> to vector<8x1xf32>
    %535 = vector.broadcast %534 : vector<8x1xf32> to vector<8x8xf32>
    %536 = arith.subf %532, %535 : vector<8x8xf32>
    %537 = math.exp %536 : vector<8x8xf32>
    %cst_216 = arith.constant dense<0.000000e+00> : vector<8xf32>
    %538 = vector.multi_reduction <add>, %537, %cst_216 [1] : vector<8x8xf32> to vector<8xf32>
    %539 = vector.shape_cast %538 : vector<8xf32> to vector<8x1xf32>
    %540 = tpu.reciprocal %539 : vector<8x1xf32> -> vector<8x1xf32>
    %541 = vector.broadcast %540 : vector<8x1xf32> to vector<8x8xf32>
    %542 = arith.mulf %537, %541 : vector<8x8xf32>
    %543 = vector.extract_strided_slice %488 {offsets = [0, 16], sizes = [8, 8], strides = [1, 1]} : vector<8x32xf32> to vector<8x8xf32>
    %cst_217 = arith.constant dense<0.000000e+00> : vector<8x8xf32>
    %544 = tpu.matmul %542, %543, %cst_217 {dimension_numbers = #tpu.dot_dimension_numbers<[1], [0], [0], [1], [0, 0, 1, 1], [], []>} : vector<8x8xf32>, vector<8x8xf32>, vector<8x8xf32> -> vector<8x8xf32>
    %545 = vector.extract_strided_slice %474 {offsets = [16, 0], sizes = [8, 32], strides = [1, 1]} : vector<32x32xf32> to vector<8x32xf32>
    %cst_218 = arith.constant dense<0.000000e+00> : vector<8x32xf32>
    %546 = tpu.matmul %544, %545, %cst_218 {dimension_numbers = #tpu.dot_dimension_numbers<[1], [0], [0], [1], [0, 0, 1, 1], [], []>} : vector<8x8xf32>, vector<8x32xf32>, vector<8x32xf32> -> vector<8x32xf32>
    %547 = arith.addf %527, %546 : vector<8x32xf32>
    %548 = vector.extract_strided_slice %481 {offsets = [0, 24], sizes = [8, 8], strides = [1, 1]} : vector<8x32xf32> to vector<8x8xf32>
    %549 = vector.extract_strided_slice %487 {offsets = [0, 24], sizes = [8, 8], strides = [1, 1]} : vector<8x32xf32> to vector<8x8xf32>
    %cst_219 = arith.constant dense<0.000000e+00> : vector<8x8xf32>
    %550 = tpu.matmul %548, %549, %cst_219 {dimension_numbers = #tpu.dot_dimension_numbers<[1], [1], [0], [0], [0, 0, 1, 0], [], []>} : vector<8x8xf32>, vector<8x8xf32>, vector<8x8xf32> -> vector<8x8xf32>
    %cst_220 = arith.constant 0.353553385 : f32
    %551 = vector.broadcast %cst_220 : f32 to vector<8x8xf32>
    %552 = arith.mulf %550, %551 : vector<8x8xf32>
    %cst_221 = arith.constant dense<0xFF800000> : vector<8xf32>
    %553 = vector.multi_reduction <maximumf>, %552, %cst_221 [1] : vector<8x8xf32> to vector<8xf32>
    %554 = vector.shape_cast %553 : vector<8xf32> to vector<8x1xf32>
    %555 = vector.broadcast %554 : vector<8x1xf32> to vector<8x8xf32>
    %556 = arith.subf %552, %555 : vector<8x8xf32>
    %557 = math.exp %556 : vector<8x8xf32>
    %cst_222 = arith.constant dense<0.000000e+00> : vector<8xf32>
    %558 = vector.multi_reduction <add>, %557, %cst_222 [1] : vector<8x8xf32> to vector<8xf32>
    %559 = vector.shape_cast %558 : vector<8xf32> to vector<8x1xf32>
    %560 = tpu.reciprocal %559 : vector<8x1xf32> -> vector<8x1xf32>
    %561 = vector.broadcast %560 : vector<8x1xf32> to vector<8x8xf32>
    %562 = arith.mulf %557, %561 : vector<8x8xf32>
    %563 = vector.extract_strided_slice %488 {offsets = [0, 24], sizes = [8, 8], strides = [1, 1]} : vector<8x32xf32> to vector<8x8xf32>
    %cst_223 = arith.constant dense<0.000000e+00> : vector<8x8xf32>
    %564 = tpu.matmul %562, %563, %cst_223 {dimension_numbers = #tpu.dot_dimension_numbers<[1], [0], [0], [1], [0, 0, 1, 1], [], []>} : vector<8x8xf32>, vector<8x8xf32>, vector<8x8xf32> -> vector<8x8xf32>
    %565 = vector.extract_strided_slice %474 {offsets = [24, 0], sizes = [8, 32], strides = [1, 1]} : vector<32x32xf32> to vector<8x32xf32>
    %cst_224 = arith.constant dense<0.000000e+00> : vector<8x32xf32>
    %566 = tpu.matmul %564, %565, %cst_224 {dimension_numbers = #tpu.dot_dimension_numbers<[1], [0], [0], [1], [0, 0, 1, 1], [], []>} : vector<8x8xf32>, vector<8x32xf32>, vector<8x32xf32> -> vector<8x32xf32>
    %567 = arith.addf %547, %566 : vector<8x32xf32>
    %568 = vector.broadcast %476 : vector<1x32xf32> to vector<8x32xf32>
    %569 = arith.addf %567, %568 : vector<8x32xf32>
    %570 = arith.addf %468, %569 : vector<8x32xf32>
    %c6 = arith.constant 6 : index
    %c0_225 = arith.constant 0 : index
    %571 = vector.load %arg9[%c6, %c0_225] : memref<12x32xf32, #tpu.memory_space<vmem>>, vector<1x32xf32>
    %c6_226 = arith.constant 6 : index
    %c0_227 = arith.constant 0 : index
    %572 = vector.load %arg10[%c6_226, %c0_227] : memref<12x32xf32, #tpu.memory_space<vmem>>, vector<1x32xf32>
    %cst_228 = arith.constant dense<0.000000e+00> : vector<8xf32>
    %573 = vector.multi_reduction <add>, %570, %cst_228 [1] : vector<8x32xf32> to vector<8xf32>
    %574 = vector.shape_cast %573 : vector<8xf32> to vector<8x1xf32>
    %cst_229 = arith.constant 3.200000e+01 : f32
    %575 = vector.broadcast %cst_229 : f32 to vector<8x1xf32>
    %576 = arith.divf %574, %575 : vector<8x1xf32>
    %577 = arith.mulf %570, %570 : vector<8x32xf32>
    %cst_230 = arith.constant dense<0.000000e+00> : vector<8xf32>
    %578 = vector.multi_reduction <add>, %577, %cst_230 [1] : vector<8x32xf32> to vector<8xf32>
    %579 = vector.shape_cast %578 : vector<8xf32> to vector<8x1xf32>
    %cst_231 = arith.constant 3.200000e+01 : f32
    %580 = vector.broadcast %cst_231 : f32 to vector<8x1xf32>
    %581 = arith.divf %579, %580 : vector<8x1xf32>
    %582 = arith.mulf %576, %576 : vector<8x1xf32>
    %583 = arith.subf %581, %582 : vector<8x1xf32>
    %584 = vector.broadcast %576 : vector<8x1xf32> to vector<8x32xf32>
    %585 = arith.subf %570, %584 : vector<8x32xf32>
    %cst_232 = arith.constant 9.99999974E-6 : f32
    %586 = vector.broadcast %cst_232 : f32 to vector<8x1xf32>
    %587 = arith.addf %583, %586 : vector<8x1xf32>
    %588 = math.rsqrt %587 : vector<8x1xf32>
    %589 = vector.broadcast %588 : vector<8x1xf32> to vector<8x32xf32>
    %590 = arith.mulf %585, %589 : vector<8x32xf32>
    %591 = vector.broadcast %571 : vector<1x32xf32> to vector<8x32xf32>
    %592 = arith.mulf %590, %591 : vector<8x32xf32>
    %593 = vector.broadcast %572 : vector<1x32xf32> to vector<8x32xf32>
    %594 = arith.addf %592, %593 : vector<8x32xf32>
    %c2_233 = arith.constant 2 : index
    %c0_234 = arith.constant 0 : index
    %c0_235 = arith.constant 0 : index
    %595 = vector.load %arg5[%c2_233, %c0_234, %c0_235] : memref<4x32x2048xbf16, #tpu.memory_space<vmem>>, vector<1x32x2048xbf16>
    %596 = vector.shape_cast %595 : vector<1x32x2048xbf16> to vector<32x2048xbf16>
    %c2_236 = arith.constant 2 : index
    %c0_237 = arith.constant 0 : index
    %c0_238 = arith.constant 0 : index
    %597 = vector.load %arg6[%c2_236, %c0_237, %c0_238] : memref<4x1x2048xf32, #tpu.memory_space<vmem>>, vector<1x1x2048xf32>
    %598 = vector.shape_cast %597 : vector<1x1x2048xf32> to vector<1x2048xf32>
    %c0_239 = arith.constant 0 : index
    %c64 = arith.constant 64 : index
    %599 = vector.load %arg7[%c0_239, %c64] : memref<2048x128xbf16, #tpu.memory_space<vmem>>, vector<2048x32xbf16>
    %c2_240 = arith.constant 2 : index
    %c0_241 = arith.constant 0 : index
    %c0_242 = arith.constant 0 : index
    %600 = vector.load %arg8[%c2_240, %c0_241, %c0_242] : memref<4x1x32xf32, #tpu.memory_space<vmem>>, vector<1x1x32xf32>
    %601 = vector.shape_cast %600 : vector<1x1x32xf32> to vector<1x32xf32>
    %602 = arith.truncf %594 : vector<8x32xf32> to vector<8x32xbf16>
    %cst_243 = arith.constant dense<0.000000e+00> : vector<8x2048xf32>
    %603 = tpu.matmul %602, %596, %cst_243 {dimension_numbers = #tpu.dot_dimension_numbers<[1], [0], [0], [1], [0, 0, 1, 1], [], []>} : vector<8x32xbf16>, vector<32x2048xbf16>, vector<8x2048xf32> -> vector<8x2048xf32>
    %604 = vector.broadcast %598 : vector<1x2048xf32> to vector<8x2048xf32>
    %605 = arith.addf %603, %604 : vector<8x2048xf32>
    %cst_244 = arith.constant 0.000000e+00 : f32
    %606 = vector.broadcast %cst_244 : f32 to vector<8x2048xf32>
    %607 = arith.maximumf %605, %606 : vector<8x2048xf32>
    %608 = arith.truncf %607 : vector<8x2048xf32> to vector<8x2048xbf16>
    %cst_245 = arith.constant dense<0.000000e+00> : vector<8x32xf32>
    %609 = tpu.matmul %608, %599, %cst_245 {dimension_numbers = #tpu.dot_dimension_numbers<[1], [0], [0], [1], [0, 0, 1, 1], [], []>} : vector<8x2048xbf16>, vector<2048x32xbf16>, vector<8x32xf32> -> vector<8x32xf32>
    %610 = vector.broadcast %601 : vector<1x32xf32> to vector<8x32xf32>
    %611 = arith.addf %609, %610 : vector<8x32xf32>
    %612 = arith.addf %594, %611 : vector<8x32xf32>
    %c7 = arith.constant 7 : index
    %c0_246 = arith.constant 0 : index
    %613 = vector.load %arg9[%c7, %c0_246] : memref<12x32xf32, #tpu.memory_space<vmem>>, vector<1x32xf32>
    %c7_247 = arith.constant 7 : index
    %c0_248 = arith.constant 0 : index
    %614 = vector.load %arg10[%c7_247, %c0_248] : memref<12x32xf32, #tpu.memory_space<vmem>>, vector<1x32xf32>
    %cst_249 = arith.constant dense<0.000000e+00> : vector<8xf32>
    %615 = vector.multi_reduction <add>, %612, %cst_249 [1] : vector<8x32xf32> to vector<8xf32>
    %616 = vector.shape_cast %615 : vector<8xf32> to vector<8x1xf32>
    %cst_250 = arith.constant 3.200000e+01 : f32
    %617 = vector.broadcast %cst_250 : f32 to vector<8x1xf32>
    %618 = arith.divf %616, %617 : vector<8x1xf32>
    %619 = arith.mulf %612, %612 : vector<8x32xf32>
    %cst_251 = arith.constant dense<0.000000e+00> : vector<8xf32>
    %620 = vector.multi_reduction <add>, %619, %cst_251 [1] : vector<8x32xf32> to vector<8xf32>
    %621 = vector.shape_cast %620 : vector<8xf32> to vector<8x1xf32>
    %cst_252 = arith.constant 3.200000e+01 : f32
    %622 = vector.broadcast %cst_252 : f32 to vector<8x1xf32>
    %623 = arith.divf %621, %622 : vector<8x1xf32>
    %624 = arith.mulf %618, %618 : vector<8x1xf32>
    %625 = arith.subf %623, %624 : vector<8x1xf32>
    %626 = vector.broadcast %618 : vector<8x1xf32> to vector<8x32xf32>
    %627 = arith.subf %612, %626 : vector<8x32xf32>
    %cst_253 = arith.constant 9.99999974E-6 : f32
    %628 = vector.broadcast %cst_253 : f32 to vector<8x1xf32>
    %629 = arith.addf %625, %628 : vector<8x1xf32>
    %630 = math.rsqrt %629 : vector<8x1xf32>
    %631 = vector.broadcast %630 : vector<8x1xf32> to vector<8x32xf32>
    %632 = arith.mulf %627, %631 : vector<8x32xf32>
    %633 = vector.broadcast %613 : vector<1x32xf32> to vector<8x32xf32>
    %634 = arith.mulf %632, %633 : vector<8x32xf32>
    %635 = vector.broadcast %614 : vector<1x32xf32> to vector<8x32xf32>
    %636 = arith.addf %634, %635 : vector<8x32xf32>
    %c4_254 = arith.constant 4 : index
    %c0_255 = arith.constant 0 : index
    %c0_256 = arith.constant 0 : index
    %637 = vector.load %arg1[%c4_254, %c0_255, %c0_256] : memref<6x32x96xf32, #tpu.memory_space<vmem>>, vector<1x32x96xf32>
    %638 = vector.shape_cast %637 : vector<1x32x96xf32> to vector<32x96xf32>
    %c4_257 = arith.constant 4 : index
    %c0_258 = arith.constant 0 : index
    %c0_259 = arith.constant 0 : index
    %639 = vector.load %arg2[%c4_257, %c0_258, %c0_259] : memref<6x1x96xf32, #tpu.memory_space<vmem>>, vector<1x1x96xf32>
    %640 = vector.shape_cast %639 : vector<1x1x96xf32> to vector<1x96xf32>
    %c4_260 = arith.constant 4 : index
    %c0_261 = arith.constant 0 : index
    %c0_262 = arith.constant 0 : index
    %641 = vector.load %arg3[%c4_260, %c0_261, %c0_262] : memref<6x32x32xf32, #tpu.memory_space<vmem>>, vector<1x32x32xf32>
    %642 = vector.shape_cast %641 : vector<1x32x32xf32> to vector<32x32xf32>
    %c4_263 = arith.constant 4 : index
    %c0_264 = arith.constant 0 : index
    %c0_265 = arith.constant 0 : index
    %643 = vector.load %arg4[%c4_263, %c0_264, %c0_265] : memref<6x1x32xf32, #tpu.memory_space<vmem>>, vector<1x1x32xf32>
    %644 = vector.shape_cast %643 : vector<1x1x32xf32> to vector<1x32xf32>
    %cst_266 = arith.constant dense<0.000000e+00> : vector<8x96xf32>
    %645 = tpu.matmul %636, %638, %cst_266 {dimension_numbers = #tpu.dot_dimension_numbers<[1], [0], [0], [1], [0, 0, 1, 1], [], []>} : vector<8x32xf32>, vector<32x96xf32>, vector<8x96xf32> -> vector<8x96xf32>
    %646 = vector.broadcast %640 : vector<1x96xf32> to vector<8x96xf32>
    %647 = arith.addf %645, %646 : vector<8x96xf32>
    %648 = vector.extract_strided_slice %647 {offsets = [0, 0], sizes = [8, 32], strides = [1, 1]} : vector<8x96xf32> to vector<8x32xf32>
    %649 = vector.extract_strided_slice %647 {offsets = [0, 32], sizes = [8, 32], strides = [1, 1]} : vector<8x96xf32> to vector<8x32xf32>
    %650 = vector.extract_strided_slice %647 {offsets = [0, 64], sizes = [8, 32], strides = [1, 1]} : vector<8x96xf32> to vector<8x32xf32>
    %651 = vector.extract_strided_slice %648 {offsets = [0, 0], sizes = [8, 8], strides = [1, 1]} : vector<8x32xf32> to vector<8x8xf32>
    %652 = vector.extract_strided_slice %649 {offsets = [0, 0], sizes = [8, 8], strides = [1, 1]} : vector<8x32xf32> to vector<8x8xf32>
    %cst_267 = arith.constant dense<0.000000e+00> : vector<8x8xf32>
    %653 = tpu.matmul %651, %652, %cst_267 {dimension_numbers = #tpu.dot_dimension_numbers<[1], [1], [0], [0], [0, 0, 1, 0], [], []>} : vector<8x8xf32>, vector<8x8xf32>, vector<8x8xf32> -> vector<8x8xf32>
    %cst_268 = arith.constant 0.353553385 : f32
    %654 = vector.broadcast %cst_268 : f32 to vector<8x8xf32>
    %655 = arith.mulf %653, %654 : vector<8x8xf32>
    %cst_269 = arith.constant dense<0xFF800000> : vector<8xf32>
    %656 = vector.multi_reduction <maximumf>, %655, %cst_269 [1] : vector<8x8xf32> to vector<8xf32>
    %657 = vector.shape_cast %656 : vector<8xf32> to vector<8x1xf32>
    %658 = vector.broadcast %657 : vector<8x1xf32> to vector<8x8xf32>
    %659 = arith.subf %655, %658 : vector<8x8xf32>
    %660 = math.exp %659 : vector<8x8xf32>
    %cst_270 = arith.constant dense<0.000000e+00> : vector<8xf32>
    %661 = vector.multi_reduction <add>, %660, %cst_270 [1] : vector<8x8xf32> to vector<8xf32>
    %662 = vector.shape_cast %661 : vector<8xf32> to vector<8x1xf32>
    %663 = tpu.reciprocal %662 : vector<8x1xf32> -> vector<8x1xf32>
    %664 = vector.broadcast %663 : vector<8x1xf32> to vector<8x8xf32>
    %665 = arith.mulf %660, %664 : vector<8x8xf32>
    %666 = vector.extract_strided_slice %650 {offsets = [0, 0], sizes = [8, 8], strides = [1, 1]} : vector<8x32xf32> to vector<8x8xf32>
    %cst_271 = arith.constant dense<0.000000e+00> : vector<8x8xf32>
    %667 = tpu.matmul %665, %666, %cst_271 {dimension_numbers = #tpu.dot_dimension_numbers<[1], [0], [0], [1], [0, 0, 1, 1], [], []>} : vector<8x8xf32>, vector<8x8xf32>, vector<8x8xf32> -> vector<8x8xf32>
    %668 = vector.extract_strided_slice %642 {offsets = [0, 0], sizes = [8, 32], strides = [1, 1]} : vector<32x32xf32> to vector<8x32xf32>
    %cst_272 = arith.constant dense<0.000000e+00> : vector<8x32xf32>
    %669 = tpu.matmul %667, %668, %cst_272 {dimension_numbers = #tpu.dot_dimension_numbers<[1], [0], [0], [1], [0, 0, 1, 1], [], []>} : vector<8x8xf32>, vector<8x32xf32>, vector<8x32xf32> -> vector<8x32xf32>
    %670 = vector.extract_strided_slice %648 {offsets = [0, 8], sizes = [8, 8], strides = [1, 1]} : vector<8x32xf32> to vector<8x8xf32>
    %671 = vector.extract_strided_slice %649 {offsets = [0, 8], sizes = [8, 8], strides = [1, 1]} : vector<8x32xf32> to vector<8x8xf32>
    %cst_273 = arith.constant dense<0.000000e+00> : vector<8x8xf32>
    %672 = tpu.matmul %670, %671, %cst_273 {dimension_numbers = #tpu.dot_dimension_numbers<[1], [1], [0], [0], [0, 0, 1, 0], [], []>} : vector<8x8xf32>, vector<8x8xf32>, vector<8x8xf32> -> vector<8x8xf32>
    %cst_274 = arith.constant 0.353553385 : f32
    %673 = vector.broadcast %cst_274 : f32 to vector<8x8xf32>
    %674 = arith.mulf %672, %673 : vector<8x8xf32>
    %cst_275 = arith.constant dense<0xFF800000> : vector<8xf32>
    %675 = vector.multi_reduction <maximumf>, %674, %cst_275 [1] : vector<8x8xf32> to vector<8xf32>
    %676 = vector.shape_cast %675 : vector<8xf32> to vector<8x1xf32>
    %677 = vector.broadcast %676 : vector<8x1xf32> to vector<8x8xf32>
    %678 = arith.subf %674, %677 : vector<8x8xf32>
    %679 = math.exp %678 : vector<8x8xf32>
    %cst_276 = arith.constant dense<0.000000e+00> : vector<8xf32>
    %680 = vector.multi_reduction <add>, %679, %cst_276 [1] : vector<8x8xf32> to vector<8xf32>
    %681 = vector.shape_cast %680 : vector<8xf32> to vector<8x1xf32>
    %682 = tpu.reciprocal %681 : vector<8x1xf32> -> vector<8x1xf32>
    %683 = vector.broadcast %682 : vector<8x1xf32> to vector<8x8xf32>
    %684 = arith.mulf %679, %683 : vector<8x8xf32>
    %685 = vector.extract_strided_slice %650 {offsets = [0, 8], sizes = [8, 8], strides = [1, 1]} : vector<8x32xf32> to vector<8x8xf32>
    %cst_277 = arith.constant dense<0.000000e+00> : vector<8x8xf32>
    %686 = tpu.matmul %684, %685, %cst_277 {dimension_numbers = #tpu.dot_dimension_numbers<[1], [0], [0], [1], [0, 0, 1, 1], [], []>} : vector<8x8xf32>, vector<8x8xf32>, vector<8x8xf32> -> vector<8x8xf32>
    %687 = vector.extract_strided_slice %642 {offsets = [8, 0], sizes = [8, 32], strides = [1, 1]} : vector<32x32xf32> to vector<8x32xf32>
    %cst_278 = arith.constant dense<0.000000e+00> : vector<8x32xf32>
    %688 = tpu.matmul %686, %687, %cst_278 {dimension_numbers = #tpu.dot_dimension_numbers<[1], [0], [0], [1], [0, 0, 1, 1], [], []>} : vector<8x8xf32>, vector<8x32xf32>, vector<8x32xf32> -> vector<8x32xf32>
    %689 = arith.addf %669, %688 : vector<8x32xf32>
    %690 = vector.extract_strided_slice %648 {offsets = [0, 16], sizes = [8, 8], strides = [1, 1]} : vector<8x32xf32> to vector<8x8xf32>
    %691 = vector.extract_strided_slice %649 {offsets = [0, 16], sizes = [8, 8], strides = [1, 1]} : vector<8x32xf32> to vector<8x8xf32>
    %cst_279 = arith.constant dense<0.000000e+00> : vector<8x8xf32>
    %692 = tpu.matmul %690, %691, %cst_279 {dimension_numbers = #tpu.dot_dimension_numbers<[1], [1], [0], [0], [0, 0, 1, 0], [], []>} : vector<8x8xf32>, vector<8x8xf32>, vector<8x8xf32> -> vector<8x8xf32>
    %cst_280 = arith.constant 0.353553385 : f32
    %693 = vector.broadcast %cst_280 : f32 to vector<8x8xf32>
    %694 = arith.mulf %692, %693 : vector<8x8xf32>
    %cst_281 = arith.constant dense<0xFF800000> : vector<8xf32>
    %695 = vector.multi_reduction <maximumf>, %694, %cst_281 [1] : vector<8x8xf32> to vector<8xf32>
    %696 = vector.shape_cast %695 : vector<8xf32> to vector<8x1xf32>
    %697 = vector.broadcast %696 : vector<8x1xf32> to vector<8x8xf32>
    %698 = arith.subf %694, %697 : vector<8x8xf32>
    %699 = math.exp %698 : vector<8x8xf32>
    %cst_282 = arith.constant dense<0.000000e+00> : vector<8xf32>
    %700 = vector.multi_reduction <add>, %699, %cst_282 [1] : vector<8x8xf32> to vector<8xf32>
    %701 = vector.shape_cast %700 : vector<8xf32> to vector<8x1xf32>
    %702 = tpu.reciprocal %701 : vector<8x1xf32> -> vector<8x1xf32>
    %703 = vector.broadcast %702 : vector<8x1xf32> to vector<8x8xf32>
    %704 = arith.mulf %699, %703 : vector<8x8xf32>
    %705 = vector.extract_strided_slice %650 {offsets = [0, 16], sizes = [8, 8], strides = [1, 1]} : vector<8x32xf32> to vector<8x8xf32>
    %cst_283 = arith.constant dense<0.000000e+00> : vector<8x8xf32>
    %706 = tpu.matmul %704, %705, %cst_283 {dimension_numbers = #tpu.dot_dimension_numbers<[1], [0], [0], [1], [0, 0, 1, 1], [], []>} : vector<8x8xf32>, vector<8x8xf32>, vector<8x8xf32> -> vector<8x8xf32>
    %707 = vector.extract_strided_slice %642 {offsets = [16, 0], sizes = [8, 32], strides = [1, 1]} : vector<32x32xf32> to vector<8x32xf32>
    %cst_284 = arith.constant dense<0.000000e+00> : vector<8x32xf32>
    %708 = tpu.matmul %706, %707, %cst_284 {dimension_numbers = #tpu.dot_dimension_numbers<[1], [0], [0], [1], [0, 0, 1, 1], [], []>} : vector<8x8xf32>, vector<8x32xf32>, vector<8x32xf32> -> vector<8x32xf32>
    %709 = arith.addf %689, %708 : vector<8x32xf32>
    %710 = vector.extract_strided_slice %648 {offsets = [0, 24], sizes = [8, 8], strides = [1, 1]} : vector<8x32xf32> to vector<8x8xf32>
    %711 = vector.extract_strided_slice %649 {offsets = [0, 24], sizes = [8, 8], strides = [1, 1]} : vector<8x32xf32> to vector<8x8xf32>
    %cst_285 = arith.constant dense<0.000000e+00> : vector<8x8xf32>
    %712 = tpu.matmul %710, %711, %cst_285 {dimension_numbers = #tpu.dot_dimension_numbers<[1], [1], [0], [0], [0, 0, 1, 0], [], []>} : vector<8x8xf32>, vector<8x8xf32>, vector<8x8xf32> -> vector<8x8xf32>
    %cst_286 = arith.constant 0.353553385 : f32
    %713 = vector.broadcast %cst_286 : f32 to vector<8x8xf32>
    %714 = arith.mulf %712, %713 : vector<8x8xf32>
    %cst_287 = arith.constant dense<0xFF800000> : vector<8xf32>
    %715 = vector.multi_reduction <maximumf>, %714, %cst_287 [1] : vector<8x8xf32> to vector<8xf32>
    %716 = vector.shape_cast %715 : vector<8xf32> to vector<8x1xf32>
    %717 = vector.broadcast %716 : vector<8x1xf32> to vector<8x8xf32>
    %718 = arith.subf %714, %717 : vector<8x8xf32>
    %719 = math.exp %718 : vector<8x8xf32>
    %cst_288 = arith.constant dense<0.000000e+00> : vector<8xf32>
    %720 = vector.multi_reduction <add>, %719, %cst_288 [1] : vector<8x8xf32> to vector<8xf32>
    %721 = vector.shape_cast %720 : vector<8xf32> to vector<8x1xf32>
    %722 = tpu.reciprocal %721 : vector<8x1xf32> -> vector<8x1xf32>
    %723 = vector.broadcast %722 : vector<8x1xf32> to vector<8x8xf32>
    %724 = arith.mulf %719, %723 : vector<8x8xf32>
    %725 = vector.extract_strided_slice %650 {offsets = [0, 24], sizes = [8, 8], strides = [1, 1]} : vector<8x32xf32> to vector<8x8xf32>
    %cst_289 = arith.constant dense<0.000000e+00> : vector<8x8xf32>
    %726 = tpu.matmul %724, %725, %cst_289 {dimension_numbers = #tpu.dot_dimension_numbers<[1], [0], [0], [1], [0, 0, 1, 1], [], []>} : vector<8x8xf32>, vector<8x8xf32>, vector<8x8xf32> -> vector<8x8xf32>
    %727 = vector.extract_strided_slice %642 {offsets = [24, 0], sizes = [8, 32], strides = [1, 1]} : vector<32x32xf32> to vector<8x32xf32>
    %cst_290 = arith.constant dense<0.000000e+00> : vector<8x32xf32>
    %728 = tpu.matmul %726, %727, %cst_290 {dimension_numbers = #tpu.dot_dimension_numbers<[1], [0], [0], [1], [0, 0, 1, 1], [], []>} : vector<8x8xf32>, vector<8x32xf32>, vector<8x32xf32> -> vector<8x32xf32>
    %729 = arith.addf %709, %728 : vector<8x32xf32>
    %730 = vector.broadcast %644 : vector<1x32xf32> to vector<8x32xf32>
    %731 = arith.addf %729, %730 : vector<8x32xf32>
    %732 = arith.addf %636, %731 : vector<8x32xf32>
    %c8 = arith.constant 8 : index
    %c0_291 = arith.constant 0 : index
    %733 = vector.load %arg9[%c8, %c0_291] : memref<12x32xf32, #tpu.memory_space<vmem>>, vector<1x32xf32>
    %c8_292 = arith.constant 8 : index
    %c0_293 = arith.constant 0 : index
    %734 = vector.load %arg10[%c8_292, %c0_293] : memref<12x32xf32, #tpu.memory_space<vmem>>, vector<1x32xf32>
    %cst_294 = arith.constant dense<0.000000e+00> : vector<8xf32>
    %735 = vector.multi_reduction <add>, %732, %cst_294 [1] : vector<8x32xf32> to vector<8xf32>
    %736 = vector.shape_cast %735 : vector<8xf32> to vector<8x1xf32>
    %cst_295 = arith.constant 3.200000e+01 : f32
    %737 = vector.broadcast %cst_295 : f32 to vector<8x1xf32>
    %738 = arith.divf %736, %737 : vector<8x1xf32>
    %739 = arith.mulf %732, %732 : vector<8x32xf32>
    %cst_296 = arith.constant dense<0.000000e+00> : vector<8xf32>
    %740 = vector.multi_reduction <add>, %739, %cst_296 [1] : vector<8x32xf32> to vector<8xf32>
    %741 = vector.shape_cast %740 : vector<8xf32> to vector<8x1xf32>
    %cst_297 = arith.constant 3.200000e+01 : f32
    %742 = vector.broadcast %cst_297 : f32 to vector<8x1xf32>
    %743 = arith.divf %741, %742 : vector<8x1xf32>
    %744 = arith.mulf %738, %738 : vector<8x1xf32>
    %745 = arith.subf %743, %744 : vector<8x1xf32>
    %746 = vector.broadcast %738 : vector<8x1xf32> to vector<8x32xf32>
    %747 = arith.subf %732, %746 : vector<8x32xf32>
    %cst_298 = arith.constant 9.99999974E-6 : f32
    %748 = vector.broadcast %cst_298 : f32 to vector<8x1xf32>
    %749 = arith.addf %745, %748 : vector<8x1xf32>
    %750 = math.rsqrt %749 : vector<8x1xf32>
    %751 = vector.broadcast %750 : vector<8x1xf32> to vector<8x32xf32>
    %752 = arith.mulf %747, %751 : vector<8x32xf32>
    %753 = vector.broadcast %733 : vector<1x32xf32> to vector<8x32xf32>
    %754 = arith.mulf %752, %753 : vector<8x32xf32>
    %755 = vector.broadcast %734 : vector<1x32xf32> to vector<8x32xf32>
    %756 = arith.addf %754, %755 : vector<8x32xf32>
    %c5_299 = arith.constant 5 : index
    %c0_300 = arith.constant 0 : index
    %c0_301 = arith.constant 0 : index
    %757 = vector.load %arg1[%c5_299, %c0_300, %c0_301] : memref<6x32x96xf32, #tpu.memory_space<vmem>>, vector<1x32x96xf32>
    %758 = vector.shape_cast %757 : vector<1x32x96xf32> to vector<32x96xf32>
    %c5_302 = arith.constant 5 : index
    %c0_303 = arith.constant 0 : index
    %c0_304 = arith.constant 0 : index
    %759 = vector.load %arg2[%c5_302, %c0_303, %c0_304] : memref<6x1x96xf32, #tpu.memory_space<vmem>>, vector<1x1x96xf32>
    %760 = vector.shape_cast %759 : vector<1x1x96xf32> to vector<1x96xf32>
    %c5_305 = arith.constant 5 : index
    %c0_306 = arith.constant 0 : index
    %c0_307 = arith.constant 0 : index
    %761 = vector.load %arg3[%c5_305, %c0_306, %c0_307] : memref<6x32x32xf32, #tpu.memory_space<vmem>>, vector<1x32x32xf32>
    %762 = vector.shape_cast %761 : vector<1x32x32xf32> to vector<32x32xf32>
    %c5_308 = arith.constant 5 : index
    %c0_309 = arith.constant 0 : index
    %c0_310 = arith.constant 0 : index
    %763 = vector.load %arg4[%c5_308, %c0_309, %c0_310] : memref<6x1x32xf32, #tpu.memory_space<vmem>>, vector<1x1x32xf32>
    %764 = vector.shape_cast %763 : vector<1x1x32xf32> to vector<1x32xf32>
    %765 = vector.extract_strided_slice %758 {offsets = [0, 0], sizes = [32, 32], strides = [1, 1]} : vector<32x96xf32> to vector<32x32xf32>
    %cst_311 = arith.constant dense<0.000000e+00> : vector<8x32xf32>
    %766 = tpu.matmul %756, %765, %cst_311 {dimension_numbers = #tpu.dot_dimension_numbers<[1], [0], [0], [1], [0, 0, 1, 1], [], []>} : vector<8x32xf32>, vector<32x32xf32>, vector<8x32xf32> -> vector<8x32xf32>
    %767 = vector.extract_strided_slice %760 {offsets = [0, 0], sizes = [1, 32], strides = [1, 1]} : vector<1x96xf32> to vector<1x32xf32>
    %768 = vector.broadcast %767 : vector<1x32xf32> to vector<8x32xf32>
    %769 = arith.addf %766, %768 : vector<8x32xf32>
    %770 = vector.extract_strided_slice %758 {offsets = [0, 32], sizes = [32, 64], strides = [1, 1]} : vector<32x96xf32> to vector<32x64xf32>
    %cst_312 = arith.constant dense<0.000000e+00> : vector<8x64xf32>
    %771 = tpu.matmul %348, %770, %cst_312 {dimension_numbers = #tpu.dot_dimension_numbers<[1], [0], [0], [1], [0, 0, 1, 1], [], []>} : vector<8x32xf32>, vector<32x64xf32>, vector<8x64xf32> -> vector<8x64xf32>
    %772 = vector.extract_strided_slice %760 {offsets = [0, 32], sizes = [1, 64], strides = [1, 1]} : vector<1x96xf32> to vector<1x64xf32>
    %773 = vector.broadcast %772 : vector<1x64xf32> to vector<8x64xf32>
    %774 = arith.addf %771, %773 : vector<8x64xf32>
    %775 = vector.extract_strided_slice %774 {offsets = [0, 0], sizes = [8, 32], strides = [1, 1]} : vector<8x64xf32> to vector<8x32xf32>
    %776 = vector.extract_strided_slice %774 {offsets = [0, 32], sizes = [8, 32], strides = [1, 1]} : vector<8x64xf32> to vector<8x32xf32>
    %777 = vector.extract_strided_slice %769 {offsets = [0, 0], sizes = [8, 8], strides = [1, 1]} : vector<8x32xf32> to vector<8x8xf32>
    %778 = vector.extract_strided_slice %775 {offsets = [0, 0], sizes = [8, 8], strides = [1, 1]} : vector<8x32xf32> to vector<8x8xf32>
    %cst_313 = arith.constant dense<0.000000e+00> : vector<8x8xf32>
    %779 = tpu.matmul %777, %778, %cst_313 {dimension_numbers = #tpu.dot_dimension_numbers<[1], [1], [0], [0], [0, 0, 1, 0], [], []>} : vector<8x8xf32>, vector<8x8xf32>, vector<8x8xf32> -> vector<8x8xf32>
    %cst_314 = arith.constant 0.353553385 : f32
    %780 = vector.broadcast %cst_314 : f32 to vector<8x8xf32>
    %781 = arith.mulf %779, %780 : vector<8x8xf32>
    %cst_315 = arith.constant dense<0xFF800000> : vector<8xf32>
    %782 = vector.multi_reduction <maximumf>, %781, %cst_315 [1] : vector<8x8xf32> to vector<8xf32>
    %783 = vector.shape_cast %782 : vector<8xf32> to vector<8x1xf32>
    %784 = vector.broadcast %783 : vector<8x1xf32> to vector<8x8xf32>
    %785 = arith.subf %781, %784 : vector<8x8xf32>
    %786 = math.exp %785 : vector<8x8xf32>
    %cst_316 = arith.constant dense<0.000000e+00> : vector<8xf32>
    %787 = vector.multi_reduction <add>, %786, %cst_316 [1] : vector<8x8xf32> to vector<8xf32>
    %788 = vector.shape_cast %787 : vector<8xf32> to vector<8x1xf32>
    %789 = tpu.reciprocal %788 : vector<8x1xf32> -> vector<8x1xf32>
    %790 = vector.broadcast %789 : vector<8x1xf32> to vector<8x8xf32>
    %791 = arith.mulf %786, %790 : vector<8x8xf32>
    %792 = vector.extract_strided_slice %776 {offsets = [0, 0], sizes = [8, 8], strides = [1, 1]} : vector<8x32xf32> to vector<8x8xf32>
    %cst_317 = arith.constant dense<0.000000e+00> : vector<8x8xf32>
    %793 = tpu.matmul %791, %792, %cst_317 {dimension_numbers = #tpu.dot_dimension_numbers<[1], [0], [0], [1], [0, 0, 1, 1], [], []>} : vector<8x8xf32>, vector<8x8xf32>, vector<8x8xf32> -> vector<8x8xf32>
    %794 = vector.extract_strided_slice %762 {offsets = [0, 0], sizes = [8, 32], strides = [1, 1]} : vector<32x32xf32> to vector<8x32xf32>
    %cst_318 = arith.constant dense<0.000000e+00> : vector<8x32xf32>
    %795 = tpu.matmul %793, %794, %cst_318 {dimension_numbers = #tpu.dot_dimension_numbers<[1], [0], [0], [1], [0, 0, 1, 1], [], []>} : vector<8x8xf32>, vector<8x32xf32>, vector<8x32xf32> -> vector<8x32xf32>
    %796 = vector.extract_strided_slice %769 {offsets = [0, 8], sizes = [8, 8], strides = [1, 1]} : vector<8x32xf32> to vector<8x8xf32>
    %797 = vector.extract_strided_slice %775 {offsets = [0, 8], sizes = [8, 8], strides = [1, 1]} : vector<8x32xf32> to vector<8x8xf32>
    %cst_319 = arith.constant dense<0.000000e+00> : vector<8x8xf32>
    %798 = tpu.matmul %796, %797, %cst_319 {dimension_numbers = #tpu.dot_dimension_numbers<[1], [1], [0], [0], [0, 0, 1, 0], [], []>} : vector<8x8xf32>, vector<8x8xf32>, vector<8x8xf32> -> vector<8x8xf32>
    %cst_320 = arith.constant 0.353553385 : f32
    %799 = vector.broadcast %cst_320 : f32 to vector<8x8xf32>
    %800 = arith.mulf %798, %799 : vector<8x8xf32>
    %cst_321 = arith.constant dense<0xFF800000> : vector<8xf32>
    %801 = vector.multi_reduction <maximumf>, %800, %cst_321 [1] : vector<8x8xf32> to vector<8xf32>
    %802 = vector.shape_cast %801 : vector<8xf32> to vector<8x1xf32>
    %803 = vector.broadcast %802 : vector<8x1xf32> to vector<8x8xf32>
    %804 = arith.subf %800, %803 : vector<8x8xf32>
    %805 = math.exp %804 : vector<8x8xf32>
    %cst_322 = arith.constant dense<0.000000e+00> : vector<8xf32>
    %806 = vector.multi_reduction <add>, %805, %cst_322 [1] : vector<8x8xf32> to vector<8xf32>
    %807 = vector.shape_cast %806 : vector<8xf32> to vector<8x1xf32>
    %808 = tpu.reciprocal %807 : vector<8x1xf32> -> vector<8x1xf32>
    %809 = vector.broadcast %808 : vector<8x1xf32> to vector<8x8xf32>
    %810 = arith.mulf %805, %809 : vector<8x8xf32>
    %811 = vector.extract_strided_slice %776 {offsets = [0, 8], sizes = [8, 8], strides = [1, 1]} : vector<8x32xf32> to vector<8x8xf32>
    %cst_323 = arith.constant dense<0.000000e+00> : vector<8x8xf32>
    %812 = tpu.matmul %810, %811, %cst_323 {dimension_numbers = #tpu.dot_dimension_numbers<[1], [0], [0], [1], [0, 0, 1, 1], [], []>} : vector<8x8xf32>, vector<8x8xf32>, vector<8x8xf32> -> vector<8x8xf32>
    %813 = vector.extract_strided_slice %762 {offsets = [8, 0], sizes = [8, 32], strides = [1, 1]} : vector<32x32xf32> to vector<8x32xf32>
    %cst_324 = arith.constant dense<0.000000e+00> : vector<8x32xf32>
    %814 = tpu.matmul %812, %813, %cst_324 {dimension_numbers = #tpu.dot_dimension_numbers<[1], [0], [0], [1], [0, 0, 1, 1], [], []>} : vector<8x8xf32>, vector<8x32xf32>, vector<8x32xf32> -> vector<8x32xf32>
    %815 = arith.addf %795, %814 : vector<8x32xf32>
    %816 = vector.extract_strided_slice %769 {offsets = [0, 16], sizes = [8, 8], strides = [1, 1]} : vector<8x32xf32> to vector<8x8xf32>
    %817 = vector.extract_strided_slice %775 {offsets = [0, 16], sizes = [8, 8], strides = [1, 1]} : vector<8x32xf32> to vector<8x8xf32>
    %cst_325 = arith.constant dense<0.000000e+00> : vector<8x8xf32>
    %818 = tpu.matmul %816, %817, %cst_325 {dimension_numbers = #tpu.dot_dimension_numbers<[1], [1], [0], [0], [0, 0, 1, 0], [], []>} : vector<8x8xf32>, vector<8x8xf32>, vector<8x8xf32> -> vector<8x8xf32>
    %cst_326 = arith.constant 0.353553385 : f32
    %819 = vector.broadcast %cst_326 : f32 to vector<8x8xf32>
    %820 = arith.mulf %818, %819 : vector<8x8xf32>
    %cst_327 = arith.constant dense<0xFF800000> : vector<8xf32>
    %821 = vector.multi_reduction <maximumf>, %820, %cst_327 [1] : vector<8x8xf32> to vector<8xf32>
    %822 = vector.shape_cast %821 : vector<8xf32> to vector<8x1xf32>
    %823 = vector.broadcast %822 : vector<8x1xf32> to vector<8x8xf32>
    %824 = arith.subf %820, %823 : vector<8x8xf32>
    %825 = math.exp %824 : vector<8x8xf32>
    %cst_328 = arith.constant dense<0.000000e+00> : vector<8xf32>
    %826 = vector.multi_reduction <add>, %825, %cst_328 [1] : vector<8x8xf32> to vector<8xf32>
    %827 = vector.shape_cast %826 : vector<8xf32> to vector<8x1xf32>
    %828 = tpu.reciprocal %827 : vector<8x1xf32> -> vector<8x1xf32>
    %829 = vector.broadcast %828 : vector<8x1xf32> to vector<8x8xf32>
    %830 = arith.mulf %825, %829 : vector<8x8xf32>
    %831 = vector.extract_strided_slice %776 {offsets = [0, 16], sizes = [8, 8], strides = [1, 1]} : vector<8x32xf32> to vector<8x8xf32>
    %cst_329 = arith.constant dense<0.000000e+00> : vector<8x8xf32>
    %832 = tpu.matmul %830, %831, %cst_329 {dimension_numbers = #tpu.dot_dimension_numbers<[1], [0], [0], [1], [0, 0, 1, 1], [], []>} : vector<8x8xf32>, vector<8x8xf32>, vector<8x8xf32> -> vector<8x8xf32>
    %833 = vector.extract_strided_slice %762 {offsets = [16, 0], sizes = [8, 32], strides = [1, 1]} : vector<32x32xf32> to vector<8x32xf32>
    %cst_330 = arith.constant dense<0.000000e+00> : vector<8x32xf32>
    %834 = tpu.matmul %832, %833, %cst_330 {dimension_numbers = #tpu.dot_dimension_numbers<[1], [0], [0], [1], [0, 0, 1, 1], [], []>} : vector<8x8xf32>, vector<8x32xf32>, vector<8x32xf32> -> vector<8x32xf32>
    %835 = arith.addf %815, %834 : vector<8x32xf32>
    %836 = vector.extract_strided_slice %769 {offsets = [0, 24], sizes = [8, 8], strides = [1, 1]} : vector<8x32xf32> to vector<8x8xf32>
    %837 = vector.extract_strided_slice %775 {offsets = [0, 24], sizes = [8, 8], strides = [1, 1]} : vector<8x32xf32> to vector<8x8xf32>
    %cst_331 = arith.constant dense<0.000000e+00> : vector<8x8xf32>
    %838 = tpu.matmul %836, %837, %cst_331 {dimension_numbers = #tpu.dot_dimension_numbers<[1], [1], [0], [0], [0, 0, 1, 0], [], []>} : vector<8x8xf32>, vector<8x8xf32>, vector<8x8xf32> -> vector<8x8xf32>
    %cst_332 = arith.constant 0.353553385 : f32
    %839 = vector.broadcast %cst_332 : f32 to vector<8x8xf32>
    %840 = arith.mulf %838, %839 : vector<8x8xf32>
    %cst_333 = arith.constant dense<0xFF800000> : vector<8xf32>
    %841 = vector.multi_reduction <maximumf>, %840, %cst_333 [1] : vector<8x8xf32> to vector<8xf32>
    %842 = vector.shape_cast %841 : vector<8xf32> to vector<8x1xf32>
    %843 = vector.broadcast %842 : vector<8x1xf32> to vector<8x8xf32>
    %844 = arith.subf %840, %843 : vector<8x8xf32>
    %845 = math.exp %844 : vector<8x8xf32>
    %cst_334 = arith.constant dense<0.000000e+00> : vector<8xf32>
    %846 = vector.multi_reduction <add>, %845, %cst_334 [1] : vector<8x8xf32> to vector<8xf32>
    %847 = vector.shape_cast %846 : vector<8xf32> to vector<8x1xf32>
    %848 = tpu.reciprocal %847 : vector<8x1xf32> -> vector<8x1xf32>
    %849 = vector.broadcast %848 : vector<8x1xf32> to vector<8x8xf32>
    %850 = arith.mulf %845, %849 : vector<8x8xf32>
    %851 = vector.extract_strided_slice %776 {offsets = [0, 24], sizes = [8, 8], strides = [1, 1]} : vector<8x32xf32> to vector<8x8xf32>
    %cst_335 = arith.constant dense<0.000000e+00> : vector<8x8xf32>
    %852 = tpu.matmul %850, %851, %cst_335 {dimension_numbers = #tpu.dot_dimension_numbers<[1], [0], [0], [1], [0, 0, 1, 1], [], []>} : vector<8x8xf32>, vector<8x8xf32>, vector<8x8xf32> -> vector<8x8xf32>
    %853 = vector.extract_strided_slice %762 {offsets = [24, 0], sizes = [8, 32], strides = [1, 1]} : vector<32x32xf32> to vector<8x32xf32>
    %cst_336 = arith.constant dense<0.000000e+00> : vector<8x32xf32>
    %854 = tpu.matmul %852, %853, %cst_336 {dimension_numbers = #tpu.dot_dimension_numbers<[1], [0], [0], [1], [0, 0, 1, 1], [], []>} : vector<8x8xf32>, vector<8x32xf32>, vector<8x32xf32> -> vector<8x32xf32>
    %855 = arith.addf %835, %854 : vector<8x32xf32>
    %856 = vector.broadcast %764 : vector<1x32xf32> to vector<8x32xf32>
    %857 = arith.addf %855, %856 : vector<8x32xf32>
    %858 = arith.addf %756, %857 : vector<8x32xf32>
    %c9 = arith.constant 9 : index
    %c0_337 = arith.constant 0 : index
    %859 = vector.load %arg9[%c9, %c0_337] : memref<12x32xf32, #tpu.memory_space<vmem>>, vector<1x32xf32>
    %c9_338 = arith.constant 9 : index
    %c0_339 = arith.constant 0 : index
    %860 = vector.load %arg10[%c9_338, %c0_339] : memref<12x32xf32, #tpu.memory_space<vmem>>, vector<1x32xf32>
    %cst_340 = arith.constant dense<0.000000e+00> : vector<8xf32>
    %861 = vector.multi_reduction <add>, %858, %cst_340 [1] : vector<8x32xf32> to vector<8xf32>
    %862 = vector.shape_cast %861 : vector<8xf32> to vector<8x1xf32>
    %cst_341 = arith.constant 3.200000e+01 : f32
    %863 = vector.broadcast %cst_341 : f32 to vector<8x1xf32>
    %864 = arith.divf %862, %863 : vector<8x1xf32>
    %865 = arith.mulf %858, %858 : vector<8x32xf32>
    %cst_342 = arith.constant dense<0.000000e+00> : vector<8xf32>
    %866 = vector.multi_reduction <add>, %865, %cst_342 [1] : vector<8x32xf32> to vector<8xf32>
    %867 = vector.shape_cast %866 : vector<8xf32> to vector<8x1xf32>
    %cst_343 = arith.constant 3.200000e+01 : f32
    %868 = vector.broadcast %cst_343 : f32 to vector<8x1xf32>
    %869 = arith.divf %867, %868 : vector<8x1xf32>
    %870 = arith.mulf %864, %864 : vector<8x1xf32>
    %871 = arith.subf %869, %870 : vector<8x1xf32>
    %872 = vector.broadcast %864 : vector<8x1xf32> to vector<8x32xf32>
    %873 = arith.subf %858, %872 : vector<8x32xf32>
    %cst_344 = arith.constant 9.99999974E-6 : f32
    %874 = vector.broadcast %cst_344 : f32 to vector<8x1xf32>
    %875 = arith.addf %871, %874 : vector<8x1xf32>
    %876 = math.rsqrt %875 : vector<8x1xf32>
    %877 = vector.broadcast %876 : vector<8x1xf32> to vector<8x32xf32>
    %878 = arith.mulf %873, %877 : vector<8x32xf32>
    %879 = vector.broadcast %859 : vector<1x32xf32> to vector<8x32xf32>
    %880 = arith.mulf %878, %879 : vector<8x32xf32>
    %881 = vector.broadcast %860 : vector<1x32xf32> to vector<8x32xf32>
    %882 = arith.addf %880, %881 : vector<8x32xf32>
    %c3_345 = arith.constant 3 : index
    %c0_346 = arith.constant 0 : index
    %c0_347 = arith.constant 0 : index
    %883 = vector.load %arg5[%c3_345, %c0_346, %c0_347] : memref<4x32x2048xbf16, #tpu.memory_space<vmem>>, vector<1x32x2048xbf16>
    %884 = vector.shape_cast %883 : vector<1x32x2048xbf16> to vector<32x2048xbf16>
    %c3_348 = arith.constant 3 : index
    %c0_349 = arith.constant 0 : index
    %c0_350 = arith.constant 0 : index
    %885 = vector.load %arg6[%c3_348, %c0_349, %c0_350] : memref<4x1x2048xf32, #tpu.memory_space<vmem>>, vector<1x1x2048xf32>
    %886 = vector.shape_cast %885 : vector<1x1x2048xf32> to vector<1x2048xf32>
    %c0_351 = arith.constant 0 : index
    %c96 = arith.constant 96 : index
    %887 = vector.load %arg7[%c0_351, %c96] : memref<2048x128xbf16, #tpu.memory_space<vmem>>, vector<2048x32xbf16>
    %c3_352 = arith.constant 3 : index
    %c0_353 = arith.constant 0 : index
    %c0_354 = arith.constant 0 : index
    %888 = vector.load %arg8[%c3_352, %c0_353, %c0_354] : memref<4x1x32xf32, #tpu.memory_space<vmem>>, vector<1x1x32xf32>
    %889 = vector.shape_cast %888 : vector<1x1x32xf32> to vector<1x32xf32>
    %890 = arith.truncf %882 : vector<8x32xf32> to vector<8x32xbf16>
    %cst_355 = arith.constant dense<0.000000e+00> : vector<8x2048xf32>
    %891 = tpu.matmul %890, %884, %cst_355 {dimension_numbers = #tpu.dot_dimension_numbers<[1], [0], [0], [1], [0, 0, 1, 1], [], []>} : vector<8x32xbf16>, vector<32x2048xbf16>, vector<8x2048xf32> -> vector<8x2048xf32>
    %892 = vector.broadcast %886 : vector<1x2048xf32> to vector<8x2048xf32>
    %893 = arith.addf %891, %892 : vector<8x2048xf32>
    %cst_356 = arith.constant 0.000000e+00 : f32
    %894 = vector.broadcast %cst_356 : f32 to vector<8x2048xf32>
    %895 = arith.maximumf %893, %894 : vector<8x2048xf32>
    %896 = arith.truncf %895 : vector<8x2048xf32> to vector<8x2048xbf16>
    %cst_357 = arith.constant dense<0.000000e+00> : vector<8x32xf32>
    %897 = tpu.matmul %896, %887, %cst_357 {dimension_numbers = #tpu.dot_dimension_numbers<[1], [0], [0], [1], [0, 0, 1, 1], [], []>} : vector<8x2048xbf16>, vector<2048x32xbf16>, vector<8x32xf32> -> vector<8x32xf32>
    %898 = vector.broadcast %889 : vector<1x32xf32> to vector<8x32xf32>
    %899 = arith.addf %897, %898 : vector<8x32xf32>
    %900 = arith.addf %882, %899 : vector<8x32xf32>
    %c10 = arith.constant 10 : index
    %c0_358 = arith.constant 0 : index
    %901 = vector.load %arg9[%c10, %c0_358] : memref<12x32xf32, #tpu.memory_space<vmem>>, vector<1x32xf32>
    %c10_359 = arith.constant 10 : index
    %c0_360 = arith.constant 0 : index
    %902 = vector.load %arg10[%c10_359, %c0_360] : memref<12x32xf32, #tpu.memory_space<vmem>>, vector<1x32xf32>
    %cst_361 = arith.constant dense<0.000000e+00> : vector<8xf32>
    %903 = vector.multi_reduction <add>, %900, %cst_361 [1] : vector<8x32xf32> to vector<8xf32>
    %904 = vector.shape_cast %903 : vector<8xf32> to vector<8x1xf32>
    %cst_362 = arith.constant 3.200000e+01 : f32
    %905 = vector.broadcast %cst_362 : f32 to vector<8x1xf32>
    %906 = arith.divf %904, %905 : vector<8x1xf32>
    %907 = arith.mulf %900, %900 : vector<8x32xf32>
    %cst_363 = arith.constant dense<0.000000e+00> : vector<8xf32>
    %908 = vector.multi_reduction <add>, %907, %cst_363 [1] : vector<8x32xf32> to vector<8xf32>
    %909 = vector.shape_cast %908 : vector<8xf32> to vector<8x1xf32>
    %cst_364 = arith.constant 3.200000e+01 : f32
    %910 = vector.broadcast %cst_364 : f32 to vector<8x1xf32>
    %911 = arith.divf %909, %910 : vector<8x1xf32>
    %912 = arith.mulf %906, %906 : vector<8x1xf32>
    %913 = arith.subf %911, %912 : vector<8x1xf32>
    %914 = vector.broadcast %906 : vector<8x1xf32> to vector<8x32xf32>
    %915 = arith.subf %900, %914 : vector<8x32xf32>
    %cst_365 = arith.constant 9.99999974E-6 : f32
    %916 = vector.broadcast %cst_365 : f32 to vector<8x1xf32>
    %917 = arith.addf %913, %916 : vector<8x1xf32>
    %918 = math.rsqrt %917 : vector<8x1xf32>
    %919 = vector.broadcast %918 : vector<8x1xf32> to vector<8x32xf32>
    %920 = arith.mulf %915, %919 : vector<8x32xf32>
    %921 = vector.broadcast %901 : vector<1x32xf32> to vector<8x32xf32>
    %922 = arith.mulf %920, %921 : vector<8x32xf32>
    %923 = vector.broadcast %902 : vector<1x32xf32> to vector<8x32xf32>
    %924 = arith.addf %922, %923 : vector<8x32xf32>
    %c11 = arith.constant 11 : index
    %c0_366 = arith.constant 0 : index
    %925 = vector.load %arg9[%c11, %c0_366] : memref<12x32xf32, #tpu.memory_space<vmem>>, vector<1x32xf32>
    %c11_367 = arith.constant 11 : index
    %c0_368 = arith.constant 0 : index
    %926 = vector.load %arg10[%c11_367, %c0_368] : memref<12x32xf32, #tpu.memory_space<vmem>>, vector<1x32xf32>
    %cst_369 = arith.constant dense<0.000000e+00> : vector<8xf32>
    %927 = vector.multi_reduction <add>, %924, %cst_369 [1] : vector<8x32xf32> to vector<8xf32>
    %928 = vector.shape_cast %927 : vector<8xf32> to vector<8x1xf32>
    %cst_370 = arith.constant 3.200000e+01 : f32
    %929 = vector.broadcast %cst_370 : f32 to vector<8x1xf32>
    %930 = arith.divf %928, %929 : vector<8x1xf32>
    %931 = arith.mulf %924, %924 : vector<8x32xf32>
    %cst_371 = arith.constant dense<0.000000e+00> : vector<8xf32>
    %932 = vector.multi_reduction <add>, %931, %cst_371 [1] : vector<8x32xf32> to vector<8xf32>
    %933 = vector.shape_cast %932 : vector<8xf32> to vector<8x1xf32>
    %cst_372 = arith.constant 3.200000e+01 : f32
    %934 = vector.broadcast %cst_372 : f32 to vector<8x1xf32>
    %935 = arith.divf %933, %934 : vector<8x1xf32>
    %936 = arith.mulf %930, %930 : vector<8x1xf32>
    %937 = arith.subf %935, %936 : vector<8x1xf32>
    %938 = vector.broadcast %930 : vector<8x1xf32> to vector<8x32xf32>
    %939 = arith.subf %924, %938 : vector<8x32xf32>
    %cst_373 = arith.constant 9.99999974E-6 : f32
    %940 = vector.broadcast %cst_373 : f32 to vector<8x1xf32>
    %941 = arith.addf %937, %940 : vector<8x1xf32>
    %942 = math.rsqrt %941 : vector<8x1xf32>
    %943 = vector.broadcast %942 : vector<8x1xf32> to vector<8x32xf32>
    %944 = arith.mulf %939, %943 : vector<8x32xf32>
    %945 = vector.broadcast %925 : vector<1x32xf32> to vector<8x32xf32>
    %946 = arith.mulf %944, %945 : vector<8x32xf32>
    %947 = vector.broadcast %926 : vector<1x32xf32> to vector<8x32xf32>
    %948 = arith.addf %946, %947 : vector<8x32xf32>
    %c0_374 = arith.constant 0 : index
    %c0_375 = arith.constant 0 : index
    %949 = vector.load %arg12[%c0_374, %c0_375] : memref<8x32xf32, #tpu.memory_space<vmem>>, vector<8x32xf32>
    tpu.vector_store %arg12[%c0_374, %c0_375], %948 {strides = array<i32>} : memref<8x32xf32, #tpu.memory_space<vmem>>, vector<8x32xf32>,
    %950 = arith.mulf %948, %948 : vector<8x32xf32>
    %cst_376 = arith.constant dense<0.000000e+00> : vector<8xf32>
    %951 = vector.multi_reduction <add>, %950, %cst_376 [1] : vector<8x32xf32> to vector<8xf32>
    %952 = vector.shape_cast %951 : vector<8xf32> to vector<8x1xf32>
    %953 = math.rsqrt %952 : vector<8x1xf32>
    %954 = vector.broadcast %953 : vector<8x1xf32> to vector<8x32xf32>
    %955 = arith.mulf %948, %954 : vector<8x32xf32>
    %cst_377 = arith.constant dense<0.000000e+00> : vector<8x8xf32>
    %956 = tpu.matmul %955, %955, %cst_377 {dimension_numbers = #tpu.dot_dimension_numbers<[1], [1], [0], [0], [0, 0, 1, 0], [], []>} : vector<8x32xf32>, vector<8x32xf32>, vector<8x8xf32> -> vector<8x8xf32>
    %c0_378 = arith.constant 0 : index
    %c0_379 = arith.constant 0 : index
    %957 = vector.load %arg11[%c0_378, %c0_379] : memref<8x8xf32, #tpu.memory_space<vmem>>, vector<8x8xf32>
    tpu.vector_store %arg11[%c0_378, %c0_379], %956 {strides = array<i32>} : memref<8x8xf32, #tpu.memory_space<vmem>>, vector<8x8xf32>,
    return
  }
}

</mosaic_0001>

<llo_original>
// kernel: my_transformer_forward.1
$region0: #{my_transformer_forward.1}
  #allocation0 [shape = 'u32[]', space=smem, size = 0x4, offset = 0x4, fixed_abs, tag = 'smem constant byte address 0x4 - core index']
  #allocation1 [shape = 'u32[72,128]{1,0:T(1,128)}', space=vmem, size = 0x9000, scoped, tag = 'internal scratch']
  %s0 = inlined_call_operand.hbm [shape: f32[8,32], index: 0, kind: input, shape index: {}]
  %s1 = inlined_call_operand.hbm [shape: f32[6,32,96], index: 1, kind: input, shape index: {}]
  %s2 = inlined_call_operand.hbm [shape: f32[6,1,96], index: 2, kind: input, shape index: {}]
  %s3 = inlined_call_operand.hbm [shape: f32[6,32,32], index: 3, kind: input, shape index: {}]
  %s4 = inlined_call_operand.hbm [shape: f32[6,1,32], index: 4, kind: input, shape index: {}]
  %s5 = inlined_call_operand.hbm [shape: bf16[4,32,2048], index: 5, kind: input, shape index: {}]
  %s6 = inlined_call_operand.hbm [shape: f32[4,1,2048], index: 6, kind: input, shape index: {}]
  %s7 = inlined_call_operand.hbm [shape: bf16[2048,128], index: 7, kind: input, shape index: {}]
  %s8 = inlined_call_operand.vmem [shape: f32[4,1,32], index: 8, kind: input, shape index: {}]
  %s9 = inlined_call_operand.hbm [shape: f32[12,32], index: 9, kind: input, shape index: {}]
  %s10 = inlined_call_operand.hbm [shape: f32[12,32], index: 10, kind: input, shape index: {}]
  %s11 = inlined_call_operand.hbm [shape: f32[8,8], index: 11, kind: output, shape index: {0}]
  %s12 = inlined_call_operand.hbm [shape: f32[8,32], index: 12, kind: output, shape index: {1}]
  %13 = xla_tuple %s11, %s12
  %s14 = sld [smem:[#allocation0]]
  $region102: #{my_transformer_forward.1} parent=0
    _
  %s16 = ssub.s32 1, %s14
  %s17 = scalar_select 0, %s16, %s14
  $region1: #{my_transformer_forward.1} parent=0
    #allocation2 [shape = 'u8[4096]{0}', space=vmem, size = 0x1000, scoped, tag = 'input window, operand 0, single buffered']
    #allocation3 [shape = 's32[1]{0}', space=sflag, size = 0x4, scoped, tag = 'scoped memory for my_transformer_forward.1']
    #allocation4 [shape = 's32[1]{0}', space=sflag, size = 0x4, scoped, tag = 'scoped memory for my_transformer_forward.1']
    #allocation5 [shape = 'u8[98304]{0}', space=vmem, size = 0x18000, scoped, tag = 'input window, operand 1, single buffered']
    #allocation6 [shape = 's32[1]{0}', space=sflag, size = 0x4, scoped, tag = 'scoped memory for my_transformer_forward.1']
    #allocation7 [shape = 'u8[3072]{0}', space=vmem, size = 0xc00, scoped, tag = 'input window, operand 2, single buffered']
    #allocation8 [shape = 'u8[98304]{0}', space=vmem, size = 0x18000, scoped, tag = 'input window, operand 3, single buffered']
    #allocation9 [shape = 's32[1]{0}', space=sflag, size = 0x4, scoped, tag = 'scoped memory for my_transformer_forward.1']
    #allocation10 [shape = 'u8[3072]{0}', space=vmem, size = 0xc00, scoped, tag = 'input window, operand 4, single buffered']
    #allocation11 [shape = 'u8[524288]{0}', space=vmem, size = 0x80000, scoped, tag = 'input window, operand 5, single buffered']
    #allocation12 [shape = 's32[1]{0}', space=sflag, size = 0x4, scoped, tag = 'scoped memory for my_transformer_forward.1']
    #allocation13 [shape = 'u8[32768]{0}', space=vmem, size = 0x8000, scoped, tag = 'input window, operand 6, single buffered']
    #allocation14 [shape = 'u8[524288]{0}', space=vmem, size = 0x80000, scoped, tag = 'input window, operand 7, single buffered']
    #allocation15 [shape = 's32[1]{0}', space=sflag, size = 0x4, scoped, tag = 'scoped memory for my_transformer_forward.1']
    #allocation16 [shape = 'u8[8192]{0}', space=vmem, size = 0x2000, scoped, tag = 'input window, operand 9, single buffered']
    #allocation17 [shape = 'u8[8192]{0}', space=vmem, size = 0x2000, scoped, tag = 'input window, operand 10, single buffered']
    #allocation18 [shape = 's32[1]{0}', space=sflag, size = 0x4, scoped, tag = 'scoped memory for my_transformer_forward.1']
    #allocation19 [shape = 'u8[4096]{0}', space=vmem, size = 0x1000, scoped, tag = 'output window, operand 0, single buffered']
    #allocation20 [shape = 'u8[4096]{0}', space=vmem, size = 0x1000, scoped, tag = 'output window, operand 1, single buffered']
    #allocation21 [shape = 's32[1]{0}', space=sflag, size = 0x4, scoped, tag = 'scoped memory for my_transformer_forward.1']
    %18 = vsyncpa [#allocation3], 0
    %19 = vsyncpa [#allocation6], 0
    %20 = vsyncpa [#allocation9], 0
    %21 = vsyncpa [#allocation12], 0
    %22 = vsyncpa [#allocation15], 0
    %23 = vsyncpa [#allocation18], 0
    %24 = vsyncpa [#allocation4], 0
    %25 = vsyncpa [#allocation21], 0
    // Predicated region
    $region2: #{my_transformer_forward.1} parent=1 // pred_check
      _
    $region3: #{my_transformer_forward.1} parent=1 // pred_check_branch
      %27 = sbr.rel (0) target = $region5
    $region4: #{my_transformer_forward.1} parent=1 // pred_region
      %29 = vsyncadd [#allocation3], 0
      %s31 = sshll.u32 %s0, 4
      %s32 = int_to_ptr.hbm [resolvable:$true] %s31
      %s33 = sshll.u32 [#allocation2], 4
      %s34 = int_to_ptr.vmem [resolvable:$true] %s33
      %36 = dma.hbm_to_vmem [thread:$0]  %s32, 128, %s34, [#allocation3]
    $region5: #{my_transformer_forward.1} parent=1 // pred_fallthru
      _
    // Predicated region
    $region6: #{my_transformer_forward.1} parent=1 // pred_check
      _
    $region7: #{my_transformer_forward.1} parent=1 // pred_check_branch
      %38 = sbr.rel (0) target = $region9
    $region8: #{my_transformer_forward.1} parent=1 // pred_region
      %40 = vsyncadd [#allocation6], 0
      %s41 = sshll.u32 %s1, 4
      %s42 = int_to_ptr.hbm [resolvable:$true] %s41
      %s43 = sshll.u32 [#allocation5], 4
      %s44 = int_to_ptr.vmem [resolvable:$true] %s43
      %49 = dma.hbm_to_vmem [thread:$0]  %s42, 3072, %s44, [#allocation6], 128, 128, 8
    $region9: #{my_transformer_forward.1} parent=1 // pred_fallthru
      _
    // Predicated region
    $region10: #{my_transformer_forward.1} parent=1 // pred_check
      _
    $region11: #{my_transformer_forward.1} parent=1 // pred_check_branch
      %51 = sbr.rel (0) target = $region13
    $region12: #{my_transformer_forward.1} parent=1 // pred_region
      %53 = vsyncadd [#allocation6], 0
      %s54 = sshll.u32 %s2, 4
      %s55 = int_to_ptr.hbm [resolvable:$true] %s54
      %s56 = sshll.u32 [#allocation7], 4
      %s57 = int_to_ptr.vmem [resolvable:$true] %s56
      %62 = dma.hbm_to_vmem [thread:$0]  %s55, 96, %s57, [#allocation6], 16, 16, 1
    $region13: #{my_transformer_forward.1} parent=1 // pred_fallthru
      _
    // Predicated region
    $region14: #{my_transformer_forward.1} parent=1 // pred_check
      _
    $region15: #{my_transformer_forward.1} parent=1 // pred_check_branch
      %64 = sbr.rel (0) target = $region17
    $region16: #{my_transformer_forward.1} parent=1 // pred_region
      %66 = vsyncadd [#allocation9], 0
      %s67 = sshll.u32 %s3, 4
      %s68 = int_to_ptr.hbm [resolvable:$true] %s67
      %s69 = sshll.u32 [#allocation8], 4
      %s70 = int_to_ptr.vmem [resolvable:$true] %s69
      %75 = dma.hbm_to_vmem [thread:$0]  %s68, 3072, %s70, [#allocation9], 128, 128, 8
    $region17: #{my_transformer_forward.1} parent=1 // pred_fallthru
      _
    // Predicated region
    $region18: #{my_transformer_forward.1} parent=1 // pred_check
      _
    $region19: #{my_transformer_forward.1} parent=1 // pred_check_branch
      %77 = sbr.rel (0) target = $region21
    $region20: #{my_transformer_forward.1} parent=1 // pred_region
      %79 = vsyncadd [#allocation9], 0
      %s80 = sshll.u32 %s4, 4
      %s81 = int_to_ptr.hbm [resolvable:$true] %s80
      %s82 = sshll.u32 [#allocation10], 4
      %s83 = int_to_ptr.vmem [resolvable:$true] %s82
      %88 = dma.hbm_to_vmem [thread:$0]  %s81, 96, %s83, [#allocation9], 16, 16, 1
    $region21: #{my_transformer_forward.1} parent=1 // pred_fallthru
      _
    // Predicated region
    $region22: #{my_transformer_forward.1} parent=1 // pred_check
      _
    $region23: #{my_transformer_forward.1} parent=1 // pred_check_branch
      %90 = sbr.rel (0) target = $region25
    $region24: #{my_transformer_forward.1} parent=1 // pred_region
      %92 = vsyncadd [#allocation12], 0
      %s93 = sshll.u32 %s5, 4
      %s94 = int_to_ptr.hbm [resolvable:$true] %s93
      %s95 = sshll.u32 [#allocation11], 4
      %s96 = int_to_ptr.vmem [resolvable:$true] %s95
      %101 = dma.hbm_to_vmem [thread:$0]  %s94, 16384, %s96, [#allocation12], 1024, 1024, 64
    $region25: #{my_transformer_forward.1} parent=1 // pred_fallthru
      _
    // Predicated region
    $region26: #{my_transformer_forward.1} parent=1 // pred_check
      _
    $region27: #{my_transformer_forward.1} parent=1 // pred_check_branch
      %103 = sbr.rel (0) target = $region29
    $region28: #{my_transformer_forward.1} parent=1 // pred_region
      %105 = vsyncadd [#allocation12], 0
      %s106 = sshll.u32 %s6, 4
      %s107 = int_to_ptr.hbm [resolvable:$true] %s106
      %s108 = sshll.u32 [#allocation13], 4
      %s109 = int_to_ptr.vmem [resolvable:$true] %s108
      %114 = dma.hbm_to_vmem [thread:$0]  %s107, 1024, %s109, [#allocation12], 256, 256, 16
    $region29: #{my_transformer_forward.1} parent=1 // pred_fallthru
      _
    // Predicated region
    $region30: #{my_transformer_forward.1} parent=1 // pred_check
      _
    $region31: #{my_transformer_forward.1} parent=1 // pred_check_branch
      %116 = sbr.rel (0) target = $region33
    $region32: #{my_transformer_forward.1} parent=1 // pred_region
      %118 = vsyncadd [#allocation15], 0
      %s119 = sshll.u32 %s7, 4
      %s120 = int_to_ptr.hbm [resolvable:$true] %s119
      %s121 = sshll.u32 [#allocation14], 4
      %s122 = int_to_ptr.vmem [resolvable:$true] %s121
      %127 = dma.hbm_to_vmem [thread:$0]  %s120, 16384, %s122, [#allocation15], 64, 64, 4
    $region33: #{my_transformer_forward.1} parent=1 // pred_fallthru
      _
    // Predicated region
    $region34: #{my_transformer_forward.1} parent=1 // pred_check
      _
    $region35: #{my_transformer_forward.1} parent=1 // pred_check_branch
      %129 = sbr.rel (0) target = $region37
    $region36: #{my_transformer_forward.1} parent=1 // pred_region
      _
    $region37: #{my_transformer_forward.1} parent=1 // pred_fallthru
      _
    // Predicated region
    $region38: #{my_transformer_forward.1} parent=1 // pred_check
      _
    $region39: #{my_transformer_forward.1} parent=1 // pred_check_branch
      %131 = sbr.rel (0) target = $region41
    $region40: #{my_transformer_forward.1} parent=1 // pred_region
      %133 = vsyncadd [#allocation15], 0
      %s134 = sshll.u32 %s9, 4
      %s135 = int_to_ptr.hbm [resolvable:$true] %s134
      %s136 = sshll.u32 [#allocation16], 4
      %s137 = int_to_ptr.vmem [resolvable:$true] %s136
      %142 = dma.hbm_to_vmem [thread:$0]  %s135, 256, %s137, [#allocation15], 128, 128, 8
    $region41: #{my_transformer_forward.1} parent=1 // pred_fallthru
      _
    // Predicated region
    $region42: #{my_transformer_forward.1} parent=1 // pred_check
      _
    $region43: #{my_transformer_forward.1} parent=1 // pred_check_branch
      %144 = sbr.rel (0) target = $region45
    $region44: #{my_transformer_forward.1} parent=1 // pred_region
      %146 = vsyncadd [#allocation18], 0
      %s147 = sshll.u32 %s10, 4
      %s148 = int_to_ptr.hbm [resolvable:$true] %s147
      %s149 = sshll.u32 [#allocation17], 4
      %s150 = int_to_ptr.vmem [resolvable:$true] %s149
      %155 = dma.hbm_to_vmem [thread:$0]  %s148, 256, %s150, [#allocation18], 128, 128, 8
    $region45: #{my_transformer_forward.1} parent=1 // pred_fallthru
      _
    // Predicated region
    $region46: #{my_transformer_forward.1} parent=1 // pred_check
      _
    $region47: #{my_transformer_forward.1} parent=1 // pred_check_branch
      %157 = sbr.rel (0) target = $region49
    $region48: #{my_transformer_forward.1} parent=1 // pred_region
      %159 = dma.done [#allocation3], 128
    $region49: #{my_transformer_forward.1} parent=1 // pred_fallthru
      _
    // Predicated region
    $region50: #{my_transformer_forward.1} parent=1 // pred_check
      _
    $region51: #{my_transformer_forward.1} parent=1 // pred_check_branch
      %161 = sbr.rel (0) target = $region53
    $region52: #{my_transformer_forward.1} parent=1 // pred_region
      %163 = dma.done [#allocation6], 3072
    $region53: #{my_transformer_forward.1} parent=1 // pred_fallthru
      _
    // Predicated region
    $region54: #{my_transformer_forward.1} parent=1 // pred_check
      _
    $region55: #{my_transformer_forward.1} parent=1 // pred_check_branch
      %165 = sbr.rel (0) target = $region57
    $region56: #{my_transformer_forward.1} parent=1 // pred_region
      %167 = dma.done [#allocation6], 96
    $region57: #{my_transformer_forward.1} parent=1 // pred_fallthru
      _
    // Predicated region
    $region58: #{my_transformer_forward.1} parent=1 // pred_check
      _
    $region59: #{my_transformer_forward.1} parent=1 // pred_check_branch
      %169 = sbr.rel (0) target = $region61
    $region60: #{my_transformer_forward.1} parent=1 // pred_region
      %171 = dma.done [#allocation9], 3072
    $region61: #{my_transformer_forward.1} parent=1 // pred_fallthru
      _
    // Predicated region
    $region62: #{my_transformer_forward.1} parent=1 // pred_check
      _
    $region63: #{my_transformer_forward.1} parent=1 // pred_check_branch
      %173 = sbr.rel (0) target = $region65
    $region64: #{my_transformer_forward.1} parent=1 // pred_region
      %175 = dma.done [#allocation9], 96
    $region65: #{my_transformer_forward.1} parent=1 // pred_fallthru
      _
    // Predicated region
    $region66: #{my_transformer_forward.1} parent=1 // pred_check
      _
    $region67: #{my_transformer_forward.1} parent=1 // pred_check_branch
      %177 = sbr.rel (0) target = $region69
    $region68: #{my_transformer_forward.1} parent=1 // pred_region
      %179 = dma.done [#allocation12], 16384
    $region69: #{my_transformer_forward.1} parent=1 // pred_fallthru
      _
    // Predicated region
    $region70: #{my_transformer_forward.1} parent=1 // pred_check
      _
    $region71: #{my_transformer_forward.1} parent=1 // pred_check_branch
      %181 = sbr.rel (0) target = $region73
    $region72: #{my_transformer_forward.1} parent=1 // pred_region
      %183 = dma.done [#allocation12], 1024
    $region73: #{my_transformer_forward.1} parent=1 // pred_fallthru
      _
    // Predicated region
    $region74: #{my_transformer_forward.1} parent=1 // pred_check
      _
    $region75: #{my_transformer_forward.1} parent=1 // pred_check_branch
      %185 = sbr.rel (0) target = $region77
    $region76: #{my_transformer_forward.1} parent=1 // pred_region
      %187 = dma.done [#allocation15], 16384
    $region77: #{my_transformer_forward.1} parent=1 // pred_fallthru
      _
    // Predicated region
    $region78: #{my_transformer_forward.1} parent=1 // pred_check
      _
    $region79: #{my_transformer_forward.1} parent=1 // pred_check_branch
      %189 = sbr.rel (0) target = $region81
    $region80: #{my_transformer_forward.1} parent=1 // pred_region
      %191 = dma.done [#allocation15], 256
    $region81: #{my_transformer_forward.1} parent=1 // pred_fallthru
      _
    // Predicated region
    $region82: #{my_transformer_forward.1} parent=1 // pred_check
      _
    $region83: #{my_transformer_forward.1} parent=1 // pred_check_branch
      %193 = sbr.rel (0) target = $region85
    $region84: #{my_transformer_forward.1} parent=1 // pred_region
      %195 = dma.done [#allocation18], 256
    $region85: #{my_transformer_forward.1} parent=1 // pred_fallthru
      _
    %v197 = vld [vmem:[#allocation2] sm:$0xff]
    %v198 = vld [vmem:[#allocation5] sm:$0xff]
    %v199 = vld [vmem:[#allocation5 + $0x8] sm:$0xff]
    %v200 = vld [vmem:[#allocation5 + $0x10] sm:$0xff]
    %v201 = vld [vmem:[#allocation5 + $0x18] sm:$0xff]
    %v202 = vld [vmem:[#allocation7] sm:$0x1]
    %v203 = vld [vmem:[#allocation8] sm:$0xff]
    %v204 = vld [vmem:[#allocation8 + $0x8] sm:$0xff]
    %v205 = vld [vmem:[#allocation8 + $0x10] sm:$0xff]
    %v206 = vld [vmem:[#allocation8 + $0x18] sm:$0xff]
    %v207 = vld [vmem:[#allocation10] sm:$0x1]
    %v209 = vperm.slane %v202, 0
    %vm211 = vcmask 261120
    %v213 = vsel %vm211, %v197, 0
    %215 = vmatpush.msra.mxu0 0.0
    %216 = vmatpush.msra.mxu0 0.0
    %217 = vmatpush.msra.mxu0 0.0
    %218 = vmatpush.msra.mxu0 0.0
    %219 = vmatpush.msra.mxu0 0.0
    %220 = vmatpush.msra.mxu0 0.0
    %221 = vmatpush.msra.mxu0 0.0
    %222 = vmatpush.msra.mxu0 0.0
    %223 = vmatpush.msra.mxu0 0.0
    %224 = vmatpush.msra.mxu0 0.0
    %225 = vmatpush.msra.mxu0 0.0
    %226 = vmatpush.msra.mxu0 0.0
    %227 = vmatpush.msra.mxu0 %v201
    %228 = vmatpush.msra.mxu0 %v200
    %229 = vmatpush.msra.mxu0 %v199
    %230 = vmatpush.msra.mxu0 %v198
    %231 = vmatmul.f32.gmra.mxu0 %v213
    %v232 = vpop.f32.mrf.mxu0
    %v233 = vadd.f32 %v209, %v232
    %234 = vdwg.mxu0
    %236 = vrot.lane.b32.xlu0 %v233, 96
    %v237 = vpop.permute.xlu0 %236
    %vm238 = vcmask 64512
    %v239 = vsel %vm238, %v233, 0
    %v241 = vsel %vm238, %v237, 0
    %243 = vmatpush.xpose.msra.mxu0 0.0
    %244 = vmatpush.xpose.msra.mxu0 0.0
    %245 = vmatpush.xpose.msra.mxu0 0.0
    %246 = vmatpush.xpose.msra.mxu0 0.0
    %247 = vmatpush.xpose.msra.mxu0 0.0
    %248 = vmatpush.xpose.msra.mxu0 0.0
    %249 = vmatpush.xpose.msra.mxu0 0.0
    %250 = vmatpush.xpose.msra.mxu0 0.0
    %251 = vmatpush.xpose.msra.mxu0 0.0
    %252 = vmatpush.xpose.msra.mxu0 0.0
    %253 = vmatpush.xpose.msra.mxu0 0.0
    %254 = vmatpush.xpose.msra.mxu0 0.0
    %255 = vmatpush.xpose.msra.mxu0 0.0
    %256 = vmatpush.xpose.msra.mxu0 0.0
    %257 = vmatpush.xpose.msra.mxu0 0.0
    %258 = vmatpush.xpose.msra.mxu0 %v241
    %259 = vmatmul.f32.gmra.mxu0 %v239
    %v260 = vpop.f32.mrf.mxu0
    %v261 = vadd.f32 0.0, %v260
    %262 = vdwg.mxu0
    %v263 = vmul.f32 %v261, 0.35355338
    %v264 = vsel %vm238, %v263, -inf
    %265 = vmax.xlane.f32.xlu0 %v264
    %v266 = vpop.xlane.xlu0 %265
    %v267 = vsub.f32 %v263, %v266
    %v268 = vmul.f32 %v267, 1.442695
    %v269 = vpow.pop %v268
    %v270 = vsel %vm238, %v269, 0.0
    %271 = vadd.xlane.f32.xlu0 %v270
    %v272 = vpop.xlane.xlu0 %271
    %v273 = vrcp.pop %v272
    %v274 = vmul.f32 %v272, %v273
    %v275 = vsub.f32 1.0, %v274
    %v276 = vmul.f32 %v273, %v275
    %v277 = vadd.f32 %v273, %v276
    %vm278 = vweird.f32 %v272
    %vm279 = vweird.f32 %v273
    %vm280 = vmor %vm278, %vm279
    %v281 = vsel %vm280, %v273, %v277
    %v282 = vand.u32 2147483647, %v272
    %vm283 = vcmp.eq.f32.partialorder %v282, 8.507059e+37
    %v284 = vand.u32 %v272, 2147483648
    %v285 = vor.u32 1.1754944e-38, %v284
    %v286 = vsel %vm283, %v285, %v281
    %v287 = vmul.f32 %v269, %v286
    %288 = vrot.lane.b32.xlu0 %v233, 64
    %v289 = vpop.permute.xlu0 %288
    %v292 = vsel %vm238, %v287, 0
    %294 = vmatpush.msra.mxu0 0.0
    %295 = vmatpush.msra.mxu0 0.0
    %296 = vmatpush.msra.mxu0 0.0
    %297 = vmatpush.msra.mxu0 0.0
    %298 = vmatpush.msra.mxu0 0.0
    %299 = vmatpush.msra.mxu0 0.0
    %300 = vmatpush.msra.mxu0 0.0
    %301 = vmatpush.msra.mxu0 0.0
    %302 = vmatpush.msra.mxu0 0.0
    %303 = vmatpush.msra.mxu0 0.0
    %304 = vmatpush.msra.mxu0 0.0
    %305 = vmatpush.msra.mxu0 0.0
    %306 = vmatpush.msra.mxu0 0.0
    %307 = vmatpush.msra.mxu0 0.0
    %308 = vmatpush.msra.mxu0 0.0
    %309 = vmatpush.msra.mxu0 %v289
    %310 = vmatmul.f32.gmra.mxu0 %v292
    %v311 = vpop.f32.mrf.mxu0
    %v312 = vadd.f32 0.0, %v311
    %313 = vdwg.mxu0
    %314 = vrot.lane.b32.xlu0 %v233, 120
    %v315 = vpop.permute.xlu0 %314
    %316 = vrot.lane.b32.xlu0 %v233, 88
    %v317 = vpop.permute.xlu0 %316
    %v318 = vsel %vm238, %v315, 0
    %v320 = vsel %vm238, %v317, 0
    %322 = vmatpush.xpose.msra.mxu0 0.0
    %323 = vmatpush.xpose.msra.mxu0 0.0
    %324 = vmatpush.xpose.msra.mxu0 0.0
    %325 = vmatpush.xpose.msra.mxu0 0.0
    %326 = vmatpush.xpose.msra.mxu0 0.0
    %327 = vmatpush.xpose.msra.mxu0 0.0
    %328 = vmatpush.xpose.msra.mxu0 0.0
    %329 = vmatpush.xpose.msra.mxu0 0.0
    %330 = vmatpush.xpose.msra.mxu0 0.0
    %331 = vmatpush.xpose.msra.mxu0 0.0
    %332 = vmatpush.xpose.msra.mxu0 0.0
    %333 = vmatpush.xpose.msra.mxu0 0.0
    %334 = vmatpush.xpose.msra.mxu0 0.0
    %335 = vmatpush.xpose.msra.mxu0 0.0
    %336 = vmatpush.xpose.msra.mxu0 0.0
    %337 = vmatpush.xpose.msra.mxu0 %v320
    %338 = vmatmul.f32.gmra.mxu0 %v318
    %v339 = vpop.f32.mrf.mxu0
    %v340 = vadd.f32 0.0, %v339
    %341 = vdwg.mxu0
    %v342 = vmul.f32 %v340, 0.35355338
    %v343 = vsel %vm238, %v342, -inf
    %344 = vmax.xlane.f32.xlu0 %v343
    %v345 = vpop.xlane.xlu0 %344
    %v346 = vsub.f32 %v342, %v345
    %v347 = vmul.f32 %v346, 1.442695
    %v348 = vpow.pop %v347
    %v349 = vsel %vm238, %v348, 0.0
    %350 = vadd.xlane.f32.xlu0 %v349
    %v351 = vpop.xlane.xlu0 %350
    %v352 = vrcp.pop %v351
    %v353 = vmul.f32 %v351, %v352
    %v354 = vsub.f32 1.0, %v353
    %v355 = vmul.f32 %v352, %v354
    %v356 = vadd.f32 %v352, %v355
    %vm357 = vweird.f32 %v351
    %vm358 = vweird.f32 %v352
    %vm359 = vmor %vm357, %vm358
    %v360 = vsel %vm359, %v352, %v356
    %v361 = vand.u32 2147483647, %v351
    %vm362 = vcmp.eq.f32.partialorder %v361, 8.507059e+37
    %v363 = vand.u32 %v351, 2147483648
    %v364 = vor.u32 1.1754944e-38, %v363
    %v365 = vsel %vm362, %v364, %v360
    %v366 = vmul.f32 %v348, %v365
    %367 = vrot.lane.b32.xlu0 %v233, 56
    %v368 = vpop.permute.xlu0 %367
    %v371 = vsel %vm238, %v366, 0
    %373 = vmatpush.msra.mxu0 0.0
    %374 = vmatpush.msra.mxu0 0.0
    %375 = vmatpush.msra.mxu0 0.0
    %376 = vmatpush.msra.mxu0 0.0
    %377 = vmatpush.msra.mxu0 0.0
    %378 = vmatpush.msra.mxu0 0.0
    %379 = vmatpush.msra.mxu0 0.0
    %380 = vmatpush.msra.mxu0 0.0
    %381 = vmatpush.msra.mxu0 0.0
    %382 = vmatpush.msra.mxu0 0.0
    %383 = vmatpush.msra.mxu0 0.0
    %384 = vmatpush.msra.mxu0 0.0
    %385 = vmatpush.msra.mxu0 0.0
    %386 = vmatpush.msra.mxu0 0.0
    %387 = vmatpush.msra.mxu0 0.0
    %388 = vmatpush.msra.mxu0 %v368
    %389 = vmatmul.f32.gmra.mxu0 %v371
    %v390 = vpop.f32.mrf.mxu0
    %v391 = vadd.f32 0.0, %v390
    %392 = vdwg.mxu0
    %v394 = vsel %vm238, %v391, 0
    %396 = vmatpush.msra.mxu0 0.0
    %397 = vmatpush.msra.mxu0 0.0
    %398 = vmatpush.msra.mxu0 0.0
    %399 = vmatpush.msra.mxu0 0.0
    %400 = vmatpush.msra.mxu0 0.0
    %401 = vmatpush.msra.mxu0 0.0
    %402 = vmatpush.msra.mxu0 0.0
    %403 = vmatpush.msra.mxu0 0.0
    %404 = vmatpush.msra.mxu0 0.0
    %405 = vmatpush.msra.mxu0 0.0
    %406 = vmatpush.msra.mxu0 0.0
    %407 = vmatpush.msra.mxu0 0.0
    %408 = vmatpush.msra.mxu0 0.0
    %409 = vmatpush.msra.mxu0 0.0
    %410 = vmatpush.msra.mxu0 0.0
    %411 = vmatpush.msra.mxu0 %v204
    %412 = vmatmul.f32.gmra.mxu0 %v394
    %v413 = vpop.f32.mrf.mxu0
    %v414 = vadd.f32 0.0, %v413
    %415 = vdwg.mxu0
    %v417 = vsel %vm238, %v312, 0
    %419 = vmatpush.msra.mxu0 0.0
    %420 = vmatpush.msra.mxu0 0.0
    %421 = vmatpush.msra.mxu0 0.0
    %422 = vmatpush.msra.mxu0 0.0
    %423 = vmatpush.msra.mxu0 0.0
    %424 = vmatpush.msra.mxu0 0.0
    %425 = vmatpush.msra.mxu0 0.0
    %426 = vmatpush.msra.mxu0 0.0
    %427 = vmatpush.msra.mxu0 0.0
    %428 = vmatpush.msra.mxu0 0.0
    %429 = vmatpush.msra.mxu0 0.0
    %430 = vmatpush.msra.mxu0 0.0
    %431 = vmatpush.msra.mxu0 0.0
    %432 = vmatpush.msra.mxu0 0.0
    %433 = vmatpush.msra.mxu0 0.0
    %434 = vmatpush.msra.mxu0 %v203
    %435 = vmatmul.f32.gmra.mxu0 %v417
    %v436 = vpop.f32.mrf.mxu0
    %v437 = vadd.f32 %v414, %v436
    %438 = vdwg.mxu0
    %439 = vrot.lane.b32.xlu0 %v233, 112
    %v440 = vpop.permute.xlu0 %439
    %441 = vrot.lane.b32.xlu0 %v233, 80
    %v442 = vpop.permute.xlu0 %441
    %v443 = vsel %vm238, %v440, 0
    %v445 = vsel %vm238, %v442, 0
    %447 = vmatpush.xpose.msra.mxu0 0.0
    %448 = vmatpush.xpose.msra.mxu0 0.0
    %449 = vmatpush.xpose.msra.mxu0 0.0
    %450 = vmatpush.xpose.msra.mxu0 0.0
    %451 = vmatpush.xpose.msra.mxu0 0.0
    %452 = vmatpush.xpose.msra.mxu0 0.0
    %453 = vmatpush.xpose.msra.mxu0 0.0
    %454 = vmatpush.xpose.msra.mxu0 0.0
    %455 = vmatpush.xpose.msra.mxu0 0.0
    %456 = vmatpush.xpose.msra.mxu0 0.0
    %457 = vmatpush.xpose.msra.mxu0 0.0
    %458 = vmatpush.xpose.msra.mxu0 0.0
    %459 = vmatpush.xpose.msra.mxu0 0.0
    %460 = vmatpush.xpose.msra.mxu0 0.0
    %461 = vmatpush.xpose.msra.mxu0 0.0
    %462 = vmatpush.xpose.msra.mxu0 %v445
    %463 = vmatmul.f32.gmra.mxu0 %v443
    %v464 = vpop.f32.mrf.mxu0
    %v465 = vadd.f32 0.0, %v464
    %466 = vdwg.mxu0
    %v467 = vmul.f32 %v465, 0.35355338
    %v468 = vsel %vm238, %v467, -inf
    %469 = vmax.xlane.f32.xlu0 %v468
    %v470 = vpop.xlane.xlu0 %469
    %v471 = vsub.f32 %v467, %v470
    %v472 = vmul.f32 %v471, 1.442695
    %v473 = vpow.pop %v472
    %v474 = vsel %vm238, %v473, 0.0
    %475 = vadd.xlane.f32.xlu0 %v474
    %v476 = vpop.xlane.xlu0 %475
    %v477 = vrcp.pop %v476
    %v478 = vmul.f32 %v476, %v477
    %v479 = vsub.f32 1.0, %v478
    %v480 = vmul.f32 %v477, %v479
    %v481 = vadd.f32 %v477, %v480
    %vm482 = vweird.f32 %v476
    %vm483 = vweird.f32 %v477
    %vm484 = vmor %vm482, %vm483
    %v485 = vsel %vm484, %v477, %v481
    %v486 = vand.u32 2147483647, %v476
    %vm487 = vcmp.eq.f32.partialorder %v486, 8.507059e+37
    %v488 = vand.u32 %v476, 2147483648
    %v489 = vor.u32 1.1754944e-38, %v488
    %v490 = vsel %vm487, %v489, %v485
    %v491 = vmul.f32 %v473, %v490
    %492 = vrot.lane.b32.xlu0 %v233, 48
    %v493 = vpop.permute.xlu0 %492
    %v496 = vsel %vm238, %v491, 0
    %498 = vmatpush.msra.mxu0 0.0
    %499 = vmatpush.msra.mxu0 0.0
    %500 = vmatpush.msra.mxu0 0.0
    %501 = vmatpush.msra.mxu0 0.0
    %502 = vmatpush.msra.mxu0 0.0
    %503 = vmatpush.msra.mxu0 0.0
    %504 = vmatpush.msra.mxu0 0.0
    %505 = vmatpush.msra.mxu0 0.0
    %506 = vmatpush.msra.mxu0 0.0
    %507 = vmatpush.msra.mxu0 0.0
    %508 = vmatpush.msra.mxu0 0.0
    %509 = vmatpush.msra.mxu0 0.0
    %510 = vmatpush.msra.mxu0 0.0
    %511 = vmatpush.msra.mxu0 0.0
    %512 = vmatpush.msra.mxu0 0.0
    %513 = vmatpush.msra.mxu0 %v493
    %514 = vmatmul.f32.gmra.mxu0 %v496
    %v515 = vpop.f32.mrf.mxu0
    %v516 = vadd.f32 0.0, %v515
    %517 = vdwg.mxu0
    %v519 = vsel %vm238, %v516, 0
    %521 = vmatpush.msra.mxu0 0.0
    %522 = vmatpush.msra.mxu0 0.0
    %523 = vmatpush.msra.mxu0 0.0
    %524 = vmatpush.msra.mxu0 0.0
    %525 = vmatpush.msra.mxu0 0.0
    %526 = vmatpush.msra.mxu0 0.0
    %527 = vmatpush.msra.mxu0 0.0
    %528 = vmatpush.msra.mxu0 0.0
    %529 = vmatpush.msra.mxu0 0.0
    %530 = vmatpush.msra.mxu0 0.0
    %531 = vmatpush.msra.mxu0 0.0
    %532 = vmatpush.msra.mxu0 0.0
    %533 = vmatpush.msra.mxu0 0.0
    %534 = vmatpush.msra.mxu0 0.0
    %535 = vmatpush.msra.mxu0 0.0
    %536 = vmatpush.msra.mxu0 %v205
    %537 = vmatmul.f32.gmra.mxu0 %v519
    %v538 = vpop.f32.mrf.mxu0
    %v539 = vadd.f32 0.0, %v538
    %540 = vdwg.mxu0
    %v541 = vadd.f32 %v437, %v539
    %542 = vrot.lane.b32.xlu0 %v233, 104
    %v543 = vpop.permute.xlu0 %542
    %544 = vrot.lane.b32.xlu0 %v233, 72
    %v545 = vpop.permute.xlu0 %544
    %v546 = vsel %vm238, %v543, 0
    %v548 = vsel %vm238, %v545, 0
    %550 = vmatpush.xpose.msra.mxu0 0.0
    %551 = vmatpush.xpose.msra.mxu0 0.0
    %552 = vmatpush.xpose.msra.mxu0 0.0
    %553 = vmatpush.xpose.msra.mxu0 0.0
    %554 = vmatpush.xpose.msra.mxu0 0.0
    %555 = vmatpush.xpose.msra.mxu0 0.0
    %556 = vmatpush.xpose.msra.mxu0 0.0
    %557 = vmatpush.xpose.msra.mxu0 0.0
    %558 = vmatpush.xpose.msra.mxu0 0.0
    %559 = vmatpush.xpose.msra.mxu0 0.0
    %560 = vmatpush.xpose.msra.mxu0 0.0
    %561 = vmatpush.xpose.msra.mxu0 0.0
    %562 = vmatpush.xpose.msra.mxu0 0.0
    %563 = vmatpush.xpose.msra.mxu0 0.0
    %564 = vmatpush.xpose.msra.mxu0 0.0
    %565 = vmatpush.xpose.msra.mxu0 %v548
    %566 = vmatmul.f32.gmra.mxu0 %v546
    %v567 = vpop.f32.mrf.mxu0
    %v568 = vadd.f32 0.0, %v567
    %569 = vdwg.mxu0
    %v570 = vmul.f32 %v568, 0.35355338
    %v571 = vsel %vm238, %v570, -inf
    %572 = vmax.xlane.f32.xlu0 %v571
    %v573 = vpop.xlane.xlu0 %572
    %v574 = vsub.f32 %v570, %v573
    %v575 = vmul.f32 %v574, 1.442695
    %v576 = vpow.pop %v575
    %v577 = vsel %vm238, %v576, 0.0
    %578 = vadd.xlane.f32.xlu0 %v577
    %v579 = vpop.xlane.xlu0 %578
    %v580 = vrcp.pop %v579
    %v581 = vmul.f32 %v579, %v580
    %v582 = vsub.f32 1.0, %v581
    %v583 = vmul.f32 %v580, %v582
    %v584 = vadd.f32 %v580, %v583
    %vm585 = vweird.f32 %v579
    %vm586 = vweird.f32 %v580
    %vm587 = vmor %vm585, %vm586
    %v588 = vsel %vm587, %v580, %v584
    %v589 = vand.u32 2147483647, %v579
    %vm590 = vcmp.eq.f32.partialorder %v589, 8.507059e+37
    %v591 = vand.u32 %v579, 2147483648
    %v592 = vor.u32 1.1754944e-38, %v591
    %v593 = vsel %vm590, %v592, %v588
    %v594 = vmul.f32 %v576, %v593
    %595 = vrot.lane.b32.xlu0 %v233, 40
    %v596 = vpop.permute.xlu0 %595
    %v599 = vsel %vm238, %v594, 0
    %601 = vmatpush.msra.mxu0 0.0
    %602 = vmatpush.msra.mxu0 0.0
    %603 = vmatpush.msra.mxu0 0.0
    %604 = vmatpush.msra.mxu0 0.0
    %605 = vmatpush.msra.mxu0 0.0
    %606 = vmatpush.msra.mxu0 0.0
    %607 = vmatpush.msra.mxu0 0.0
    %608 = vmatpush.msra.mxu0 0.0
    %609 = vmatpush.msra.mxu0 0.0
    %610 = vmatpush.msra.mxu0 0.0
    %611 = vmatpush.msra.mxu0 0.0
    %612 = vmatpush.msra.mxu0 0.0
    %613 = vmatpush.msra.mxu0 0.0
    %614 = vmatpush.msra.mxu0 0.0
    %615 = vmatpush.msra.mxu0 0.0
    %616 = vmatpush.msra.mxu0 %v596
    %617 = vmatmul.f32.gmra.mxu0 %v599
    %v618 = vpop.f32.mrf.mxu0
    %v619 = vadd.f32 0.0, %v618
    %620 = vdwg.mxu0
    %v622 = vsel %vm238, %v619, 0
    %624 = vmatpush.msra.mxu0 0.0
    %625 = vmatpush.msra.mxu0 0.0
    %626 = vmatpush.msra.mxu0 0.0
    %627 = vmatpush.msra.mxu0 0.0
    %628 = vmatpush.msra.mxu0 0.0
    %629 = vmatpush.msra.mxu0 0.0
    %630 = vmatpush.msra.mxu0 0.0
    %631 = vmatpush.msra.mxu0 0.0
    %632 = vmatpush.msra.mxu0 0.0
    %633 = vmatpush.msra.mxu0 0.0
    %634 = vmatpush.msra.mxu0 0.0
    %635 = vmatpush.msra.mxu0 0.0
    %636 = vmatpush.msra.mxu0 0.0
    %637 = vmatpush.msra.mxu0 0.0
    %638 = vmatpush.msra.mxu0 0.0
    %639 = vmatpush.msra.mxu0 %v206
    %640 = vmatmul.f32.gmra.mxu0 %v622
    %v641 = vpop.f32.mrf.mxu0
    %v642 = vadd.f32 0.0, %v641
    %643 = vdwg.mxu0
    %v644 = vadd.f32 %v541, %v642
    %v646 = vperm.slane %v207, 0
    %v648 = vadd.f32 %v644, %v646
    %v649 = vadd.f32 %v197, %v648
    %v650 = vld [vmem:[#allocation16] sm:$0x1]
    %v651 = vld [vmem:[#allocation17] sm:$0x1]
    %v652 = vsel %vm211, %v649, 0.0
    %653 = vadd.xlane.f32.xlu0 %v652
    %v654 = vpop.xlane.xlu0 %653
    %v655 = vrcp.pop 32.0
    %v656 = vmul.f32 32.0, %v655
    %v657 = vsub.f32 1.0, %v656
    %v658 = vmul.f32 %v655, %v657
    %v659 = vadd.f32 %v655, %v658
    %vm660 = vweird.f32 %v655
    %v661 = vsel %vm660, %v655, %v659
    %v662 = vmul.f32 %v654, %v661
    %v663 = vmul.f32 %v649, %v649
    %v664 = vsel %vm211, %v663, 0.0
    %665 = vadd.xlane.f32.xlu0 %v664
    %v666 = vpop.xlane.xlu0 %665
    %v667 = vmul.f32 %v666, %v661
    %v668 = vmul.f32 %v662, %v662
    %v669 = vsub.f32 %v667, %v668
    %v670 = vsub.f32 %v649, %v662
    %v671 = vadd.f32 %v669, 1e-05
    %v672 = vrsqrt.pop %v671
    %v673 = vmul.f32 %v672, %v671
    %v674 = vmul.f32 %v673, %v672
    %v675 = vmul.f32 0.5, %v674
    %v676 = vsub.f32 1.5, %v675
    %v677 = vmul.f32 %v672, %v676
    %vm678 = vweird.f32 %v671
    %vm679 = vweird.f32 %v672
    %vm680 = vmor %vm678, %vm679
    %v681 = vsel %vm680, %v672, %v677
    %v682 = vmul.f32 %v670, %v681
    %v683 = vperm.slane %v650, 0
    %v684 = vmul.f32 %v682, %v683
    %v685 = vperm.slane %v651, 0
    %v686 = vadd.f32 %v684, %v685
    %v687 = vld [vmem:[#allocation11] sm:$0xff]
    %v688 = vld [vmem:[#allocation11 + $0x8] sm:$0xff]
    %v689 = vld [vmem:[#allocation11 + $0x10] sm:$0xff]
    %v690 = vld [vmem:[#allocation11 + $0x18] sm:$0xff]
    %v691 = vld [vmem:[#allocation11 + $0x20] sm:$0xff]
    %v692 = vld [vmem:[#allocation11 + $0x28] sm:$0xff]
    %v693 = vld [vmem:[#allocation11 + $0x30] sm:$0xff]
    %v694 = vld [vmem:[#allocation11 + $0x38] sm:$0xff]
    %v695 = vld [vmem:[#allocation11 + $0x40] sm:$0xff]
    %v696 = vld [vmem:[#allocation11 + $0x48] sm:$0xff]
    %v697 = vld [vmem:[#allocation11 + $0x50] sm:$0xff]
    %v698 = vld [vmem:[#allocation11 + $0x58] sm:$0xff]
    %v699 = vld [vmem:[#allocation11 + $0x60] sm:$0xff]
    %v700 = vld [vmem:[#allocation11 + $0x68] sm:$0xff]
    %v701 = vld [vmem:[#allocation11 + $0x70] sm:$0xff]
    %v702 = vld [vmem:[#allocation11 + $0x78] sm:$0xff]
    %v703 = vld [vmem:[#allocation11 + $0x80] sm:$0xff]
    %v704 = vld [vmem:[#allocation11 + $0x88] sm:$0xff]
    %v705 = vld [vmem:[#allocation11 + $0x90] sm:$0xff]
    %v706 = vld [vmem:[#allocation11 + $0x98] sm:$0xff]
    %v707 = vld [vmem:[#allocation11 + $0xa0] sm:$0xff]
    %v708 = vld [vmem:[#allocation11 + $0xa8] sm:$0xff]
    %v709 = vld [vmem:[#allocation11 + $0xb0] sm:$0xff]
    %v710 = vld [vmem:[#allocation11 + $0xb8] sm:$0xff]
    %v711 = vld [vmem:[#allocation11 + $0xc0] sm:$0xff]
    %v712 = vld [vmem:[#allocation11 + $0xc8] sm:$0xff]
    %v713 = vld [vmem:[#allocation11 + $0xd0] sm:$0xff]
    %v714 = vld [vmem:[#allocation11 + $0xd8] sm:$0xff]
    %v715 = vld [vmem:[#allocation11 + $0xe0] sm:$0xff]
    %v716 = vld [vmem:[#allocation11 + $0xe8] sm:$0xff]
    %v717 = vld [vmem:[#allocation11 + $0xf0] sm:$0xff]
    %v718 = vld [vmem:[#allocation11 + $0xf8] sm:$0xff]
    %v719 = vld [vmem:[#allocation13] sm:$0xff]
    %v720 = vld [vmem:[#allocation13 + $0x8] sm:$0xff]
    %v721 = vld [vmem:[#allocation14] sm:$0xf]
    %v722 = vld [vmem:[#allocation14 + $0x4] sm:$0xf]
    %v723 = vld [vmem:[#allocation14 + $0x8] sm:$0xf]
    %v724 = vld [vmem:[#allocation14 + $0xc] sm:$0xf]
    %v725 = vld [vmem:[#allocation14 + $0x10] sm:$0xf]
    %v726 = vld [vmem:[#allocation14 + $0x14] sm:$0xf]
    %v727 = vld [vmem:[#allocation14 + $0x18] sm:$0xf]
    %v728 = vld [vmem:[#allocation14 + $0x1c] sm:$0xf]
    %v729 = vld [vmem:[#allocation14 + $0x20] sm:$0xf]
    %v730 = vld [vmem:[#allocation14 + $0x24] sm:$0xf]
    %v731 = vld [vmem:[#allocation14 + $0x28] sm:$0xf]
    %v732 = vld [vmem:[#allocation14 + $0x2c] sm:$0xf]
    %v733 = vld [vmem:[#allocation14 + $0x30] sm:$0xf]
    %v734 = vld [vmem:[#allocation14 + $0x34] sm:$0xf]
    %v735 = vld [vmem:[#allocation14 + $0x38] sm:$0xf]
    %v736 = vld [vmem:[#allocation14 + $0x3c] sm:$0xf]
    %v737 = vld [vmem:[#allocation14 + $0x40] sm:$0xf]
    %v738 = vld [vmem:[#allocation14 + $0x44] sm:$0xf]
    %v739 = vld [vmem:[#allocation14 + $0x48] sm:$0xf]
    %v740 = vld [vmem:[#allocation14 + $0x4c] sm:$0xf]
    %v741 = vld [vmem:[#allocation14 + $0x50] sm:$0xf]
    %v742 = vld [vmem:[#allocation14 + $0x54] sm:$0xf]
    %v743 = vld [vmem:[#allocation14 + $0x58] sm:$0xf]
    %v744 = vld [vmem:[#allocation14 + $0x5c] sm:$0xf]
    %v745 = vld [vmem:[#allocation14 + $0x60] sm:$0xf]
    %v746 = vld [vmem:[#allocation14 + $0x64] sm:$0xf]
    %v747 = vld [vmem:[#allocation14 + $0x68] sm:$0xf]
    %v748 = vld [vmem:[#allocation14 + $0x6c] sm:$0xf]
    %v749 = vld [vmem:[#allocation14 + $0x70] sm:$0xf]
    %v750 = vld [vmem:[#allocation14 + $0x74] sm:$0xf]
    %v751 = vld [vmem:[#allocation14 + $0x78] sm:$0xf]
    %v752 = vld [vmem:[#allocation14 + $0x7c] sm:$0xf]
    %v753 = vld [vmem:[#allocation14 + $0x80] sm:$0xf]
    %v754 = vld [vmem:[#allocation14 + $0x84] sm:$0xf]
    %v755 = vld [vmem:[#allocation14 + $0x88] sm:$0xf]
    %v756 = vld [vmem:[#allocation14 + $0x8c] sm:$0xf]
    %v757 = vld [vmem:[#allocation14 + $0x90] sm:$0xf]
    %v758 = vld [vmem:[#allocation14 + $0x94] sm:$0xf]
    %v759 = vld [vmem:[#allocation14 + $0x98] sm:$0xf]
    %v760 = vld [vmem:[#allocation14 + $0x9c] sm:$0xf]
    %v761 = vld [vmem:[#allocation14 + $0xa0] sm:$0xf]
    %v762 = vld [vmem:[#allocation14 + $0xa4] sm:$0xf]
    %v763 = vld [vmem:[#allocation14 + $0xa8] sm:$0xf]
    %v764 = vld [vmem:[#allocation14 + $0xac] sm:$0xf]
    %v765 = vld [vmem:[#allocation14 + $0xb0] sm:$0xf]
    %v766 = vld [vmem:[#allocation14 + $0xb4] sm:$0xf]
    %v767 = vld [vmem:[#allocation14 + $0xb8] sm:$0xf]
    %v768 = vld [vmem:[#allocation14 + $0xbc] sm:$0xf]
    %v769 = vld [vmem:[#allocation14 + $0xc0] sm:$0xf]
    %v770 = vld [vmem:[#allocation14 + $0xc4] sm:$0xf]
    %v771 = vld [vmem:[#allocation14 + $0xc8] sm:$0xf]
    %v772 = vld [vmem:[#allocation14 + $0xcc] sm:$0xf]
    %v773 = vld [vmem:[#allocation14 + $0xd0] sm:$0xf]
    %v774 = vld [vmem:[#allocation14 + $0xd4] sm:$0xf]
    %v775 = vld [vmem:[#allocation14 + $0xd8] sm:$0xf]
    %v776 = vld [vmem:[#allocation14 + $0xdc] sm:$0xf]
    %v777 = vld [vmem:[#allocation14 + $0xe0] sm:$0xf]
    %v778 = vld [vmem:[#allocation14 + $0xe4] sm:$0xf]
    %v779 = vld [vmem:[#allocation14 + $0xe8] sm:$0xf]
    %v780 = vld [vmem:[#allocation14 + $0xec] sm:$0xf]
    %v781 = vld [vmem:[#allocation14 + $0xf0] sm:$0xf]
    %v782 = vld [vmem:[#allocation14 + $0xf4] sm:$0xf]
    %v783 = vld [vmem:[#allocation14 + $0xf8] sm:$0xf]
    %v784 = vld [vmem:[#allocation14 + $0xfc] sm:$0xf]
    %v785 = vld [vmem:[#allocation14 + $0x100] sm:$0xf]
    %v786 = vld [vmem:[#allocation14 + $0x104] sm:$0xf]
    %v787 = vld [vmem:[#allocation14 + $0x108] sm:$0xf]
    %v788 = vld [vmem:[#allocation14 + $0x10c] sm:$0xf]
    %v789 = vld [vmem:[#allocation14 + $0x110] sm:$0xf]
    %v790 = vld [vmem:[#allocation14 + $0x114] sm:$0xf]
    %v791 = vld [vmem:[#allocation14 + $0x118] sm:$0xf]
    %v792 = vld [vmem:[#allocation14 + $0x11c] sm:$0xf]
    %v793 = vld [vmem:[#allocation14 + $0x120] sm:$0xf]
    %v794 = vld [vmem:[#allocation14 + $0x124] sm:$0xf]
    %v795 = vld [vmem:[#allocation14 + $0x128] sm:$0xf]
    %v796 = vld [vmem:[#allocation14 + $0x12c] sm:$0xf]
    %v797 = vld [vmem:[#allocation14 + $0x130] sm:$0xf]
    %v798 = vld [vmem:[#allocation14 + $0x134] sm:$0xf]
    %v799 = vld [vmem:[#allocation14 + $0x138] sm:$0xf]
    %v800 = vld [vmem:[#allocation14 + $0x13c] sm:$0xf]
    %v801 = vld [vmem:[#allocation14 + $0x140] sm:$0xf]
    %v802 = vld [vmem:[#allocation14 + $0x144] sm:$0xf]
    %v803 = vld [vmem:[#allocation14 + $0x148] sm:$0xf]
    %v804 = vld [vmem:[#allocation14 + $0x14c] sm:$0xf]
    %v805 = vld [vmem:[#allocation14 + $0x150] sm:$0xf]
    %v806 = vld [vmem:[#allocation14 + $0x154] sm:$0xf]
    %v807 = vld [vmem:[#allocation14 + $0x158] sm:$0xf]
    %v808 = vld [vmem:[#allocation14 + $0x15c] sm:$0xf]
    %v809 = vld [vmem:[#allocation14 + $0x160] sm:$0xf]
    %v810 = vld [vmem:[#allocation14 + $0x164] sm:$0xf]
    %v811 = vld [vmem:[#allocation14 + $0x168] sm:$0xf]
    %v812 = vld [vmem:[#allocation14 + $0x16c] sm:$0xf]
    %v813 = vld [vmem:[#allocation14 + $0x170] sm:$0xf]
    %v814 = vld [vmem:[#allocation14 + $0x174] sm:$0xf]
    %v815 = vld [vmem:[#allocation14 + $0x178] sm:$0xf]
    %v816 = vld [vmem:[#allocation14 + $0x17c] sm:$0xf]
    %v817 = vld [vmem:[#allocation14 + $0x180] sm:$0xf]
    %v818 = vld [vmem:[#allocation14 + $0x184] sm:$0xf]
    %v819 = vld [vmem:[#allocation14 + $0x188] sm:$0xf]
    %v820 = vld [vmem:[#allocation14 + $0x18c] sm:$0xf]
    %v821 = vld [vmem:[#allocation14 + $0x190] sm:$0xf]
    %v822 = vld [vmem:[#allocation14 + $0x194] sm:$0xf]
    %v823 = vld [vmem:[#allocation14 + $0x198] sm:$0xf]
    %v824 = vld [vmem:[#allocation14 + $0x19c] sm:$0xf]
    %v825 = vld [vmem:[#allocation14 + $0x1a0] sm:$0xf]
    %v826 = vld [vmem:[#allocation14 + $0x1a4] sm:$0xf]
    %v827 = vld [vmem:[#allocation14 + $0x1a8] sm:$0xf]
    %v828 = vld [vmem:[#allocation14 + $0x1ac] sm:$0xf]
    %v829 = vld [vmem:[#allocation14 + $0x1b0] sm:$0xf]
    %v830 = vld [vmem:[#allocation14 + $0x1b4] sm:$0xf]
    %v831 = vld [vmem:[#allocation14 + $0x1b8] sm:$0xf]
    %v832 = vld [vmem:[#allocation14 + $0x1bc] sm:$0xf]
    %v833 = vld [vmem:[#allocation14 + $0x1c0] sm:$0xf]
    %v834 = vld [vmem:[#allocation14 + $0x1c4] sm:$0xf]
    %v835 = vld [vmem:[#allocation14 + $0x1c8] sm:$0xf]
    %v836 = vld [vmem:[#allocation14 + $0x1cc] sm:$0xf]
    %v837 = vld [vmem:[#allocation14 + $0x1d0] sm:$0xf]
    %v838 = vld [vmem:[#allocation14 + $0x1d4] sm:$0xf]
    %v839 = vld [vmem:[#allocation14 + $0x1d8] sm:$0xf]
    %v840 = vld [vmem:[#allocation14 + $0x1dc] sm:$0xf]
    %v841 = vld [vmem:[#allocation14 + $0x1e0] sm:$0xf]
    %v842 = vld [vmem:[#allocation14 + $0x1e4] sm:$0xf]
    %v843 = vld [vmem:[#allocation14 + $0x1e8] sm:$0xf]
    %v844 = vld [vmem:[#allocation14 + $0x1ec] sm:$0xf]
    %v845 = vld [vmem:[#allocation14 + $0x1f0] sm:$0xf]
    %v846 = vld [vmem:[#allocation14 + $0x1f4] sm:$0xf]
    %v847 = vld [vmem:[#allocation14 + $0x1f8] sm:$0xf]
    %v848 = vld [vmem:[#allocation14 + $0x1fc] sm:$0xf]
    %v849 = vld [vmem:[#allocation14 + $0x200] sm:$0xf]
    %v850 = vld [vmem:[#allocation14 + $0x204] sm:$0xf]
    %v851 = vld [vmem:[#allocation14 + $0x208] sm:$0xf]
    %v852 = vld [vmem:[#allocation14 + $0x20c] sm:$0xf]
    %v853 = vld [vmem:[#allocation14 + $0x210] sm:$0xf]
    %v854 = vld [vmem:[#allocation14 + $0x214] sm:$0xf]
    %v855 = vld [vmem:[#allocation14 + $0x218] sm:$0xf]
    %v856 = vld [vmem:[#allocation14 + $0x21c] sm:$0xf]
    %v857 = vld [vmem:[#allocation14 + $0x220] sm:$0xf]
    %v858 = vld [vmem:[#allocation14 + $0x224] sm:$0xf]
    %v859 = vld [vmem:[#allocation14 + $0x228] sm:$0xf]
    %v860 = vld [vmem:[#allocation14 + $0x22c] sm:$0xf]
    %v861 = vld [vmem:[#allocation14 + $0x230] sm:$0xf]
    %v862 = vld [vmem:[#allocation14 + $0x234] sm:$0xf]
    %v863 = vld [vmem:[#allocation14 + $0x238] sm:$0xf]
    %v864 = vld [vmem:[#allocation14 + $0x23c] sm:$0xf]
    %v865 = vld [vmem:[#allocation14 + $0x240] sm:$0xf]
    %v866 = vld [vmem:[#allocation14 + $0x244] sm:$0xf]
    %v867 = vld [vmem:[#allocation14 + $0x248] sm:$0xf]
    %v868 = vld [vmem:[#allocation14 + $0x24c] sm:$0xf]
    %v869 = vld [vmem:[#allocation14 + $0x250] sm:$0xf]
    %v870 = vld [vmem:[#allocation14 + $0x254] sm:$0xf]
    %v871 = vld [vmem:[#allocation14 + $0x258] sm:$0xf]
    %v872 = vld [vmem:[#allocation14 + $0x25c] sm:$0xf]
    %v873 = vld [vmem:[#allocation14 + $0x260] sm:$0xf]
    %v874 = vld [vmem:[#allocation14 + $0x264] sm:$0xf]
    %v875 = vld [vmem:[#allocation14 + $0x268] sm:$0xf]
    %v876 = vld [vmem:[#allocation14 + $0x26c] sm:$0xf]
    %v877 = vld [vmem:[#allocation14 + $0x270] sm:$0xf]
    %v878 = vld [vmem:[#allocation14 + $0x274] sm:$0xf]
    %v879 = vld [vmem:[#allocation14 + $0x278] sm:$0xf]
    %v880 = vld [vmem:[#allocation14 + $0x27c] sm:$0xf]
    %v881 = vld [vmem:[#allocation14 + $0x280] sm:$0xf]
    %v882 = vld [vmem:[#allocation14 + $0x284] sm:$0xf]
    %v883 = vld [vmem:[#allocation14 + $0x288] sm:$0xf]
    %v884 = vld [vmem:[#allocation14 + $0x28c] sm:$0xf]
    %v885 = vld [vmem:[#allocation14 + $0x290] sm:$0xf]
    %v886 = vld [vmem:[#allocation14 + $0x294] sm:$0xf]
    %v887 = vld [vmem:[#allocation14 + $0x298] sm:$0xf]
    %v888 = vld [vmem:[#allocation14 + $0x29c] sm:$0xf]
    %v889 = vld [vmem:[#allocation14 + $0x2a0] sm:$0xf]
    %v890 = vld [vmem:[#allocation14 + $0x2a4] sm:$0xf]
    %v891 = vld [vmem:[#allocation14 + $0x2a8] sm:$0xf]
    %v892 = vld [vmem:[#allocation14 + $0x2ac] sm:$0xf]
    %v893 = vld [vmem:[#allocation14 + $0x2b0] sm:$0xf]
    %v894 = vld [vmem:[#allocation14 + $0x2b4] sm:$0xf]
    %v895 = vld [vmem:[#allocation14 + $0x2b8] sm:$0xf]
    %v896 = vld [vmem:[#allocation14 + $0x2bc] sm:$0xf]
    %v897 = vld [vmem:[#allocation14 + $0x2c0] sm:$0xf]
    %v898 = vld [vmem:[#allocation14 + $0x2c4] sm:$0xf]
    %v899 = vld [vmem:[#allocation14 + $0x2c8] sm:$0xf]
    %v900 = vld [vmem:[#allocation14 + $0x2cc] sm:$0xf]
    %v901 = vld [vmem:[#allocation14 + $0x2d0] sm:$0xf]
    %v902 = vld [vmem:[#allocation14 + $0x2d4] sm:$0xf]
    %v903 = vld [vmem:[#allocation14 + $0x2d8] sm:$0xf]
    %v904 = vld [vmem:[#allocation14 + $0x2dc] sm:$0xf]
    %v905 = vld [vmem:[#allocation14 + $0x2e0] sm:$0xf]
    %v906 = vld [vmem:[#allocation14 + $0x2e4] sm:$0xf]
    %v907 = vld [vmem:[#allocation14 + $0x2e8] sm:$0xf]
    %v908 = vld [vmem:[#allocation14 + $0x2ec] sm:$0xf]
    %v909 = vld [vmem:[#allocation14 + $0x2f0] sm:$0xf]
    %v910 = vld [vmem:[#allocation14 + $0x2f4] sm:$0xf]
    %v911 = vld [vmem:[#allocation14 + $0x2f8] sm:$0xf]
    %v912 = vld [vmem:[#allocation14 + $0x2fc] sm:$0xf]
    %v913 = vld [vmem:[#allocation14 + $0x300] sm:$0xf]
    %v914 = vld [vmem:[#allocation14 + $0x304] sm:$0xf]
    %v915 = vld [vmem:[#allocation14 + $0x308] sm:$0xf]
    %v916 = vld [vmem:[#allocation14 + $0x30c] sm:$0xf]
    %v917 = vld [vmem:[#allocation14 + $0x310] sm:$0xf]
    %v918 = vld [vmem:[#allocation14 + $0x314] sm:$0xf]
    %v919 = vld [vmem:[#allocation14 + $0x318] sm:$0xf]
    %v920 = vld [vmem:[#allocation14 + $0x31c] sm:$0xf]
    %v921 = vld [vmem:[#allocation14 + $0x320] sm:$0xf]
    %v922 = vld [vmem:[#allocation14 + $0x324] sm:$0xf]
    %v923 = vld [vmem:[#allocation14 + $0x328] sm:$0xf]
    %v924 = vld [vmem:[#allocation14 + $0x32c] sm:$0xf]
    %v925 = vld [vmem:[#allocation14 + $0x330] sm:$0xf]
    %v926 = vld [vmem:[#allocation14 + $0x334] sm:$0xf]
    %v927 = vld [vmem:[#allocation14 + $0x338] sm:$0xf]
    %v928 = vld [vmem:[#allocation14 + $0x33c] sm:$0xf]
    %v929 = vld [vmem:[#allocation14 + $0x340] sm:$0xf]
    %v930 = vld [vmem:[#allocation14 + $0x344] sm:$0xf]
    %v931 = vld [vmem:[#allocation14 + $0x348] sm:$0xf]
    %v932 = vld [vmem:[#allocation14 + $0x34c] sm:$0xf]
    %v933 = vld [vmem:[#allocation14 + $0x350] sm:$0xf]
    %v934 = vld [vmem:[#allocation14 + $0x354] sm:$0xf]
    %v935 = vld [vmem:[#allocation14 + $0x358] sm:$0xf]
    %v936 = vld [vmem:[#allocation14 + $0x35c] sm:$0xf]
    %v937 = vld [vmem:[#allocation14 + $0x360] sm:$0xf]
    %v938 = vld [vmem:[#allocation14 + $0x364] sm:$0xf]
    %v939 = vld [vmem:[#allocation14 + $0x368] sm:$0xf]
    %v940 = vld [vmem:[#allocation14 + $0x36c] sm:$0xf]
    %v941 = vld [vmem:[#allocation14 + $0x370] sm:$0xf]
    %v942 = vld [vmem:[#allocation14 + $0x374] sm:$0xf]
    %v943 = vld [vmem:[#allocation14 + $0x378] sm:$0xf]
    %v944 = vld [vmem:[#allocation14 + $0x37c] sm:$0xf]
    %v945 = vld [vmem:[#allocation14 + $0x380] sm:$0xf]
    %v946 = vld [vmem:[#allocation14 + $0x384] sm:$0xf]
    %v947 = vld [vmem:[#allocation14 + $0x388] sm:$0xf]
    %v948 = vld [vmem:[#allocation14 + $0x38c] sm:$0xf]
    %v949 = vld [vmem:[#allocation14 + $0x390] sm:$0xf]
    %v950 = vld [vmem:[#allocation14 + $0x394] sm:$0xf]
    %v951 = vld [vmem:[#allocation14 + $0x398] sm:$0xf]
    %v952 = vld [vmem:[#allocation14 + $0x39c] sm:$0xf]
    %v953 = vld [vmem:[#allocation14 + $0x3a0] sm:$0xf]
    %v954 = vld [vmem:[#allocation14 + $0x3a4] sm:$0xf]
    %v955 = vld [vmem:[#allocation14 + $0x3a8] sm:$0xf]
    %v956 = vld [vmem:[#allocation14 + $0x3ac] sm:$0xf]
    %v957 = vld [vmem:[#allocation14 + $0x3b0] sm:$0xf]
    %v958 = vld [vmem:[#allocation14 + $0x3b4] sm:$0xf]
    %v959 = vld [vmem:[#allocation14 + $0x3b8] sm:$0xf]
    %v960 = vld [vmem:[#allocation14 + $0x3bc] sm:$0xf]
    %v961 = vld [vmem:[#allocation14 + $0x3c0] sm:$0xf]
    %v962 = vld [vmem:[#allocation14 + $0x3c4] sm:$0xf]
    %v963 = vld [vmem:[#allocation14 + $0x3c8] sm:$0xf]
    %v964 = vld [vmem:[#allocation14 + $0x3cc] sm:$0xf]
    %v965 = vld [vmem:[#allocation14 + $0x3d0] sm:$0xf]
    %v966 = vld [vmem:[#allocation14 + $0x3d4] sm:$0xf]
    %v967 = vld [vmem:[#allocation14 + $0x3d8] sm:$0xf]
    %v968 = vld [vmem:[#allocation14 + $0x3dc] sm:$0xf]
    %v969 = vld [vmem:[#allocation14 + $0x3e0] sm:$0xf]
    %v970 = vld [vmem:[#allocation14 + $0x3e4] sm:$0xf]
    %v971 = vld [vmem:[#allocation14 + $0x3e8] sm:$0xf]
    %v972 = vld [vmem:[#allocation14 + $0x3ec] sm:$0xf]
    %v973 = vld [vmem:[#allocation14 + $0x3f0] sm:$0xf]
    %v974 = vld [vmem:[#allocation14 + $0x3f4] sm:$0xf]
    %v975 = vld [vmem:[#allocation14 + $0x3f8] sm:$0xf]
    %v976 = vld [vmem:[#allocation14 + $0x3fc] sm:$0xf]
    %v977 = vld [vmem:[%s8] sm:$0x1]
    %v978 = vpack.c.bf16 %v686, %v686
    %v981 = vperm.slane %v719, 0
    %v982 = vperm.slane %v719, 1
    %v983 = vperm.slane %v719, 2
    %v984 = vperm.slane %v719, 3
    %v985 = vperm.slane %v719, 4
    %v986 = vperm.slane %v719, 5
    %v987 = vperm.slane %v719, 6
    %v988 = vperm.slane %v719, 7
    %v989 = vperm.slane %v720, 0
    %v990 = vperm.slane %v720, 1
    %v991 = vperm.slane %v720, 2
    %v992 = vperm.slane %v720, 3
    %v993 = vperm.slane %v720, 4
    %v994 = vperm.slane %v720, 5
    %v995 = vperm.slane %v720, 6
    %v996 = vperm.slane %v720, 7
    %v1045 = vunpack.c.l.b16 %v687
    %v1046 = vunpack.c.h.b16 %v687
    %v1047 = vunpack.c.l.b16 %v688
    %v1048 = vunpack.c.h.b16 %v688
    %v1049 = vunpack.c.l.b16 %v689
    %v1050 = vunpack.c.h.b16 %v689
    %v1051 = vunpack.c.l.b16 %v690
    %v1052 = vunpack.c.h.b16 %v690
    %v1053 = vunpack.c.l.b16 %v691
    %v1054 = vunpack.c.h.b16 %v691
    %v1055 = vunpack.c.l.b16 %v692
    %v1056 = vunpack.c.h.b16 %v692
    %v1057 = vunpack.c.l.b16 %v693
    %v1058 = vunpack.c.h.b16 %v693
    %v1059 = vunpack.c.l.b16 %v694
    %v1060 = vunpack.c.h.b16 %v694
    %v1061 = vunpack.c.l.b16 %v695
    %v1062 = vunpack.c.h.b16 %v695
    %v1063 = vunpack.c.l.b16 %v696
    %v1064 = vunpack.c.h.b16 %v696
    %v1065 = vunpack.c.l.b16 %v697
    %v1066 = vunpack.c.h.b16 %v697
    %v1067 = vunpack.c.l.b16 %v698
    %v1068 = vunpack.c.h.b16 %v698
    %v1069 = vunpack.c.l.b16 %v699
    %v1070 = vunpack.c.h.b16 %v699
    %v1071 = vunpack.c.l.b16 %v700
    %v1072 = vunpack.c.h.b16 %v700
    %v1073 = vunpack.c.l.b16 %v701
    %v1074 = vunpack.c.h.b16 %v701
    %v1075 = vunpack.c.l.b16 %v702
    %v1076 = vunpack.c.h.b16 %v702
    %v1077 = vunpack.c.l.b16 %v703
    %v1078 = vunpack.c.h.b16 %v703
    %v1079 = vunpack.c.l.b16 %v704
    %v1080 = vunpack.c.h.b16 %v704
    %v1081 = vunpack.c.l.b16 %v705
    %v1082 = vunpack.c.h.b16 %v705
    %v1083 = vunpack.c.l.b16 %v706
    %v1084 = vunpack.c.h.b16 %v706
    %v1085 = vunpack.c.l.b16 %v707
    %v1086 = vunpack.c.h.b16 %v707
    %v1087 = vunpack.c.l.b16 %v708
    %v1088 = vunpack.c.h.b16 %v708
    %v1089 = vunpack.c.l.b16 %v709
    %v1090 = vunpack.c.h.b16 %v709
    %v1091 = vunpack.c.l.b16 %v710
    %v1092 = vunpack.c.h.b16 %v710
    %v1093 = vunpack.c.l.b16 %v711
    %v1094 = vunpack.c.h.b16 %v711
    %v1095 = vunpack.c.l.b16 %v712
    %v1096 = vunpack.c.h.b16 %v712
    %v1097 = vunpack.c.l.b16 %v713
    %v1098 = vunpack.c.h.b16 %v713
    %v1099 = vunpack.c.l.b16 %v714
    %v1100 = vunpack.c.h.b16 %v714
    %v1101 = vunpack.c.l.b16 %v715
    %v1102 = vunpack.c.h.b16 %v715
    %v1103 = vunpack.c.l.b16 %v716
    %v1104 = vunpack.c.h.b16 %v716
    %v1105 = vunpack.c.l.b16 %v717
    %v1106 = vunpack.c.h.b16 %v717
    %v1107 = vunpack.c.l.b16 %v718
    %v1108 = vunpack.c.h.b16 %v718
    %v1109 = vpack.c.b16 %v1061, %v1045
    %v1110 = vpack.c.b16 %v1062, %v1046
    %v1111 = vpack.c.b16 %v1063, %v1047
    %v1112 = vpack.c.b16 %v1064, %v1048
    %v1113 = vpack.c.b16 %v1065, %v1049
    %v1114 = vpack.c.b16 %v1066, %v1050
    %v1115 = vpack.c.b16 %v1067, %v1051
    %v1116 = vpack.c.b16 %v1068, %v1052
    %v1117 = vpack.c.b16 %v1069, %v1053
    %v1118 = vpack.c.b16 %v1070, %v1054
    %v1119 = vpack.c.b16 %v1071, %v1055
    %v1120 = vpack.c.b16 %v1072, %v1056
    %v1121 = vpack.c.b16 %v1073, %v1057
    %v1122 = vpack.c.b16 %v1074, %v1058
    %v1123 = vpack.c.b16 %v1075, %v1059
    %v1124 = vpack.c.b16 %v1076, %v1060
    %v1125 = vpack.c.b16 %v1093, %v1077
    %v1126 = vpack.c.b16 %v1094, %v1078
    %v1127 = vpack.c.b16 %v1095, %v1079
    %v1128 = vpack.c.b16 %v1096, %v1080
    %v1129 = vpack.c.b16 %v1097, %v1081
    %v1130 = vpack.c.b16 %v1098, %v1082
    %v1131 = vpack.c.b16 %v1099, %v1083
    %v1132 = vpack.c.b16 %v1100, %v1084
    %v1133 = vpack.c.b16 %v1101, %v1085
    %v1134 = vpack.c.b16 %v1102, %v1086
    %v1135 = vpack.c.b16 %v1103, %v1087
    %v1136 = vpack.c.b16 %v1104, %v1088
    %v1137 = vpack.c.b16 %v1105, %v1089
    %v1138 = vpack.c.b16 %v1106, %v1090
    %v1139 = vpack.c.b16 %v1107, %v1091
    %v1140 = vpack.c.b16 %v1108, %v1092
    %v1174 = vsel %vm211, %v978, 0
    %1176 = vmatpush.bf16.msra.mxu0 0
    %1177 = vmatpush.bf16.msra.mxu0 0
    %1178 = vmatpush.bf16.msra.mxu0 0
    %1179 = vmatpush.bf16.msra.mxu0 0
    %1180 = vmatpush.bf16.msra.mxu0 0
    %1181 = vmatpush.bf16.msra.mxu0 0
    %1182 = vmatpush.bf16.msra.mxu0 %v1125
    %1183 = vmatpush.bf16.msra.mxu0 %v1109
    %1184 = vmatmul.bf16.gmra.mxu0 %v1174
    %v1185 = vpop.f32.mrf.mxu0
    %v1186 = vadd.f32 %v981, %v1185
    %v1187 = vpop.f32.mrf.mxu0
    %1188 = vdwg.mxu0
    %1189 = vmatpush.bf16.msra.mxu0 0
    %1190 = vmatpush.bf16.msra.mxu0 0
    %1191 = vmatpush.bf16.msra.mxu0 0
    %1192 = vmatpush.bf16.msra.mxu0 0
    %1193 = vmatpush.bf16.msra.mxu0 0
    %1194 = vmatpush.bf16.msra.mxu0 0
    %1195 = vmatpush.bf16.msra.mxu0 %v1126
    %1196 = vmatpush.bf16.msra.mxu0 %v1110
    %1197 = vmatmul.bf16.gmra.mxu0 %v1174
    %v1198 = vpop.f32.mrf.mxu0
    %v1199 = vadd.f32 %v982, %v1198
    %v1200 = vpop.f32.mrf.mxu0
    %1201 = vdwg.mxu0
    %1202 = vmatpush.bf16.msra.mxu0 0
    %1203 = vmatpush.bf16.msra.mxu0 0
    %1204 = vmatpush.bf16.msra.mxu0 0
    %1205 = vmatpush.bf16.msra.mxu0 0
    %1206 = vmatpush.bf16.msra.mxu0 0
    %1207 = vmatpush.bf16.msra.mxu0 0
    %1208 = vmatpush.bf16.msra.mxu0 %v1127
    %1209 = vmatpush.bf16.msra.mxu0 %v1111
    %1210 = vmatmul.bf16.gmra.mxu0 %v1174
    %v1211 = vpop.f32.mrf.mxu0
    %v1212 = vadd.f32 %v983, %v1211
    %v1213 = vpop.f32.mrf.mxu0
    %1214 = vdwg.mxu0
    %1215 = vmatpush.bf16.msra.mxu0 0
    %1216 = vmatpush.bf16.msra.mxu0 0
    %1217 = vmatpush.bf16.msra.mxu0 0
    %1218 = vmatpush.bf16.msra.mxu0 0
    %1219 = vmatpush.bf16.msra.mxu0 0
    %1220 = vmatpush.bf16.msra.mxu0 0
    %1221 = vmatpush.bf16.msra.mxu0 %v1128
    %1222 = vmatpush.bf16.msra.mxu0 %v1112
    %1223 = vmatmul.bf16.gmra.mxu0 %v1174
    %v1224 = vpop.f32.mrf.mxu0
    %v1225 = vadd.f32 %v984, %v1224
    %v1226 = vpop.f32.mrf.mxu0
    %1227 = vdwg.mxu0
    %1228 = vmatpush.bf16.msra.mxu0 0
    %1229 = vmatpush.bf16.msra.mxu0 0
    %1230 = vmatpush.bf16.msra.mxu0 0
    %1231 = vmatpush.bf16.msra.mxu0 0
    %1232 = vmatpush.bf16.msra.mxu0 0
    %1233 = vmatpush.bf16.msra.mxu0 0
    %1234 = vmatpush.bf16.msra.mxu0 %v1129
    %1235 = vmatpush.bf16.msra.mxu0 %v1113
    %1236 = vmatmul.bf16.gmra.mxu0 %v1174
    %v1237 = vpop.f32.mrf.mxu0
    %v1238 = vadd.f32 %v985, %v1237
    %v1239 = vpop.f32.mrf.mxu0
    %1240 = vdwg.mxu0
    %1241 = vmatpush.bf16.msra.mxu0 0
    %1242 = vmatpush.bf16.msra.mxu0 0
    %1243 = vmatpush.bf16.msra.mxu0 0
    %1244 = vmatpush.bf16.msra.mxu0 0
    %1245 = vmatpush.bf16.msra.mxu0 0
    %1246 = vmatpush.bf16.msra.mxu0 0
    %1247 = vmatpush.bf16.msra.mxu0 %v1130
    %1248 = vmatpush.bf16.msra.mxu0 %v1114
    %1249 = vmatmul.bf16.gmra.mxu0 %v1174
    %v1250 = vpop.f32.mrf.mxu0
    %v1251 = vadd.f32 %v986, %v1250
    %v1252 = vpop.f32.mrf.mxu0
    %1253 = vdwg.mxu0
    %1254 = vmatpush.bf16.msra.mxu0 0
    %1255 = vmatpush.bf16.msra.mxu0 0
    %1256 = vmatpush.bf16.msra.mxu0 0
    %1257 = vmatpush.bf16.msra.mxu0 0
    %1258 = vmatpush.bf16.msra.mxu0 0
    %1259 = vmatpush.bf16.msra.mxu0 0
    %1260 = vmatpush.bf16.msra.mxu0 %v1131
    %1261 = vmatpush.bf16.msra.mxu0 %v1115
    %1262 = vmatmul.bf16.gmra.mxu0 %v1174
    %v1263 = vpop.f32.mrf.mxu0
    %v1264 = vadd.f32 %v987, %v1263
    %v1265 = vpop.f32.mrf.mxu0
    %1266 = vdwg.mxu0
    %1267 = vmatpush.bf16.msra.mxu0 0
    %1268 = vmatpush.bf16.msra.mxu0 0
    %1269 = vmatpush.bf16.msra.mxu0 0
    %1270 = vmatpush.bf16.msra.mxu0 0
    %1271 = vmatpush.bf16.msra.mxu0 0
    %1272 = vmatpush.bf16.msra.mxu0 0
    %1273 = vmatpush.bf16.msra.mxu0 %v1132
    %1274 = vmatpush.bf16.msra.mxu0 %v1116
    %1275 = vmatmul.bf16.gmra.mxu0 %v1174
    %v1276 = vpop.f32.mrf.mxu0
    %v1277 = vadd.f32 %v988, %v1276
    %v1278 = vpop.f32.mrf.mxu0
    %1279 = vdwg.mxu0
    %1280 = vmatpush.bf16.msra.mxu0 0
    %1281 = vmatpush.bf16.msra.mxu0 0
    %1282 = vmatpush.bf16.msra.mxu0 0
    %1283 = vmatpush.bf16.msra.mxu0 0
    %1284 = vmatpush.bf16.msra.mxu0 0
    %1285 = vmatpush.bf16.msra.mxu0 0
    %1286 = vmatpush.bf16.msra.mxu0 %v1133
    %1287 = vmatpush.bf16.msra.mxu0 %v1117
    %1288 = vmatmul.bf16.gmra.mxu0 %v1174
    %v1289 = vpop.f32.mrf.mxu0
    %v1290 = vadd.f32 %v989, %v1289
    %v1291 = vpop.f32.mrf.mxu0
    %1292 = vdwg.mxu0
    %1293 = vmatpush.bf16.msra.mxu0 0
    %1294 = vmatpush.bf16.msra.mxu0 0
    %1295 = vmatpush.bf16.msra.mxu0 0
    %1296 = vmatpush.bf16.msra.mxu0 0
    %1297 = vmatpush.bf16.msra.mxu0 0
    %1298 = vmatpush.bf16.msra.mxu0 0
    %1299 = vmatpush.bf16.msra.mxu0 %v1134
    %1300 = vmatpush.bf16.msra.mxu0 %v1118
    %1301 = vmatmul.bf16.gmra.mxu0 %v1174
    %v1302 = vpop.f32.mrf.mxu0
    %v1303 = vadd.f32 %v990, %v1302
    %v1304 = vpop.f32.mrf.mxu0
    %1305 = vdwg.mxu0
    %1306 = vmatpush.bf16.msra.mxu0 0
    %1307 = vmatpush.bf16.msra.mxu0 0
    %1308 = vmatpush.bf16.msra.mxu0 0
    %1309 = vmatpush.bf16.msra.mxu0 0
    %1310 = vmatpush.bf16.msra.mxu0 0
    %1311 = vmatpush.bf16.msra.mxu0 0
    %1312 = vmatpush.bf16.msra.mxu0 %v1135
    %1313 = vmatpush.bf16.msra.mxu0 %v1119
    %1314 = vmatmul.bf16.gmra.mxu0 %v1174
    %v1315 = vpop.f32.mrf.mxu0
    %v1316 = vadd.f32 %v991, %v1315
    %v1317 = vpop.f32.mrf.mxu0
    %1318 = vdwg.mxu0
    %1319 = vmatpush.bf16.msra.mxu0 0
    %1320 = vmatpush.bf16.msra.mxu0 0
    %1321 = vmatpush.bf16.msra.mxu0 0
    %1322 = vmatpush.bf16.msra.mxu0 0
    %1323 = vmatpush.bf16.msra.mxu0 0
    %1324 = vmatpush.bf16.msra.mxu0 0
    %1325 = vmatpush.bf16.msra.mxu0 %v1136
    %1326 = vmatpush.bf16.msra.mxu0 %v1120
    %1327 = vmatmul.bf16.gmra.mxu0 %v1174
    %v1328 = vpop.f32.mrf.mxu0
    %v1329 = vadd.f32 %v992, %v1328
    %v1330 = vpop.f32.mrf.mxu0
    %1331 = vdwg.mxu0
    %1332 = vmatpush.bf16.msra.mxu0 0
    %1333 = vmatpush.bf16.msra.mxu0 0
    %1334 = vmatpush.bf16.msra.mxu0 0
    %1335 = vmatpush.bf16.msra.mxu0 0
    %1336 = vmatpush.bf16.msra.mxu0 0
    %1337 = vmatpush.bf16.msra.mxu0 0
    %1338 = vmatpush.bf16.msra.mxu0 %v1137
    %1339 = vmatpush.bf16.msra.mxu0 %v1121
    %1340 = vmatmul.bf16.gmra.mxu0 %v1174
    %v1341 = vpop.f32.mrf.mxu0
    %v1342 = vadd.f32 %v993, %v1341
    %v1343 = vpop.f32.mrf.mxu0
    %1344 = vdwg.mxu0
    %1345 = vmatpush.bf16.msra.mxu0 0
    %1346 = vmatpush.bf16.msra.mxu0 0
    %1347 = vmatpush.bf16.msra.mxu0 0
    %1348 = vmatpush.bf16.msra.mxu0 0
    %1349 = vmatpush.bf16.msra.mxu0 0
    %1350 = vmatpush.bf16.msra.mxu0 0
    %1351 = vmatpush.bf16.msra.mxu0 %v1138
    %1352 = vmatpush.bf16.msra.mxu0 %v1122
    %1353 = vmatmul.bf16.gmra.mxu0 %v1174
    %v1354 = vpop.f32.mrf.mxu0
    %v1355 = vadd.f32 %v994, %v1354
    %v1356 = vpop.f32.mrf.mxu0
    %1357 = vdwg.mxu0
    %1358 = vmatpush.bf16.msra.mxu0 0
    %1359 = vmatpush.bf16.msra.mxu0 0
    %1360 = vmatpush.bf16.msra.mxu0 0
    %1361 = vmatpush.bf16.msra.mxu0 0
    %1362 = vmatpush.bf16.msra.mxu0 0
    %1363 = vmatpush.bf16.msra.mxu0 0
    %1364 = vmatpush.bf16.msra.mxu0 %v1139
    %1365 = vmatpush.bf16.msra.mxu0 %v1123
    %1366 = vmatmul.bf16.gmra.mxu0 %v1174
    %v1367 = vpop.f32.mrf.mxu0
    %v1368 = vadd.f32 %v995, %v1367
    %v1369 = vpop.f32.mrf.mxu0
    %1370 = vdwg.mxu0
    %1371 = vmatpush.bf16.msra.mxu0 0
    %1372 = vmatpush.bf16.msra.mxu0 0
    %1373 = vmatpush.bf16.msra.mxu0 0
    %1374 = vmatpush.bf16.msra.mxu0 0
    %1375 = vmatpush.bf16.msra.mxu0 0
    %1376 = vmatpush.bf16.msra.mxu0 0
    %1377 = vmatpush.bf16.msra.mxu0 %v1140
    %1378 = vmatpush.bf16.msra.mxu0 %v1124
    %1379 = vmatmul.bf16.gmra.mxu0 %v1174
    %v1380 = vpop.f32.mrf.mxu0
    %v1381 = vadd.f32 %v996, %v1380
    %v1382 = vpop.f32.mrf.mxu0
    %1383 = vdwg.mxu0
    %v1384 = vmax.f32 %v1186, 0.0
    %v1385 = vmax.f32 %v1199, 0.0
    %v1386 = vmax.f32 %v1212, 0.0
    %v1387 = vmax.f32 %v1225, 0.0
    %v1388 = vmax.f32 %v1238, 0.0
    %v1389 = vmax.f32 %v1251, 0.0
    %v1390 = vmax.f32 %v1264, 0.0
    %v1391 = vmax.f32 %v1277, 0.0
    %v1392 = vmax.f32 %v1290, 0.0
    %v1393 = vmax.f32 %v1303, 0.0
    %v1394 = vmax.f32 %v1316, 0.0
    %v1395 = vmax.f32 %v1329, 0.0
    %v1396 = vmax.f32 %v1342, 0.0
    %v1397 = vmax.f32 %v1355, 0.0
    %v1398 = vmax.f32 %v1368, 0.0
    %v1399 = vmax.f32 %v1381, 0.0
    %v1400 = vpack.c.bf16 %v1384, %v1384
    %v1401 = vpack.c.bf16 %v1385, %v1385
    %v1402 = vpack.c.bf16 %v1386, %v1386
    %v1403 = vpack.c.bf16 %v1387, %v1387
    %v1404 = vpack.c.bf16 %v1388, %v1388
    %v1405 = vpack.c.bf16 %v1389, %v1389
    %v1406 = vpack.c.bf16 %v1390, %v1390
    %v1407 = vpack.c.bf16 %v1391, %v1391
    %v1408 = vpack.c.bf16 %v1392, %v1392
    %v1409 = vpack.c.bf16 %v1393, %v1393
    %v1410 = vpack.c.bf16 %v1394, %v1394
    %v1411 = vpack.c.bf16 %v1395, %v1395
    %v1412 = vpack.c.bf16 %v1396, %v1396
    %v1413 = vpack.c.bf16 %v1397, %v1397
    %v1414 = vpack.c.bf16 %v1398, %v1398
    %v1415 = vpack.c.bf16 %v1399, %v1399
    %v1417 = vperm.slane %v977, 0
    %v1675 = vunpack.c.l.b16 %v721
    %v1676 = vunpack.c.l.b16 %v722
    %v1677 = vunpack.c.l.b16 %v723
    %v1678 = vunpack.c.l.b16 %v724
    %v1679 = vunpack.c.l.b16 %v725
    %v1680 = vunpack.c.l.b16 %v726
    %v1681 = vunpack.c.l.b16 %v727
    %v1682 = vunpack.c.l.b16 %v728
    %v1683 = vunpack.c.l.b16 %v729
    %v1684 = vunpack.c.l.b16 %v730
    %v1685 = vunpack.c.l.b16 %v731
    %v1686 = vunpack.c.l.b16 %v732
    %v1687 = vunpack.c.l.b16 %v733
    %v1688 = vunpack.c.l.b16 %v734
    %v1689 = vunpack.c.l.b16 %v735
    %v1690 = vunpack.c.l.b16 %v736
    %v1691 = vunpack.c.l.b16 %v737
    %v1692 = vunpack.c.l.b16 %v738
    %v1693 = vunpack.c.l.b16 %v739
    %v1694 = vunpack.c.l.b16 %v740
    %v1695 = vunpack.c.l.b16 %v741
    %v1696 = vunpack.c.l.b16 %v742
    %v1697 = vunpack.c.l.b16 %v743
    %v1698 = vunpack.c.l.b16 %v744
    %v1699 = vunpack.c.l.b16 %v745
    %v1700 = vunpack.c.l.b16 %v746
    %v1701 = vunpack.c.l.b16 %v747
    %v1702 = vunpack.c.l.b16 %v748
    %v1703 = vunpack.c.l.b16 %v749
    %v1704 = vunpack.c.l.b16 %v750
    %v1705 = vunpack.c.l.b16 %v751
    %v1706 = vunpack.c.l.b16 %v752
    %v1707 = vunpack.c.l.b16 %v753
    %v1708 = vunpack.c.l.b16 %v754
    %v1709 = vunpack.c.l.b16 %v755
    %v1710 = vunpack.c.l.b16 %v756
    %v1711 = vunpack.c.l.b16 %v757
    %v1712 = vunpack.c.l.b16 %v758
    %v1713 = vunpack.c.l.b16 %v759
    %v1714 = vunpack.c.l.b16 %v760
    %v1715 = vunpack.c.l.b16 %v761
    %v1716 = vunpack.c.l.b16 %v762
    %v1717 = vunpack.c.l.b16 %v763
    %v1718 = vunpack.c.l.b16 %v764
    %v1719 = vunpack.c.l.b16 %v765
    %v1720 = vunpack.c.l.b16 %v766
    %v1721 = vunpack.c.l.b16 %v767
    %v1722 = vunpack.c.l.b16 %v768
    %v1723 = vunpack.c.l.b16 %v769
    %v1724 = vunpack.c.l.b16 %v770
    %v1725 = vunpack.c.l.b16 %v771
    %v1726 = vunpack.c.l.b16 %v772
    %v1727 = vunpack.c.l.b16 %v773
    %v1728 = vunpack.c.l.b16 %v774
    %v1729 = vunpack.c.l.b16 %v775
    %v1730 = vunpack.c.l.b16 %v776
    %v1731 = vunpack.c.l.b16 %v777
    %v1732 = vunpack.c.l.b16 %v778
    %v1733 = vunpack.c.l.b16 %v779
    %v1734 = vunpack.c.l.b16 %v780
    %v1735 = vunpack.c.l.b16 %v781
    %v1736 = vunpack.c.l.b16 %v782
    %v1737 = vunpack.c.l.b16 %v783
    %v1738 = vunpack.c.l.b16 %v784
    %v1739 = vunpack.c.l.b16 %v785
    %v1740 = vunpack.c.l.b16 %v786
    %v1741 = vunpack.c.l.b16 %v787
    %v1742 = vunpack.c.l.b16 %v788
    %v1743 = vunpack.c.l.b16 %v789
    %v1744 = vunpack.c.l.b16 %v790
    %v1745 = vunpack.c.l.b16 %v791
    %v1746 = vunpack.c.l.b16 %v792
    %v1747 = vunpack.c.l.b16 %v793
    %v1748 = vunpack.c.l.b16 %v794
    %v1749 = vunpack.c.l.b16 %v795
    %v1750 = vunpack.c.l.b16 %v796
    %v1751 = vunpack.c.l.b16 %v797
    %v1752 = vunpack.c.l.b16 %v798
    %v1753 = vunpack.c.l.b16 %v799
    %v1754 = vunpack.c.l.b16 %v800
    %v1755 = vunpack.c.l.b16 %v801
    %v1756 = vunpack.c.l.b16 %v802
    %v1757 = vunpack.c.l.b16 %v803
    %v1758 = vunpack.c.l.b16 %v804
    %v1759 = vunpack.c.l.b16 %v805
    %v1760 = vunpack.c.l.b16 %v806
    %v1761 = vunpack.c.l.b16 %v807
    %v1762 = vunpack.c.l.b16 %v808
    %v1763 = vunpack.c.l.b16 %v809
    %v1764 = vunpack.c.l.b16 %v810
    %v1765 = vunpack.c.l.b16 %v811
    %v1766 = vunpack.c.l.b16 %v812
    %v1767 = vunpack.c.l.b16 %v813
    %v1768 = vunpack.c.l.b16 %v814
    %v1769 = vunpack.c.l.b16 %v815
    %v1770 = vunpack.c.l.b16 %v816
    %v1771 = vunpack.c.l.b16 %v817
    %v1772 = vunpack.c.l.b16 %v818
    %v1773 = vunpack.c.l.b16 %v819
    %v1774 = vunpack.c.l.b16 %v820
    %v1775 = vunpack.c.l.b16 %v821
    %v1776 = vunpack.c.l.b16 %v822
    %v1777 = vunpack.c.l.b16 %v823
    %v1778 = vunpack.c.l.b16 %v824
    %v1779 = vunpack.c.l.b16 %v825
    %v1780 = vunpack.c.l.b16 %v826
    %v1781 = vunpack.c.l.b16 %v827
    %v1782 = vunpack.c.l.b16 %v828
    %v1783 = vunpack.c.l.b16 %v829
    %v1784 = vunpack.c.l.b16 %v830
    %v1785 = vunpack.c.l.b16 %v831
    %v1786 = vunpack.c.l.b16 %v832
    %v1787 = vunpack.c.l.b16 %v833
    %v1788 = vunpack.c.l.b16 %v834
    %v1789 = vunpack.c.l.b16 %v835
    %v1790 = vunpack.c.l.b16 %v836
    %v1791 = vunpack.c.l.b16 %v837
    %v1792 = vunpack.c.l.b16 %v838
    %v1793 = vunpack.c.l.b16 %v839
    %v1794 = vunpack.c.l.b16 %v840
    %v1795 = vunpack.c.l.b16 %v841
    %v1796 = vunpack.c.l.b16 %v842
    %v1797 = vunpack.c.l.b16 %v843
    %v1798 = vunpack.c.l.b16 %v844
    %v1799 = vunpack.c.l.b16 %v845
    %v1800 = vunpack.c.l.b16 %v846
    %v1801 = vunpack.c.l.b16 %v847
    %v1802 = vunpack.c.l.b16 %v848
    %v1803 = vunpack.c.l.b16 %v849
    %v1804 = vunpack.c.l.b16 %v850
    %v1805 = vunpack.c.l.b16 %v851
    %v1806 = vunpack.c.l.b16 %v852
    %v1807 = vunpack.c.l.b16 %v853
    %v1808 = vunpack.c.l.b16 %v854
    %v1809 = vunpack.c.l.b16 %v855
    %v1810 = vunpack.c.l.b16 %v856
    %v1811 = vunpack.c.l.b16 %v857
    %v1812 = vunpack.c.l.b16 %v858
    %v1813 = vunpack.c.l.b16 %v859
    %v1814 = vunpack.c.l.b16 %v860
    %v1815 = vunpack.c.l.b16 %v861
    %v1816 = vunpack.c.l.b16 %v862
    %v1817 = vunpack.c.l.b16 %v863
    %v1818 = vunpack.c.l.b16 %v864
    %v1819 = vunpack.c.l.b16 %v865
    %v1820 = vunpack.c.l.b16 %v866
    %v1821 = vunpack.c.l.b16 %v867
    %v1822 = vunpack.c.l.b16 %v868
    %v1823 = vunpack.c.l.b16 %v869
    %v1824 = vunpack.c.l.b16 %v870
    %v1825 = vunpack.c.l.b16 %v871
    %v1826 = vunpack.c.l.b16 %v872
    %v1827 = vunpack.c.l.b16 %v873
    %v1828 = vunpack.c.l.b16 %v874
    %v1829 = vunpack.c.l.b16 %v875
    %v1830 = vunpack.c.l.b16 %v876
    %v1831 = vunpack.c.l.b16 %v877
    %v1832 = vunpack.c.l.b16 %v878
    %v1833 = vunpack.c.l.b16 %v879
    %v1834 = vunpack.c.l.b16 %v880
    %v1835 = vunpack.c.l.b16 %v881
    %v1836 = vunpack.c.l.b16 %v882
    %v1837 = vunpack.c.l.b16 %v883
    %v1838 = vunpack.c.l.b16 %v884
    %v1839 = vunpack.c.l.b16 %v885
    %v1840 = vunpack.c.l.b16 %v886
    %v1841 = vunpack.c.l.b16 %v887
    %v1842 = vunpack.c.l.b16 %v888
    %v1843 = vunpack.c.l.b16 %v889
    %v1844 = vunpack.c.l.b16 %v890
    %v1845 = vunpack.c.l.b16 %v891
    %v1846 = vunpack.c.l.b16 %v892
    %v1847 = vunpack.c.l.b16 %v893
    %v1848 = vunpack.c.l.b16 %v894
    %v1849 = vunpack.c.l.b16 %v895
    %v1850 = vunpack.c.l.b16 %v896
    %v1851 = vunpack.c.l.b16 %v897
    %v1852 = vunpack.c.l.b16 %v898
    %v1853 = vunpack.c.l.b16 %v899
    %v1854 = vunpack.c.l.b16 %v900
    %v1855 = vunpack.c.l.b16 %v901
    %v1856 = vunpack.c.l.b16 %v902
    %v1857 = vunpack.c.l.b16 %v903
    %v1858 = vunpack.c.l.b16 %v904
    %v1859 = vunpack.c.l.b16 %v905
    %v1860 = vunpack.c.l.b16 %v906
    %v1861 = vunpack.c.l.b16 %v907
    %v1862 = vunpack.c.l.b16 %v908
    %v1863 = vunpack.c.l.b16 %v909
    %v1864 = vunpack.c.l.b16 %v910
    %v1865 = vunpack.c.l.b16 %v911
    %v1866 = vunpack.c.l.b16 %v912
    %v1867 = vunpack.c.l.b16 %v913
    %v1868 = vunpack.c.l.b16 %v914
    %v1869 = vunpack.c.l.b16 %v915
    %v1870 = vunpack.c.l.b16 %v916
    %v1871 = vunpack.c.l.b16 %v917
    %v1872 = vunpack.c.l.b16 %v918
    %v1873 = vunpack.c.l.b16 %v919
    %v1874 = vunpack.c.l.b16 %v920
    %v1875 = vunpack.c.l.b16 %v921
    %v1876 = vunpack.c.l.b16 %v922
    %v1877 = vunpack.c.l.b16 %v923
    %v1878 = vunpack.c.l.b16 %v924
    %v1879 = vunpack.c.l.b16 %v925
    %v1880 = vunpack.c.l.b16 %v926
    %v1881 = vunpack.c.l.b16 %v927
    %v1882 = vunpack.c.l.b16 %v928
    %v1883 = vunpack.c.l.b16 %v929
    %v1884 = vunpack.c.l.b16 %v930
    %v1885 = vunpack.c.l.b16 %v931
    %v1886 = vunpack.c.l.b16 %v932
    %v1887 = vunpack.c.l.b16 %v933
    %v1888 = vunpack.c.l.b16 %v934
    %v1889 = vunpack.c.l.b16 %v935
    %v1890 = vunpack.c.l.b16 %v936
    %v1891 = vunpack.c.l.b16 %v937
    %v1892 = vunpack.c.l.b16 %v938
    %v1893 = vunpack.c.l.b16 %v939
    %v1894 = vunpack.c.l.b16 %v940
    %v1895 = vunpack.c.l.b16 %v941
    %v1896 = vunpack.c.l.b16 %v942
    %v1897 = vunpack.c.l.b16 %v943
    %v1898 = vunpack.c.l.b16 %v944
    %v1899 = vunpack.c.l.b16 %v945
    %v1900 = vunpack.c.l.b16 %v946
    %v1901 = vunpack.c.l.b16 %v947
    %v1902 = vunpack.c.l.b16 %v948
    %v1903 = vunpack.c.l.b16 %v949
    %v1904 = vunpack.c.l.b16 %v950
    %v1905 = vunpack.c.l.b16 %v951
    %v1906 = vunpack.c.l.b16 %v952
    %v1907 = vunpack.c.l.b16 %v953
    %v1908 = vunpack.c.l.b16 %v954
    %v1909 = vunpack.c.l.b16 %v955
    %v1910 = vunpack.c.l.b16 %v956
    %v1911 = vunpack.c.l.b16 %v957
    %v1912 = vunpack.c.l.b16 %v958
    %v1913 = vunpack.c.l.b16 %v959
    %v1914 = vunpack.c.l.b16 %v960
    %v1915 = vunpack.c.l.b16 %v961
    %v1916 = vunpack.c.l.b16 %v962
    %v1917 = vunpack.c.l.b16 %v963
    %v1918 = vunpack.c.l.b16 %v964
    %v1919 = vunpack.c.l.b16 %v965
    %v1920 = vunpack.c.l.b16 %v966
    %v1921 = vunpack.c.l.b16 %v967
    %v1922 = vunpack.c.l.b16 %v968
    %v1923 = vunpack.c.l.b16 %v969
    %v1924 = vunpack.c.l.b16 %v970
    %v1925 = vunpack.c.l.b16 %v971
    %v1926 = vunpack.c.l.b16 %v972
    %v1927 = vunpack.c.l.b16 %v973
    %v1928 = vunpack.c.l.b16 %v974
    %v1929 = vunpack.c.l.b16 %v975
    %v1930 = vunpack.c.l.b16 %v976
    %v1931 = vpack.c.b16 %v1676, %v1675
    %v1932 = vpack.c.b16 %v1678, %v1677
    %v1933 = vpack.c.b16 %v1680, %v1679
    %v1934 = vpack.c.b16 %v1682, %v1681
    %v1935 = vpack.c.b16 %v1684, %v1683
    %v1936 = vpack.c.b16 %v1686, %v1685
    %v1937 = vpack.c.b16 %v1688, %v1687
    %v1938 = vpack.c.b16 %v1690, %v1689
    %v1939 = vpack.c.b16 %v1692, %v1691
    %v1940 = vpack.c.b16 %v1694, %v1693
    %v1941 = vpack.c.b16 %v1696, %v1695
    %v1942 = vpack.c.b16 %v1698, %v1697
    %v1943 = vpack.c.b16 %v1700, %v1699
    %v1944 = vpack.c.b16 %v1702, %v1701
    %v1945 = vpack.c.b16 %v1704, %v1703
    %v1946 = vpack.c.b16 %v1706, %v1705
    %v1947 = vpack.c.b16 %v1708, %v1707
    %v1948 = vpack.c.b16 %v1710, %v1709
    %v1949 = vpack.c.b16 %v1712, %v1711
    %v1950 = vpack.c.b16 %v1714, %v1713
    %v1951 = vpack.c.b16 %v1716, %v1715
    %v1952 = vpack.c.b16 %v1718, %v1717
    %v1953 = vpack.c.b16 %v1720, %v1719
    %v1954 = vpack.c.b16 %v1722, %v1721
    %v1955 = vpack.c.b16 %v1724, %v1723
    %v1956 = vpack.c.b16 %v1726, %v1725
    %v1957 = vpack.c.b16 %v1728, %v1727
    %v1958 = vpack.c.b16 %v1730, %v1729
    %v1959 = vpack.c.b16 %v1732, %v1731
    %v1960 = vpack.c.b16 %v1734, %v1733
    %v1961 = vpack.c.b16 %v1736, %v1735
    %v1962 = vpack.c.b16 %v1738, %v1737
    %v1963 = vpack.c.b16 %v1740, %v1739
    %v1964 = vpack.c.b16 %v1742, %v1741
    %v1965 = vpack.c.b16 %v1744, %v1743
    %v1966 = vpack.c.b16 %v1746, %v1745
    %v1967 = vpack.c.b16 %v1748, %v1747
    %v1968 = vpack.c.b16 %v1750, %v1749
    %v1969 = vpack.c.b16 %v1752, %v1751
    %v1970 = vpack.c.b16 %v1754, %v1753
    %v1971 = vpack.c.b16 %v1756, %v1755
    %v1972 = vpack.c.b16 %v1758, %v1757
    %v1973 = vpack.c.b16 %v1760, %v1759
    %v1974 = vpack.c.b16 %v1762, %v1761
    %v1975 = vpack.c.b16 %v1764, %v1763
    %v1976 = vpack.c.b16 %v1766, %v1765
    %v1977 = vpack.c.b16 %v1768, %v1767
    %v1978 = vpack.c.b16 %v1770, %v1769
    %v1979 = vpack.c.b16 %v1772, %v1771
    %v1980 = vpack.c.b16 %v1774, %v1773
    %v1981 = vpack.c.b16 %v1776, %v1775
    %v1982 = vpack.c.b16 %v1778, %v1777
    %v1983 = vpack.c.b16 %v1780, %v1779
    %v1984 = vpack.c.b16 %v1782, %v1781
    %v1985 = vpack.c.b16 %v1784, %v1783
    %v1986 = vpack.c.b16 %v1786, %v1785
    %v1987 = vpack.c.b16 %v1788, %v1787
    %v1988 = vpack.c.b16 %v1790, %v1789
    %v1989 = vpack.c.b16 %v1792, %v1791
    %v1990 = vpack.c.b16 %v1794, %v1793
    %v1991 = vpack.c.b16 %v1796, %v1795
    %v1992 = vpack.c.b16 %v1798, %v1797
    %v1993 = vpack.c.b16 %v1800, %v1799
    %v1994 = vpack.c.b16 %v1802, %v1801
    %v1995 = vpack.c.b16 %v1804, %v1803
    %v1996 = vpack.c.b16 %v1806, %v1805
    %v1997 = vpack.c.b16 %v1808, %v1807
    %v1998 = vpack.c.b16 %v1810, %v1809
    %v1999 = vpack.c.b16 %v1812, %v1811
    %v2000 = vpack.c.b16 %v1814, %v1813
    %v2001 = vpack.c.b16 %v1816, %v1815
    %v2002 = vpack.c.b16 %v1818, %v1817
    %v2003 = vpack.c.b16 %v1820, %v1819
    %v2004 = vpack.c.b16 %v1822, %v1821
    %v2005 = vpack.c.b16 %v1824, %v1823
    %v2006 = vpack.c.b16 %v1826, %v1825
    %v2007 = vpack.c.b16 %v1828, %v1827
    %v2008 = vpack.c.b16 %v1830, %v1829
    %v2009 = vpack.c.b16 %v1832, %v1831
    %v2010 = vpack.c.b16 %v1834, %v1833
    %v2011 = vpack.c.b16 %v1836, %v1835
    %v2012 = vpack.c.b16 %v1838, %v1837
    %v2013 = vpack.c.b16 %v1840, %v1839
    %v2014 = vpack.c.b16 %v1842, %v1841
    %v2015 = vpack.c.b16 %v1844, %v1843
    %v2016 = vpack.c.b16 %v1846, %v1845
    %v2017 = vpack.c.b16 %v1848, %v1847
    %v2018 = vpack.c.b16 %v1850, %v1849
    %v2019 = vpack.c.b16 %v1852, %v1851
    %v2020 = vpack.c.b16 %v1854, %v1853
    %v2021 = vpack.c.b16 %v1856, %v1855
    %v2022 = vpack.c.b16 %v1858, %v1857
    %v2023 = vpack.c.b16 %v1860, %v1859
    %v2024 = vpack.c.b16 %v1862, %v1861
    %v2025 = vpack.c.b16 %v1864, %v1863
    %v2026 = vpack.c.b16 %v1866, %v1865
    %v2027 = vpack.c.b16 %v1868, %v1867
    %v2028 = vpack.c.b16 %v1870, %v1869
    %v2029 = vpack.c.b16 %v1872, %v1871
    %v2030 = vpack.c.b16 %v1874, %v1873
    %v2031 = vpack.c.b16 %v1876, %v1875
    %v2032 = vpack.c.b16 %v1878, %v1877
    %v2033 = vpack.c.b16 %v1880, %v1879
    %v2034 = vpack.c.b16 %v1882, %v1881
    %v2035 = vpack.c.b16 %v1884, %v1883
    %v2036 = vpack.c.b16 %v1886, %v1885
    %v2037 = vpack.c.b16 %v1888, %v1887
    %v2038 = vpack.c.b16 %v1890, %v1889
    %v2039 = vpack.c.b16 %v1892, %v1891
    %v2040 = vpack.c.b16 %v1894, %v1893
    %v2041 = vpack.c.b16 %v1896, %v1895
    %v2042 = vpack.c.b16 %v1898, %v1897
    %v2043 = vpack.c.b16 %v1900, %v1899
    %v2044 = vpack.c.b16 %v1902, %v1901
    %v2045 = vpack.c.b16 %v1904, %v1903
    %v2046 = vpack.c.b16 %v1906, %v1905
    %v2047 = vpack.c.b16 %v1908, %v1907
    %v2048 = vpack.c.b16 %v1910, %v1909
    %v2049 = vpack.c.b16 %v1912, %v1911
    %v2050 = vpack.c.b16 %v1914, %v1913
    %v2051 = vpack.c.b16 %v1916, %v1915
    %v2052 = vpack.c.b16 %v1918, %v1917
    %v2053 = vpack.c.b16 %v1920, %v1919
    %v2054 = vpack.c.b16 %v1922, %v1921
    %v2055 = vpack.c.b16 %v1924, %v1923
    %v2056 = vpack.c.b16 %v1926, %v1925
    %v2057 = vpack.c.b16 %v1928, %v1927
    %v2058 = vpack.c.b16 %v1930, %v1929
    %2187 = vmatpush.bf16.msra.mxu0 %v1938
    %2188 = vmatpush.bf16.msra.mxu0 %v1937
    %2189 = vmatpush.bf16.msra.mxu0 %v1936
    %2190 = vmatpush.bf16.msra.mxu0 %v1935
    %2191 = vmatpush.bf16.msra.mxu0 %v1934
    %2192 = vmatpush.bf16.msra.mxu0 %v1933
    %2193 = vmatpush.bf16.msra.mxu0 %v1932
    %2194 = vmatpush.bf16.msra.mxu0 %v1931
    %2195 = vmatmul.bf16.gmra.mxu0 %v1400
    %v2196 = vpop.f32.mrf.mxu0
    %v2197 = vadd.f32 %v1417, %v2196
    %v2198 = vpop.f32.mrf.mxu0
    %2199 = vdwg.mxu0
    %2200 = vmatpush.bf16.msra.mxu0 %v1946
    %2201 = vmatpush.bf16.msra.mxu0 %v1945
    %2202 = vmatpush.bf16.msra.mxu0 %v1944
    %2203 = vmatpush.bf16.msra.mxu0 %v1943
    %2204 = vmatpush.bf16.msra.mxu0 %v1942
    %2205 = vmatpush.bf16.msra.mxu0 %v1941
    %2206 = vmatpush.bf16.msra.mxu0 %v1940
    %2207 = vmatpush.bf16.msra.mxu0 %v1939
    %2208 = vmatmul.bf16.gmra.mxu0 %v1401
    %v2209 = vpop.f32.mrf.mxu0
    %v2210 = vadd.f32 %v2197, %v2209
    %v2211 = vpop.f32.mrf.mxu0
    %2212 = vdwg.mxu0
    %2213 = vmatpush.bf16.msra.mxu0 %v1954
    %2214 = vmatpush.bf16.msra.mxu0 %v1953
    %2215 = vmatpush.bf16.msra.mxu0 %v1952
    %2216 = vmatpush.bf16.msra.mxu0 %v1951
    %2217 = vmatpush.bf16.msra.mxu0 %v1950
    %2218 = vmatpush.bf16.msra.mxu0 %v1949
    %2219 = vmatpush.bf16.msra.mxu0 %v1948
    %2220 = vmatpush.bf16.msra.mxu0 %v1947
    %2221 = vmatmul.bf16.gmra.mxu0 %v1402
    %v2222 = vpop.f32.mrf.mxu0
    %v2223 = vadd.f32 %v2210, %v2222
    %v2224 = vpop.f32.mrf.mxu0
    %2225 = vdwg.mxu0
    %2226 = vmatpush.bf16.msra.mxu0 %v1962
    %2227 = vmatpush.bf16.msra.mxu0 %v1961
    %2228 = vmatpush.bf16.msra.mxu0 %v1960
    %2229 = vmatpush.bf16.msra.mxu0 %v1959
    %2230 = vmatpush.bf16.msra.mxu0 %v1958
    %2231 = vmatpush.bf16.msra.mxu0 %v1957
    %2232 = vmatpush.bf16.msra.mxu0 %v1956
    %2233 = vmatpush.bf16.msra.mxu0 %v1955
    %2234 = vmatmul.bf16.gmra.mxu0 %v1403
    %v2235 = vpop.f32.mrf.mxu0
    %v2236 = vadd.f32 %v2223, %v2235
    %v2237 = vpop.f32.mrf.mxu0
    %2238 = vdwg.mxu0
    %2239 = vmatpush.bf16.msra.mxu0 %v1970
    %2240 = vmatpush.bf16.msra.mxu0 %v1969
    %2241 = vmatpush.bf16.msra.mxu0 %v1968
    %2242 = vmatpush.bf16.msra.mxu0 %v1967
    %2243 = vmatpush.bf16.msra.mxu0 %v1966
    %2244 = vmatpush.bf16.msra.mxu0 %v1965
    %2245 = vmatpush.bf16.msra.mxu0 %v1964
    %2246 = vmatpush.bf16.msra.mxu0 %v1963
    %2247 = vmatmul.bf16.gmra.mxu0 %v1404
    %v2248 = vpop.f32.mrf.mxu0
    %v2249 = vadd.f32 %v2236, %v2248
    %v2250 = vpop.f32.mrf.mxu0
    %2251 = vdwg.mxu0
    %2252 = vmatpush.bf16.msra.mxu0 %v1978
    %2253 = vmatpush.bf16.msra.mxu0 %v1977
    %2254 = vmatpush.bf16.msra.mxu0 %v1976
    %2255 = vmatpush.bf16.msra.mxu0 %v1975
    %2256 = vmatpush.bf16.msra.mxu0 %v1974
    %2257 = vmatpush.bf16.msra.mxu0 %v1973
    %2258 = vmatpush.bf16.msra.mxu0 %v1972
    %2259 = vmatpush.bf16.msra.mxu0 %v1971
    %2260 = vmatmul.bf16.gmra.mxu0 %v1405
    %v2261 = vpop.f32.mrf.mxu0
    %v2262 = vadd.f32 %v2249, %v2261
    %v2263 = vpop.f32.mrf.mxu0
    %2264 = vdwg.mxu0
    %2265 = vmatpush.bf16.msra.mxu0 %v1986
    %2266 = vmatpush.bf16.msra.mxu0 %v1985
    %2267 = vmatpush.bf16.msra.mxu0 %v1984
    %2268 = vmatpush.bf16.msra.mxu0 %v1983
    %2269 = vmatpush.bf16.msra.mxu0 %v1982
    %2270 = vmatpush.bf16.msra.mxu0 %v1981
    %2271 = vmatpush.bf16.msra.mxu0 %v1980
    %2272 = vmatpush.bf16.msra.mxu0 %v1979
    %2273 = vmatmul.bf16.gmra.mxu0 %v1406
    %v2274 = vpop.f32.mrf.mxu0
    %v2275 = vadd.f32 %v2262, %v2274
    %v2276 = vpop.f32.mrf.mxu0
    %2277 = vdwg.mxu0
    %2278 = vmatpush.bf16.msra.mxu0 %v1994
    %2279 = vmatpush.bf16.msra.mxu0 %v1993
    %2280 = vmatpush.bf16.msra.mxu0 %v1992
    %2281 = vmatpush.bf16.msra.mxu0 %v1991
    %2282 = vmatpush.bf16.msra.mxu0 %v1990
    %2283 = vmatpush.bf16.msra.mxu0 %v1989
    %2284 = vmatpush.bf16.msra.mxu0 %v1988
    %2285 = vmatpush.bf16.msra.mxu0 %v1987
    %2286 = vmatmul.bf16.gmra.mxu0 %v1407
    %v2287 = vpop.f32.mrf.mxu0
    %v2288 = vadd.f32 %v2275, %v2287
    %v2289 = vpop.f32.mrf.mxu0
    %2290 = vdwg.mxu0
    %2291 = vmatpush.bf16.msra.mxu0 %v2002
    %2292 = vmatpush.bf16.msra.mxu0 %v2001
    %2293 = vmatpush.bf16.msra.mxu0 %v2000
    %2294 = vmatpush.bf16.msra.mxu0 %v1999
    %2295 = vmatpush.bf16.msra.mxu0 %v1998
    %2296 = vmatpush.bf16.msra.mxu0 %v1997
    %2297 = vmatpush.bf16.msra.mxu0 %v1996
    %2298 = vmatpush.bf16.msra.mxu0 %v1995
    %2299 = vmatmul.bf16.gmra.mxu0 %v1408
    %v2300 = vpop.f32.mrf.mxu0
    %v2301 = vadd.f32 %v2288, %v2300
    %v2302 = vpop.f32.mrf.mxu0
    %2303 = vdwg.mxu0
    %2304 = vmatpush.bf16.msra.mxu0 %v2010
    %2305 = vmatpush.bf16.msra.mxu0 %v2009
    %2306 = vmatpush.bf16.msra.mxu0 %v2008
    %2307 = vmatpush.bf16.msra.mxu0 %v2007
    %2308 = vmatpush.bf16.msra.mxu0 %v2006
    %2309 = vmatpush.bf16.msra.mxu0 %v2005
    %2310 = vmatpush.bf16.msra.mxu0 %v2004
    %2311 = vmatpush.bf16.msra.mxu0 %v2003
    %2312 = vmatmul.bf16.gmra.mxu0 %v1409
    %v2313 = vpop.f32.mrf.mxu0
    %v2314 = vadd.f32 %v2301, %v2313
    %v2315 = vpop.f32.mrf.mxu0
    %2316 = vdwg.mxu0
    %2317 = vmatpush.bf16.msra.mxu0 %v2018
    %2318 = vmatpush.bf16.msra.mxu0 %v2017
    %2319 = vmatpush.bf16.msra.mxu0 %v2016
    %2320 = vmatpush.bf16.msra.mxu0 %v2015
    %2321 = vmatpush.bf16.msra.mxu0 %v2014
    %2322 = vmatpush.bf16.msra.mxu0 %v2013
    %2323 = vmatpush.bf16.msra.mxu0 %v2012
    %2324 = vmatpush.bf16.msra.mxu0 %v2011
    %2325 = vmatmul.bf16.gmra.mxu0 %v1410
    %v2326 = vpop.f32.mrf.mxu0
    %v2327 = vadd.f32 %v2314, %v2326
    %v2328 = vpop.f32.mrf.mxu0
    %2329 = vdwg.mxu0
    %2330 = vmatpush.bf16.msra.mxu0 %v2026
    %2331 = vmatpush.bf16.msra.mxu0 %v2025
    %2332 = vmatpush.bf16.msra.mxu0 %v2024
    %2333 = vmatpush.bf16.msra.mxu0 %v2023
    %2334 = vmatpush.bf16.msra.mxu0 %v2022
    %2335 = vmatpush.bf16.msra.mxu0 %v2021
    %2336 = vmatpush.bf16.msra.mxu0 %v2020
    %2337 = vmatpush.bf16.msra.mxu0 %v2019
    %2338 = vmatmul.bf16.gmra.mxu0 %v1411
    %v2339 = vpop.f32.mrf.mxu0
    %v2340 = vadd.f32 %v2327, %v2339
    %v2341 = vpop.f32.mrf.mxu0
    %2342 = vdwg.mxu0
    %2343 = vmatpush.bf16.msra.mxu0 %v2034
    %2344 = vmatpush.bf16.msra.mxu0 %v2033
    %2345 = vmatpush.bf16.msra.mxu0 %v2032
    %2346 = vmatpush.bf16.msra.mxu0 %v2031
    %2347 = vmatpush.bf16.msra.mxu0 %v2030
    %2348 = vmatpush.bf16.msra.mxu0 %v2029
    %2349 = vmatpush.bf16.msra.mxu0 %v2028
    %2350 = vmatpush.bf16.msra.mxu0 %v2027
    %2351 = vmatmul.bf16.gmra.mxu0 %v1412
    %v2352 = vpop.f32.mrf.mxu0
    %v2353 = vadd.f32 %v2340, %v2352
    %v2354 = vpop.f32.mrf.mxu0
    %2355 = vdwg.mxu0
    %2356 = vmatpush.bf16.msra.mxu0 %v2042
    %2357 = vmatpush.bf16.msra.mxu0 %v2041
    %2358 = vmatpush.bf16.msra.mxu0 %v2040
    %2359 = vmatpush.bf16.msra.mxu0 %v2039
    %2360 = vmatpush.bf16.msra.mxu0 %v2038
    %2361 = vmatpush.bf16.msra.mxu0 %v2037
    %2362 = vmatpush.bf16.msra.mxu0 %v2036
    %2363 = vmatpush.bf16.msra.mxu0 %v2035
    %2364 = vmatmul.bf16.gmra.mxu0 %v1413
    %v2365 = vpop.f32.mrf.mxu0
    %v2366 = vadd.f32 %v2353, %v2365
    %v2367 = vpop.f32.mrf.mxu0
    %2368 = vdwg.mxu0
    %2369 = vmatpush.bf16.msra.mxu0 %v2050
    %2370 = vmatpush.bf16.msra.mxu0 %v2049
    %2371 = vmatpush.bf16.msra.mxu0 %v2048
    %2372 = vmatpush.bf16.msra.mxu0 %v2047
    %2373 = vmatpush.bf16.msra.mxu0 %v2046
    %2374 = vmatpush.bf16.msra.mxu0 %v2045
    %2375 = vmatpush.bf16.msra.mxu0 %v2044
    %2376 = vmatpush.bf16.msra.mxu0 %v2043
    %2377 = vmatmul.bf16.gmra.mxu0 %v1414
    %v2378 = vpop.f32.mrf.mxu0
    %v2379 = vadd.f32 %v2366, %v2378
    %v2380 = vpop.f32.mrf.mxu0
    %2381 = vdwg.mxu0
    %2382 = vmatpush.bf16.msra.mxu0 %v2058
    %2383 = vmatpush.bf16.msra.mxu0 %v2057
    %2384 = vmatpush.bf16.msra.mxu0 %v2056
    %2385 = vmatpush.bf16.msra.mxu0 %v2055
    %2386 = vmatpush.bf16.msra.mxu0 %v2054
    %2387 = vmatpush.bf16.msra.mxu0 %v2053
    %2388 = vmatpush.bf16.msra.mxu0 %v2052
    %2389 = vmatpush.bf16.msra.mxu0 %v2051
    %2390 = vmatmul.bf16.gmra.mxu0 %v1415
    %v2391 = vpop.f32.mrf.mxu0
    %v2392 = vadd.f32 %v2379, %v2391
    %v2393 = vpop.f32.mrf.mxu0
    %2394 = vdwg.mxu0
    %v2395 = vadd.f32 %v686, %v2392
    %v2396 = vld [vmem:[#allocation16 + $0x1] sm:$0x1]
    %v2397 = vld [vmem:[#allocation17 + $0x1] sm:$0x1]
    %v2398 = vsel %vm211, %v2395, 0.0
    %2399 = vadd.xlane.f32.xlu0 %v2398
    %v2400 = vpop.xlane.xlu0 %2399
    %v2401 = vmul.f32 %v2400, %v661
    %v2402 = vmul.f32 %v2395, %v2395
    %v2403 = vsel %vm211, %v2402, 0.0
    %2404 = vadd.xlane.f32.xlu0 %v2403
    %v2405 = vpop.xlane.xlu0 %2404
    %v2406 = vmul.f32 %v2405, %v661
    %v2407 = vmul.f32 %v2401, %v2401
    %v2408 = vsub.f32 %v2406, %v2407
    %v2409 = vsub.f32 %v2395, %v2401
    %v2410 = vadd.f32 %v2408, 1e-05
    %v2411 = vrsqrt.pop %v2410
    %v2412 = vmul.f32 %v2411, %v2410
    %v2413 = vmul.f32 %v2412, %v2411
    %v2414 = vmul.f32 0.5, %v2413
    %v2415 = vsub.f32 1.5, %v2414
    %v2416 = vmul.f32 %v2411, %v2415
    %vm2417 = vweird.f32 %v2410
    %vm2418 = vweird.f32 %v2411
    %vm2419 = vmor %vm2417, %vm2418
    %v2420 = vsel %vm2419, %v2411, %v2416
    %v2421 = vmul.f32 %v2409, %v2420
    %v2422 = vperm.slane %v2396, 0
    %v2423 = vmul.f32 %v2421, %v2422
    %v2424 = vperm.slane %v2397, 0
    %v2425 = vadd.f32 %v2423, %v2424
    %s2426 = scalar_lea.vmem [#allocation5], 32
    %v2427 = vld [vmem:[%s2426] sm:$0xff]
    %v2428 = vld [vmem:[%s2426 + $0x8] sm:$0xff]
    %v2429 = vld [vmem:[%s2426 + $0x10] sm:$0xff]
    %v2430 = vld [vmem:[%s2426 + $0x18] sm:$0xff]
    %s2431 = scalar_lea.vmem [#allocation7], 1
    %v2432 = vld [vmem:[%s2431] sm:$0x1]
    %s2433 = scalar_lea.vmem [#allocation8], 32
    %v2434 = vld [vmem:[%s2433] sm:$0xff]
    %v2435 = vld [vmem:[%s2433 + $0x8] sm:$0xff]
    %v2436 = vld [vmem:[%s2433 + $0x10] sm:$0xff]
    %v2437 = vld [vmem:[%s2433 + $0x18] sm:$0xff]
    %s2438 = scalar_lea.vmem [#allocation10], 1
    %v2439 = vld [vmem:[%s2438] sm:$0x1]
    %v2441 = vperm.slane %v2432, 0
    %v2444 = vsel %vm211, %v2425, 0
    %2446 = vmatpush.msra.mxu0 0.0
    %2447 = vmatpush.msra.mxu0 0.0
    %2448 = vmatpush.msra.mxu0 0.0
    %2449 = vmatpush.msra.mxu0 0.0
    %2450 = vmatpush.msra.mxu0 0.0
    %2451 = vmatpush.msra.mxu0 0.0
    %2452 = vmatpush.msra.mxu0 0.0
    %2453 = vmatpush.msra.mxu0 0.0
    %2454 = vmatpush.msra.mxu0 0.0
    %2455 = vmatpush.msra.mxu0 0.0
    %2456 = vmatpush.msra.mxu0 0.0
    %2457 = vmatpush.msra.mxu0 0.0
    %2458 = vmatpush.msra.mxu0 %v2430
    %2459 = vmatpush.msra.mxu0 %v2429
    %2460 = vmatpush.msra.mxu0 %v2428
    %2461 = vmatpush.msra.mxu0 %v2427
    %2462 = vmatmul.f32.gmra.mxu0 %v2444
    %v2463 = vpop.f32.mrf.mxu0
    %v2464 = vadd.f32 %v2441, %v2463
    %2465 = vdwg.mxu0
    %2467 = vrot.lane.b32.xlu0 %v2464, 96
    %v2468 = vpop.permute.xlu0 %2467
    %v2469 = vsel %vm238, %v2464, 0
    %v2471 = vsel %vm238, %v2468, 0
    %2473 = vmatpush.xpose.msra.mxu0 0.0
    %2474 = vmatpush.xpose.msra.mxu0 0.0
    %2475 = vmatpush.xpose.msra.mxu0 0.0
    %2476 = vmatpush.xpose.msra.mxu0 0.0
    %2477 = vmatpush.xpose.msra.mxu0 0.0
    %2478 = vmatpush.xpose.msra.mxu0 0.0
    %2479 = vmatpush.xpose.msra.mxu0 0.0
    %2480 = vmatpush.xpose.msra.mxu0 0.0
    %2481 = vmatpush.xpose.msra.mxu0 0.0
    %2482 = vmatpush.xpose.msra.mxu0 0.0
    %2483 = vmatpush.xpose.msra.mxu0 0.0
    %2484 = vmatpush.xpose.msra.mxu0 0.0
    %2485 = vmatpush.xpose.msra.mxu0 0.0
    %2486 = vmatpush.xpose.msra.mxu0 0.0
    %2487 = vmatpush.xpose.msra.mxu0 0.0
    %2488 = vmatpush.xpose.msra.mxu0 %v2471
    %2489 = vmatmul.f32.gmra.mxu0 %v2469
    %v2490 = vpop.f32.mrf.mxu0
    %v2491 = vadd.f32 0.0, %v2490
    %2492 = vdwg.mxu0
    %v2493 = vmul.f32 %v2491, 0.35355338
    %v2494 = vsel %vm238, %v2493, -inf
    %2495 = vmax.xlane.f32.xlu0 %v2494
    %v2496 = vpop.xlane.xlu0 %2495
    %v2497 = vsub.f32 %v2493, %v2496
    %v2498 = vmul.f32 %v2497, 1.442695
    %v2499 = vpow.pop %v2498
    %v2500 = vsel %vm238, %v2499, 0.0
    %2501 = vadd.xlane.f32.xlu0 %v2500
    %v2502 = vpop.xlane.xlu0 %2501
    %v2503 = vrcp.pop %v2502
    %v2504 = vmul.f32 %v2502, %v2503
    %v2505 = vsub.f32 1.0, %v2504
    %v2506 = vmul.f32 %v2503, %v2505
    %v2507 = vadd.f32 %v2503, %v2506
    %vm2508 = vweird.f32 %v2502
    %vm2509 = vweird.f32 %v2503
    %vm2510 = vmor %vm2508, %vm2509
    %v2511 = vsel %vm2510, %v2503, %v2507
    %v2512 = vand.u32 2147483647, %v2502
    %vm2513 = vcmp.eq.f32.partialorder %v2512, 8.507059e+37
    %v2514 = vand.u32 %v2502, 2147483648
    %v2515 = vor.u32 1.1754944e-38, %v2514
    %v2516 = vsel %vm2513, %v2515, %v2511
    %v2517 = vmul.f32 %v2499, %v2516
    %2518 = vrot.lane.b32.xlu0 %v2464, 64
    %v2519 = vpop.permute.xlu0 %2518
    %v2522 = vsel %vm238, %v2517, 0
    %2524 = vmatpush.msra.mxu0 0.0
    %2525 = vmatpush.msra.mxu0 0.0
    %2526 = vmatpush.msra.mxu0 0.0
    %2527 = vmatpush.msra.mxu0 0.0
    %2528 = vmatpush.msra.mxu0 0.0
    %2529 = vmatpush.msra.mxu0 0.0
    %2530 = vmatpush.msra.mxu0 0.0
    %2531 = vmatpush.msra.mxu0 0.0
    %2532 = vmatpush.msra.mxu0 0.0
    %2533 = vmatpush.msra.mxu0 0.0
    %2534 = vmatpush.msra.mxu0 0.0
    %2535 = vmatpush.msra.mxu0 0.0
    %2536 = vmatpush.msra.mxu0 0.0
    %2537 = vmatpush.msra.mxu0 0.0
    %2538 = vmatpush.msra.mxu0 0.0
    %2539 = vmatpush.msra.mxu0 %v2519
    %2540 = vmatmul.f32.gmra.mxu0 %v2522
    %v2541 = vpop.f32.mrf.mxu0
    %v2542 = vadd.f32 0.0, %v2541
    %2543 = vdwg.mxu0
    %2544 = vrot.lane.b32.xlu0 %v2464, 120
    %v2545 = vpop.permute.xlu0 %2544
    %2546 = vrot.lane.b32.xlu0 %v2464, 88
    %v2547 = vpop.permute.xlu0 %2546
    %v2548 = vsel %vm238, %v2545, 0
    %v2550 = vsel %vm238, %v2547, 0
    %2552 = vmatpush.xpose.msra.mxu0 0.0
    %2553 = vmatpush.xpose.msra.mxu0 0.0
    %2554 = vmatpush.xpose.msra.mxu0 0.0
    %2555 = vmatpush.xpose.msra.mxu0 0.0
    %2556 = vmatpush.xpose.msra.mxu0 0.0
    %2557 = vmatpush.xpose.msra.mxu0 0.0
    %2558 = vmatpush.xpose.msra.mxu0 0.0
    %2559 = vmatpush.xpose.msra.mxu0 0.0
    %2560 = vmatpush.xpose.msra.mxu0 0.0
    %2561 = vmatpush.xpose.msra.mxu0 0.0
    %2562 = vmatpush.xpose.msra.mxu0 0.0
    %2563 = vmatpush.xpose.msra.mxu0 0.0
    %2564 = vmatpush.xpose.msra.mxu0 0.0
    %2565 = vmatpush.xpose.msra.mxu0 0.0
    %2566 = vmatpush.xpose.msra.mxu0 0.0
    %2567 = vmatpush.xpose.msra.mxu0 %v2550
    %2568 = vmatmul.f32.gmra.mxu0 %v2548
    %v2569 = vpop.f32.mrf.mxu0
    %v2570 = vadd.f32 0.0, %v2569
    %2571 = vdwg.mxu0
    %v2572 = vmul.f32 %v2570, 0.35355338
    %v2573 = vsel %vm238, %v2572, -inf
    %2574 = vmax.xlane.f32.xlu0 %v2573
    %v2575 = vpop.xlane.xlu0 %2574
    %v2576 = vsub.f32 %v2572, %v2575
    %v2577 = vmul.f32 %v2576, 1.442695
    %v2578 = vpow.pop %v2577
    %v2579 = vsel %vm238, %v2578, 0.0
    %2580 = vadd.xlane.f32.xlu0 %v2579
    %v2581 = vpop.xlane.xlu0 %2580
    %v2582 = vrcp.pop %v2581
    %v2583 = vmul.f32 %v2581, %v2582
    %v2584 = vsub.f32 1.0, %v2583
    %v2585 = vmul.f32 %v2582, %v2584
    %v2586 = vadd.f32 %v2582, %v2585
    %vm2587 = vweird.f32 %v2581
    %vm2588 = vweird.f32 %v2582
    %vm2589 = vmor %vm2587, %vm2588
    %v2590 = vsel %vm2589, %v2582, %v2586
    %v2591 = vand.u32 2147483647, %v2581
    %vm2592 = vcmp.eq.f32.partialorder %v2591, 8.507059e+37
    %v2593 = vand.u32 %v2581, 2147483648
    %v2594 = vor.u32 1.1754944e-38, %v2593
    %v2595 = vsel %vm2592, %v2594, %v2590
    %v2596 = vmul.f32 %v2578, %v2595
    %2597 = vrot.lane.b32.xlu0 %v2464, 56
    %v2598 = vpop.permute.xlu0 %2597
    %v2601 = vsel %vm238, %v2596, 0
    %2603 = vmatpush.msra.mxu0 0.0
    %2604 = vmatpush.msra.mxu0 0.0
    %2605 = vmatpush.msra.mxu0 0.0
    %2606 = vmatpush.msra.mxu0 0.0
    %2607 = vmatpush.msra.mxu0 0.0
    %2608 = vmatpush.msra.mxu0 0.0
    %2609 = vmatpush.msra.mxu0 0.0
    %2610 = vmatpush.msra.mxu0 0.0
    %2611 = vmatpush.msra.mxu0 0.0
    %2612 = vmatpush.msra.mxu0 0.0
    %2613 = vmatpush.msra.mxu0 0.0
    %2614 = vmatpush.msra.mxu0 0.0
    %2615 = vmatpush.msra.mxu0 0.0
    %2616 = vmatpush.msra.mxu0 0.0
    %2617 = vmatpush.msra.mxu0 0.0
    %2618 = vmatpush.msra.mxu0 %v2598
    %2619 = vmatmul.f32.gmra.mxu0 %v2601
    %v2620 = vpop.f32.mrf.mxu0
    %v2621 = vadd.f32 0.0, %v2620
    %2622 = vdwg.mxu0
    %v2624 = vsel %vm238, %v2621, 0
    %2626 = vmatpush.msra.mxu0 0.0
    %2627 = vmatpush.msra.mxu0 0.0
    %2628 = vmatpush.msra.mxu0 0.0
    %2629 = vmatpush.msra.mxu0 0.0
    %2630 = vmatpush.msra.mxu0 0.0
    %2631 = vmatpush.msra.mxu0 0.0
    %2632 = vmatpush.msra.mxu0 0.0
    %2633 = vmatpush.msra.mxu0 0.0
    %2634 = vmatpush.msra.mxu0 0.0
    %2635 = vmatpush.msra.mxu0 0.0
    %2636 = vmatpush.msra.mxu0 0.0
    %2637 = vmatpush.msra.mxu0 0.0
    %2638 = vmatpush.msra.mxu0 0.0
    %2639 = vmatpush.msra.mxu0 0.0
    %2640 = vmatpush.msra.mxu0 0.0
    %2641 = vmatpush.msra.mxu0 %v2435
    %2642 = vmatmul.f32.gmra.mxu0 %v2624
    %v2643 = vpop.f32.mrf.mxu0
    %v2644 = vadd.f32 0.0, %v2643
    %2645 = vdwg.mxu0
    %v2647 = vsel %vm238, %v2542, 0
    %2649 = vmatpush.msra.mxu0 0.0
    %2650 = vmatpush.msra.mxu0 0.0
    %2651 = vmatpush.msra.mxu0 0.0
    %2652 = vmatpush.msra.mxu0 0.0
    %2653 = vmatpush.msra.mxu0 0.0
    %2654 = vmatpush.msra.mxu0 0.0
    %2655 = vmatpush.msra.mxu0 0.0
    %2656 = vmatpush.msra.mxu0 0.0
    %2657 = vmatpush.msra.mxu0 0.0
    %2658 = vmatpush.msra.mxu0 0.0
    %2659 = vmatpush.msra.mxu0 0.0
    %2660 = vmatpush.msra.mxu0 0.0
    %2661 = vmatpush.msra.mxu0 0.0
    %2662 = vmatpush.msra.mxu0 0.0
    %2663 = vmatpush.msra.mxu0 0.0
    %2664 = vmatpush.msra.mxu0 %v2434
    %2665 = vmatmul.f32.gmra.mxu0 %v2647
    %v2666 = vpop.f32.mrf.mxu0
    %v2667 = vadd.f32 %v2644, %v2666
    %2668 = vdwg.mxu0
    %2669 = vrot.lane.b32.xlu0 %v2464, 112
    %v2670 = vpop.permute.xlu0 %2669
    %2671 = vrot.lane.b32.xlu0 %v2464, 80
    %v2672 = vpop.permute.xlu0 %2671
    %v2673 = vsel %vm238, %v2670, 0
    %v2675 = vsel %vm238, %v2672, 0
    %2677 = vmatpush.xpose.msra.mxu0 0.0
    %2678 = vmatpush.xpose.msra.mxu0 0.0
    %2679 = vmatpush.xpose.msra.mxu0 0.0
    %2680 = vmatpush.xpose.msra.mxu0 0.0
    %2681 = vmatpush.xpose.msra.mxu0 0.0
    %2682 = vmatpush.xpose.msra.mxu0 0.0
    %2683 = vmatpush.xpose.msra.mxu0 0.0
    %2684 = vmatpush.xpose.msra.mxu0 0.0
    %2685 = vmatpush.xpose.msra.mxu0 0.0
    %2686 = vmatpush.xpose.msra.mxu0 0.0
    %2687 = vmatpush.xpose.msra.mxu0 0.0
    %2688 = vmatpush.xpose.msra.mxu0 0.0
    %2689 = vmatpush.xpose.msra.mxu0 0.0
    %2690 = vmatpush.xpose.msra.mxu0 0.0
    %2691 = vmatpush.xpose.msra.mxu0 0.0
    %2692 = vmatpush.xpose.msra.mxu0 %v2675
    %2693 = vmatmul.f32.gmra.mxu0 %v2673
    %v2694 = vpop.f32.mrf.mxu0
    %v2695 = vadd.f32 0.0, %v2694
    %2696 = vdwg.mxu0
    %v2697 = vmul.f32 %v2695, 0.35355338
    %v2698 = vsel %vm238, %v2697, -inf
    %2699 = vmax.xlane.f32.xlu0 %v2698
    %v2700 = vpop.xlane.xlu0 %2699
    %v2701 = vsub.f32 %v2697, %v2700
    %v2702 = vmul.f32 %v2701, 1.442695
    %v2703 = vpow.pop %v2702
    %v2704 = vsel %vm238, %v2703, 0.0
    %2705 = vadd.xlane.f32.xlu0 %v2704
    %v2706 = vpop.xlane.xlu0 %2705
    %v2707 = vrcp.pop %v2706
    %v2708 = vmul.f32 %v2706, %v2707
    %v2709 = vsub.f32 1.0, %v2708
    %v2710 = vmul.f32 %v2707, %v2709
    %v2711 = vadd.f32 %v2707, %v2710
    %vm2712 = vweird.f32 %v2706
    %vm2713 = vweird.f32 %v2707
    %vm2714 = vmor %vm2712, %vm2713
    %v2715 = vsel %vm2714, %v2707, %v2711
    %v2716 = vand.u32 2147483647, %v2706
    %vm2717 = vcmp.eq.f32.partialorder %v2716, 8.507059e+37
    %v2718 = vand.u32 %v2706, 2147483648
    %v2719 = vor.u32 1.1754944e-38, %v2718
    %v2720 = vsel %vm2717, %v2719, %v2715
    %v2721 = vmul.f32 %v2703, %v2720
    %2722 = vrot.lane.b32.xlu0 %v2464, 48
    %v2723 = vpop.permute.xlu0 %2722
    %v2726 = vsel %vm238, %v2721, 0
    %2728 = vmatpush.msra.mxu0 0.0
    %2729 = vmatpush.msra.mxu0 0.0
    %2730 = vmatpush.msra.mxu0 0.0
    %2731 = vmatpush.msra.mxu0 0.0
    %2732 = vmatpush.msra.mxu0 0.0
    %2733 = vmatpush.msra.mxu0 0.0
    %2734 = vmatpush.msra.mxu0 0.0
    %2735 = vmatpush.msra.mxu0 0.0
    %2736 = vmatpush.msra.mxu0 0.0
    %2737 = vmatpush.msra.mxu0 0.0
    %2738 = vmatpush.msra.mxu0 0.0
    %2739 = vmatpush.msra.mxu0 0.0
    %2740 = vmatpush.msra.mxu0 0.0
    %2741 = vmatpush.msra.mxu0 0.0
    %2742 = vmatpush.msra.mxu0 0.0
    %2743 = vmatpush.msra.mxu0 %v2723
    %2744 = vmatmul.f32.gmra.mxu0 %v2726
    %v2745 = vpop.f32.mrf.mxu0
    %v2746 = vadd.f32 0.0, %v2745
    %2747 = vdwg.mxu0
    %v2749 = vsel %vm238, %v2746, 0
    %2751 = vmatpush.msra.mxu0 0.0
    %2752 = vmatpush.msra.mxu0 0.0
    %2753 = vmatpush.msra.mxu0 0.0
    %2754 = vmatpush.msra.mxu0 0.0
    %2755 = vmatpush.msra.mxu0 0.0
    %2756 = vmatpush.msra.mxu0 0.0
    %2757 = vmatpush.msra.mxu0 0.0
    %2758 = vmatpush.msra.mxu0 0.0
    %2759 = vmatpush.msra.mxu0 0.0
    %2760 = vmatpush.msra.mxu0 0.0
    %2761 = vmatpush.msra.mxu0 0.0
    %2762 = vmatpush.msra.mxu0 0.0
    %2763 = vmatpush.msra.mxu0 0.0
    %2764 = vmatpush.msra.mxu0 0.0
    %2765 = vmatpush.msra.mxu0 0.0
    %2766 = vmatpush.msra.mxu0 %v2436
    %2767 = vmatmul.f32.gmra.mxu0 %v2749
    %v2768 = vpop.f32.mrf.mxu0
    %v2769 = vadd.f32 0.0, %v2768
    %2770 = vdwg.mxu0
    %v2771 = vadd.f32 %v2667, %v2769
    %2772 = vrot.lane.b32.xlu0 %v2464, 104
    %v2773 = vpop.permute.xlu0 %2772
    %2774 = vrot.lane.b32.xlu0 %v2464, 72
    %v2775 = vpop.permute.xlu0 %2774
    %v2776 = vsel %vm238, %v2773, 0
    %v2778 = vsel %vm238, %v2775, 0
    %2780 = vmatpush.xpose.msra.mxu0 0.0
    %2781 = vmatpush.xpose.msra.mxu0 0.0
    %2782 = vmatpush.xpose.msra.mxu0 0.0
    %2783 = vmatpush.xpose.msra.mxu0 0.0
    %2784 = vmatpush.xpose.msra.mxu0 0.0
    %2785 = vmatpush.xpose.msra.mxu0 0.0
    %2786 = vmatpush.xpose.msra.mxu0 0.0
    %2787 = vmatpush.xpose.msra.mxu0 0.0
    %2788 = vmatpush.xpose.msra.mxu0 0.0
    %2789 = vmatpush.xpose.msra.mxu0 0.0
    %2790 = vmatpush.xpose.msra.mxu0 0.0
    %2791 = vmatpush.xpose.msra.mxu0 0.0
    %2792 = vmatpush.xpose.msra.mxu0 0.0
    %2793 = vmatpush.xpose.msra.mxu0 0.0
    %2794 = vmatpush.xpose.msra.mxu0 0.0
    %2795 = vmatpush.xpose.msra.mxu0 %v2778
    %2796 = vmatmul.f32.gmra.mxu0 %v2776
    %v2797 = vpop.f32.mrf.mxu0
    %v2798 = vadd.f32 0.0, %v2797
    %2799 = vdwg.mxu0
    %v2800 = vmul.f32 %v2798, 0.35355338
    %v2801 = vsel %vm238, %v2800, -inf
    %2802 = vmax.xlane.f32.xlu0 %v2801
    %v2803 = vpop.xlane.xlu0 %2802
    %v2804 = vsub.f32 %v2800, %v2803
    %v2805 = vmul.f32 %v2804, 1.442695
    %v2806 = vpow.pop %v2805
    %v2807 = vsel %vm238, %v2806, 0.0
    %2808 = vadd.xlane.f32.xlu0 %v2807
    %v2809 = vpop.xlane.xlu0 %2808
    %v2810 = vrcp.pop %v2809
    %v2811 = vmul.f32 %v2809, %v2810
    %v2812 = vsub.f32 1.0, %v2811
    %v2813 = vmul.f32 %v2810, %v2812
    %v2814 = vadd.f32 %v2810, %v2813
    %vm2815 = vweird.f32 %v2809
    %vm2816 = vweird.f32 %v2810
    %vm2817 = vmor %vm2815, %vm2816
    %v2818 = vsel %vm2817, %v2810, %v2814
    %v2819 = vand.u32 2147483647, %v2809
    %vm2820 = vcmp.eq.f32.partialorder %v2819, 8.507059e+37
    %v2821 = vand.u32 %v2809, 2147483648
    %v2822 = vor.u32 1.1754944e-38, %v2821
    %v2823 = vsel %vm2820, %v2822, %v2818
    %v2824 = vmul.f32 %v2806, %v2823
    %2825 = vrot.lane.b32.xlu0 %v2464, 40
    %v2826 = vpop.permute.xlu0 %2825
    %v2829 = vsel %vm238, %v2824, 0
    %2831 = vmatpush.msra.mxu0 0.0
    %2832 = vmatpush.msra.mxu0 0.0
    %2833 = vmatpush.msra.mxu0 0.0
    %2834 = vmatpush.msra.mxu0 0.0
    %2835 = vmatpush.msra.mxu0 0.0
    %2836 = vmatpush.msra.mxu0 0.0
    %2837 = vmatpush.msra.mxu0 0.0
    %2838 = vmatpush.msra.mxu0 0.0
    %2839 = vmatpush.msra.mxu0 0.0
    %2840 = vmatpush.msra.mxu0 0.0
    %2841 = vmatpush.msra.mxu0 0.0
    %2842 = vmatpush.msra.mxu0 0.0
    %2843 = vmatpush.msra.mxu0 0.0
    %2844 = vmatpush.msra.mxu0 0.0
    %2845 = vmatpush.msra.mxu0 0.0
    %2846 = vmatpush.msra.mxu0 %v2826
    %2847 = vmatmul.f32.gmra.mxu0 %v2829
    %v2848 = vpop.f32.mrf.mxu0
    %v2849 = vadd.f32 0.0, %v2848
    %2850 = vdwg.mxu0
    %v2852 = vsel %vm238, %v2849, 0
    %2854 = vmatpush.msra.mxu0 0.0
    %2855 = vmatpush.msra.mxu0 0.0
    %2856 = vmatpush.msra.mxu0 0.0
    %2857 = vmatpush.msra.mxu0 0.0
    %2858 = vmatpush.msra.mxu0 0.0
    %2859 = vmatpush.msra.mxu0 0.0
    %2860 = vmatpush.msra.mxu0 0.0
    %2861 = vmatpush.msra.mxu0 0.0
    %2862 = vmatpush.msra.mxu0 0.0
    %2863 = vmatpush.msra.mxu0 0.0
    %2864 = vmatpush.msra.mxu0 0.0
    %2865 = vmatpush.msra.mxu0 0.0
    %2866 = vmatpush.msra.mxu0 0.0
    %2867 = vmatpush.msra.mxu0 0.0
    %2868 = vmatpush.msra.mxu0 0.0
    %2869 = vmatpush.msra.mxu0 %v2437
    %2870 = vmatmul.f32.gmra.mxu0 %v2852
    %v2871 = vpop.f32.mrf.mxu0
    %v2872 = vadd.f32 0.0, %v2871
    %2873 = vdwg.mxu0
    %v2874 = vadd.f32 %v2771, %v2872
    %v2876 = vperm.slane %v2439, 0
    %v2878 = vadd.f32 %v2874, %v2876
    %v2879 = vadd.f32 %v2425, %v2878
    %v2880 = vld [vmem:[#allocation16 + $0x2] sm:$0x1]
    %v2881 = vld [vmem:[#allocation17 + $0x2] sm:$0x1]
    %v2882 = vsel %vm211, %v2879, 0.0
    %2883 = vadd.xlane.f32.xlu0 %v2882
    %v2884 = vpop.xlane.xlu0 %2883
    %v2885 = vmul.f32 %v2884, %v661
    %v2886 = vmul.f32 %v2879, %v2879
    %v2887 = vsel %vm211, %v2886, 0.0
    %2888 = vadd.xlane.f32.xlu0 %v2887
    %v2889 = vpop.xlane.xlu0 %2888
    %v2890 = vmul.f32 %v2889, %v661
    %v2891 = vmul.f32 %v2885, %v2885
    %v2892 = vsub.f32 %v2890, %v2891
    %v2893 = vsub.f32 %v2879, %v2885
    %v2894 = vadd.f32 %v2892, 1e-05
    %v2895 = vrsqrt.pop %v2894
    %v2896 = vmul.f32 %v2895, %v2894
    %v2897 = vmul.f32 %v2896, %v2895
    %v2898 = vmul.f32 0.5, %v2897
    %v2899 = vsub.f32 1.5, %v2898
    %v2900 = vmul.f32 %v2895, %v2899
    %vm2901 = vweird.f32 %v2894
    %vm2902 = vweird.f32 %v2895
    %vm2903 = vmor %vm2901, %vm2902
    %v2904 = vsel %vm2903, %v2895, %v2900
    %v2905 = vmul.f32 %v2893, %v2904
    %v2906 = vperm.slane %v2880, 0
    %v2907 = vmul.f32 %v2905, %v2906
    %v2908 = vperm.slane %v2881, 0
    %v2909 = vadd.f32 %v2907, %v2908
    %s2910 = scalar_lea.vmem [#allocation11], 256
    %v2911 = vld [vmem:[%s2910] sm:$0xff]
    %v2912 = vld [vmem:[%s2910 + $0x8] sm:$0xff]
    %v2913 = vld [vmem:[%s2910 + $0x10] sm:$0xff]
    %v2914 = vld [vmem:[%s2910 + $0x18] sm:$0xff]
    %v2915 = vld [vmem:[%s2910 + $0x20] sm:$0xff]
    %v2916 = vld [vmem:[%s2910 + $0x28] sm:$0xff]
    %v2917 = vld [vmem:[%s2910 + $0x30] sm:$0xff]
    %v2918 = vld [vmem:[%s2910 + $0x38] sm:$0xff]
    %v2919 = vld [vmem:[%s2910 + $0x40] sm:$0xff]
    %v2920 = vld [vmem:[%s2910 + $0x48] sm:$0xff]
    %v2921 = vld [vmem:[%s2910 + $0x50] sm:$0xff]
    %v2922 = vld [vmem:[%s2910 + $0x58] sm:$0xff]
    %v2923 = vld [vmem:[%s2910 + $0x60] sm:$0xff]
    %v2924 = vld [vmem:[%s2910 + $0x68] sm:$0xff]
    %v2925 = vld [vmem:[%s2910 + $0x70] sm:$0xff]
    %v2926 = vld [vmem:[%s2910 + $0x78] sm:$0xff]
    %v2927 = vld [vmem:[%s2910 + $0x80] sm:$0xff]
    %v2928 = vld [vmem:[%s2910 + $0x88] sm:$0xff]
    %v2929 = vld [vmem:[%s2910 + $0x90] sm:$0xff]
    %v2930 = vld [vmem:[%s2910 + $0x98] sm:$0xff]
    %v2931 = vld [vmem:[%s2910 + $0xa0] sm:$0xff]
    %v2932 = vld [vmem:[%s2910 + $0xa8] sm:$0xff]
    %v2933 = vld [vmem:[%s2910 + $0xb0] sm:$0xff]
    %v2934 = vld [vmem:[%s2910 + $0xb8] sm:$0xff]
    %v2935 = vld [vmem:[%s2910 + $0xc0] sm:$0xff]
    %v2936 = vld [vmem:[%s2910 + $0xc8] sm:$0xff]
    %v2937 = vld [vmem:[%s2910 + $0xd0] sm:$0xff]
    %v2938 = vld [vmem:[%s2910 + $0xd8] sm:$0xff]
    %v2939 = vld [vmem:[%s2910 + $0xe0] sm:$0xff]
    %v2940 = vld [vmem:[%s2910 + $0xe8] sm:$0xff]
    %v2941 = vld [vmem:[%s2910 + $0xf0] sm:$0xff]
    %v2942 = vld [vmem:[%s2910 + $0xf8] sm:$0xff]
    %s2943 = scalar_lea.vmem [#allocation13], 16
    %v2944 = vld [vmem:[%s2943] sm:$0xff]
    %v2945 = vld [vmem:[%s2943 + $0x8] sm:$0xff]
    %s2946 = scalar_lea.vmem %s8, 1
    %v2947 = vld [vmem:[%s2946] sm:$0x1]
    %v2948 = vpack.c.bf16 %v2909, %v2909
    %v2951 = vperm.slane %v2944, 0
    %v2952 = vperm.slane %v2944, 1
    %v2953 = vperm.slane %v2944, 2
    %v2954 = vperm.slane %v2944, 3
    %v2955 = vperm.slane %v2944, 4
    %v2956 = vperm.slane %v2944, 5
    %v2957 = vperm.slane %v2944, 6
    %v2958 = vperm.slane %v2944, 7
    %v2959 = vperm.slane %v2945, 0
    %v2960 = vperm.slane %v2945, 1
    %v2961 = vperm.slane %v2945, 2
    %v2962 = vperm.slane %v2945, 3
    %v2963 = vperm.slane %v2945, 4
    %v2964 = vperm.slane %v2945, 5
    %v2965 = vperm.slane %v2945, 6
    %v2966 = vperm.slane %v2945, 7
    %v3015 = vunpack.c.l.b16 %v2911
    %v3016 = vunpack.c.h.b16 %v2911
    %v3017 = vunpack.c.l.b16 %v2912
    %v3018 = vunpack.c.h.b16 %v2912
    %v3019 = vunpack.c.l.b16 %v2913
    %v3020 = vunpack.c.h.b16 %v2913
    %v3021 = vunpack.c.l.b16 %v2914
    %v3022 = vunpack.c.h.b16 %v2914
    %v3023 = vunpack.c.l.b16 %v2915
    %v3024 = vunpack.c.h.b16 %v2915
    %v3025 = vunpack.c.l.b16 %v2916
    %v3026 = vunpack.c.h.b16 %v2916
    %v3027 = vunpack.c.l.b16 %v2917
    %v3028 = vunpack.c.h.b16 %v2917
    %v3029 = vunpack.c.l.b16 %v2918
    %v3030 = vunpack.c.h.b16 %v2918
    %v3031 = vunpack.c.l.b16 %v2919
    %v3032 = vunpack.c.h.b16 %v2919
    %v3033 = vunpack.c.l.b16 %v2920
    %v3034 = vunpack.c.h.b16 %v2920
    %v3035 = vunpack.c.l.b16 %v2921
    %v3036 = vunpack.c.h.b16 %v2921
    %v3037 = vunpack.c.l.b16 %v2922
    %v3038 = vunpack.c.h.b16 %v2922
    %v3039 = vunpack.c.l.b16 %v2923
    %v3040 = vunpack.c.h.b16 %v2923
    %v3041 = vunpack.c.l.b16 %v2924
    %v3042 = vunpack.c.h.b16 %v2924
    %v3043 = vunpack.c.l.b16 %v2925
    %v3044 = vunpack.c.h.b16 %v2925
    %v3045 = vunpack.c.l.b16 %v2926
    %v3046 = vunpack.c.h.b16 %v2926
    %v3047 = vunpack.c.l.b16 %v2927
    %v3048 = vunpack.c.h.b16 %v2927
    %v3049 = vunpack.c.l.b16 %v2928
    %v3050 = vunpack.c.h.b16 %v2928
    %v3051 = vunpack.c.l.b16 %v2929
    %v3052 = vunpack.c.h.b16 %v2929
    %v3053 = vunpack.c.l.b16 %v2930
    %v3054 = vunpack.c.h.b16 %v2930
    %v3055 = vunpack.c.l.b16 %v2931
    %v3056 = vunpack.c.h.b16 %v2931
    %v3057 = vunpack.c.l.b16 %v2932
    %v3058 = vunpack.c.h.b16 %v2932
    %v3059 = vunpack.c.l.b16 %v2933
    %v3060 = vunpack.c.h.b16 %v2933
    %v3061 = vunpack.c.l.b16 %v2934
    %v3062 = vunpack.c.h.b16 %v2934
    %v3063 = vunpack.c.l.b16 %v2935
    %v3064 = vunpack.c.h.b16 %v2935
    %v3065 = vunpack.c.l.b16 %v2936
    %v3066 = vunpack.c.h.b16 %v2936
    %v3067 = vunpack.c.l.b16 %v2937
    %v3068 = vunpack.c.h.b16 %v2937
    %v3069 = vunpack.c.l.b16 %v2938
    %v3070 = vunpack.c.h.b16 %v2938
    %v3071 = vunpack.c.l.b16 %v2939
    %v3072 = vunpack.c.h.b16 %v2939
    %v3073 = vunpack.c.l.b16 %v2940
    %v3074 = vunpack.c.h.b16 %v2940
    %v3075 = vunpack.c.l.b16 %v2941
    %v3076 = vunpack.c.h.b16 %v2941
    %v3077 = vunpack.c.l.b16 %v2942
    %v3078 = vunpack.c.h.b16 %v2942
    %v3079 = vpack.c.b16 %v3031, %v3015
    %v3080 = vpack.c.b16 %v3032, %v3016
    %v3081 = vpack.c.b16 %v3033, %v3017
    %v3082 = vpack.c.b16 %v3034, %v3018
    %v3083 = vpack.c.b16 %v3035, %v3019
    %v3084 = vpack.c.b16 %v3036, %v3020
    %v3085 = vpack.c.b16 %v3037, %v3021
    %v3086 = vpack.c.b16 %v3038, %v3022
    %v3087 = vpack.c.b16 %v3039, %v3023
    %v3088 = vpack.c.b16 %v3040, %v3024
    %v3089 = vpack.c.b16 %v3041, %v3025
    %v3090 = vpack.c.b16 %v3042, %v3026
    %v3091 = vpack.c.b16 %v3043, %v3027
    %v3092 = vpack.c.b16 %v3044, %v3028
    %v3093 = vpack.c.b16 %v3045, %v3029
    %v3094 = vpack.c.b16 %v3046, %v3030
    %v3095 = vpack.c.b16 %v3063, %v3047
    %v3096 = vpack.c.b16 %v3064, %v3048
    %v3097 = vpack.c.b16 %v3065, %v3049
    %v3098 = vpack.c.b16 %v3066, %v3050
    %v3099 = vpack.c.b16 %v3067, %v3051
    %v3100 = vpack.c.b16 %v3068, %v3052
    %v3101 = vpack.c.b16 %v3069, %v3053
    %v3102 = vpack.c.b16 %v3070, %v3054
    %v3103 = vpack.c.b16 %v3071, %v3055
    %v3104 = vpack.c.b16 %v3072, %v3056
    %v3105 = vpack.c.b16 %v3073, %v3057
    %v3106 = vpack.c.b16 %v3074, %v3058
    %v3107 = vpack.c.b16 %v3075, %v3059
    %v3108 = vpack.c.b16 %v3076, %v3060
    %v3109 = vpack.c.b16 %v3077, %v3061
    %v3110 = vpack.c.b16 %v3078, %v3062
    %v3144 = vsel %vm211, %v2948, 0
    %3146 = vmatpush.bf16.msra.mxu0 0
    %3147 = vmatpush.bf16.msra.mxu0 0
    %3148 = vmatpush.bf16.msra.mxu0 0
    %3149 = vmatpush.bf16.msra.mxu0 0
    %3150 = vmatpush.bf16.msra.mxu0 0
    %3151 = vmatpush.bf16.msra.mxu0 0
    %3152 = vmatpush.bf16.msra.mxu0 %v3095
    %3153 = vmatpush.bf16.msra.mxu0 %v3079
    %3154 = vmatmul.bf16.gmra.mxu0 %v3144
    %v3155 = vpop.f32.mrf.mxu0
    %v3156 = vadd.f32 %v2951, %v3155
    %v3157 = vpop.f32.mrf.mxu0
    %3158 = vdwg.mxu0
    %3159 = vmatpush.bf16.msra.mxu0 0
    %3160 = vmatpush.bf16.msra.mxu0 0
    %3161 = vmatpush.bf16.msra.mxu0 0
    %3162 = vmatpush.bf16.msra.mxu0 0
    %3163 = vmatpush.bf16.msra.mxu0 0
    %3164 = vmatpush.bf16.msra.mxu0 0
    %3165 = vmatpush.bf16.msra.mxu0 %v3096
    %3166 = vmatpush.bf16.msra.mxu0 %v3080
    %3167 = vmatmul.bf16.gmra.mxu0 %v3144
    %v3168 = vpop.f32.mrf.mxu0
    %v3169 = vadd.f32 %v2952, %v3168
    %v3170 = vpop.f32.mrf.mxu0
    %3171 = vdwg.mxu0
    %3172 = vmatpush.bf16.msra.mxu0 0
    %3173 = vmatpush.bf16.msra.mxu0 0
    %3174 = vmatpush.bf16.msra.mxu0 0
    %3175 = vmatpush.bf16.msra.mxu0 0
    %3176 = vmatpush.bf16.msra.mxu0 0
    %3177 = vmatpush.bf16.msra.mxu0 0
    %3178 = vmatpush.bf16.msra.mxu0 %v3097
    %3179 = vmatpush.bf16.msra.mxu0 %v3081
    %3180 = vmatmul.bf16.gmra.mxu0 %v3144
    %v3181 = vpop.f32.mrf.mxu0
    %v3182 = vadd.f32 %v2953, %v3181
    %v3183 = vpop.f32.mrf.mxu0
    %3184 = vdwg.mxu0
    %3185 = vmatpush.bf16.msra.mxu0 0
    %3186 = vmatpush.bf16.msra.mxu0 0
    %3187 = vmatpush.bf16.msra.mxu0 0
    %3188 = vmatpush.bf16.msra.mxu0 0
    %3189 = vmatpush.bf16.msra.mxu0 0
    %3190 = vmatpush.bf16.msra.mxu0 0
    %3191 = vmatpush.bf16.msra.mxu0 %v3098
    %3192 = vmatpush.bf16.msra.mxu0 %v3082
    %3193 = vmatmul.bf16.gmra.mxu0 %v3144
    %v3194 = vpop.f32.mrf.mxu0
    %v3195 = vadd.f32 %v2954, %v3194
    %v3196 = vpop.f32.mrf.mxu0
    %3197 = vdwg.mxu0
    %3198 = vmatpush.bf16.msra.mxu0 0
    %3199 = vmatpush.bf16.msra.mxu0 0
    %3200 = vmatpush.bf16.msra.mxu0 0
    %3201 = vmatpush.bf16.msra.mxu0 0
    %3202 = vmatpush.bf16.msra.mxu0 0
    %3203 = vmatpush.bf16.msra.mxu0 0
    %3204 = vmatpush.bf16.msra.mxu0 %v3099
    %3205 = vmatpush.bf16.msra.mxu0 %v3083
    %3206 = vmatmul.bf16.gmra.mxu0 %v3144
    %v3207 = vpop.f32.mrf.mxu0
    %v3208 = vadd.f32 %v2955, %v3207
    %v3209 = vpop.f32.mrf.mxu0
    %3210 = vdwg.mxu0
    %3211 = vmatpush.bf16.msra.mxu0 0
    %3212 = vmatpush.bf16.msra.mxu0 0
    %3213 = vmatpush.bf16.msra.mxu0 0
    %3214 = vmatpush.bf16.msra.mxu0 0
    %3215 = vmatpush.bf16.msra.mxu0 0
    %3216 = vmatpush.bf16.msra.mxu0 0
    %3217 = vmatpush.bf16.msra.mxu0 %v3100
    %3218 = vmatpush.bf16.msra.mxu0 %v3084
    %3219 = vmatmul.bf16.gmra.mxu0 %v3144
    %v3220 = vpop.f32.mrf.mxu0
    %v3221 = vadd.f32 %v2956, %v3220
    %v3222 = vpop.f32.mrf.mxu0
    %3223 = vdwg.mxu0
    %3224 = vmatpush.bf16.msra.mxu0 0
    %3225 = vmatpush.bf16.msra.mxu0 0
    %3226 = vmatpush.bf16.msra.mxu0 0
    %3227 = vmatpush.bf16.msra.mxu0 0
    %3228 = vmatpush.bf16.msra.mxu0 0
    %3229 = vmatpush.bf16.msra.mxu0 0
    %3230 = vmatpush.bf16.msra.mxu0 %v3101
    %3231 = vmatpush.bf16.msra.mxu0 %v3085
    %3232 = vmatmul.bf16.gmra.mxu0 %v3144
    %v3233 = vpop.f32.mrf.mxu0
    %v3234 = vadd.f32 %v2957, %v3233
    %v3235 = vpop.f32.mrf.mxu0
    %3236 = vdwg.mxu0
    %3237 = vmatpush.bf16.msra.mxu0 0
    %3238 = vmatpush.bf16.msra.mxu0 0
    %3239 = vmatpush.bf16.msra.mxu0 0
    %3240 = vmatpush.bf16.msra.mxu0 0
    %3241 = vmatpush.bf16.msra.mxu0 0
    %3242 = vmatpush.bf16.msra.mxu0 0
    %3243 = vmatpush.bf16.msra.mxu0 %v3102
    %3244 = vmatpush.bf16.msra.mxu0 %v3086
    %3245 = vmatmul.bf16.gmra.mxu0 %v3144
    %v3246 = vpop.f32.mrf.mxu0
    %v3247 = vadd.f32 %v2958, %v3246
    %v3248 = vpop.f32.mrf.mxu0
    %3249 = vdwg.mxu0
    %3250 = vmatpush.bf16.msra.mxu0 0
    %3251 = vmatpush.bf16.msra.mxu0 0
    %3252 = vmatpush.bf16.msra.mxu0 0
    %3253 = vmatpush.bf16.msra.mxu0 0
    %3254 = vmatpush.bf16.msra.mxu0 0
    %3255 = vmatpush.bf16.msra.mxu0 0
    %3256 = vmatpush.bf16.msra.mxu0 %v3103
    %3257 = vmatpush.bf16.msra.mxu0 %v3087
    %3258 = vmatmul.bf16.gmra.mxu0 %v3144
    %v3259 = vpop.f32.mrf.mxu0
    %v3260 = vadd.f32 %v2959, %v3259
    %v3261 = vpop.f32.mrf.mxu0
    %3262 = vdwg.mxu0
    %3263 = vmatpush.bf16.msra.mxu0 0
    %3264 = vmatpush.bf16.msra.mxu0 0
    %3265 = vmatpush.bf16.msra.mxu0 0
    %3266 = vmatpush.bf16.msra.mxu0 0
    %3267 = vmatpush.bf16.msra.mxu0 0
    %3268 = vmatpush.bf16.msra.mxu0 0
    %3269 = vmatpush.bf16.msra.mxu0 %v3104
    %3270 = vmatpush.bf16.msra.mxu0 %v3088
    %3271 = vmatmul.bf16.gmra.mxu0 %v3144
    %v3272 = vpop.f32.mrf.mxu0
    %v3273 = vadd.f32 %v2960, %v3272
    %v3274 = vpop.f32.mrf.mxu0
    %3275 = vdwg.mxu0
    %3276 = vmatpush.bf16.msra.mxu0 0
    %3277 = vmatpush.bf16.msra.mxu0 0
    %3278 = vmatpush.bf16.msra.mxu0 0
    %3279 = vmatpush.bf16.msra.mxu0 0
    %3280 = vmatpush.bf16.msra.mxu0 0
    %3281 = vmatpush.bf16.msra.mxu0 0
    %3282 = vmatpush.bf16.msra.mxu0 %v3105
    %3283 = vmatpush.bf16.msra.mxu0 %v3089
    %3284 = vmatmul.bf16.gmra.mxu0 %v3144
    %v3285 = vpop.f32.mrf.mxu0
    %v3286 = vadd.f32 %v2961, %v3285
    %v3287 = vpop.f32.mrf.mxu0
    %3288 = vdwg.mxu0
    %3289 = vmatpush.bf16.msra.mxu0 0
    %3290 = vmatpush.bf16.msra.mxu0 0
    %3291 = vmatpush.bf16.msra.mxu0 0
    %3292 = vmatpush.bf16.msra.mxu0 0
    %3293 = vmatpush.bf16.msra.mxu0 0
    %3294 = vmatpush.bf16.msra.mxu0 0
    %3295 = vmatpush.bf16.msra.mxu0 %v3106
    %3296 = vmatpush.bf16.msra.mxu0 %v3090
    %3297 = vmatmul.bf16.gmra.mxu0 %v3144
    %v3298 = vpop.f32.mrf.mxu0
    %v3299 = vadd.f32 %v2962, %v3298
    %v3300 = vpop.f32.mrf.mxu0
    %3301 = vdwg.mxu0
    %3302 = vmatpush.bf16.msra.mxu0 0
    %3303 = vmatpush.bf16.msra.mxu0 0
    %3304 = vmatpush.bf16.msra.mxu0 0
    %3305 = vmatpush.bf16.msra.mxu0 0
    %3306 = vmatpush.bf16.msra.mxu0 0
    %3307 = vmatpush.bf16.msra.mxu0 0
    %3308 = vmatpush.bf16.msra.mxu0 %v3107
    %3309 = vmatpush.bf16.msra.mxu0 %v3091
    %3310 = vmatmul.bf16.gmra.mxu0 %v3144
    %v3311 = vpop.f32.mrf.mxu0
    %v3312 = vadd.f32 %v2963, %v3311
    %v3313 = vpop.f32.mrf.mxu0
    %3314 = vdwg.mxu0
    %3315 = vmatpush.bf16.msra.mxu0 0
    %3316 = vmatpush.bf16.msra.mxu0 0
    %3317 = vmatpush.bf16.msra.mxu0 0
    %3318 = vmatpush.bf16.msra.mxu0 0
    %3319 = vmatpush.bf16.msra.mxu0 0
    %3320 = vmatpush.bf16.msra.mxu0 0
    %3321 = vmatpush.bf16.msra.mxu0 %v3108
    %3322 = vmatpush.bf16.msra.mxu0 %v3092
    %3323 = vmatmul.bf16.gmra.mxu0 %v3144
    %v3324 = vpop.f32.mrf.mxu0
    %v3325 = vadd.f32 %v2964, %v3324
    %v3326 = vpop.f32.mrf.mxu0
    %3327 = vdwg.mxu0
    %3328 = vmatpush.bf16.msra.mxu0 0
    %3329 = vmatpush.bf16.msra.mxu0 0
    %3330 = vmatpush.bf16.msra.mxu0 0
    %3331 = vmatpush.bf16.msra.mxu0 0
    %3332 = vmatpush.bf16.msra.mxu0 0
    %3333 = vmatpush.bf16.msra.mxu0 0
    %3334 = vmatpush.bf16.msra.mxu0 %v3109
    %3335 = vmatpush.bf16.msra.mxu0 %v3093
    %3336 = vmatmul.bf16.gmra.mxu0 %v3144
    %v3337 = vpop.f32.mrf.mxu0
    %v3338 = vadd.f32 %v2965, %v3337
    %v3339 = vpop.f32.mrf.mxu0
    %3340 = vdwg.mxu0
    %3341 = vmatpush.bf16.msra.mxu0 0
    %3342 = vmatpush.bf16.msra.mxu0 0
    %3343 = vmatpush.bf16.msra.mxu0 0
    %3344 = vmatpush.bf16.msra.mxu0 0
    %3345 = vmatpush.bf16.msra.mxu0 0
    %3346 = vmatpush.bf16.msra.mxu0 0
    %3347 = vmatpush.bf16.msra.mxu0 %v3110
    %3348 = vmatpush.bf16.msra.mxu0 %v3094
    %3349 = vmatmul.bf16.gmra.mxu0 %v3144
    %v3350 = vpop.f32.mrf.mxu0
    %v3351 = vadd.f32 %v2966, %v3350
    %v3352 = vpop.f32.mrf.mxu0
    %3353 = vdwg.mxu0
    %v3354 = vmax.f32 %v3156, 0.0
    %v3355 = vmax.f32 %v3169, 0.0
    %v3356 = vmax.f32 %v3182, 0.0
    %v3357 = vmax.f32 %v3195, 0.0
    %v3358 = vmax.f32 %v3208, 0.0
    %v3359 = vmax.f32 %v3221, 0.0
    %v3360 = vmax.f32 %v3234, 0.0
    %v3361 = vmax.f32 %v3247, 0.0
    %v3362 = vmax.f32 %v3260, 0.0
    %v3363 = vmax.f32 %v3273, 0.0
    %v3364 = vmax.f32 %v3286, 0.0
    %v3365 = vmax.f32 %v3299, 0.0
    %v3366 = vmax.f32 %v3312, 0.0
    %v3367 = vmax.f32 %v3325, 0.0
    %v3368 = vmax.f32 %v3338, 0.0
    %v3369 = vmax.f32 %v3351, 0.0
    %v3370 = vpack.c.bf16 %v3354, %v3354
    %v3371 = vpack.c.bf16 %v3355, %v3355
    %v3372 = vpack.c.bf16 %v3356, %v3356
    %v3373 = vpack.c.bf16 %v3357, %v3357
    %v3374 = vpack.c.bf16 %v3358, %v3358
    %v3375 = vpack.c.bf16 %v3359, %v3359
    %v3376 = vpack.c.bf16 %v3360, %v3360
    %v3377 = vpack.c.bf16 %v3361, %v3361
    %v3378 = vpack.c.bf16 %v3362, %v3362
    %v3379 = vpack.c.bf16 %v3363, %v3363
    %v3380 = vpack.c.bf16 %v3364, %v3364
    %v3381 = vpack.c.bf16 %v3365, %v3365
    %v3382 = vpack.c.bf16 %v3366, %v3366
    %v3383 = vpack.c.bf16 %v3367, %v3367
    %v3384 = vpack.c.bf16 %v3368, %v3368
    %v3385 = vpack.c.bf16 %v3369, %v3369
    %v3387 = vperm.slane %v2947, 0
    %3389 = vrot.lane.b32.xlu0 %v1931, 96
    %v3390 = vpop.permute.xlu0 %3389
    %3391 = vrot.lane.b32.xlu0 %v1932, 96
    %v3392 = vpop.permute.xlu0 %3391
    %3393 = vrot.lane.b32.xlu0 %v1933, 96
    %v3394 = vpop.permute.xlu0 %3393
    %3395 = vrot.lane.b32.xlu0 %v1934, 96
    %v3396 = vpop.permute.xlu0 %3395
    %3397 = vrot.lane.b32.xlu0 %v1935, 96
    %v3398 = vpop.permute.xlu0 %3397
    %3399 = vrot.lane.b32.xlu0 %v1936, 96
    %v3400 = vpop.permute.xlu0 %3399
    %3401 = vrot.lane.b32.xlu0 %v1937, 96
    %v3402 = vpop.permute.xlu0 %3401
    %3403 = vrot.lane.b32.xlu0 %v1938, 96
    %v3404 = vpop.permute.xlu0 %3403
    %3405 = vrot.lane.b32.xlu0 %v1939, 96
    %v3406 = vpop.permute.xlu0 %3405
    %3407 = vrot.lane.b32.xlu0 %v1940, 96
    %v3408 = vpop.permute.xlu0 %3407
    %3409 = vrot.lane.b32.xlu0 %v1941, 96
    %v3410 = vpop.permute.xlu0 %3409
    %3411 = vrot.lane.b32.xlu0 %v1942, 96
    %v3412 = vpop.permute.xlu0 %3411
    %3413 = vrot.lane.b32.xlu0 %v1943, 96
    %v3414 = vpop.permute.xlu0 %3413
    %3415 = vrot.lane.b32.xlu0 %v1944, 96
    %v3416 = vpop.permute.xlu0 %3415
    %3417 = vrot.lane.b32.xlu0 %v1945, 96
    %v3418 = vpop.permute.xlu0 %3417
    %3419 = vrot.lane.b32.xlu0 %v1946, 96
    %v3420 = vpop.permute.xlu0 %3419
    %3421 = vrot.lane.b32.xlu0 %v1947, 96
    %v3422 = vpop.permute.xlu0 %3421
    %3423 = vrot.lane.b32.xlu0 %v1948, 96
    %v3424 = vpop.permute.xlu0 %3423
    %3425 = vrot.lane.b32.xlu0 %v1949, 96
    %v3426 = vpop.permute.xlu0 %3425
    %3427 = vrot.lane.b32.xlu0 %v1950, 96
    %v3428 = vpop.permute.xlu0 %3427
    %3429 = vrot.lane.b32.xlu0 %v1951, 96
    %v3430 = vpop.permute.xlu0 %3429
    %3431 = vrot.lane.b32.xlu0 %v1952, 96
    %v3432 = vpop.permute.xlu0 %3431
    %3433 = vrot.lane.b32.xlu0 %v1953, 96
    %v3434 = vpop.permute.xlu0 %3433
    %3435 = vrot.lane.b32.xlu0 %v1954, 96
    %v3436 = vpop.permute.xlu0 %3435
    %3437 = vrot.lane.b32.xlu0 %v1955, 96
    %v3438 = vpop.permute.xlu0 %3437
    %3439 = vrot.lane.b32.xlu0 %v1956, 96
    %v3440 = vpop.permute.xlu0 %3439
    %3441 = vrot.lane.b32.xlu0 %v1957, 96
    %v3442 = vpop.permute.xlu0 %3441
    %3443 = vrot.lane.b32.xlu0 %v1958, 96
    %v3444 = vpop.permute.xlu0 %3443
    %3445 = vrot.lane.b32.xlu0 %v1959, 96
    %v3446 = vpop.permute.xlu0 %3445
    %3447 = vrot.lane.b32.xlu0 %v1960, 96
    %v3448 = vpop.permute.xlu0 %3447
    %3449 = vrot.lane.b32.xlu0 %v1961, 96
    %v3450 = vpop.permute.xlu0 %3449
    %3451 = vrot.lane.b32.xlu0 %v1962, 96
    %v3452 = vpop.permute.xlu0 %3451
    %3453 = vrot.lane.b32.xlu0 %v1963, 96
    %v3454 = vpop.permute.xlu0 %3453
    %3455 = vrot.lane.b32.xlu0 %v1964, 96
    %v3456 = vpop.permute.xlu0 %3455
    %3457 = vrot.lane.b32.xlu0 %v1965, 96
    %v3458 = vpop.permute.xlu0 %3457
    %3459 = vrot.lane.b32.xlu0 %v1966, 96
    %v3460 = vpop.permute.xlu0 %3459
    %3461 = vrot.lane.b32.xlu0 %v1967, 96
    %v3462 = vpop.permute.xlu0 %3461
    %3463 = vrot.lane.b32.xlu0 %v1968, 96
    %v3464 = vpop.permute.xlu0 %3463
    %3465 = vrot.lane.b32.xlu0 %v1969, 96
    %v3466 = vpop.permute.xlu0 %3465
    %3467 = vrot.lane.b32.xlu0 %v1970, 96
    %v3468 = vpop.permute.xlu0 %3467
    %3469 = vrot.lane.b32.xlu0 %v1971, 96
    %v3470 = vpop.permute.xlu0 %3469
    %3471 = vrot.lane.b32.xlu0 %v1972, 96
    %v3472 = vpop.permute.xlu0 %3471
    %3473 = vrot.lane.b32.xlu0 %v1973, 96
    %v3474 = vpop.permute.xlu0 %3473
    %3475 = vrot.lane.b32.xlu0 %v1974, 96
    %v3476 = vpop.permute.xlu0 %3475
    %3477 = vrot.lane.b32.xlu0 %v1975, 96
    %v3478 = vpop.permute.xlu0 %3477
    %3479 = vrot.lane.b32.xlu0 %v1976, 96
    %v3480 = vpop.permute.xlu0 %3479
    %3481 = vrot.lane.b32.xlu0 %v1977, 96
    %v3482 = vpop.permute.xlu0 %3481
    %3483 = vrot.lane.b32.xlu0 %v1978, 96
    %v3484 = vpop.permute.xlu0 %3483
    %3485 = vrot.lane.b32.xlu0 %v1979, 96
    %v3486 = vpop.permute.xlu0 %3485
    %3487 = vrot.lane.b32.xlu0 %v1980, 96
    %v3488 = vpop.permute.xlu0 %3487
    %3489 = vrot.lane.b32.xlu0 %v1981, 96
    %v3490 = vpop.permute.xlu0 %3489
    %3491 = vrot.lane.b32.xlu0 %v1982, 96
    %v3492 = vpop.permute.xlu0 %3491
    %3493 = vrot.lane.b32.xlu0 %v1983, 96
    %v3494 = vpop.permute.xlu0 %3493
    %3495 = vrot.lane.b32.xlu0 %v1984, 96
    %v3496 = vpop.permute.xlu0 %3495
    %3497 = vrot.lane.b32.xlu0 %v1985, 96
    %v3498 = vpop.permute.xlu0 %3497
    %3499 = vrot.lane.b32.xlu0 %v1986, 96
    %v3500 = vpop.permute.xlu0 %3499
    %3501 = vrot.lane.b32.xlu0 %v1987, 96
    %v3502 = vpop.permute.xlu0 %3501
    %3503 = vrot.lane.b32.xlu0 %v1988, 96
    %v3504 = vpop.permute.xlu0 %3503
    %3505 = vrot.lane.b32.xlu0 %v1989, 96
    %v3506 = vpop.permute.xlu0 %3505
    %3507 = vrot.lane.b32.xlu0 %v1990, 96
    %v3508 = vpop.permute.xlu0 %3507
    %3509 = vrot.lane.b32.xlu0 %v1991, 96
    %v3510 = vpop.permute.xlu0 %3509
    %3511 = vrot.lane.b32.xlu0 %v1992, 96
    %v3512 = vpop.permute.xlu0 %3511
    %3513 = vrot.lane.b32.xlu0 %v1993, 96
    %v3514 = vpop.permute.xlu0 %3513
    %3515 = vrot.lane.b32.xlu0 %v1994, 96
    %v3516 = vpop.permute.xlu0 %3515
    %3517 = vrot.lane.b32.xlu0 %v1995, 96
    %v3518 = vpop.permute.xlu0 %3517
    %3519 = vrot.lane.b32.xlu0 %v1996, 96
    %v3520 = vpop.permute.xlu0 %3519
    %3521 = vrot.lane.b32.xlu0 %v1997, 96
    %v3522 = vpop.permute.xlu0 %3521
    %3523 = vrot.lane.b32.xlu0 %v1998, 96
    %v3524 = vpop.permute.xlu0 %3523
    %3525 = vrot.lane.b32.xlu0 %v1999, 96
    %v3526 = vpop.permute.xlu0 %3525
    %3527 = vrot.lane.b32.xlu0 %v2000, 96
    %v3528 = vpop.permute.xlu0 %3527
    %3529 = vrot.lane.b32.xlu0 %v2001, 96
    %v3530 = vpop.permute.xlu0 %3529
    %3531 = vrot.lane.b32.xlu0 %v2002, 96
    %v3532 = vpop.permute.xlu0 %3531
    %3533 = vrot.lane.b32.xlu0 %v2003, 96
    %v3534 = vpop.permute.xlu0 %3533
    %3535 = vrot.lane.b32.xlu0 %v2004, 96
    %v3536 = vpop.permute.xlu0 %3535
    %3537 = vrot.lane.b32.xlu0 %v2005, 96
    %v3538 = vpop.permute.xlu0 %3537
    %3539 = vrot.lane.b32.xlu0 %v2006, 96
    %v3540 = vpop.permute.xlu0 %3539
    %3541 = vrot.lane.b32.xlu0 %v2007, 96
    %v3542 = vpop.permute.xlu0 %3541
    %3543 = vrot.lane.b32.xlu0 %v2008, 96
    %v3544 = vpop.permute.xlu0 %3543
    %3545 = vrot.lane.b32.xlu0 %v2009, 96
    %v3546 = vpop.permute.xlu0 %3545
    %3547 = vrot.lane.b32.xlu0 %v2010, 96
    %v3548 = vpop.permute.xlu0 %3547
    %3549 = vrot.lane.b32.xlu0 %v2011, 96
    %v3550 = vpop.permute.xlu0 %3549
    %3551 = vrot.lane.b32.xlu0 %v2012, 96
    %v3552 = vpop.permute.xlu0 %3551
    %3553 = vrot.lane.b32.xlu0 %v2013, 96
    %v3554 = vpop.permute.xlu0 %3553
    %3555 = vrot.lane.b32.xlu0 %v2014, 96
    %v3556 = vpop.permute.xlu0 %3555
    %3557 = vrot.lane.b32.xlu0 %v2015, 96
    %v3558 = vpop.permute.xlu0 %3557
    %3559 = vrot.lane.b32.xlu0 %v2016, 96
    %v3560 = vpop.permute.xlu0 %3559
    %3561 = vrot.lane.b32.xlu0 %v2017, 96
    %v3562 = vpop.permute.xlu0 %3561
    %3563 = vrot.lane.b32.xlu0 %v2018, 96
    %v3564 = vpop.permute.xlu0 %3563
    %3565 = vrot.lane.b32.xlu0 %v2019, 96
    %v3566 = vpop.permute.xlu0 %3565
    %3567 = vrot.lane.b32.xlu0 %v2020, 96
    %v3568 = vpop.permute.xlu0 %3567
    %3569 = vrot.lane.b32.xlu0 %v2021, 96
    %v3570 = vpop.permute.xlu0 %3569
    %3571 = vrot.lane.b32.xlu0 %v2022, 96
    %v3572 = vpop.permute.xlu0 %3571
    %3573 = vrot.lane.b32.xlu0 %v2023, 96
    %v3574 = vpop.permute.xlu0 %3573
    %3575 = vrot.lane.b32.xlu0 %v2024, 96
    %v3576 = vpop.permute.xlu0 %3575
    %3577 = vrot.lane.b32.xlu0 %v2025, 96
    %v3578 = vpop.permute.xlu0 %3577
    %3579 = vrot.lane.b32.xlu0 %v2026, 96
    %v3580 = vpop.permute.xlu0 %3579
    %3581 = vrot.lane.b32.xlu0 %v2027, 96
    %v3582 = vpop.permute.xlu0 %3581
    %3583 = vrot.lane.b32.xlu0 %v2028, 96
    %v3584 = vpop.permute.xlu0 %3583
    %3585 = vrot.lane.b32.xlu0 %v2029, 96
    %v3586 = vpop.permute.xlu0 %3585
    %3587 = vrot.lane.b32.xlu0 %v2030, 96
    %v3588 = vpop.permute.xlu0 %3587
    %3589 = vrot.lane.b32.xlu0 %v2031, 96
    %v3590 = vpop.permute.xlu0 %3589
    %3591 = vrot.lane.b32.xlu0 %v2032, 96
    %v3592 = vpop.permute.xlu0 %3591
    %3593 = vrot.lane.b32.xlu0 %v2033, 96
    %v3594 = vpop.permute.xlu0 %3593
    %3595 = vrot.lane.b32.xlu0 %v2034, 96
    %v3596 = vpop.permute.xlu0 %3595
    %3597 = vrot.lane.b32.xlu0 %v2035, 96
    %v3598 = vpop.permute.xlu0 %3597
    %3599 = vrot.lane.b32.xlu0 %v2036, 96
    %v3600 = vpop.permute.xlu0 %3599
    %3601 = vrot.lane.b32.xlu0 %v2037, 96
    %v3602 = vpop.permute.xlu0 %3601
    %3603 = vrot.lane.b32.xlu0 %v2038, 96
    %v3604 = vpop.permute.xlu0 %3603
    %3605 = vrot.lane.b32.xlu0 %v2039, 96
    %v3606 = vpop.permute.xlu0 %3605
    %3607 = vrot.lane.b32.xlu0 %v2040, 96
    %v3608 = vpop.permute.xlu0 %3607
    %3609 = vrot.lane.b32.xlu0 %v2041, 96
    %v3610 = vpop.permute.xlu0 %3609
    %3611 = vrot.lane.b32.xlu0 %v2042, 96
    %v3612 = vpop.permute.xlu0 %3611
    %3613 = vrot.lane.b32.xlu0 %v2043, 96
    %v3614 = vpop.permute.xlu0 %3613
    %3615 = vrot.lane.b32.xlu0 %v2044, 96
    %v3616 = vpop.permute.xlu0 %3615
    %3617 = vrot.lane.b32.xlu0 %v2045, 96
    %v3618 = vpop.permute.xlu0 %3617
    %3619 = vrot.lane.b32.xlu0 %v2046, 96
    %v3620 = vpop.permute.xlu0 %3619
    %3621 = vrot.lane.b32.xlu0 %v2047, 96
    %v3622 = vpop.permute.xlu0 %3621
    %3623 = vrot.lane.b32.xlu0 %v2048, 96
    %v3624 = vpop.permute.xlu0 %3623
    %3625 = vrot.lane.b32.xlu0 %v2049, 96
    %v3626 = vpop.permute.xlu0 %3625
    %3627 = vrot.lane.b32.xlu0 %v2050, 96
    %v3628 = vpop.permute.xlu0 %3627
    %3629 = vrot.lane.b32.xlu0 %v2051, 96
    %v3630 = vpop.permute.xlu0 %3629
    %3631 = vrot.lane.b32.xlu0 %v2052, 96
    %v3632 = vpop.permute.xlu0 %3631
    %3633 = vrot.lane.b32.xlu0 %v2053, 96
    %v3634 = vpop.permute.xlu0 %3633
    %3635 = vrot.lane.b32.xlu0 %v2054, 96
    %v3636 = vpop.permute.xlu0 %3635
    %3637 = vrot.lane.b32.xlu0 %v2055, 96
    %v3638 = vpop.permute.xlu0 %3637
    %3639 = vrot.lane.b32.xlu0 %v2056, 96
    %v3640 = vpop.permute.xlu0 %3639
    %3641 = vrot.lane.b32.xlu0 %v2057, 96
    %v3642 = vpop.permute.xlu0 %3641
    %3643 = vrot.lane.b32.xlu0 %v2058, 96
    %v3644 = vpop.permute.xlu0 %3643
    %3773 = vmatpush.bf16.msra.mxu0 %v3404
    %3774 = vmatpush.bf16.msra.mxu0 %v3402
    %3775 = vmatpush.bf16.msra.mxu0 %v3400
    %3776 = vmatpush.bf16.msra.mxu0 %v3398
    %3777 = vmatpush.bf16.msra.mxu0 %v3396
    %3778 = vmatpush.bf16.msra.mxu0 %v3394
    %3779 = vmatpush.bf16.msra.mxu0 %v3392
    %3780 = vmatpush.bf16.msra.mxu0 %v3390
    %3781 = vmatmul.bf16.gmra.mxu0 %v3370
    %v3782 = vpop.f32.mrf.mxu0
    %v3783 = vadd.f32 %v3387, %v3782
    %v3784 = vpop.f32.mrf.mxu0
    %3785 = vdwg.mxu0
    %3786 = vmatpush.bf16.msra.mxu0 %v3420
    %3787 = vmatpush.bf16.msra.mxu0 %v3418
    %3788 = vmatpush.bf16.msra.mxu0 %v3416
    %3789 = vmatpush.bf16.msra.mxu0 %v3414
    %3790 = vmatpush.bf16.msra.mxu0 %v3412
    %3791 = vmatpush.bf16.msra.mxu0 %v3410
    %3792 = vmatpush.bf16.msra.mxu0 %v3408
    %3793 = vmatpush.bf16.msra.mxu0 %v3406
    %3794 = vmatmul.bf16.gmra.mxu0 %v3371
    %v3795 = vpop.f32.mrf.mxu0
    %v3796 = vadd.f32 %v3783, %v3795
    %v3797 = vpop.f32.mrf.mxu0
    %3798 = vdwg.mxu0
    %3799 = vmatpush.bf16.msra.mxu0 %v3436
    %3800 = vmatpush.bf16.msra.mxu0 %v3434
    %3801 = vmatpush.bf16.msra.mxu0 %v3432
    %3802 = vmatpush.bf16.msra.mxu0 %v3430
    %3803 = vmatpush.bf16.msra.mxu0 %v3428
    %3804 = vmatpush.bf16.msra.mxu0 %v3426
    %3805 = vmatpush.bf16.msra.mxu0 %v3424
    %3806 = vmatpush.bf16.msra.mxu0 %v3422
    %3807 = vmatmul.bf16.gmra.mxu0 %v3372
    %v3808 = vpop.f32.mrf.mxu0
    %v3809 = vadd.f32 %v3796, %v3808
    %v3810 = vpop.f32.mrf.mxu0
    %3811 = vdwg.mxu0
    %3812 = vmatpush.bf16.msra.mxu0 %v3452
    %3813 = vmatpush.bf16.msra.mxu0 %v3450
    %3814 = vmatpush.bf16.msra.mxu0 %v3448
    %3815 = vmatpush.bf16.msra.mxu0 %v3446
    %3816 = vmatpush.bf16.msra.mxu0 %v3444
    %3817 = vmatpush.bf16.msra.mxu0 %v3442
    %3818 = vmatpush.bf16.msra.mxu0 %v3440
    %3819 = vmatpush.bf16.msra.mxu0 %v3438
    %3820 = vmatmul.bf16.gmra.mxu0 %v3373
    %v3821 = vpop.f32.mrf.mxu0
    %v3822 = vadd.f32 %v3809, %v3821
    %v3823 = vpop.f32.mrf.mxu0
    %3824 = vdwg.mxu0
    %3825 = vmatpush.bf16.msra.mxu0 %v3468
    %3826 = vmatpush.bf16.msra.mxu0 %v3466
    %3827 = vmatpush.bf16.msra.mxu0 %v3464
    %3828 = vmatpush.bf16.msra.mxu0 %v3462
    %3829 = vmatpush.bf16.msra.mxu0 %v3460
    %3830 = vmatpush.bf16.msra.mxu0 %v3458
    %3831 = vmatpush.bf16.msra.mxu0 %v3456
    %3832 = vmatpush.bf16.msra.mxu0 %v3454
    %3833 = vmatmul.bf16.gmra.mxu0 %v3374
    %v3834 = vpop.f32.mrf.mxu0
    %v3835 = vadd.f32 %v3822, %v3834
    %v3836 = vpop.f32.mrf.mxu0
    %3837 = vdwg.mxu0
    %3838 = vmatpush.bf16.msra.mxu0 %v3484
    %3839 = vmatpush.bf16.msra.mxu0 %v3482
    %3840 = vmatpush.bf16.msra.mxu0 %v3480
    %3841 = vmatpush.bf16.msra.mxu0 %v3478
    %3842 = vmatpush.bf16.msra.mxu0 %v3476
    %3843 = vmatpush.bf16.msra.mxu0 %v3474
    %3844 = vmatpush.bf16.msra.mxu0 %v3472
    %3845 = vmatpush.bf16.msra.mxu0 %v3470
    %3846 = vmatmul.bf16.gmra.mxu0 %v3375
    %v3847 = vpop.f32.mrf.mxu0
    %v3848 = vadd.f32 %v3835, %v3847
    %v3849 = vpop.f32.mrf.mxu0
    %3850 = vdwg.mxu0
    %3851 = vmatpush.bf16.msra.mxu0 %v3500
    %3852 = vmatpush.bf16.msra.mxu0 %v3498
    %3853 = vmatpush.bf16.msra.mxu0 %v3496
    %3854 = vmatpush.bf16.msra.mxu0 %v3494
    %3855 = vmatpush.bf16.msra.mxu0 %v3492
    %3856 = vmatpush.bf16.msra.mxu0 %v3490
    %3857 = vmatpush.bf16.msra.mxu0 %v3488
    %3858 = vmatpush.bf16.msra.mxu0 %v3486
    %3859 = vmatmul.bf16.gmra.mxu0 %v3376
    %v3860 = vpop.f32.mrf.mxu0
    %v3861 = vadd.f32 %v3848, %v3860
    %v3862 = vpop.f32.mrf.mxu0
    %3863 = vdwg.mxu0
    %3864 = vmatpush.bf16.msra.mxu0 %v3516
    %3865 = vmatpush.bf16.msra.mxu0 %v3514
    %3866 = vmatpush.bf16.msra.mxu0 %v3512
    %3867 = vmatpush.bf16.msra.mxu0 %v3510
    %3868 = vmatpush.bf16.msra.mxu0 %v3508
    %3869 = vmatpush.bf16.msra.mxu0 %v3506
    %3870 = vmatpush.bf16.msra.mxu0 %v3504
    %3871 = vmatpush.bf16.msra.mxu0 %v3502
    %3872 = vmatmul.bf16.gmra.mxu0 %v3377
    %v3873 = vpop.f32.mrf.mxu0
    %v3874 = vadd.f32 %v3861, %v3873
    %v3875 = vpop.f32.mrf.mxu0
    %3876 = vdwg.mxu0
    %3877 = vmatpush.bf16.msra.mxu0 %v3532
    %3878 = vmatpush.bf16.msra.mxu0 %v3530
    %3879 = vmatpush.bf16.msra.mxu0 %v3528
    %3880 = vmatpush.bf16.msra.mxu0 %v3526
    %3881 = vmatpush.bf16.msra.mxu0 %v3524
    %3882 = vmatpush.bf16.msra.mxu0 %v3522
    %3883 = vmatpush.bf16.msra.mxu0 %v3520
    %3884 = vmatpush.bf16.msra.mxu0 %v3518
    %3885 = vmatmul.bf16.gmra.mxu0 %v3378
    %v3886 = vpop.f32.mrf.mxu0
    %v3887 = vadd.f32 %v3874, %v3886
    %v3888 = vpop.f32.mrf.mxu0
    %3889 = vdwg.mxu0
    %3890 = vmatpush.bf16.msra.mxu0 %v3548
    %3891 = vmatpush.bf16.msra.mxu0 %v3546
    %3892 = vmatpush.bf16.msra.mxu0 %v3544
    %3893 = vmatpush.bf16.msra.mxu0 %v3542
    %3894 = vmatpush.bf16.msra.mxu0 %v3540
    %3895 = vmatpush.bf16.msra.mxu0 %v3538
    %3896 = vmatpush.bf16.msra.mxu0 %v3536
    %3897 = vmatpush.bf16.msra.mxu0 %v3534
    %3898 = vmatmul.bf16.gmra.mxu0 %v3379
    %v3899 = vpop.f32.mrf.mxu0
    %v3900 = vadd.f32 %v3887, %v3899
    %v3901 = vpop.f32.mrf.mxu0
    %3902 = vdwg.mxu0
    %3903 = vmatpush.bf16.msra.mxu0 %v3564
    %3904 = vmatpush.bf16.msra.mxu0 %v3562
    %3905 = vmatpush.bf16.msra.mxu0 %v3560
    %3906 = vmatpush.bf16.msra.mxu0 %v3558
    %3907 = vmatpush.bf16.msra.mxu0 %v3556
    %3908 = vmatpush.bf16.msra.mxu0 %v3554
    %3909 = vmatpush.bf16.msra.mxu0 %v3552
    %3910 = vmatpush.bf16.msra.mxu0 %v3550
    %3911 = vmatmul.bf16.gmra.mxu0 %v3380
    %v3912 = vpop.f32.mrf.mxu0
    %v3913 = vadd.f32 %v3900, %v3912
    %v3914 = vpop.f32.mrf.mxu0
    %3915 = vdwg.mxu0
    %3916 = vmatpush.bf16.msra.mxu0 %v3580
    %3917 = vmatpush.bf16.msra.mxu0 %v3578
    %3918 = vmatpush.bf16.msra.mxu0 %v3576
    %3919 = vmatpush.bf16.msra.mxu0 %v3574
    %3920 = vmatpush.bf16.msra.mxu0 %v3572
    %3921 = vmatpush.bf16.msra.mxu0 %v3570
    %3922 = vmatpush.bf16.msra.mxu0 %v3568
    %3923 = vmatpush.bf16.msra.mxu0 %v3566
    %3924 = vmatmul.bf16.gmra.mxu0 %v3381
    %v3925 = vpop.f32.mrf.mxu0
    %v3926 = vadd.f32 %v3913, %v3925
    %v3927 = vpop.f32.mrf.mxu0
    %3928 = vdwg.mxu0
    %3929 = vmatpush.bf16.msra.mxu0 %v3596
    %3930 = vmatpush.bf16.msra.mxu0 %v3594
    %3931 = vmatpush.bf16.msra.mxu0 %v3592
    %3932 = vmatpush.bf16.msra.mxu0 %v3590
    %3933 = vmatpush.bf16.msra.mxu0 %v3588
    %3934 = vmatpush.bf16.msra.mxu0 %v3586
    %3935 = vmatpush.bf16.msra.mxu0 %v3584
    %3936 = vmatpush.bf16.msra.mxu0 %v3582
    %3937 = vmatmul.bf16.gmra.mxu0 %v3382
    %v3938 = vpop.f32.mrf.mxu0
    %v3939 = vadd.f32 %v3926, %v3938
    %v3940 = vpop.f32.mrf.mxu0
    %3941 = vdwg.mxu0
    %3942 = vmatpush.bf16.msra.mxu0 %v3612
    %3943 = vmatpush.bf16.msra.mxu0 %v3610
    %3944 = vmatpush.bf16.msra.mxu0 %v3608
    %3945 = vmatpush.bf16.msra.mxu0 %v3606
    %3946 = vmatpush.bf16.msra.mxu0 %v3604
    %3947 = vmatpush.bf16.msra.mxu0 %v3602
    %3948 = vmatpush.bf16.msra.mxu0 %v3600
    %3949 = vmatpush.bf16.msra.mxu0 %v3598
    %3950 = vmatmul.bf16.gmra.mxu0 %v3383
    %v3951 = vpop.f32.mrf.mxu0
    %v3952 = vadd.f32 %v3939, %v3951
    %v3953 = vpop.f32.mrf.mxu0
    %3954 = vdwg.mxu0
    %3955 = vmatpush.bf16.msra.mxu0 %v3628
    %3956 = vmatpush.bf16.msra.mxu0 %v3626
    %3957 = vmatpush.bf16.msra.mxu0 %v3624
    %3958 = vmatpush.bf16.msra.mxu0 %v3622
    %3959 = vmatpush.bf16.msra.mxu0 %v3620
    %3960 = vmatpush.bf16.msra.mxu0 %v3618
    %3961 = vmatpush.bf16.msra.mxu0 %v3616
    %3962 = vmatpush.bf16.msra.mxu0 %v3614
    %3963 = vmatmul.bf16.gmra.mxu0 %v3384
    %v3964 = vpop.f32.mrf.mxu0
    %v3965 = vadd.f32 %v3952, %v3964
    %v3966 = vpop.f32.mrf.mxu0
    %3967 = vdwg.mxu0
    %3968 = vmatpush.bf16.msra.mxu0 %v3644
    %3969 = vmatpush.bf16.msra.mxu0 %v3642
    %3970 = vmatpush.bf16.msra.mxu0 %v3640
    %3971 = vmatpush.bf16.msra.mxu0 %v3638
    %3972 = vmatpush.bf16.msra.mxu0 %v3636
    %3973 = vmatpush.bf16.msra.mxu0 %v3634
    %3974 = vmatpush.bf16.msra.mxu0 %v3632
    %3975 = vmatpush.bf16.msra.mxu0 %v3630
    %3976 = vmatmul.bf16.gmra.mxu0 %v3385
    %v3977 = vpop.f32.mrf.mxu0
    %v3978 = vadd.f32 %v3965, %v3977
    %v3979 = vpop.f32.mrf.mxu0
    %3980 = vdwg.mxu0
    %v3981 = vadd.f32 %v2909, %v3978
    %v3982 = vld [vmem:[#allocation16 + $0x3] sm:$0x1]
    %v3983 = vld [vmem:[#allocation17 + $0x3] sm:$0x1]
    %v3984 = vsel %vm211, %v3981, 0.0
    %3985 = vadd.xlane.f32.xlu0 %v3984
    %v3986 = vpop.xlane.xlu0 %3985
    %v3987 = vmul.f32 %v3986, %v661
    %v3988 = vmul.f32 %v3981, %v3981
    %v3989 = vsel %vm211, %v3988, 0.0
    %3990 = vadd.xlane.f32.xlu0 %v3989
    %v3991 = vpop.xlane.xlu0 %3990
    %v3992 = vmul.f32 %v3991, %v661
    %v3993 = vmul.f32 %v3987, %v3987
    %v3994 = vsub.f32 %v3992, %v3993
    %v3995 = vsub.f32 %v3981, %v3987
    %v3996 = vadd.f32 %v3994, 1e-05
    %v3997 = vrsqrt.pop %v3996
    %v3998 = vmul.f32 %v3997, %v3996
    %v3999 = vmul.f32 %v3998, %v3997
    %v4000 = vmul.f32 0.5, %v3999
    %v4001 = vsub.f32 1.5, %v4000
    %v4002 = vmul.f32 %v3997, %v4001
    %vm4003 = vweird.f32 %v3996
    %vm4004 = vweird.f32 %v3997
    %vm4005 = vmor %vm4003, %vm4004
    %v4006 = vsel %vm4005, %v3997, %v4002
    %v4007 = vmul.f32 %v3995, %v4006
    %v4008 = vperm.slane %v3982, 0
    %v4009 = vmul.f32 %v4007, %v4008
    %v4010 = vperm.slane %v3983, 0
    %v4011 = vadd.f32 %v4009, %v4010
    %v4012 = vld [vmem:[#allocation16 + $0x4] sm:$0x1]
    %v4013 = vld [vmem:[#allocation17 + $0x4] sm:$0x1]
    %v4014 = vsel %vm211, %v4011, 0.0
    %4015 = vadd.xlane.f32.xlu0 %v4014
    %v4016 = vpop.xlane.xlu0 %4015
    %v4017 = vmul.f32 %v4016, %v661
    %v4018 = vmul.f32 %v4011, %v4011
    %v4019 = vsel %vm211, %v4018, 0.0
    %4020 = vadd.xlane.f32.xlu0 %v4019
    %v4021 = vpop.xlane.xlu0 %4020
    %v4022 = vmul.f32 %v4021, %v661
    %v4023 = vmul.f32 %v4017, %v4017
    %v4024 = vsub.f32 %v4022, %v4023
    %v4025 = vsub.f32 %v4011, %v4017
    %v4026 = vadd.f32 %v4024, 1e-05
    %v4027 = vrsqrt.pop %v4026
    %v4028 = vmul.f32 %v4027, %v4026
    %v4029 = vmul.f32 %v4028, %v4027
    %v4030 = vmul.f32 0.5, %v4029
    %v4031 = vsub.f32 1.5, %v4030
    %v4032 = vmul.f32 %v4027, %v4031
    %vm4033 = vweird.f32 %v4026
    %vm4034 = vweird.f32 %v4027
    %vm4035 = vmor %vm4033, %vm4034
    %v4036 = vsel %vm4035, %v4027, %v4032
    %v4037 = vmul.f32 %v4025, %v4036
    %v4038 = vperm.slane %v4012, 0
    %v4039 = vmul.f32 %v4037, %v4038
    %v4040 = vperm.slane %v4013, 0
    %v4041 = vadd.f32 %v4039, %v4040
    %s4042 = scalar_lea.vmem [#allocation5], 64
    %v4043 = vld [vmem:[%s4042] sm:$0xff]
    %v4044 = vld [vmem:[%s4042 + $0x8] sm:$0xff]
    %v4045 = vld [vmem:[%s4042 + $0x10] sm:$0xff]
    %v4046 = vld [vmem:[%s4042 + $0x18] sm:$0xff]
    %s4047 = scalar_lea.vmem [#allocation7], 2
    %v4048 = vld [vmem:[%s4047] sm:$0x1]
    %s4049 = scalar_lea.vmem [#allocation8], 64
    %v4050 = vld [vmem:[%s4049] sm:$0xff]
    %v4051 = vld [vmem:[%s4049 + $0x8] sm:$0xff]
    %v4052 = vld [vmem:[%s4049 + $0x10] sm:$0xff]
    %v4053 = vld [vmem:[%s4049 + $0x18] sm:$0xff]
    %s4054 = scalar_lea.vmem [#allocation10], 2
    %v4055 = vld [vmem:[%s4054] sm:$0x1]
    %v4057 = vperm.slane %v4048, 0
    %4059 = vmatpush.msra.mxu0 0.0
    %4060 = vmatpush.msra.mxu0 0.0
    %4061 = vmatpush.msra.mxu0 0.0
    %4062 = vmatpush.msra.mxu0 0.0
    %4063 = vmatpush.msra.mxu0 0.0
    %4064 = vmatpush.msra.mxu0 0.0
    %4065 = vmatpush.msra.mxu0 0.0
    %4066 = vmatpush.msra.mxu0 0.0
    %4067 = vmatpush.msra.mxu0 0.0
    %4068 = vmatpush.msra.mxu0 0.0
    %4069 = vmatpush.msra.mxu0 0.0
    %4070 = vmatpush.msra.mxu0 0.0
    %4071 = vmatpush.msra.mxu0 %v4046
    %4072 = vmatpush.msra.mxu0 %v4045
    %4073 = vmatpush.msra.mxu0 %v4044
    %4074 = vmatpush.msra.mxu0 %v4043
    %4075 = vmatmul.f32.gmra.mxu0 %v213
    %v4076 = vpop.f32.mrf.mxu0
    %v4077 = vadd.f32 %v4057, %v4076
    %4078 = vdwg.mxu0
    %4080 = vrot.lane.b32.xlu0 %v4077, 96
    %v4081 = vpop.permute.xlu0 %4080
    %v4082 = vsel %vm238, %v4077, 0
    %v4084 = vsel %vm238, %v4081, 0
    %4086 = vmatpush.xpose.msra.mxu0 0.0
    %4087 = vmatpush.xpose.msra.mxu0 0.0
    %4088 = vmatpush.xpose.msra.mxu0 0.0
    %4089 = vmatpush.xpose.msra.mxu0 0.0
    %4090 = vmatpush.xpose.msra.mxu0 0.0
    %4091 = vmatpush.xpose.msra.mxu0 0.0
    %4092 = vmatpush.xpose.msra.mxu0 0.0
    %4093 = vmatpush.xpose.msra.mxu0 0.0
    %4094 = vmatpush.xpose.msra.mxu0 0.0
    %4095 = vmatpush.xpose.msra.mxu0 0.0
    %4096 = vmatpush.xpose.msra.mxu0 0.0
    %4097 = vmatpush.xpose.msra.mxu0 0.0
    %4098 = vmatpush.xpose.msra.mxu0 0.0
    %4099 = vmatpush.xpose.msra.mxu0 0.0
    %4100 = vmatpush.xpose.msra.mxu0 0.0
    %4101 = vmatpush.xpose.msra.mxu0 %v4084
    %4102 = vmatmul.f32.gmra.mxu0 %v4082
    %v4103 = vpop.f32.mrf.mxu0
    %v4104 = vadd.f32 0.0, %v4103
    %4105 = vdwg.mxu0
    %v4106 = vmul.f32 %v4104, 0.35355338
    %v4107 = vsel %vm238, %v4106, -inf
    %4108 = vmax.xlane.f32.xlu0 %v4107
    %v4109 = vpop.xlane.xlu0 %4108
    %v4110 = vsub.f32 %v4106, %v4109
    %v4111 = vmul.f32 %v4110, 1.442695
    %v4112 = vpow.pop %v4111
    %v4113 = vsel %vm238, %v4112, 0.0
    %4114 = vadd.xlane.f32.xlu0 %v4113
    %v4115 = vpop.xlane.xlu0 %4114
    %v4116 = vrcp.pop %v4115
    %v4117 = vmul.f32 %v4115, %v4116
    %v4118 = vsub.f32 1.0, %v4117
    %v4119 = vmul.f32 %v4116, %v4118
    %v4120 = vadd.f32 %v4116, %v4119
    %vm4121 = vweird.f32 %v4115
    %vm4122 = vweird.f32 %v4116
    %vm4123 = vmor %vm4121, %vm4122
    %v4124 = vsel %vm4123, %v4116, %v4120
    %v4125 = vand.u32 2147483647, %v4115
    %vm4126 = vcmp.eq.f32.partialorder %v4125, 8.507059e+37
    %v4127 = vand.u32 %v4115, 2147483648
    %v4128 = vor.u32 1.1754944e-38, %v4127
    %v4129 = vsel %vm4126, %v4128, %v4124
    %v4130 = vmul.f32 %v4112, %v4129
    %4131 = vrot.lane.b32.xlu0 %v4077, 64
    %v4132 = vpop.permute.xlu0 %4131
    %v4135 = vsel %vm238, %v4130, 0
    %4137 = vmatpush.msra.mxu0 0.0
    %4138 = vmatpush.msra.mxu0 0.0
    %4139 = vmatpush.msra.mxu0 0.0
    %4140 = vmatpush.msra.mxu0 0.0
    %4141 = vmatpush.msra.mxu0 0.0
    %4142 = vmatpush.msra.mxu0 0.0
    %4143 = vmatpush.msra.mxu0 0.0
    %4144 = vmatpush.msra.mxu0 0.0
    %4145 = vmatpush.msra.mxu0 0.0
    %4146 = vmatpush.msra.mxu0 0.0
    %4147 = vmatpush.msra.mxu0 0.0
    %4148 = vmatpush.msra.mxu0 0.0
    %4149 = vmatpush.msra.mxu0 0.0
    %4150 = vmatpush.msra.mxu0 0.0
    %4151 = vmatpush.msra.mxu0 0.0
    %4152 = vmatpush.msra.mxu0 %v4132
    %4153 = vmatmul.f32.gmra.mxu0 %v4135
    %v4154 = vpop.f32.mrf.mxu0
    %v4155 = vadd.f32 0.0, %v4154
    %4156 = vdwg.mxu0
    %4157 = vrot.lane.b32.xlu0 %v4077, 120
    %v4158 = vpop.permute.xlu0 %4157
    %4159 = vrot.lane.b32.xlu0 %v4077, 88
    %v4160 = vpop.permute.xlu0 %4159
    %v4161 = vsel %vm238, %v4158, 0
    %v4163 = vsel %vm238, %v4160, 0
    %4165 = vmatpush.xpose.msra.mxu0 0.0
    %4166 = vmatpush.xpose.msra.mxu0 0.0
    %4167 = vmatpush.xpose.msra.mxu0 0.0
    %4168 = vmatpush.xpose.msra.mxu0 0.0
    %4169 = vmatpush.xpose.msra.mxu0 0.0
    %4170 = vmatpush.xpose.msra.mxu0 0.0
    %4171 = vmatpush.xpose.msra.mxu0 0.0
    %4172 = vmatpush.xpose.msra.mxu0 0.0
    %4173 = vmatpush.xpose.msra.mxu0 0.0
    %4174 = vmatpush.xpose.msra.mxu0 0.0
    %4175 = vmatpush.xpose.msra.mxu0 0.0
    %4176 = vmatpush.xpose.msra.mxu0 0.0
    %4177 = vmatpush.xpose.msra.mxu0 0.0
    %4178 = vmatpush.xpose.msra.mxu0 0.0
    %4179 = vmatpush.xpose.msra.mxu0 0.0
    %4180 = vmatpush.xpose.msra.mxu0 %v4163
    %4181 = vmatmul.f32.gmra.mxu0 %v4161
    %v4182 = vpop.f32.mrf.mxu0
    %v4183 = vadd.f32 0.0, %v4182
    %4184 = vdwg.mxu0
    %v4185 = vmul.f32 %v4183, 0.35355338
    %v4186 = vsel %vm238, %v4185, -inf
    %4187 = vmax.xlane.f32.xlu0 %v4186
    %v4188 = vpop.xlane.xlu0 %4187
    %v4189 = vsub.f32 %v4185, %v4188
    %v4190 = vmul.f32 %v4189, 1.442695
    %v4191 = vpow.pop %v4190
    %v4192 = vsel %vm238, %v4191, 0.0
    %4193 = vadd.xlane.f32.xlu0 %v4192
    %v4194 = vpop.xlane.xlu0 %4193
    %v4195 = vrcp.pop %v4194
    %v4196 = vmul.f32 %v4194, %v4195
    %v4197 = vsub.f32 1.0, %v4196
    %v4198 = vmul.f32 %v4195, %v4197
    %v4199 = vadd.f32 %v4195, %v4198
    %vm4200 = vweird.f32 %v4194
    %vm4201 = vweird.f32 %v4195
    %vm4202 = vmor %vm4200, %vm4201
    %v4203 = vsel %vm4202, %v4195, %v4199
    %v4204 = vand.u32 2147483647, %v4194
    %vm4205 = vcmp.eq.f32.partialorder %v4204, 8.507059e+37
    %v4206 = vand.u32 %v4194, 2147483648
    %v4207 = vor.u32 1.1754944e-38, %v4206
    %v4208 = vsel %vm4205, %v4207, %v4203
    %v4209 = vmul.f32 %v4191, %v4208
    %4210 = vrot.lane.b32.xlu0 %v4077, 56
    %v4211 = vpop.permute.xlu0 %4210
    %v4214 = vsel %vm238, %v4209, 0
    %4216 = vmatpush.msra.mxu0 0.0
    %4217 = vmatpush.msra.mxu0 0.0
    %4218 = vmatpush.msra.mxu0 0.0
    %4219 = vmatpush.msra.mxu0 0.0
    %4220 = vmatpush.msra.mxu0 0.0
    %4221 = vmatpush.msra.mxu0 0.0
    %4222 = vmatpush.msra.mxu0 0.0
    %4223 = vmatpush.msra.mxu0 0.0
    %4224 = vmatpush.msra.mxu0 0.0
    %4225 = vmatpush.msra.mxu0 0.0
    %4226 = vmatpush.msra.mxu0 0.0
    %4227 = vmatpush.msra.mxu0 0.0
    %4228 = vmatpush.msra.mxu0 0.0
    %4229 = vmatpush.msra.mxu0 0.0
    %4230 = vmatpush.msra.mxu0 0.0
    %4231 = vmatpush.msra.mxu0 %v4211
    %4232 = vmatmul.f32.gmra.mxu0 %v4214
    %v4233 = vpop.f32.mrf.mxu0
    %v4234 = vadd.f32 0.0, %v4233
    %4235 = vdwg.mxu0
    %v4237 = vsel %vm238, %v4234, 0
    %4239 = vmatpush.msra.mxu0 0.0
    %4240 = vmatpush.msra.mxu0 0.0
    %4241 = vmatpush.msra.mxu0 0.0
    %4242 = vmatpush.msra.mxu0 0.0
    %4243 = vmatpush.msra.mxu0 0.0
    %4244 = vmatpush.msra.mxu0 0.0
    %4245 = vmatpush.msra.mxu0 0.0
    %4246 = vmatpush.msra.mxu0 0.0
    %4247 = vmatpush.msra.mxu0 0.0
    %4248 = vmatpush.msra.mxu0 0.0
    %4249 = vmatpush.msra.mxu0 0.0
    %4250 = vmatpush.msra.mxu0 0.0
    %4251 = vmatpush.msra.mxu0 0.0
    %4252 = vmatpush.msra.mxu0 0.0
    %4253 = vmatpush.msra.mxu0 0.0
    %4254 = vmatpush.msra.mxu0 %v4051
    %4255 = vmatmul.f32.gmra.mxu0 %v4237
    %v4256 = vpop.f32.mrf.mxu0
    %v4257 = vadd.f32 0.0, %v4256
    %4258 = vdwg.mxu0
    %v4260 = vsel %vm238, %v4155, 0
    %4262 = vmatpush.msra.mxu0 0.0
    %4263 = vmatpush.msra.mxu0 0.0
    %4264 = vmatpush.msra.mxu0 0.0
    %4265 = vmatpush.msra.mxu0 0.0
    %4266 = vmatpush.msra.mxu0 0.0
    %4267 = vmatpush.msra.mxu0 0.0
    %4268 = vmatpush.msra.mxu0 0.0
    %4269 = vmatpush.msra.mxu0 0.0
    %4270 = vmatpush.msra.mxu0 0.0
    %4271 = vmatpush.msra.mxu0 0.0
    %4272 = vmatpush.msra.mxu0 0.0
    %4273 = vmatpush.msra.mxu0 0.0
    %4274 = vmatpush.msra.mxu0 0.0
    %4275 = vmatpush.msra.mxu0 0.0
    %4276 = vmatpush.msra.mxu0 0.0
    %4277 = vmatpush.msra.mxu0 %v4050
    %4278 = vmatmul.f32.gmra.mxu0 %v4260
    %v4279 = vpop.f32.mrf.mxu0
    %v4280 = vadd.f32 %v4257, %v4279
    %4281 = vdwg.mxu0
    %4282 = vrot.lane.b32.xlu0 %v4077, 112
    %v4283 = vpop.permute.xlu0 %4282
    %4284 = vrot.lane.b32.xlu0 %v4077, 80
    %v4285 = vpop.permute.xlu0 %4284
    %v4286 = vsel %vm238, %v4283, 0
    %v4288 = vsel %vm238, %v4285, 0
    %4290 = vmatpush.xpose.msra.mxu0 0.0
    %4291 = vmatpush.xpose.msra.mxu0 0.0
    %4292 = vmatpush.xpose.msra.mxu0 0.0
    %4293 = vmatpush.xpose.msra.mxu0 0.0
    %4294 = vmatpush.xpose.msra.mxu0 0.0
    %4295 = vmatpush.xpose.msra.mxu0 0.0
    %4296 = vmatpush.xpose.msra.mxu0 0.0
    %4297 = vmatpush.xpose.msra.mxu0 0.0
    %4298 = vmatpush.xpose.msra.mxu0 0.0
    %4299 = vmatpush.xpose.msra.mxu0 0.0
    %4300 = vmatpush.xpose.msra.mxu0 0.0
    %4301 = vmatpush.xpose.msra.mxu0 0.0
    %4302 = vmatpush.xpose.msra.mxu0 0.0
    %4303 = vmatpush.xpose.msra.mxu0 0.0
    %4304 = vmatpush.xpose.msra.mxu0 0.0
    %4305 = vmatpush.xpose.msra.mxu0 %v4288
    %4306 = vmatmul.f32.gmra.mxu0 %v4286
    %v4307 = vpop.f32.mrf.mxu0
    %v4308 = vadd.f32 0.0, %v4307
    %4309 = vdwg.mxu0
    %v4310 = vmul.f32 %v4308, 0.35355338
    %v4311 = vsel %vm238, %v4310, -inf
    %4312 = vmax.xlane.f32.xlu0 %v4311
    %v4313 = vpop.xlane.xlu0 %4312
    %v4314 = vsub.f32 %v4310, %v4313
    %v4315 = vmul.f32 %v4314, 1.442695
    %v4316 = vpow.pop %v4315
    %v4317 = vsel %vm238, %v4316, 0.0
    %4318 = vadd.xlane.f32.xlu0 %v4317
    %v4319 = vpop.xlane.xlu0 %4318
    %v4320 = vrcp.pop %v4319
    %v4321 = vmul.f32 %v4319, %v4320
    %v4322 = vsub.f32 1.0, %v4321
    %v4323 = vmul.f32 %v4320, %v4322
    %v4324 = vadd.f32 %v4320, %v4323
    %vm4325 = vweird.f32 %v4319
    %vm4326 = vweird.f32 %v4320
    %vm4327 = vmor %vm4325, %vm4326
    %v4328 = vsel %vm4327, %v4320, %v4324
    %v4329 = vand.u32 2147483647, %v4319
    %vm4330 = vcmp.eq.f32.partialorder %v4329, 8.507059e+37
    %v4331 = vand.u32 %v4319, 2147483648
    %v4332 = vor.u32 1.1754944e-38, %v4331
    %v4333 = vsel %vm4330, %v4332, %v4328
    %v4334 = vmul.f32 %v4316, %v4333
    %4335 = vrot.lane.b32.xlu0 %v4077, 48
    %v4336 = vpop.permute.xlu0 %4335
    %v4339 = vsel %vm238, %v4334, 0
    %4341 = vmatpush.msra.mxu0 0.0
    %4342 = vmatpush.msra.mxu0 0.0
    %4343 = vmatpush.msra.mxu0 0.0
    %4344 = vmatpush.msra.mxu0 0.0
    %4345 = vmatpush.msra.mxu0 0.0
    %4346 = vmatpush.msra.mxu0 0.0
    %4347 = vmatpush.msra.mxu0 0.0
    %4348 = vmatpush.msra.mxu0 0.0
    %4349 = vmatpush.msra.mxu0 0.0
    %4350 = vmatpush.msra.mxu0 0.0
    %4351 = vmatpush.msra.mxu0 0.0
    %4352 = vmatpush.msra.mxu0 0.0
    %4353 = vmatpush.msra.mxu0 0.0
    %4354 = vmatpush.msra.mxu0 0.0
    %4355 = vmatpush.msra.mxu0 0.0
    %4356 = vmatpush.msra.mxu0 %v4336
    %4357 = vmatmul.f32.gmra.mxu0 %v4339
    %v4358 = vpop.f32.mrf.mxu0
    %v4359 = vadd.f32 0.0, %v4358
    %4360 = vdwg.mxu0
    %v4362 = vsel %vm238, %v4359, 0
    %4364 = vmatpush.msra.mxu0 0.0
    %4365 = vmatpush.msra.mxu0 0.0
    %4366 = vmatpush.msra.mxu0 0.0
    %4367 = vmatpush.msra.mxu0 0.0
    %4368 = vmatpush.msra.mxu0 0.0
    %4369 = vmatpush.msra.mxu0 0.0
    %4370 = vmatpush.msra.mxu0 0.0
    %4371 = vmatpush.msra.mxu0 0.0
    %4372 = vmatpush.msra.mxu0 0.0
    %4373 = vmatpush.msra.mxu0 0.0
    %4374 = vmatpush.msra.mxu0 0.0
    %4375 = vmatpush.msra.mxu0 0.0
    %4376 = vmatpush.msra.mxu0 0.0
    %4377 = vmatpush.msra.mxu0 0.0
    %4378 = vmatpush.msra.mxu0 0.0
    %4379 = vmatpush.msra.mxu0 %v4052
    %4380 = vmatmul.f32.gmra.mxu0 %v4362
    %v4381 = vpop.f32.mrf.mxu0
    %v4382 = vadd.f32 0.0, %v4381
    %4383 = vdwg.mxu0
    %v4384 = vadd.f32 %v4280, %v4382
    %4385 = vrot.lane.b32.xlu0 %v4077, 104
    %v4386 = vpop.permute.xlu0 %4385
    %4387 = vrot.lane.b32.xlu0 %v4077, 72
    %v4388 = vpop.permute.xlu0 %4387
    %v4389 = vsel %vm238, %v4386, 0
    %v4391 = vsel %vm238, %v4388, 0
    %4393 = vmatpush.xpose.msra.mxu0 0.0
    %4394 = vmatpush.xpose.msra.mxu0 0.0
    %4395 = vmatpush.xpose.msra.mxu0 0.0
    %4396 = vmatpush.xpose.msra.mxu0 0.0
    %4397 = vmatpush.xpose.msra.mxu0 0.0
    %4398 = vmatpush.xpose.msra.mxu0 0.0
    %4399 = vmatpush.xpose.msra.mxu0 0.0
    %4400 = vmatpush.xpose.msra.mxu0 0.0
    %4401 = vmatpush.xpose.msra.mxu0 0.0
    %4402 = vmatpush.xpose.msra.mxu0 0.0
    %4403 = vmatpush.xpose.msra.mxu0 0.0
    %4404 = vmatpush.xpose.msra.mxu0 0.0
    %4405 = vmatpush.xpose.msra.mxu0 0.0
    %4406 = vmatpush.xpose.msra.mxu0 0.0
    %4407 = vmatpush.xpose.msra.mxu0 0.0
    %4408 = vmatpush.xpose.msra.mxu0 %v4391
    %4409 = vmatmul.f32.gmra.mxu0 %v4389
    %v4410 = vpop.f32.mrf.mxu0
    %v4411 = vadd.f32 0.0, %v4410
    %4412 = vdwg.mxu0
    %v4413 = vmul.f32 %v4411, 0.35355338
    %v4414 = vsel %vm238, %v4413, -inf
    %4415 = vmax.xlane.f32.xlu0 %v4414
    %v4416 = vpop.xlane.xlu0 %4415
    %v4417 = vsub.f32 %v4413, %v4416
    %v4418 = vmul.f32 %v4417, 1.442695
    %v4419 = vpow.pop %v4418
    %v4420 = vsel %vm238, %v4419, 0.0
    %4421 = vadd.xlane.f32.xlu0 %v4420
    %v4422 = vpop.xlane.xlu0 %4421
    %v4423 = vrcp.pop %v4422
    %v4424 = vmul.f32 %v4422, %v4423
    %v4425 = vsub.f32 1.0, %v4424
    %v4426 = vmul.f32 %v4423, %v4425
    %v4427 = vadd.f32 %v4423, %v4426
    %vm4428 = vweird.f32 %v4422
    %vm4429 = vweird.f32 %v4423
    %vm4430 = vmor %vm4428, %vm4429
    %v4431 = vsel %vm4430, %v4423, %v4427
    %v4432 = vand.u32 2147483647, %v4422
    %vm4433 = vcmp.eq.f32.partialorder %v4432, 8.507059e+37
    %v4434 = vand.u32 %v4422, 2147483648
    %v4435 = vor.u32 1.1754944e-38, %v4434
    %v4436 = vsel %vm4433, %v4435, %v4431
    %v4437 = vmul.f32 %v4419, %v4436
    %4438 = vrot.lane.b32.xlu0 %v4077, 40
    %v4439 = vpop.permute.xlu0 %4438
    %v4442 = vsel %vm238, %v4437, 0
    %4444 = vmatpush.msra.mxu0 0.0
    %4445 = vmatpush.msra.mxu0 0.0
    %4446 = vmatpush.msra.mxu0 0.0
    %4447 = vmatpush.msra.mxu0 0.0
    %4448 = vmatpush.msra.mxu0 0.0
    %4449 = vmatpush.msra.mxu0 0.0
    %4450 = vmatpush.msra.mxu0 0.0
    %4451 = vmatpush.msra.mxu0 0.0
    %4452 = vmatpush.msra.mxu0 0.0
    %4453 = vmatpush.msra.mxu0 0.0
    %4454 = vmatpush.msra.mxu0 0.0
    %4455 = vmatpush.msra.mxu0 0.0
    %4456 = vmatpush.msra.mxu0 0.0
    %4457 = vmatpush.msra.mxu0 0.0
    %4458 = vmatpush.msra.mxu0 0.0
    %4459 = vmatpush.msra.mxu0 %v4439
    %4460 = vmatmul.f32.gmra.mxu0 %v4442
    %v4461 = vpop.f32.mrf.mxu0
    %v4462 = vadd.f32 0.0, %v4461
    %4463 = vdwg.mxu0
    %v4465 = vsel %vm238, %v4462, 0
    %4467 = vmatpush.msra.mxu0 0.0
    %4468 = vmatpush.msra.mxu0 0.0
    %4469 = vmatpush.msra.mxu0 0.0
    %4470 = vmatpush.msra.mxu0 0.0
    %4471 = vmatpush.msra.mxu0 0.0
    %4472 = vmatpush.msra.mxu0 0.0
    %4473 = vmatpush.msra.mxu0 0.0
    %4474 = vmatpush.msra.mxu0 0.0
    %4475 = vmatpush.msra.mxu0 0.0
    %4476 = vmatpush.msra.mxu0 0.0
    %4477 = vmatpush.msra.mxu0 0.0
    %4478 = vmatpush.msra.mxu0 0.0
    %4479 = vmatpush.msra.mxu0 0.0
    %4480 = vmatpush.msra.mxu0 0.0
    %4481 = vmatpush.msra.mxu0 0.0
    %4482 = vmatpush.msra.mxu0 %v4053
    %4483 = vmatmul.f32.gmra.mxu0 %v4465
    %v4484 = vpop.f32.mrf.mxu0
    %v4485 = vadd.f32 0.0, %v4484
    %4486 = vdwg.mxu0
    %v4487 = vadd.f32 %v4384, %v4485
    %v4489 = vperm.slane %v4055, 0
    %v4491 = vadd.f32 %v4487, %v4489
    %v4492 = vadd.f32 %v197, %v4491
    %v4493 = vld [vmem:[#allocation16 + $0x5] sm:$0x1]
    %v4494 = vld [vmem:[#allocation17 + $0x5] sm:$0x1]
    %v4495 = vsel %vm211, %v4492, 0.0
    %4496 = vadd.xlane.f32.xlu0 %v4495
    %v4497 = vpop.xlane.xlu0 %4496
    %v4498 = vmul.f32 %v4497, %v661
    %v4499 = vmul.f32 %v4492, %v4492
    %v4500 = vsel %vm211, %v4499, 0.0
    %4501 = vadd.xlane.f32.xlu0 %v4500
    %v4502 = vpop.xlane.xlu0 %4501
    %v4503 = vmul.f32 %v4502, %v661
    %v4504 = vmul.f32 %v4498, %v4498
    %v4505 = vsub.f32 %v4503, %v4504
    %v4506 = vsub.f32 %v4492, %v4498
    %v4507 = vadd.f32 %v4505, 1e-05
    %v4508 = vrsqrt.pop %v4507
    %v4509 = vmul.f32 %v4508, %v4507
    %v4510 = vmul.f32 %v4509, %v4508
    %v4511 = vmul.f32 0.5, %v4510
    %v4512 = vsub.f32 1.5, %v4511
    %v4513 = vmul.f32 %v4508, %v4512
    %vm4514 = vweird.f32 %v4507
    %vm4515 = vweird.f32 %v4508
    %vm4516 = vmor %vm4514, %vm4515
    %v4517 = vsel %vm4516, %v4508, %v4513
    %v4518 = vmul.f32 %v4506, %v4517
    %v4519 = vperm.slane %v4493, 0
    %v4520 = vmul.f32 %v4518, %v4519
    %v4521 = vperm.slane %v4494, 0
    %v4522 = vadd.f32 %v4520, %v4521
    %s4523 = scalar_lea.vmem [#allocation5], 96
    %v4524 = vld [vmem:[%s4523] sm:$0xff]
    %v4525 = vld [vmem:[%s4523 + $0x8] sm:$0xff]
    %v4526 = vld [vmem:[%s4523 + $0x10] sm:$0xff]
    %v4527 = vld [vmem:[%s4523 + $0x18] sm:$0xff]
    %s4528 = scalar_lea.vmem [#allocation7], 3
    %v4529 = vld [vmem:[%s4528] sm:$0x1]
    %s4530 = scalar_lea.vmem [#allocation8], 96
    %v4531 = vld [vmem:[%s4530] sm:$0xff]
    %v4532 = vld [vmem:[%s4530 + $0x8] sm:$0xff]
    %v4533 = vld [vmem:[%s4530 + $0x10] sm:$0xff]
    %v4534 = vld [vmem:[%s4530 + $0x18] sm:$0xff]
    %s4535 = scalar_lea.vmem [#allocation10], 3
    %v4536 = vld [vmem:[%s4535] sm:$0x1]
    %v4538 = vperm.slane %v4529, 0
    %v4541 = vsel %vm211, %v4522, 0
    %4543 = vmatpush.msra.mxu0 0.0
    %4544 = vmatpush.msra.mxu0 0.0
    %4545 = vmatpush.msra.mxu0 0.0
    %4546 = vmatpush.msra.mxu0 0.0
    %4547 = vmatpush.msra.mxu0 0.0
    %4548 = vmatpush.msra.mxu0 0.0
    %4549 = vmatpush.msra.mxu0 0.0
    %4550 = vmatpush.msra.mxu0 0.0
    %4551 = vmatpush.msra.mxu0 0.0
    %4552 = vmatpush.msra.mxu0 0.0
    %4553 = vmatpush.msra.mxu0 0.0
    %4554 = vmatpush.msra.mxu0 0.0
    %4555 = vmatpush.msra.mxu0 %v4527
    %4556 = vmatpush.msra.mxu0 %v4526
    %4557 = vmatpush.msra.mxu0 %v4525
    %4558 = vmatpush.msra.mxu0 %v4524
    %4559 = vmatmul.f32.gmra.mxu0 %v4541
    %v4560 = vpop.f32.mrf.mxu0
    %v4561 = vadd.f32 %v4538, %v4560
    %4562 = vdwg.mxu0
    %4567 = vrot.lane.b32.xlu0 %v4524, 96
    %v4568 = vpop.permute.xlu0 %4567
    %4569 = vrot.lane.b32.xlu0 %v4525, 96
    %v4570 = vpop.permute.xlu0 %4569
    %4571 = vrot.lane.b32.xlu0 %v4526, 96
    %v4572 = vpop.permute.xlu0 %4571
    %4573 = vrot.lane.b32.xlu0 %v4527, 96
    %v4574 = vpop.permute.xlu0 %4573
    %4579 = vrot.lane.b32.xlu0 %v4538, 96
    %v4580 = vpop.permute.xlu0 %4579
    %v4583 = vsel %vm211, %v4041, 0
    %4585 = vmatpush.msra.mxu0 0.0
    %4586 = vmatpush.msra.mxu0 0.0
    %4587 = vmatpush.msra.mxu0 0.0
    %4588 = vmatpush.msra.mxu0 0.0
    %4589 = vmatpush.msra.mxu0 0.0
    %4590 = vmatpush.msra.mxu0 0.0
    %4591 = vmatpush.msra.mxu0 0.0
    %4592 = vmatpush.msra.mxu0 0.0
    %4593 = vmatpush.msra.mxu0 0.0
    %4594 = vmatpush.msra.mxu0 0.0
    %4595 = vmatpush.msra.mxu0 0.0
    %4596 = vmatpush.msra.mxu0 0.0
    %4597 = vmatpush.msra.mxu0 %v4574
    %4598 = vmatpush.msra.mxu0 %v4572
    %4599 = vmatpush.msra.mxu0 %v4570
    %4600 = vmatpush.msra.mxu0 %v4568
    %4601 = vmatmul.f32.gmra.mxu0 %v4583
    %v4602 = vpop.f32.mrf.mxu0
    %v4603 = vadd.f32 %v4580, %v4602
    %4604 = vdwg.mxu0
    %v4606 = vsel %vm238, %v4561, 0
    %v4609 = vsel %vm238, %v4603, 0
    %4611 = vmatpush.xpose.msra.mxu0 0.0
    %4612 = vmatpush.xpose.msra.mxu0 0.0
    %4613 = vmatpush.xpose.msra.mxu0 0.0
    %4614 = vmatpush.xpose.msra.mxu0 0.0
    %4615 = vmatpush.xpose.msra.mxu0 0.0
    %4616 = vmatpush.xpose.msra.mxu0 0.0
    %4617 = vmatpush.xpose.msra.mxu0 0.0
    %4618 = vmatpush.xpose.msra.mxu0 0.0
    %4619 = vmatpush.xpose.msra.mxu0 0.0
    %4620 = vmatpush.xpose.msra.mxu0 0.0
    %4621 = vmatpush.xpose.msra.mxu0 0.0
    %4622 = vmatpush.xpose.msra.mxu0 0.0
    %4623 = vmatpush.xpose.msra.mxu0 0.0
    %4624 = vmatpush.xpose.msra.mxu0 0.0
    %4625 = vmatpush.xpose.msra.mxu0 0.0
    %4626 = vmatpush.xpose.msra.mxu0 %v4609
    %4627 = vmatmul.f32.gmra.mxu0 %v4606
    %v4628 = vpop.f32.mrf.mxu0
    %v4629 = vadd.f32 0.0, %v4628
    %4630 = vdwg.mxu0
    %v4631 = vmul.f32 %v4629, 0.35355338
    %v4632 = vsel %vm238, %v4631, -inf
    %4633 = vmax.xlane.f32.xlu0 %v4632
    %v4634 = vpop.xlane.xlu0 %4633
    %v4635 = vsub.f32 %v4631, %v4634
    %v4636 = vmul.f32 %v4635, 1.442695
    %v4637 = vpow.pop %v4636
    %v4638 = vsel %vm238, %v4637, 0.0
    %4639 = vadd.xlane.f32.xlu0 %v4638
    %v4640 = vpop.xlane.xlu0 %4639
    %v4641 = vrcp.pop %v4640
    %v4642 = vmul.f32 %v4640, %v4641
    %v4643 = vsub.f32 1.0, %v4642
    %v4644 = vmul.f32 %v4641, %v4643
    %v4645 = vadd.f32 %v4641, %v4644
    %vm4646 = vweird.f32 %v4640
    %vm4647 = vweird.f32 %v4641
    %vm4648 = vmor %vm4646, %vm4647
    %v4649 = vsel %vm4648, %v4641, %v4645
    %v4650 = vand.u32 2147483647, %v4640
    %vm4651 = vcmp.eq.f32.partialorder %v4650, 8.507059e+37
    %v4652 = vand.u32 %v4640, 2147483648
    %v4653 = vor.u32 1.1754944e-38, %v4652
    %v4654 = vsel %vm4651, %v4653, %v4649
    %v4655 = vmul.f32 %v4637, %v4654
    %4656 = vrot.lane.b32.xlu0 %v4603, 96
    %v4657 = vpop.permute.xlu0 %4656
    %v4660 = vsel %vm238, %v4655, 0
    %4662 = vmatpush.msra.mxu0 0.0
    %4663 = vmatpush.msra.mxu0 0.0
    %4664 = vmatpush.msra.mxu0 0.0
    %4665 = vmatpush.msra.mxu0 0.0
    %4666 = vmatpush.msra.mxu0 0.0
    %4667 = vmatpush.msra.mxu0 0.0
    %4668 = vmatpush.msra.mxu0 0.0
    %4669 = vmatpush.msra.mxu0 0.0
    %4670 = vmatpush.msra.mxu0 0.0
    %4671 = vmatpush.msra.mxu0 0.0
    %4672 = vmatpush.msra.mxu0 0.0
    %4673 = vmatpush.msra.mxu0 0.0
    %4674 = vmatpush.msra.mxu0 0.0
    %4675 = vmatpush.msra.mxu0 0.0
    %4676 = vmatpush.msra.mxu0 0.0
    %4677 = vmatpush.msra.mxu0 %v4657
    %4678 = vmatmul.f32.gmra.mxu0 %v4660
    %v4679 = vpop.f32.mrf.mxu0
    %v4680 = vadd.f32 0.0, %v4679
    %4681 = vdwg.mxu0
    %4682 = vrot.lane.b32.xlu0 %v4561, 120
    %v4683 = vpop.permute.xlu0 %4682
    %4684 = vrot.lane.b32.xlu0 %v4603, 120
    %v4685 = vpop.permute.xlu0 %4684
    %v4686 = vsel %vm238, %v4683, 0
    %v4688 = vsel %vm238, %v4685, 0
    %4690 = vmatpush.xpose.msra.mxu0 0.0
    %4691 = vmatpush.xpose.msra.mxu0 0.0
    %4692 = vmatpush.xpose.msra.mxu0 0.0
    %4693 = vmatpush.xpose.msra.mxu0 0.0
    %4694 = vmatpush.xpose.msra.mxu0 0.0
    %4695 = vmatpush.xpose.msra.mxu0 0.0
    %4696 = vmatpush.xpose.msra.mxu0 0.0
    %4697 = vmatpush.xpose.msra.mxu0 0.0
    %4698 = vmatpush.xpose.msra.mxu0 0.0
    %4699 = vmatpush.xpose.msra.mxu0 0.0
    %4700 = vmatpush.xpose.msra.mxu0 0.0
    %4701 = vmatpush.xpose.msra.mxu0 0.0
    %4702 = vmatpush.xpose.msra.mxu0 0.0
    %4703 = vmatpush.xpose.msra.mxu0 0.0
    %4704 = vmatpush.xpose.msra.mxu0 0.0
    %4705 = vmatpush.xpose.msra.mxu0 %v4688
    %4706 = vmatmul.f32.gmra.mxu0 %v4686
    %v4707 = vpop.f32.mrf.mxu0
    %v4708 = vadd.f32 0.0, %v4707
    %4709 = vdwg.mxu0
    %v4710 = vmul.f32 %v4708, 0.35355338
    %v4711 = vsel %vm238, %v4710, -inf
    %4712 = vmax.xlane.f32.xlu0 %v4711
    %v4713 = vpop.xlane.xlu0 %4712
    %v4714 = vsub.f32 %v4710, %v4713
    %v4715 = vmul.f32 %v4714, 1.442695
    %v4716 = vpow.pop %v4715
    %v4717 = vsel %vm238, %v4716, 0.0
    %4718 = vadd.xlane.f32.xlu0 %v4717
    %v4719 = vpop.xlane.xlu0 %4718
    %v4720 = vrcp.pop %v4719
    %v4721 = vmul.f32 %v4719, %v4720
    %v4722 = vsub.f32 1.0, %v4721
    %v4723 = vmul.f32 %v4720, %v4722
    %v4724 = vadd.f32 %v4720, %v4723
    %vm4725 = vweird.f32 %v4719
    %vm4726 = vweird.f32 %v4720
    %vm4727 = vmor %vm4725, %vm4726
    %v4728 = vsel %vm4727, %v4720, %v4724
    %v4729 = vand.u32 2147483647, %v4719
    %vm4730 = vcmp.eq.f32.partialorder %v4729, 8.507059e+37
    %v4731 = vand.u32 %v4719, 2147483648
    %v4732 = vor.u32 1.1754944e-38, %v4731
    %v4733 = vsel %vm4730, %v4732, %v4728
    %v4734 = vmul.f32 %v4716, %v4733
    %4735 = vrot.lane.b32.xlu0 %v4603, 88
    %v4736 = vpop.permute.xlu0 %4735
    %v4739 = vsel %vm238, %v4734, 0
    %4741 = vmatpush.msra.mxu0 0.0
    %4742 = vmatpush.msra.mxu0 0.0
    %4743 = vmatpush.msra.mxu0 0.0
    %4744 = vmatpush.msra.mxu0 0.0
    %4745 = vmatpush.msra.mxu0 0.0
    %4746 = vmatpush.msra.mxu0 0.0
    %4747 = vmatpush.msra.mxu0 0.0
    %4748 = vmatpush.msra.mxu0 0.0
    %4749 = vmatpush.msra.mxu0 0.0
    %4750 = vmatpush.msra.mxu0 0.0
    %4751 = vmatpush.msra.mxu0 0.0
    %4752 = vmatpush.msra.mxu0 0.0
    %4753 = vmatpush.msra.mxu0 0.0
    %4754 = vmatpush.msra.mxu0 0.0
    %4755 = vmatpush.msra.mxu0 0.0
    %4756 = vmatpush.msra.mxu0 %v4736
    %4757 = vmatmul.f32.gmra.mxu0 %v4739
    %v4758 = vpop.f32.mrf.mxu0
    %v4759 = vadd.f32 0.0, %v4758
    %4760 = vdwg.mxu0
    %v4762 = vsel %vm238, %v4759, 0
    %4764 = vmatpush.msra.mxu0 0.0
    %4765 = vmatpush.msra.mxu0 0.0
    %4766 = vmatpush.msra.mxu0 0.0
    %4767 = vmatpush.msra.mxu0 0.0
    %4768 = vmatpush.msra.mxu0 0.0
    %4769 = vmatpush.msra.mxu0 0.0
    %4770 = vmatpush.msra.mxu0 0.0
    %4771 = vmatpush.msra.mxu0 0.0
    %4772 = vmatpush.msra.mxu0 0.0
    %4773 = vmatpush.msra.mxu0 0.0
    %4774 = vmatpush.msra.mxu0 0.0
    %4775 = vmatpush.msra.mxu0 0.0
    %4776 = vmatpush.msra.mxu0 0.0
    %4777 = vmatpush.msra.mxu0 0.0
    %4778 = vmatpush.msra.mxu0 0.0
    %4779 = vmatpush.msra.mxu0 %v4532
    %4780 = vmatmul.f32.gmra.mxu0 %v4762
    %v4781 = vpop.f32.mrf.mxu0
    %v4782 = vadd.f32 0.0, %v4781
    %4783 = vdwg.mxu0
    %v4785 = vsel %vm238, %v4680, 0
    %4787 = vmatpush.msra.mxu0 0.0
    %4788 = vmatpush.msra.mxu0 0.0
    %4789 = vmatpush.msra.mxu0 0.0
    %4790 = vmatpush.msra.mxu0 0.0
    %4791 = vmatpush.msra.mxu0 0.0
    %4792 = vmatpush.msra.mxu0 0.0
    %4793 = vmatpush.msra.mxu0 0.0
    %4794 = vmatpush.msra.mxu0 0.0
    %4795 = vmatpush.msra.mxu0 0.0
    %4796 = vmatpush.msra.mxu0 0.0
    %4797 = vmatpush.msra.mxu0 0.0
    %4798 = vmatpush.msra.mxu0 0.0
    %4799 = vmatpush.msra.mxu0 0.0
    %4800 = vmatpush.msra.mxu0 0.0
    %4801 = vmatpush.msra.mxu0 0.0
    %4802 = vmatpush.msra.mxu0 %v4531
    %4803 = vmatmul.f32.gmra.mxu0 %v4785
    %v4804 = vpop.f32.mrf.mxu0
    %v4805 = vadd.f32 %v4782, %v4804
    %4806 = vdwg.mxu0
    %4807 = vrot.lane.b32.xlu0 %v4561, 112
    %v4808 = vpop.permute.xlu0 %4807
    %4809 = vrot.lane.b32.xlu0 %v4603, 112
    %v4810 = vpop.permute.xlu0 %4809
    %v4811 = vsel %vm238, %v4808, 0
    %v4813 = vsel %vm238, %v4810, 0
    %4815 = vmatpush.xpose.msra.mxu0 0.0
    %4816 = vmatpush.xpose.msra.mxu0 0.0
    %4817 = vmatpush.xpose.msra.mxu0 0.0
    %4818 = vmatpush.xpose.msra.mxu0 0.0
    %4819 = vmatpush.xpose.msra.mxu0 0.0
    %4820 = vmatpush.xpose.msra.mxu0 0.0
    %4821 = vmatpush.xpose.msra.mxu0 0.0
    %4822 = vmatpush.xpose.msra.mxu0 0.0
    %4823 = vmatpush.xpose.msra.mxu0 0.0
    %4824 = vmatpush.xpose.msra.mxu0 0.0
    %4825 = vmatpush.xpose.msra.mxu0 0.0
    %4826 = vmatpush.xpose.msra.mxu0 0.0
    %4827 = vmatpush.xpose.msra.mxu0 0.0
    %4828 = vmatpush.xpose.msra.mxu0 0.0
    %4829 = vmatpush.xpose.msra.mxu0 0.0
    %4830 = vmatpush.xpose.msra.mxu0 %v4813
    %4831 = vmatmul.f32.gmra.mxu0 %v4811
    %v4832 = vpop.f32.mrf.mxu0
    %v4833 = vadd.f32 0.0, %v4832
    %4834 = vdwg.mxu0
    %v4835 = vmul.f32 %v4833, 0.35355338
    %v4836 = vsel %vm238, %v4835, -inf
    %4837 = vmax.xlane.f32.xlu0 %v4836
    %v4838 = vpop.xlane.xlu0 %4837
    %v4839 = vsub.f32 %v4835, %v4838
    %v4840 = vmul.f32 %v4839, 1.442695
    %v4841 = vpow.pop %v4840
    %v4842 = vsel %vm238, %v4841, 0.0
    %4843 = vadd.xlane.f32.xlu0 %v4842
    %v4844 = vpop.xlane.xlu0 %4843
    %v4845 = vrcp.pop %v4844
    %v4846 = vmul.f32 %v4844, %v4845
    %v4847 = vsub.f32 1.0, %v4846
    %v4848 = vmul.f32 %v4845, %v4847
    %v4849 = vadd.f32 %v4845, %v4848
    %vm4850 = vweird.f32 %v4844
    %vm4851 = vweird.f32 %v4845
    %vm4852 = vmor %vm4850, %vm4851
    %v4853 = vsel %vm4852, %v4845, %v4849
    %v4854 = vand.u32 2147483647, %v4844
    %vm4855 = vcmp.eq.f32.partialorder %v4854, 8.507059e+37
    %v4856 = vand.u32 %v4844, 2147483648
    %v4857 = vor.u32 1.1754944e-38, %v4856
    %v4858 = vsel %vm4855, %v4857, %v4853
    %v4859 = vmul.f32 %v4841, %v4858
    %4860 = vrot.lane.b32.xlu0 %v4603, 80
    %v4861 = vpop.permute.xlu0 %4860
    %v4864 = vsel %vm238, %v4859, 0
    %4866 = vmatpush.msra.mxu0 0.0
    %4867 = vmatpush.msra.mxu0 0.0
    %4868 = vmatpush.msra.mxu0 0.0
    %4869 = vmatpush.msra.mxu0 0.0
    %4870 = vmatpush.msra.mxu0 0.0
    %4871 = vmatpush.msra.mxu0 0.0
    %4872 = vmatpush.msra.mxu0 0.0
    %4873 = vmatpush.msra.mxu0 0.0
    %4874 = vmatpush.msra.mxu0 0.0
    %4875 = vmatpush.msra.mxu0 0.0
    %4876 = vmatpush.msra.mxu0 0.0
    %4877 = vmatpush.msra.mxu0 0.0
    %4878 = vmatpush.msra.mxu0 0.0
    %4879 = vmatpush.msra.mxu0 0.0
    %4880 = vmatpush.msra.mxu0 0.0
    %4881 = vmatpush.msra.mxu0 %v4861
    %4882 = vmatmul.f32.gmra.mxu0 %v4864
    %v4883 = vpop.f32.mrf.mxu0
    %v4884 = vadd.f32 0.0, %v4883
    %4885 = vdwg.mxu0
    %v4887 = vsel %vm238, %v4884, 0
    %4889 = vmatpush.msra.mxu0 0.0
    %4890 = vmatpush.msra.mxu0 0.0
    %4891 = vmatpush.msra.mxu0 0.0
    %4892 = vmatpush.msra.mxu0 0.0
    %4893 = vmatpush.msra.mxu0 0.0
    %4894 = vmatpush.msra.mxu0 0.0
    %4895 = vmatpush.msra.mxu0 0.0
    %4896 = vmatpush.msra.mxu0 0.0
    %4897 = vmatpush.msra.mxu0 0.0
    %4898 = vmatpush.msra.mxu0 0.0
    %4899 = vmatpush.msra.mxu0 0.0
    %4900 = vmatpush.msra.mxu0 0.0
    %4901 = vmatpush.msra.mxu0 0.0
    %4902 = vmatpush.msra.mxu0 0.0
    %4903 = vmatpush.msra.mxu0 0.0
    %4904 = vmatpush.msra.mxu0 %v4533
    %4905 = vmatmul.f32.gmra.mxu0 %v4887
    %v4906 = vpop.f32.mrf.mxu0
    %v4907 = vadd.f32 0.0, %v4906
    %4908 = vdwg.mxu0
    %v4909 = vadd.f32 %v4805, %v4907
    %4910 = vrot.lane.b32.xlu0 %v4561, 104
    %v4911 = vpop.permute.xlu0 %4910
    %4912 = vrot.lane.b32.xlu0 %v4603, 104
    %v4913 = vpop.permute.xlu0 %4912
    %v4914 = vsel %vm238, %v4911, 0
    %v4916 = vsel %vm238, %v4913, 0
    %4918 = vmatpush.xpose.msra.mxu0 0.0
    %4919 = vmatpush.xpose.msra.mxu0 0.0
    %4920 = vmatpush.xpose.msra.mxu0 0.0
    %4921 = vmatpush.xpose.msra.mxu0 0.0
    %4922 = vmatpush.xpose.msra.mxu0 0.0
    %4923 = vmatpush.xpose.msra.mxu0 0.0
    %4924 = vmatpush.xpose.msra.mxu0 0.0
    %4925 = vmatpush.xpose.msra.mxu0 0.0
    %4926 = vmatpush.xpose.msra.mxu0 0.0
    %4927 = vmatpush.xpose.msra.mxu0 0.0
    %4928 = vmatpush.xpose.msra.mxu0 0.0
    %4929 = vmatpush.xpose.msra.mxu0 0.0
    %4930 = vmatpush.xpose.msra.mxu0 0.0
    %4931 = vmatpush.xpose.msra.mxu0 0.0
    %4932 = vmatpush.xpose.msra.mxu0 0.0
    %4933 = vmatpush.xpose.msra.mxu0 %v4916
    %4934 = vmatmul.f32.gmra.mxu0 %v4914
    %v4935 = vpop.f32.mrf.mxu0
    %v4936 = vadd.f32 0.0, %v4935
    %4937 = vdwg.mxu0
    %v4938 = vmul.f32 %v4936, 0.35355338
    %v4939 = vsel %vm238, %v4938, -inf
    %4940 = vmax.xlane.f32.xlu0 %v4939
    %v4941 = vpop.xlane.xlu0 %4940
    %v4942 = vsub.f32 %v4938, %v4941
    %v4943 = vmul.f32 %v4942, 1.442695
    %v4944 = vpow.pop %v4943
    %v4945 = vsel %vm238, %v4944, 0.0
    %4946 = vadd.xlane.f32.xlu0 %v4945
    %v4947 = vpop.xlane.xlu0 %4946
    %v4948 = vrcp.pop %v4947
    %v4949 = vmul.f32 %v4947, %v4948
    %v4950 = vsub.f32 1.0, %v4949
    %v4951 = vmul.f32 %v4948, %v4950
    %v4952 = vadd.f32 %v4948, %v4951
    %vm4953 = vweird.f32 %v4947
    %vm4954 = vweird.f32 %v4948
    %vm4955 = vmor %vm4953, %vm4954
    %v4956 = vsel %vm4955, %v4948, %v4952
    %v4957 = vand.u32 2147483647, %v4947
    %vm4958 = vcmp.eq.f32.partialorder %v4957, 8.507059e+37
    %v4959 = vand.u32 %v4947, 2147483648
    %v4960 = vor.u32 1.1754944e-38, %v4959
    %v4961 = vsel %vm4958, %v4960, %v4956
    %v4962 = vmul.f32 %v4944, %v4961
    %4963 = vrot.lane.b32.xlu0 %v4603, 72
    %v4964 = vpop.permute.xlu0 %4963
    %v4967 = vsel %vm238, %v4962, 0
    %4969 = vmatpush.msra.mxu0 0.0
    %4970 = vmatpush.msra.mxu0 0.0
    %4971 = vmatpush.msra.mxu0 0.0
    %4972 = vmatpush.msra.mxu0 0.0
    %4973 = vmatpush.msra.mxu0 0.0
    %4974 = vmatpush.msra.mxu0 0.0
    %4975 = vmatpush.msra.mxu0 0.0
    %4976 = vmatpush.msra.mxu0 0.0
    %4977 = vmatpush.msra.mxu0 0.0
    %4978 = vmatpush.msra.mxu0 0.0
    %4979 = vmatpush.msra.mxu0 0.0
    %4980 = vmatpush.msra.mxu0 0.0
    %4981 = vmatpush.msra.mxu0 0.0
    %4982 = vmatpush.msra.mxu0 0.0
    %4983 = vmatpush.msra.mxu0 0.0
    %4984 = vmatpush.msra.mxu0 %v4964
    %4985 = vmatmul.f32.gmra.mxu0 %v4967
    %v4986 = vpop.f32.mrf.mxu0
    %v4987 = vadd.f32 0.0, %v4986
    %4988 = vdwg.mxu0
    %v4990 = vsel %vm238, %v4987, 0
    %4992 = vmatpush.msra.mxu0 0.0
    %4993 = vmatpush.msra.mxu0 0.0
    %4994 = vmatpush.msra.mxu0 0.0
    %4995 = vmatpush.msra.mxu0 0.0
    %4996 = vmatpush.msra.mxu0 0.0
    %4997 = vmatpush.msra.mxu0 0.0
    %4998 = vmatpush.msra.mxu0 0.0
    %4999 = vmatpush.msra.mxu0 0.0
    %5000 = vmatpush.msra.mxu0 0.0
    %5001 = vmatpush.msra.mxu0 0.0
    %5002 = vmatpush.msra.mxu0 0.0
    %5003 = vmatpush.msra.mxu0 0.0
    %5004 = vmatpush.msra.mxu0 0.0
    %5005 = vmatpush.msra.mxu0 0.0
    %5006 = vmatpush.msra.mxu0 0.0
    %5007 = vmatpush.msra.mxu0 %v4534
    %5008 = vmatmul.f32.gmra.mxu0 %v4990
    %v5009 = vpop.f32.mrf.mxu0
    %v5010 = vadd.f32 0.0, %v5009
    %5011 = vdwg.mxu0
    %v5012 = vadd.f32 %v4909, %v5010
    %v5014 = vperm.slane %v4536, 0
    %v5016 = vadd.f32 %v5012, %v5014
    %v5017 = vadd.f32 %v4522, %v5016
    %v5018 = vld [vmem:[#allocation16 + $0x6] sm:$0x1]
    %v5019 = vld [vmem:[#allocation17 + $0x6] sm:$0x1]
    %v5020 = vsel %vm211, %v5017, 0.0
    %5021 = vadd.xlane.f32.xlu0 %v5020
    %v5022 = vpop.xlane.xlu0 %5021
    %v5023 = vmul.f32 %v5022, %v661
    %v5024 = vmul.f32 %v5017, %v5017
    %v5025 = vsel %vm211, %v5024, 0.0
    %5026 = vadd.xlane.f32.xlu0 %v5025
    %v5027 = vpop.xlane.xlu0 %5026
    %v5028 = vmul.f32 %v5027, %v661
    %v5029 = vmul.f32 %v5023, %v5023
    %v5030 = vsub.f32 %v5028, %v5029
    %v5031 = vsub.f32 %v5017, %v5023
    %v5032 = vadd.f32 %v5030, 1e-05
    %v5033 = vrsqrt.pop %v5032
    %v5034 = vmul.f32 %v5033, %v5032
    %v5035 = vmul.f32 %v5034, %v5033
    %v5036 = vmul.f32 0.5, %v5035
    %v5037 = vsub.f32 1.5, %v5036
    %v5038 = vmul.f32 %v5033, %v5037
    %vm5039 = vweird.f32 %v5032
    %vm5040 = vweird.f32 %v5033
    %vm5041 = vmor %vm5039, %vm5040
    %v5042 = vsel %vm5041, %v5033, %v5038
    %v5043 = vmul.f32 %v5031, %v5042
    %v5044 = vperm.slane %v5018, 0
    %v5045 = vmul.f32 %v5043, %v5044
    %v5046 = vperm.slane %v5019, 0
    %v5047 = vadd.f32 %v5045, %v5046
    %s5048 = scalar_lea.vmem [#allocation11], 512
    %v5049 = vld [vmem:[%s5048] sm:$0xff]
    %v5050 = vld [vmem:[%s5048 + $0x8] sm:$0xff]
    %v5051 = vld [vmem:[%s5048 + $0x10] sm:$0xff]
    %v5052 = vld [vmem:[%s5048 + $0x18] sm:$0xff]
    %v5053 = vld [vmem:[%s5048 + $0x20] sm:$0xff]
    %v5054 = vld [vmem:[%s5048 + $0x28] sm:$0xff]
    %v5055 = vld [vmem:[%s5048 + $0x30] sm:$0xff]
    %v5056 = vld [vmem:[%s5048 + $0x38] sm:$0xff]
    %v5057 = vld [vmem:[%s5048 + $0x40] sm:$0xff]
    %v5058 = vld [vmem:[%s5048 + $0x48] sm:$0xff]
    %v5059 = vld [vmem:[%s5048 + $0x50] sm:$0xff]
    %v5060 = vld [vmem:[%s5048 + $0x58] sm:$0xff]
    %v5061 = vld [vmem:[%s5048 + $0x60] sm:$0xff]
    %v5062 = vld [vmem:[%s5048 + $0x68] sm:$0xff]
    %v5063 = vld [vmem:[%s5048 + $0x70] sm:$0xff]
    %v5064 = vld [vmem:[%s5048 + $0x78] sm:$0xff]
    %v5065 = vld [vmem:[%s5048 + $0x80] sm:$0xff]
    %v5066 = vld [vmem:[%s5048 + $0x88] sm:$0xff]
    %v5067 = vld [vmem:[%s5048 + $0x90] sm:$0xff]
    %v5068 = vld [vmem:[%s5048 + $0x98] sm:$0xff]
    %v5069 = vld [vmem:[%s5048 + $0xa0] sm:$0xff]
    %v5070 = vld [vmem:[%s5048 + $0xa8] sm:$0xff]
    %v5071 = vld [vmem:[%s5048 + $0xb0] sm:$0xff]
    %v5072 = vld [vmem:[%s5048 + $0xb8] sm:$0xff]
    %v5073 = vld [vmem:[%s5048 + $0xc0] sm:$0xff]
    %v5074 = vld [vmem:[%s5048 + $0xc8] sm:$0xff]
    %v5075 = vld [vmem:[%s5048 + $0xd0] sm:$0xff]
    %v5076 = vld [vmem:[%s5048 + $0xd8] sm:$0xff]
    %v5077 = vld [vmem:[%s5048 + $0xe0] sm:$0xff]
    %v5078 = vld [vmem:[%s5048 + $0xe8] sm:$0xff]
    %v5079 = vld [vmem:[%s5048 + $0xf0] sm:$0xff]
    %v5080 = vld [vmem:[%s5048 + $0xf8] sm:$0xff]
    %s5081 = scalar_lea.vmem [#allocation13], 32
    %v5082 = vld [vmem:[%s5081] sm:$0xff]
    %v5083 = vld [vmem:[%s5081 + $0x8] sm:$0xff]
    %s5084 = scalar_lea.vmem %s8, 2
    %v5085 = vld [vmem:[%s5084] sm:$0x1]
    %v5086 = vpack.c.bf16 %v5047, %v5047
    %v5089 = vperm.slane %v5082, 0
    %v5090 = vperm.slane %v5082, 1
    %v5091 = vperm.slane %v5082, 2
    %v5092 = vperm.slane %v5082, 3
    %v5093 = vperm.slane %v5082, 4
    %v5094 = vperm.slane %v5082, 5
    %v5095 = vperm.slane %v5082, 6
    %v5096 = vperm.slane %v5082, 7
    %v5097 = vperm.slane %v5083, 0
    %v5098 = vperm.slane %v5083, 1
    %v5099 = vperm.slane %v5083, 2
    %v5100 = vperm.slane %v5083, 3
    %v5101 = vperm.slane %v5083, 4
    %v5102 = vperm.slane %v5083, 5
    %v5103 = vperm.slane %v5083, 6
    %v5104 = vperm.slane %v5083, 7
    %v5153 = vunpack.c.l.b16 %v5049
    %v5154 = vunpack.c.h.b16 %v5049
    %v5155 = vunpack.c.l.b16 %v5050
    %v5156 = vunpack.c.h.b16 %v5050
    %v5157 = vunpack.c.l.b16 %v5051
    %v5158 = vunpack.c.h.b16 %v5051
    %v5159 = vunpack.c.l.b16 %v5052
    %v5160 = vunpack.c.h.b16 %v5052
    %v5161 = vunpack.c.l.b16 %v5053
    %v5162 = vunpack.c.h.b16 %v5053
    %v5163 = vunpack.c.l.b16 %v5054
    %v5164 = vunpack.c.h.b16 %v5054
    %v5165 = vunpack.c.l.b16 %v5055
    %v5166 = vunpack.c.h.b16 %v5055
    %v5167 = vunpack.c.l.b16 %v5056
    %v5168 = vunpack.c.h.b16 %v5056
    %v5169 = vunpack.c.l.b16 %v5057
    %v5170 = vunpack.c.h.b16 %v5057
    %v5171 = vunpack.c.l.b16 %v5058
    %v5172 = vunpack.c.h.b16 %v5058
    %v5173 = vunpack.c.l.b16 %v5059
    %v5174 = vunpack.c.h.b16 %v5059
    %v5175 = vunpack.c.l.b16 %v5060
    %v5176 = vunpack.c.h.b16 %v5060
    %v5177 = vunpack.c.l.b16 %v5061
    %v5178 = vunpack.c.h.b16 %v5061
    %v5179 = vunpack.c.l.b16 %v5062
    %v5180 = vunpack.c.h.b16 %v5062
    %v5181 = vunpack.c.l.b16 %v5063
    %v5182 = vunpack.c.h.b16 %v5063
    %v5183 = vunpack.c.l.b16 %v5064
    %v5184 = vunpack.c.h.b16 %v5064
    %v5185 = vunpack.c.l.b16 %v5065
    %v5186 = vunpack.c.h.b16 %v5065
    %v5187 = vunpack.c.l.b16 %v5066
    %v5188 = vunpack.c.h.b16 %v5066
    %v5189 = vunpack.c.l.b16 %v5067
    %v5190 = vunpack.c.h.b16 %v5067
    %v5191 = vunpack.c.l.b16 %v5068
    %v5192 = vunpack.c.h.b16 %v5068
    %v5193 = vunpack.c.l.b16 %v5069
    %v5194 = vunpack.c.h.b16 %v5069
    %v5195 = vunpack.c.l.b16 %v5070
    %v5196 = vunpack.c.h.b16 %v5070
    %v5197 = vunpack.c.l.b16 %v5071
    %v5198 = vunpack.c.h.b16 %v5071
    %v5199 = vunpack.c.l.b16 %v5072
    %v5200 = vunpack.c.h.b16 %v5072
    %v5201 = vunpack.c.l.b16 %v5073
    %v5202 = vunpack.c.h.b16 %v5073
    %v5203 = vunpack.c.l.b16 %v5074
    %v5204 = vunpack.c.h.b16 %v5074
    %v5205 = vunpack.c.l.b16 %v5075
    %v5206 = vunpack.c.h.b16 %v5075
    %v5207 = vunpack.c.l.b16 %v5076
    %v5208 = vunpack.c.h.b16 %v5076
    %v5209 = vunpack.c.l.b16 %v5077
    %v5210 = vunpack.c.h.b16 %v5077
    %v5211 = vunpack.c.l.b16 %v5078
    %v5212 = vunpack.c.h.b16 %v5078
    %v5213 = vunpack.c.l.b16 %v5079
    %v5214 = vunpack.c.h.b16 %v5079
    %v5215 = vunpack.c.l.b16 %v5080
    %v5216 = vunpack.c.h.b16 %v5080
    %v5217 = vpack.c.b16 %v5169, %v5153
    %v5218 = vpack.c.b16 %v5170, %v5154
    %v5219 = vpack.c.b16 %v5171, %v5155
    %v5220 = vpack.c.b16 %v5172, %v5156
    %v5221 = vpack.c.b16 %v5173, %v5157
    %v5222 = vpack.c.b16 %v5174, %v5158
    %v5223 = vpack.c.b16 %v5175, %v5159
    %v5224 = vpack.c.b16 %v5176, %v5160
    %v5225 = vpack.c.b16 %v5177, %v5161
    %v5226 = vpack.c.b16 %v5178, %v5162
    %v5227 = vpack.c.b16 %v5179, %v5163
    %v5228 = vpack.c.b16 %v5180, %v5164
    %v5229 = vpack.c.b16 %v5181, %v5165
    %v5230 = vpack.c.b16 %v5182, %v5166
    %v5231 = vpack.c.b16 %v5183, %v5167
    %v5232 = vpack.c.b16 %v5184, %v5168
    %v5233 = vpack.c.b16 %v5201, %v5185
    %v5234 = vpack.c.b16 %v5202, %v5186
    %v5235 = vpack.c.b16 %v5203, %v5187
    %v5236 = vpack.c.b16 %v5204, %v5188
    %v5237 = vpack.c.b16 %v5205, %v5189
    %v5238 = vpack.c.b16 %v5206, %v5190
    %v5239 = vpack.c.b16 %v5207, %v5191
    %v5240 = vpack.c.b16 %v5208, %v5192
    %v5241 = vpack.c.b16 %v5209, %v5193
    %v5242 = vpack.c.b16 %v5210, %v5194
    %v5243 = vpack.c.b16 %v5211, %v5195
    %v5244 = vpack.c.b16 %v5212, %v5196
    %v5245 = vpack.c.b16 %v5213, %v5197
    %v5246 = vpack.c.b16 %v5214, %v5198
    %v5247 = vpack.c.b16 %v5215, %v5199
    %v5248 = vpack.c.b16 %v5216, %v5200
    %v5282 = vsel %vm211, %v5086, 0
    %5284 = vmatpush.bf16.msra.mxu0 0
    %5285 = vmatpush.bf16.msra.mxu0 0
    %5286 = vmatpush.bf16.msra.mxu0 0
    %5287 = vmatpush.bf16.msra.mxu0 0
    %5288 = vmatpush.bf16.msra.mxu0 0
    %5289 = vmatpush.bf16.msra.mxu0 0
    %5290 = vmatpush.bf16.msra.mxu0 %v5233
    %5291 = vmatpush.bf16.msra.mxu0 %v5217
    %5292 = vmatmul.bf16.gmra.mxu0 %v5282
    %v5293 = vpop.f32.mrf.mxu0
    %v5294 = vadd.f32 %v5089, %v5293
    %v5295 = vpop.f32.mrf.mxu0
    %5296 = vdwg.mxu0
    %5297 = vmatpush.bf16.msra.mxu0 0
    %5298 = vmatpush.bf16.msra.mxu0 0
    %5299 = vmatpush.bf16.msra.mxu0 0
    %5300 = vmatpush.bf16.msra.mxu0 0
    %5301 = vmatpush.bf16.msra.mxu0 0
    %5302 = vmatpush.bf16.msra.mxu0 0
    %5303 = vmatpush.bf16.msra.mxu0 %v5234
    %5304 = vmatpush.bf16.msra.mxu0 %v5218
    %5305 = vmatmul.bf16.gmra.mxu0 %v5282
    %v5306 = vpop.f32.mrf.mxu0
    %v5307 = vadd.f32 %v5090, %v5306
    %v5308 = vpop.f32.mrf.mxu0
    %5309 = vdwg.mxu0
    %5310 = vmatpush.bf16.msra.mxu0 0
    %5311 = vmatpush.bf16.msra.mxu0 0
    %5312 = vmatpush.bf16.msra.mxu0 0
    %5313 = vmatpush.bf16.msra.mxu0 0
    %5314 = vmatpush.bf16.msra.mxu0 0
    %5315 = vmatpush.bf16.msra.mxu0 0
    %5316 = vmatpush.bf16.msra.mxu0 %v5235
    %5317 = vmatpush.bf16.msra.mxu0 %v5219
    %5318 = vmatmul.bf16.gmra.mxu0 %v5282
    %v5319 = vpop.f32.mrf.mxu0
    %v5320 = vadd.f32 %v5091, %v5319
    %v5321 = vpop.f32.mrf.mxu0
    %5322 = vdwg.mxu0
    %5323 = vmatpush.bf16.msra.mxu0 0
    %5324 = vmatpush.bf16.msra.mxu0 0
    %5325 = vmatpush.bf16.msra.mxu0 0
    %5326 = vmatpush.bf16.msra.mxu0 0
    %5327 = vmatpush.bf16.msra.mxu0 0
    %5328 = vmatpush.bf16.msra.mxu0 0
    %5329 = vmatpush.bf16.msra.mxu0 %v5236
    %5330 = vmatpush.bf16.msra.mxu0 %v5220
    %5331 = vmatmul.bf16.gmra.mxu0 %v5282
    %v5332 = vpop.f32.mrf.mxu0
    %v5333 = vadd.f32 %v5092, %v5332
    %v5334 = vpop.f32.mrf.mxu0
    %5335 = vdwg.mxu0
    %5336 = vmatpush.bf16.msra.mxu0 0
    %5337 = vmatpush.bf16.msra.mxu0 0
    %5338 = vmatpush.bf16.msra.mxu0 0
    %5339 = vmatpush.bf16.msra.mxu0 0
    %5340 = vmatpush.bf16.msra.mxu0 0
    %5341 = vmatpush.bf16.msra.mxu0 0
    %5342 = vmatpush.bf16.msra.mxu0 %v5237
    %5343 = vmatpush.bf16.msra.mxu0 %v5221
    %5344 = vmatmul.bf16.gmra.mxu0 %v5282
    %v5345 = vpop.f32.mrf.mxu0
    %v5346 = vadd.f32 %v5093, %v5345
    %v5347 = vpop.f32.mrf.mxu0
    %5348 = vdwg.mxu0
    %5349 = vmatpush.bf16.msra.mxu0 0
    %5350 = vmatpush.bf16.msra.mxu0 0
    %5351 = vmatpush.bf16.msra.mxu0 0
    %5352 = vmatpush.bf16.msra.mxu0 0
    %5353 = vmatpush.bf16.msra.mxu0 0
    %5354 = vmatpush.bf16.msra.mxu0 0
    %5355 = vmatpush.bf16.msra.mxu0 %v5238
    %5356 = vmatpush.bf16.msra.mxu0 %v5222
    %5357 = vmatmul.bf16.gmra.mxu0 %v5282
    %v5358 = vpop.f32.mrf.mxu0
    %v5359 = vadd.f32 %v5094, %v5358
    %v5360 = vpop.f32.mrf.mxu0
    %5361 = vdwg.mxu0
    %5362 = vmatpush.bf16.msra.mxu0 0
    %5363 = vmatpush.bf16.msra.mxu0 0
    %5364 = vmatpush.bf16.msra.mxu0 0
    %5365 = vmatpush.bf16.msra.mxu0 0
    %5366 = vmatpush.bf16.msra.mxu0 0
    %5367 = vmatpush.bf16.msra.mxu0 0
    %5368 = vmatpush.bf16.msra.mxu0 %v5239
    %5369 = vmatpush.bf16.msra.mxu0 %v5223
    %5370 = vmatmul.bf16.gmra.mxu0 %v5282
    %v5371 = vpop.f32.mrf.mxu0
    %v5372 = vadd.f32 %v5095, %v5371
    %v5373 = vpop.f32.mrf.mxu0
    %5374 = vdwg.mxu0
    %5375 = vmatpush.bf16.msra.mxu0 0
    %5376 = vmatpush.bf16.msra.mxu0 0
    %5377 = vmatpush.bf16.msra.mxu0 0
    %5378 = vmatpush.bf16.msra.mxu0 0
    %5379 = vmatpush.bf16.msra.mxu0 0
    %5380 = vmatpush.bf16.msra.mxu0 0
    %5381 = vmatpush.bf16.msra.mxu0 %v5240
    %5382 = vmatpush.bf16.msra.mxu0 %v5224
    %5383 = vmatmul.bf16.gmra.mxu0 %v5282
    %v5384 = vpop.f32.mrf.mxu0
    %v5385 = vadd.f32 %v5096, %v5384
    %v5386 = vpop.f32.mrf.mxu0
    %5387 = vdwg.mxu0
    %5388 = vmatpush.bf16.msra.mxu0 0
    %5389 = vmatpush.bf16.msra.mxu0 0
    %5390 = vmatpush.bf16.msra.mxu0 0
    %5391 = vmatpush.bf16.msra.mxu0 0
    %5392 = vmatpush.bf16.msra.mxu0 0
    %5393 = vmatpush.bf16.msra.mxu0 0
    %5394 = vmatpush.bf16.msra.mxu0 %v5241
    %5395 = vmatpush.bf16.msra.mxu0 %v5225
    %5396 = vmatmul.bf16.gmra.mxu0 %v5282
    %v5397 = vpop.f32.mrf.mxu0
    %v5398 = vadd.f32 %v5097, %v5397
    %v5399 = vpop.f32.mrf.mxu0
    %5400 = vdwg.mxu0
    %5401 = vmatpush.bf16.msra.mxu0 0
    %5402 = vmatpush.bf16.msra.mxu0 0
    %5403 = vmatpush.bf16.msra.mxu0 0
    %5404 = vmatpush.bf16.msra.mxu0 0
    %5405 = vmatpush.bf16.msra.mxu0 0
    %5406 = vmatpush.bf16.msra.mxu0 0
    %5407 = vmatpush.bf16.msra.mxu0 %v5242
    %5408 = vmatpush.bf16.msra.mxu0 %v5226
    %5409 = vmatmul.bf16.gmra.mxu0 %v5282
    %v5410 = vpop.f32.mrf.mxu0
    %v5411 = vadd.f32 %v5098, %v5410
    %v5412 = vpop.f32.mrf.mxu0
    %5413 = vdwg.mxu0
    %5414 = vmatpush.bf16.msra.mxu0 0
    %5415 = vmatpush.bf16.msra.mxu0 0
    %5416 = vmatpush.bf16.msra.mxu0 0
    %5417 = vmatpush.bf16.msra.mxu0 0
    %5418 = vmatpush.bf16.msra.mxu0 0
    %5419 = vmatpush.bf16.msra.mxu0 0
    %5420 = vmatpush.bf16.msra.mxu0 %v5243
    %5421 = vmatpush.bf16.msra.mxu0 %v5227
    %5422 = vmatmul.bf16.gmra.mxu0 %v5282
    %v5423 = vpop.f32.mrf.mxu0
    %v5424 = vadd.f32 %v5099, %v5423
    %v5425 = vpop.f32.mrf.mxu0
    %5426 = vdwg.mxu0
    %5427 = vmatpush.bf16.msra.mxu0 0
    %5428 = vmatpush.bf16.msra.mxu0 0
    %5429 = vmatpush.bf16.msra.mxu0 0
    %5430 = vmatpush.bf16.msra.mxu0 0
    %5431 = vmatpush.bf16.msra.mxu0 0
    %5432 = vmatpush.bf16.msra.mxu0 0
    %5433 = vmatpush.bf16.msra.mxu0 %v5244
    %5434 = vmatpush.bf16.msra.mxu0 %v5228
    %5435 = vmatmul.bf16.gmra.mxu0 %v5282
    %v5436 = vpop.f32.mrf.mxu0
    %v5437 = vadd.f32 %v5100, %v5436
    %v5438 = vpop.f32.mrf.mxu0
    %5439 = vdwg.mxu0
    %5440 = vmatpush.bf16.msra.mxu0 0
    %5441 = vmatpush.bf16.msra.mxu0 0
    %5442 = vmatpush.bf16.msra.mxu0 0
    %5443 = vmatpush.bf16.msra.mxu0 0
    %5444 = vmatpush.bf16.msra.mxu0 0
    %5445 = vmatpush.bf16.msra.mxu0 0
    %5446 = vmatpush.bf16.msra.mxu0 %v5245
    %5447 = vmatpush.bf16.msra.mxu0 %v5229
    %5448 = vmatmul.bf16.gmra.mxu0 %v5282
    %v5449 = vpop.f32.mrf.mxu0
    %v5450 = vadd.f32 %v5101, %v5449
    %v5451 = vpop.f32.mrf.mxu0
    %5452 = vdwg.mxu0
    %5453 = vmatpush.bf16.msra.mxu0 0
    %5454 = vmatpush.bf16.msra.mxu0 0
    %5455 = vmatpush.bf16.msra.mxu0 0
    %5456 = vmatpush.bf16.msra.mxu0 0
    %5457 = vmatpush.bf16.msra.mxu0 0
    %5458 = vmatpush.bf16.msra.mxu0 0
    %5459 = vmatpush.bf16.msra.mxu0 %v5246
    %5460 = vmatpush.bf16.msra.mxu0 %v5230
    %5461 = vmatmul.bf16.gmra.mxu0 %v5282
    %v5462 = vpop.f32.mrf.mxu0
    %v5463 = vadd.f32 %v5102, %v5462
    %v5464 = vpop.f32.mrf.mxu0
    %5465 = vdwg.mxu0
    %5466 = vmatpush.bf16.msra.mxu0 0
    %5467 = vmatpush.bf16.msra.mxu0 0
    %5468 = vmatpush.bf16.msra.mxu0 0
    %5469 = vmatpush.bf16.msra.mxu0 0
    %5470 = vmatpush.bf16.msra.mxu0 0
    %5471 = vmatpush.bf16.msra.mxu0 0
    %5472 = vmatpush.bf16.msra.mxu0 %v5247
    %5473 = vmatpush.bf16.msra.mxu0 %v5231
    %5474 = vmatmul.bf16.gmra.mxu0 %v5282
    %v5475 = vpop.f32.mrf.mxu0
    %v5476 = vadd.f32 %v5103, %v5475
    %v5477 = vpop.f32.mrf.mxu0
    %5478 = vdwg.mxu0
    %5479 = vmatpush.bf16.msra.mxu0 0
    %5480 = vmatpush.bf16.msra.mxu0 0
    %5481 = vmatpush.bf16.msra.mxu0 0
    %5482 = vmatpush.bf16.msra.mxu0 0
    %5483 = vmatpush.bf16.msra.mxu0 0
    %5484 = vmatpush.bf16.msra.mxu0 0
    %5485 = vmatpush.bf16.msra.mxu0 %v5248
    %5486 = vmatpush.bf16.msra.mxu0 %v5232
    %5487 = vmatmul.bf16.gmra.mxu0 %v5282
    %v5488 = vpop.f32.mrf.mxu0
    %v5489 = vadd.f32 %v5104, %v5488
    %v5490 = vpop.f32.mrf.mxu0
    %5491 = vdwg.mxu0
    %v5492 = vmax.f32 %v5294, 0.0
    %v5493 = vmax.f32 %v5307, 0.0
    %v5494 = vmax.f32 %v5320, 0.0
    %v5495 = vmax.f32 %v5333, 0.0
    %v5496 = vmax.f32 %v5346, 0.0
    %v5497 = vmax.f32 %v5359, 0.0
    %v5498 = vmax.f32 %v5372, 0.0
    %v5499 = vmax.f32 %v5385, 0.0
    %v5500 = vmax.f32 %v5398, 0.0
    %v5501 = vmax.f32 %v5411, 0.0
    %v5502 = vmax.f32 %v5424, 0.0
    %v5503 = vmax.f32 %v5437, 0.0
    %v5504 = vmax.f32 %v5450, 0.0
    %v5505 = vmax.f32 %v5463, 0.0
    %v5506 = vmax.f32 %v5476, 0.0
    %v5507 = vmax.f32 %v5489, 0.0
    %v5508 = vpack.c.bf16 %v5492, %v5492
    %v5509 = vpack.c.bf16 %v5493, %v5493
    %v5510 = vpack.c.bf16 %v5494, %v5494
    %v5511 = vpack.c.bf16 %v5495, %v5495
    %v5512 = vpack.c.bf16 %v5496, %v5496
    %v5513 = vpack.c.bf16 %v5497, %v5497
    %v5514 = vpack.c.bf16 %v5498, %v5498
    %v5515 = vpack.c.bf16 %v5499, %v5499
    %v5516 = vpack.c.bf16 %v5500, %v5500
    %v5517 = vpack.c.bf16 %v5501, %v5501
    %v5518 = vpack.c.bf16 %v5502, %v5502
    %v5519 = vpack.c.bf16 %v5503, %v5503
    %v5520 = vpack.c.bf16 %v5504, %v5504
    %v5521 = vpack.c.bf16 %v5505, %v5505
    %v5522 = vpack.c.bf16 %v5506, %v5506
    %v5523 = vpack.c.bf16 %v5507, %v5507
    %v5525 = vperm.slane %v5085, 0
    %5527 = vrot.lane.b32.xlu0 %v1931, 64
    %v5528 = vpop.permute.xlu0 %5527
    %5529 = vrot.lane.b32.xlu0 %v1932, 64
    %v5530 = vpop.permute.xlu0 %5529
    %5531 = vrot.lane.b32.xlu0 %v1933, 64
    %v5532 = vpop.permute.xlu0 %5531
    %5533 = vrot.lane.b32.xlu0 %v1934, 64
    %v5534 = vpop.permute.xlu0 %5533
    %5535 = vrot.lane.b32.xlu0 %v1935, 64
    %v5536 = vpop.permute.xlu0 %5535
    %5537 = vrot.lane.b32.xlu0 %v1936, 64
    %v5538 = vpop.permute.xlu0 %5537
    %5539 = vrot.lane.b32.xlu0 %v1937, 64
    %v5540 = vpop.permute.xlu0 %5539
    %5541 = vrot.lane.b32.xlu0 %v1938, 64
    %v5542 = vpop.permute.xlu0 %5541
    %5543 = vrot.lane.b32.xlu0 %v1939, 64
    %v5544 = vpop.permute.xlu0 %5543
    %5545 = vrot.lane.b32.xlu0 %v1940, 64
    %v5546 = vpop.permute.xlu0 %5545
    %5547 = vrot.lane.b32.xlu0 %v1941, 64
    %v5548 = vpop.permute.xlu0 %5547
    %5549 = vrot.lane.b32.xlu0 %v1942, 64
    %v5550 = vpop.permute.xlu0 %5549
    %5551 = vrot.lane.b32.xlu0 %v1943, 64
    %v5552 = vpop.permute.xlu0 %5551
    %5553 = vrot.lane.b32.xlu0 %v1944, 64
    %v5554 = vpop.permute.xlu0 %5553
    %5555 = vrot.lane.b32.xlu0 %v1945, 64
    %v5556 = vpop.permute.xlu0 %5555
    %5557 = vrot.lane.b32.xlu0 %v1946, 64
    %v5558 = vpop.permute.xlu0 %5557
    %5559 = vrot.lane.b32.xlu0 %v1947, 64
    %v5560 = vpop.permute.xlu0 %5559
    %5561 = vrot.lane.b32.xlu0 %v1948, 64
    %v5562 = vpop.permute.xlu0 %5561
    %5563 = vrot.lane.b32.xlu0 %v1949, 64
    %v5564 = vpop.permute.xlu0 %5563
    %5565 = vrot.lane.b32.xlu0 %v1950, 64
    %v5566 = vpop.permute.xlu0 %5565
    %5567 = vrot.lane.b32.xlu0 %v1951, 64
    %v5568 = vpop.permute.xlu0 %5567
    %5569 = vrot.lane.b32.xlu0 %v1952, 64
    %v5570 = vpop.permute.xlu0 %5569
    %5571 = vrot.lane.b32.xlu0 %v1953, 64
    %v5572 = vpop.permute.xlu0 %5571
    %5573 = vrot.lane.b32.xlu0 %v1954, 64
    %v5574 = vpop.permute.xlu0 %5573
    %5575 = vrot.lane.b32.xlu0 %v1955, 64
    %v5576 = vpop.permute.xlu0 %5575
    %5577 = vrot.lane.b32.xlu0 %v1956, 64
    %v5578 = vpop.permute.xlu0 %5577
    %5579 = vrot.lane.b32.xlu0 %v1957, 64
    %v5580 = vpop.permute.xlu0 %5579
    %5581 = vrot.lane.b32.xlu0 %v1958, 64
    %v5582 = vpop.permute.xlu0 %5581
    %5583 = vrot.lane.b32.xlu0 %v1959, 64
    %v5584 = vpop.permute.xlu0 %5583
    %5585 = vrot.lane.b32.xlu0 %v1960, 64
    %v5586 = vpop.permute.xlu0 %5585
    %5587 = vrot.lane.b32.xlu0 %v1961, 64
    %v5588 = vpop.permute.xlu0 %5587
    %5589 = vrot.lane.b32.xlu0 %v1962, 64
    %v5590 = vpop.permute.xlu0 %5589
    %5591 = vrot.lane.b32.xlu0 %v1963, 64
    %v5592 = vpop.permute.xlu0 %5591
    %5593 = vrot.lane.b32.xlu0 %v1964, 64
    %v5594 = vpop.permute.xlu0 %5593
    %5595 = vrot.lane.b32.xlu0 %v1965, 64
    %v5596 = vpop.permute.xlu0 %5595
    %5597 = vrot.lane.b32.xlu0 %v1966, 64
    %v5598 = vpop.permute.xlu0 %5597
    %5599 = vrot.lane.b32.xlu0 %v1967, 64
    %v5600 = vpop.permute.xlu0 %5599
    %5601 = vrot.lane.b32.xlu0 %v1968, 64
    %v5602 = vpop.permute.xlu0 %5601
    %5603 = vrot.lane.b32.xlu0 %v1969, 64
    %v5604 = vpop.permute.xlu0 %5603
    %5605 = vrot.lane.b32.xlu0 %v1970, 64
    %v5606 = vpop.permute.xlu0 %5605
    %5607 = vrot.lane.b32.xlu0 %v1971, 64
    %v5608 = vpop.permute.xlu0 %5607
    %5609 = vrot.lane.b32.xlu0 %v1972, 64
    %v5610 = vpop.permute.xlu0 %5609
    %5611 = vrot.lane.b32.xlu0 %v1973, 64
    %v5612 = vpop.permute.xlu0 %5611
    %5613 = vrot.lane.b32.xlu0 %v1974, 64
    %v5614 = vpop.permute.xlu0 %5613
    %5615 = vrot.lane.b32.xlu0 %v1975, 64
    %v5616 = vpop.permute.xlu0 %5615
    %5617 = vrot.lane.b32.xlu0 %v1976, 64
    %v5618 = vpop.permute.xlu0 %5617
    %5619 = vrot.lane.b32.xlu0 %v1977, 64
    %v5620 = vpop.permute.xlu0 %5619
    %5621 = vrot.lane.b32.xlu0 %v1978, 64
    %v5622 = vpop.permute.xlu0 %5621
    %5623 = vrot.lane.b32.xlu0 %v1979, 64
    %v5624 = vpop.permute.xlu0 %5623
    %5625 = vrot.lane.b32.xlu0 %v1980, 64
    %v5626 = vpop.permute.xlu0 %5625
    %5627 = vrot.lane.b32.xlu0 %v1981, 64
    %v5628 = vpop.permute.xlu0 %5627
    %5629 = vrot.lane.b32.xlu0 %v1982, 64
    %v5630 = vpop.permute.xlu0 %5629
    %5631 = vrot.lane.b32.xlu0 %v1983, 64
    %v5632 = vpop.permute.xlu0 %5631
    %5633 = vrot.lane.b32.xlu0 %v1984, 64
    %v5634 = vpop.permute.xlu0 %5633
    %5635 = vrot.lane.b32.xlu0 %v1985, 64
    %v5636 = vpop.permute.xlu0 %5635
    %5637 = vrot.lane.b32.xlu0 %v1986, 64
    %v5638 = vpop.permute.xlu0 %5637
    %5639 = vrot.lane.b32.xlu0 %v1987, 64
    %v5640 = vpop.permute.xlu0 %5639
    %5641 = vrot.lane.b32.xlu0 %v1988, 64
    %v5642 = vpop.permute.xlu0 %5641
    %5643 = vrot.lane.b32.xlu0 %v1989, 64
    %v5644 = vpop.permute.xlu0 %5643
    %5645 = vrot.lane.b32.xlu0 %v1990, 64
    %v5646 = vpop.permute.xlu0 %5645
    %5647 = vrot.lane.b32.xlu0 %v1991, 64
    %v5648 = vpop.permute.xlu0 %5647
    %5649 = vrot.lane.b32.xlu0 %v1992, 64
    %v5650 = vpop.permute.xlu0 %5649
    %5651 = vrot.lane.b32.xlu0 %v1993, 64
    %v5652 = vpop.permute.xlu0 %5651
    %5653 = vrot.lane.b32.xlu0 %v1994, 64
    %v5654 = vpop.permute.xlu0 %5653
    %5655 = vrot.lane.b32.xlu0 %v1995, 64
    %v5656 = vpop.permute.xlu0 %5655
    %5657 = vrot.lane.b32.xlu0 %v1996, 64
    %v5658 = vpop.permute.xlu0 %5657
    %5659 = vrot.lane.b32.xlu0 %v1997, 64
    %v5660 = vpop.permute.xlu0 %5659
    %5661 = vrot.lane.b32.xlu0 %v1998, 64
    %v5662 = vpop.permute.xlu0 %5661
    %5663 = vrot.lane.b32.xlu0 %v1999, 64
    %v5664 = vpop.permute.xlu0 %5663
    %5665 = vrot.lane.b32.xlu0 %v2000, 64
    %v5666 = vpop.permute.xlu0 %5665
    %5667 = vrot.lane.b32.xlu0 %v2001, 64
    %v5668 = vpop.permute.xlu0 %5667
    %5669 = vrot.lane.b32.xlu0 %v2002, 64
    %v5670 = vpop.permute.xlu0 %5669
    %5671 = vrot.lane.b32.xlu0 %v2003, 64
    %v5672 = vpop.permute.xlu0 %5671
    %5673 = vrot.lane.b32.xlu0 %v2004, 64
    %v5674 = vpop.permute.xlu0 %5673
    %5675 = vrot.lane.b32.xlu0 %v2005, 64
    %v5676 = vpop.permute.xlu0 %5675
    %5677 = vrot.lane.b32.xlu0 %v2006, 64
    %v5678 = vpop.permute.xlu0 %5677
    %5679 = vrot.lane.b32.xlu0 %v2007, 64
    %v5680 = vpop.permute.xlu0 %5679
    %5681 = vrot.lane.b32.xlu0 %v2008, 64
    %v5682 = vpop.permute.xlu0 %5681
    %5683 = vrot.lane.b32.xlu0 %v2009, 64
    %v5684 = vpop.permute.xlu0 %5683
    %5685 = vrot.lane.b32.xlu0 %v2010, 64
    %v5686 = vpop.permute.xlu0 %5685
    %5687 = vrot.lane.b32.xlu0 %v2011, 64
    %v5688 = vpop.permute.xlu0 %5687
    %5689 = vrot.lane.b32.xlu0 %v2012, 64
    %v5690 = vpop.permute.xlu0 %5689
    %5691 = vrot.lane.b32.xlu0 %v2013, 64
    %v5692 = vpop.permute.xlu0 %5691
    %5693 = vrot.lane.b32.xlu0 %v2014, 64
    %v5694 = vpop.permute.xlu0 %5693
    %5695 = vrot.lane.b32.xlu0 %v2015, 64
    %v5696 = vpop.permute.xlu0 %5695
    %5697 = vrot.lane.b32.xlu0 %v2016, 64
    %v5698 = vpop.permute.xlu0 %5697
    %5699 = vrot.lane.b32.xlu0 %v2017, 64
    %v5700 = vpop.permute.xlu0 %5699
    %5701 = vrot.lane.b32.xlu0 %v2018, 64
    %v5702 = vpop.permute.xlu0 %5701
    %5703 = vrot.lane.b32.xlu0 %v2019, 64
    %v5704 = vpop.permute.xlu0 %5703
    %5705 = vrot.lane.b32.xlu0 %v2020, 64
    %v5706 = vpop.permute.xlu0 %5705
    %5707 = vrot.lane.b32.xlu0 %v2021, 64
    %v5708 = vpop.permute.xlu0 %5707
    %5709 = vrot.lane.b32.xlu0 %v2022, 64
    %v5710 = vpop.permute.xlu0 %5709
    %5711 = vrot.lane.b32.xlu0 %v2023, 64
    %v5712 = vpop.permute.xlu0 %5711
    %5713 = vrot.lane.b32.xlu0 %v2024, 64
    %v5714 = vpop.permute.xlu0 %5713
    %5715 = vrot.lane.b32.xlu0 %v2025, 64
    %v5716 = vpop.permute.xlu0 %5715
    %5717 = vrot.lane.b32.xlu0 %v2026, 64
    %v5718 = vpop.permute.xlu0 %5717
    %5719 = vrot.lane.b32.xlu0 %v2027, 64
    %v5720 = vpop.permute.xlu0 %5719
    %5721 = vrot.lane.b32.xlu0 %v2028, 64
    %v5722 = vpop.permute.xlu0 %5721
    %5723 = vrot.lane.b32.xlu0 %v2029, 64
    %v5724 = vpop.permute.xlu0 %5723
    %5725 = vrot.lane.b32.xlu0 %v2030, 64
    %v5726 = vpop.permute.xlu0 %5725
    %5727 = vrot.lane.b32.xlu0 %v2031, 64
    %v5728 = vpop.permute.xlu0 %5727
    %5729 = vrot.lane.b32.xlu0 %v2032, 64
    %v5730 = vpop.permute.xlu0 %5729
    %5731 = vrot.lane.b32.xlu0 %v2033, 64
    %v5732 = vpop.permute.xlu0 %5731
    %5733 = vrot.lane.b32.xlu0 %v2034, 64
    %v5734 = vpop.permute.xlu0 %5733
    %5735 = vrot.lane.b32.xlu0 %v2035, 64
    %v5736 = vpop.permute.xlu0 %5735
    %5737 = vrot.lane.b32.xlu0 %v2036, 64
    %v5738 = vpop.permute.xlu0 %5737
    %5739 = vrot.lane.b32.xlu0 %v2037, 64
    %v5740 = vpop.permute.xlu0 %5739
    %5741 = vrot.lane.b32.xlu0 %v2038, 64
    %v5742 = vpop.permute.xlu0 %5741
    %5743 = vrot.lane.b32.xlu0 %v2039, 64
    %v5744 = vpop.permute.xlu0 %5743
    %5745 = vrot.lane.b32.xlu0 %v2040, 64
    %v5746 = vpop.permute.xlu0 %5745
    %5747 = vrot.lane.b32.xlu0 %v2041, 64
    %v5748 = vpop.permute.xlu0 %5747
    %5749 = vrot.lane.b32.xlu0 %v2042, 64
    %v5750 = vpop.permute.xlu0 %5749
    %5751 = vrot.lane.b32.xlu0 %v2043, 64
    %v5752 = vpop.permute.xlu0 %5751
    %5753 = vrot.lane.b32.xlu0 %v2044, 64
    %v5754 = vpop.permute.xlu0 %5753
    %5755 = vrot.lane.b32.xlu0 %v2045, 64
    %v5756 = vpop.permute.xlu0 %5755
    %5757 = vrot.lane.b32.xlu0 %v2046, 64
    %v5758 = vpop.permute.xlu0 %5757
    %5759 = vrot.lane.b32.xlu0 %v2047, 64
    %v5760 = vpop.permute.xlu0 %5759
    %5761 = vrot.lane.b32.xlu0 %v2048, 64
    %v5762 = vpop.permute.xlu0 %5761
    %5763 = vrot.lane.b32.xlu0 %v2049, 64
    %v5764 = vpop.permute.xlu0 %5763
    %5765 = vrot.lane.b32.xlu0 %v2050, 64
    %v5766 = vpop.permute.xlu0 %5765
    %5767 = vrot.lane.b32.xlu0 %v2051, 64
    %v5768 = vpop.permute.xlu0 %5767
    %5769 = vrot.lane.b32.xlu0 %v2052, 64
    %v5770 = vpop.permute.xlu0 %5769
    %5771 = vrot.lane.b32.xlu0 %v2053, 64
    %v5772 = vpop.permute.xlu0 %5771
    %5773 = vrot.lane.b32.xlu0 %v2054, 64
    %v5774 = vpop.permute.xlu0 %5773
    %5775 = vrot.lane.b32.xlu0 %v2055, 64
    %v5776 = vpop.permute.xlu0 %5775
    %5777 = vrot.lane.b32.xlu0 %v2056, 64
    %v5778 = vpop.permute.xlu0 %5777
    %5779 = vrot.lane.b32.xlu0 %v2057, 64
    %v5780 = vpop.permute.xlu0 %5779
    %5781 = vrot.lane.b32.xlu0 %v2058, 64
    %v5782 = vpop.permute.xlu0 %5781
    %5911 = vmatpush.bf16.msra.mxu0 %v5542
    %5912 = vmatpush.bf16.msra.mxu0 %v5540
    %5913 = vmatpush.bf16.msra.mxu0 %v5538
    %5914 = vmatpush.bf16.msra.mxu0 %v5536
    %5915 = vmatpush.bf16.msra.mxu0 %v5534
    %5916 = vmatpush.bf16.msra.mxu0 %v5532
    %5917 = vmatpush.bf16.msra.mxu0 %v5530
    %5918 = vmatpush.bf16.msra.mxu0 %v5528
    %5919 = vmatmul.bf16.gmra.mxu0 %v5508
    %v5920 = vpop.f32.mrf.mxu0
    %v5921 = vadd.f32 %v5525, %v5920
    %v5922 = vpop.f32.mrf.mxu0
    %5923 = vdwg.mxu0
    %5924 = vmatpush.bf16.msra.mxu0 %v5558
    %5925 = vmatpush.bf16.msra.mxu0 %v5556
    %5926 = vmatpush.bf16.msra.mxu0 %v5554
    %5927 = vmatpush.bf16.msra.mxu0 %v5552
    %5928 = vmatpush.bf16.msra.mxu0 %v5550
    %5929 = vmatpush.bf16.msra.mxu0 %v5548
    %5930 = vmatpush.bf16.msra.mxu0 %v5546
    %5931 = vmatpush.bf16.msra.mxu0 %v5544
    %5932 = vmatmul.bf16.gmra.mxu0 %v5509
    %v5933 = vpop.f32.mrf.mxu0
    %v5934 = vadd.f32 %v5921, %v5933
    %v5935 = vpop.f32.mrf.mxu0
    %5936 = vdwg.mxu0
    %5937 = vmatpush.bf16.msra.mxu0 %v5574
    %5938 = vmatpush.bf16.msra.mxu0 %v5572
    %5939 = vmatpush.bf16.msra.mxu0 %v5570
    %5940 = vmatpush.bf16.msra.mxu0 %v5568
    %5941 = vmatpush.bf16.msra.mxu0 %v5566
    %5942 = vmatpush.bf16.msra.mxu0 %v5564
    %5943 = vmatpush.bf16.msra.mxu0 %v5562
    %5944 = vmatpush.bf16.msra.mxu0 %v5560
    %5945 = vmatmul.bf16.gmra.mxu0 %v5510
    %v5946 = vpop.f32.mrf.mxu0
    %v5947 = vadd.f32 %v5934, %v5946
    %v5948 = vpop.f32.mrf.mxu0
    %5949 = vdwg.mxu0
    %5950 = vmatpush.bf16.msra.mxu0 %v5590
    %5951 = vmatpush.bf16.msra.mxu0 %v5588
    %5952 = vmatpush.bf16.msra.mxu0 %v5586
    %5953 = vmatpush.bf16.msra.mxu0 %v5584
    %5954 = vmatpush.bf16.msra.mxu0 %v5582
    %5955 = vmatpush.bf16.msra.mxu0 %v5580
    %5956 = vmatpush.bf16.msra.mxu0 %v5578
    %5957 = vmatpush.bf16.msra.mxu0 %v5576
    %5958 = vmatmul.bf16.gmra.mxu0 %v5511
    %v5959 = vpop.f32.mrf.mxu0
    %v5960 = vadd.f32 %v5947, %v5959
    %v5961 = vpop.f32.mrf.mxu0
    %5962 = vdwg.mxu0
    %5963 = vmatpush.bf16.msra.mxu0 %v5606
    %5964 = vmatpush.bf16.msra.mxu0 %v5604
    %5965 = vmatpush.bf16.msra.mxu0 %v5602
    %5966 = vmatpush.bf16.msra.mxu0 %v5600
    %5967 = vmatpush.bf16.msra.mxu0 %v5598
    %5968 = vmatpush.bf16.msra.mxu0 %v5596
    %5969 = vmatpush.bf16.msra.mxu0 %v5594
    %5970 = vmatpush.bf16.msra.mxu0 %v5592
    %5971 = vmatmul.bf16.gmra.mxu0 %v5512
    %v5972 = vpop.f32.mrf.mxu0
    %v5973 = vadd.f32 %v5960, %v5972
    %v5974 = vpop.f32.mrf.mxu0
    %5975 = vdwg.mxu0
    %5976 = vmatpush.bf16.msra.mxu0 %v5622
    %5977 = vmatpush.bf16.msra.mxu0 %v5620
    %5978 = vmatpush.bf16.msra.mxu0 %v5618
    %5979 = vmatpush.bf16.msra.mxu0 %v5616
    %5980 = vmatpush.bf16.msra.mxu0 %v5614
    %5981 = vmatpush.bf16.msra.mxu0 %v5612
    %5982 = vmatpush.bf16.msra.mxu0 %v5610
    %5983 = vmatpush.bf16.msra.mxu0 %v5608
    %5984 = vmatmul.bf16.gmra.mxu0 %v5513
    %v5985 = vpop.f32.mrf.mxu0
    %v5986 = vadd.f32 %v5973, %v5985
    %v5987 = vpop.f32.mrf.mxu0
    %5988 = vdwg.mxu0
    %5989 = vmatpush.bf16.msra.mxu0 %v5638
    %5990 = vmatpush.bf16.msra.mxu0 %v5636
    %5991 = vmatpush.bf16.msra.mxu0 %v5634
    %5992 = vmatpush.bf16.msra.mxu0 %v5632
    %5993 = vmatpush.bf16.msra.mxu0 %v5630
    %5994 = vmatpush.bf16.msra.mxu0 %v5628
    %5995 = vmatpush.bf16.msra.mxu0 %v5626
    %5996 = vmatpush.bf16.msra.mxu0 %v5624
    %5997 = vmatmul.bf16.gmra.mxu0 %v5514
    %v5998 = vpop.f32.mrf.mxu0
    %v5999 = vadd.f32 %v5986, %v5998
    %v6000 = vpop.f32.mrf.mxu0
    %6001 = vdwg.mxu0
    %6002 = vmatpush.bf16.msra.mxu0 %v5654
    %6003 = vmatpush.bf16.msra.mxu0 %v5652
    %6004 = vmatpush.bf16.msra.mxu0 %v5650
    %6005 = vmatpush.bf16.msra.mxu0 %v5648
    %6006 = vmatpush.bf16.msra.mxu0 %v5646
    %6007 = vmatpush.bf16.msra.mxu0 %v5644
    %6008 = vmatpush.bf16.msra.mxu0 %v5642
    %6009 = vmatpush.bf16.msra.mxu0 %v5640
    %6010 = vmatmul.bf16.gmra.mxu0 %v5515
    %v6011 = vpop.f32.mrf.mxu0
    %v6012 = vadd.f32 %v5999, %v6011
    %v6013 = vpop.f32.mrf.mxu0
    %6014 = vdwg.mxu0
    %6015 = vmatpush.bf16.msra.mxu0 %v5670
    %6016 = vmatpush.bf16.msra.mxu0 %v5668
    %6017 = vmatpush.bf16.msra.mxu0 %v5666
    %6018 = vmatpush.bf16.msra.mxu0 %v5664
    %6019 = vmatpush.bf16.msra.mxu0 %v5662
    %6020 = vmatpush.bf16.msra.mxu0 %v5660
    %6021 = vmatpush.bf16.msra.mxu0 %v5658
    %6022 = vmatpush.bf16.msra.mxu0 %v5656
    %6023 = vmatmul.bf16.gmra.mxu0 %v5516
    %v6024 = vpop.f32.mrf.mxu0
    %v6025 = vadd.f32 %v6012, %v6024
    %v6026 = vpop.f32.mrf.mxu0
    %6027 = vdwg.mxu0
    %6028 = vmatpush.bf16.msra.mxu0 %v5686
    %6029 = vmatpush.bf16.msra.mxu0 %v5684
    %6030 = vmatpush.bf16.msra.mxu0 %v5682
    %6031 = vmatpush.bf16.msra.mxu0 %v5680
    %6032 = vmatpush.bf16.msra.mxu0 %v5678
    %6033 = vmatpush.bf16.msra.mxu0 %v5676
    %6034 = vmatpush.bf16.msra.mxu0 %v5674
    %6035 = vmatpush.bf16.msra.mxu0 %v5672
    %6036 = vmatmul.bf16.gmra.mxu0 %v5517
    %v6037 = vpop.f32.mrf.mxu0
    %v6038 = vadd.f32 %v6025, %v6037
    %v6039 = vpop.f32.mrf.mxu0
    %6040 = vdwg.mxu0
    %6041 = vmatpush.bf16.msra.mxu0 %v5702
    %6042 = vmatpush.bf16.msra.mxu0 %v5700
    %6043 = vmatpush.bf16.msra.mxu0 %v5698
    %6044 = vmatpush.bf16.msra.mxu0 %v5696
    %6045 = vmatpush.bf16.msra.mxu0 %v5694
    %6046 = vmatpush.bf16.msra.mxu0 %v5692
    %6047 = vmatpush.bf16.msra.mxu0 %v5690
    %6048 = vmatpush.bf16.msra.mxu0 %v5688
    %6049 = vmatmul.bf16.gmra.mxu0 %v5518
    %v6050 = vpop.f32.mrf.mxu0
    %v6051 = vadd.f32 %v6038, %v6050
    %v6052 = vpop.f32.mrf.mxu0
    %6053 = vdwg.mxu0
    %6054 = vmatpush.bf16.msra.mxu0 %v5718
    %6055 = vmatpush.bf16.msra.mxu0 %v5716
    %6056 = vmatpush.bf16.msra.mxu0 %v5714
    %6057 = vmatpush.bf16.msra.mxu0 %v5712
    %6058 = vmatpush.bf16.msra.mxu0 %v5710
    %6059 = vmatpush.bf16.msra.mxu0 %v5708
    %6060 = vmatpush.bf16.msra.mxu0 %v5706
    %6061 = vmatpush.bf16.msra.mxu0 %v5704
    %6062 = vmatmul.bf16.gmra.mxu0 %v5519
    %v6063 = vpop.f32.mrf.mxu0
    %v6064 = vadd.f32 %v6051, %v6063
    %v6065 = vpop.f32.mrf.mxu0
    %6066 = vdwg.mxu0
    %6067 = vmatpush.bf16.msra.mxu0 %v5734
    %6068 = vmatpush.bf16.msra.mxu0 %v5732
    %6069 = vmatpush.bf16.msra.mxu0 %v5730
    %6070 = vmatpush.bf16.msra.mxu0 %v5728
    %6071 = vmatpush.bf16.msra.mxu0 %v5726
    %6072 = vmatpush.bf16.msra.mxu0 %v5724
    %6073 = vmatpush.bf16.msra.mxu0 %v5722
    %6074 = vmatpush.bf16.msra.mxu0 %v5720
    %6075 = vmatmul.bf16.gmra.mxu0 %v5520
    %v6076 = vpop.f32.mrf.mxu0
    %v6077 = vadd.f32 %v6064, %v6076
    %v6078 = vpop.f32.mrf.mxu0
    %6079 = vdwg.mxu0
    %6080 = vmatpush.bf16.msra.mxu0 %v5750
    %6081 = vmatpush.bf16.msra.mxu0 %v5748
    %6082 = vmatpush.bf16.msra.mxu0 %v5746
    %6083 = vmatpush.bf16.msra.mxu0 %v5744
    %6084 = vmatpush.bf16.msra.mxu0 %v5742
    %6085 = vmatpush.bf16.msra.mxu0 %v5740
    %6086 = vmatpush.bf16.msra.mxu0 %v5738
    %6087 = vmatpush.bf16.msra.mxu0 %v5736
    %6088 = vmatmul.bf16.gmra.mxu0 %v5521
    %v6089 = vpop.f32.mrf.mxu0
    %v6090 = vadd.f32 %v6077, %v6089
    %v6091 = vpop.f32.mrf.mxu0
    %6092 = vdwg.mxu0
    %6093 = vmatpush.bf16.msra.mxu0 %v5766
    %6094 = vmatpush.bf16.msra.mxu0 %v5764
    %6095 = vmatpush.bf16.msra.mxu0 %v5762
    %6096 = vmatpush.bf16.msra.mxu0 %v5760
    %6097 = vmatpush.bf16.msra.mxu0 %v5758
    %6098 = vmatpush.bf16.msra.mxu0 %v5756
    %6099 = vmatpush.bf16.msra.mxu0 %v5754
    %6100 = vmatpush.bf16.msra.mxu0 %v5752
    %6101 = vmatmul.bf16.gmra.mxu0 %v5522
    %v6102 = vpop.f32.mrf.mxu0
    %v6103 = vadd.f32 %v6090, %v6102
    %v6104 = vpop.f32.mrf.mxu0
    %6105 = vdwg.mxu0
    %6106 = vmatpush.bf16.msra.mxu0 %v5782
    %6107 = vmatpush.bf16.msra.mxu0 %v5780
    %6108 = vmatpush.bf16.msra.mxu0 %v5778
    %6109 = vmatpush.bf16.msra.mxu0 %v5776
    %6110 = vmatpush.bf16.msra.mxu0 %v5774
    %6111 = vmatpush.bf16.msra.mxu0 %v5772
    %6112 = vmatpush.bf16.msra.mxu0 %v5770
    %6113 = vmatpush.bf16.msra.mxu0 %v5768
    %6114 = vmatmul.bf16.gmra.mxu0 %v5523
    %v6115 = vpop.f32.mrf.mxu0
    %v6116 = vadd.f32 %v6103, %v6115
    %v6117 = vpop.f32.mrf.mxu0
    %6118 = vdwg.mxu0
    %v6119 = vadd.f32 %v5047, %v6116
    %v6120 = vld [vmem:[#allocation16 + $0x7] sm:$0x1]
    %v6121 = vld [vmem:[#allocation17 + $0x7] sm:$0x1]
    %v6122 = vsel %vm211, %v6119, 0.0
    %6123 = vadd.xlane.f32.xlu0 %v6122
    %v6124 = vpop.xlane.xlu0 %6123
    %v6125 = vmul.f32 %v6124, %v661
    %v6126 = vmul.f32 %v6119, %v6119
    %v6127 = vsel %vm211, %v6126, 0.0
    %6128 = vadd.xlane.f32.xlu0 %v6127
    %v6129 = vpop.xlane.xlu0 %6128
    %v6130 = vmul.f32 %v6129, %v661
    %v6131 = vmul.f32 %v6125, %v6125
    %v6132 = vsub.f32 %v6130, %v6131
    %v6133 = vsub.f32 %v6119, %v6125
    %v6134 = vadd.f32 %v6132, 1e-05
    %v6135 = vrsqrt.pop %v6134
    %v6136 = vmul.f32 %v6135, %v6134
    %v6137 = vmul.f32 %v6136, %v6135
    %v6138 = vmul.f32 0.5, %v6137
    %v6139 = vsub.f32 1.5, %v6138
    %v6140 = vmul.f32 %v6135, %v6139
    %vm6141 = vweird.f32 %v6134
    %vm6142 = vweird.f32 %v6135
    %vm6143 = vmor %vm6141, %vm6142
    %v6144 = vsel %vm6143, %v6135, %v6140
    %v6145 = vmul.f32 %v6133, %v6144
    %v6146 = vperm.slane %v6120, 0
    %v6147 = vmul.f32 %v6145, %v6146
    %v6148 = vperm.slane %v6121, 0
    %v6149 = vadd.f32 %v6147, %v6148
    %s6150 = scalar_lea.vmem [#allocation5], 128
    %v6151 = vld [vmem:[%s6150] sm:$0xff]
    %v6152 = vld [vmem:[%s6150 + $0x8] sm:$0xff]
    %v6153 = vld [vmem:[%s6150 + $0x10] sm:$0xff]
    %v6154 = vld [vmem:[%s6150 + $0x18] sm:$0xff]
    %s6155 = scalar_lea.vmem [#allocation7], 4
    %v6156 = vld [vmem:[%s6155] sm:$0x1]
    %s6157 = scalar_lea.vmem [#allocation8], 128
    %v6158 = vld [vmem:[%s6157] sm:$0xff]
    %v6159 = vld [vmem:[%s6157 + $0x8] sm:$0xff]
    %v6160 = vld [vmem:[%s6157 + $0x10] sm:$0xff]
    %v6161 = vld [vmem:[%s6157 + $0x18] sm:$0xff]
    %s6162 = scalar_lea.vmem [#allocation10], 4
    %v6163 = vld [vmem:[%s6162] sm:$0x1]
    %v6165 = vperm.slane %v6156, 0
    %v6168 = vsel %vm211, %v6149, 0
    %6170 = vmatpush.msra.mxu0 0.0
    %6171 = vmatpush.msra.mxu0 0.0
    %6172 = vmatpush.msra.mxu0 0.0
    %6173 = vmatpush.msra.mxu0 0.0
    %6174 = vmatpush.msra.mxu0 0.0
    %6175 = vmatpush.msra.mxu0 0.0
    %6176 = vmatpush.msra.mxu0 0.0
    %6177 = vmatpush.msra.mxu0 0.0
    %6178 = vmatpush.msra.mxu0 0.0
    %6179 = vmatpush.msra.mxu0 0.0
    %6180 = vmatpush.msra.mxu0 0.0
    %6181 = vmatpush.msra.mxu0 0.0
    %6182 = vmatpush.msra.mxu0 %v6154
    %6183 = vmatpush.msra.mxu0 %v6153
    %6184 = vmatpush.msra.mxu0 %v6152
    %6185 = vmatpush.msra.mxu0 %v6151
    %6186 = vmatmul.f32.gmra.mxu0 %v6168
    %v6187 = vpop.f32.mrf.mxu0
    %v6188 = vadd.f32 %v6165, %v6187
    %6189 = vdwg.mxu0
    %6191 = vrot.lane.b32.xlu0 %v6188, 96
    %v6192 = vpop.permute.xlu0 %6191
    %v6193 = vsel %vm238, %v6188, 0
    %v6195 = vsel %vm238, %v6192, 0
    %6197 = vmatpush.xpose.msra.mxu0 0.0
    %6198 = vmatpush.xpose.msra.mxu0 0.0
    %6199 = vmatpush.xpose.msra.mxu0 0.0
    %6200 = vmatpush.xpose.msra.mxu0 0.0
    %6201 = vmatpush.xpose.msra.mxu0 0.0
    %6202 = vmatpush.xpose.msra.mxu0 0.0
    %6203 = vmatpush.xpose.msra.mxu0 0.0
    %6204 = vmatpush.xpose.msra.mxu0 0.0
    %6205 = vmatpush.xpose.msra.mxu0 0.0
    %6206 = vmatpush.xpose.msra.mxu0 0.0
    %6207 = vmatpush.xpose.msra.mxu0 0.0
    %6208 = vmatpush.xpose.msra.mxu0 0.0
    %6209 = vmatpush.xpose.msra.mxu0 0.0
    %6210 = vmatpush.xpose.msra.mxu0 0.0
    %6211 = vmatpush.xpose.msra.mxu0 0.0
    %6212 = vmatpush.xpose.msra.mxu0 %v6195
    %6213 = vmatmul.f32.gmra.mxu0 %v6193
    %v6214 = vpop.f32.mrf.mxu0
    %v6215 = vadd.f32 0.0, %v6214
    %6216 = vdwg.mxu0
    %v6217 = vmul.f32 %v6215, 0.35355338
    %v6218 = vsel %vm238, %v6217, -inf
    %6219 = vmax.xlane.f32.xlu0 %v6218
    %v6220 = vpop.xlane.xlu0 %6219
    %v6221 = vsub.f32 %v6217, %v6220
    %v6222 = vmul.f32 %v6221, 1.442695
    %v6223 = vpow.pop %v6222
    %v6224 = vsel %vm238, %v6223, 0.0
    %6225 = vadd.xlane.f32.xlu0 %v6224
    %v6226 = vpop.xlane.xlu0 %6225
    %v6227 = vrcp.pop %v6226
    %v6228 = vmul.f32 %v6226, %v6227
    %v6229 = vsub.f32 1.0, %v6228
    %v6230 = vmul.f32 %v6227, %v6229
    %v6231 = vadd.f32 %v6227, %v6230
    %vm6232 = vweird.f32 %v6226
    %vm6233 = vweird.f32 %v6227
    %vm6234 = vmor %vm6232, %vm6233
    %v6235 = vsel %vm6234, %v6227, %v6231
    %v6236 = vand.u32 2147483647, %v6226
    %vm6237 = vcmp.eq.f32.partialorder %v6236, 8.507059e+37
    %v6238 = vand.u32 %v6226, 2147483648
    %v6239 = vor.u32 1.1754944e-38, %v6238
    %v6240 = vsel %vm6237, %v6239, %v6235
    %v6241 = vmul.f32 %v6223, %v6240
    %6242 = vrot.lane.b32.xlu0 %v6188, 64
    %v6243 = vpop.permute.xlu0 %6242
    %v6246 = vsel %vm238, %v6241, 0
    %6248 = vmatpush.msra.mxu0 0.0
    %6249 = vmatpush.msra.mxu0 0.0
    %6250 = vmatpush.msra.mxu0 0.0
    %6251 = vmatpush.msra.mxu0 0.0
    %6252 = vmatpush.msra.mxu0 0.0
    %6253 = vmatpush.msra.mxu0 0.0
    %6254 = vmatpush.msra.mxu0 0.0
    %6255 = vmatpush.msra.mxu0 0.0
    %6256 = vmatpush.msra.mxu0 0.0
    %6257 = vmatpush.msra.mxu0 0.0
    %6258 = vmatpush.msra.mxu0 0.0
    %6259 = vmatpush.msra.mxu0 0.0
    %6260 = vmatpush.msra.mxu0 0.0
    %6261 = vmatpush.msra.mxu0 0.0
    %6262 = vmatpush.msra.mxu0 0.0
    %6263 = vmatpush.msra.mxu0 %v6243
    %6264 = vmatmul.f32.gmra.mxu0 %v6246
    %v6265 = vpop.f32.mrf.mxu0
    %v6266 = vadd.f32 0.0, %v6265
    %6267 = vdwg.mxu0
    %6268 = vrot.lane.b32.xlu0 %v6188, 120
    %v6269 = vpop.permute.xlu0 %6268
    %6270 = vrot.lane.b32.xlu0 %v6188, 88
    %v6271 = vpop.permute.xlu0 %6270
    %v6272 = vsel %vm238, %v6269, 0
    %v6274 = vsel %vm238, %v6271, 0
    %6276 = vmatpush.xpose.msra.mxu0 0.0
    %6277 = vmatpush.xpose.msra.mxu0 0.0
    %6278 = vmatpush.xpose.msra.mxu0 0.0
    %6279 = vmatpush.xpose.msra.mxu0 0.0
    %6280 = vmatpush.xpose.msra.mxu0 0.0
    %6281 = vmatpush.xpose.msra.mxu0 0.0
    %6282 = vmatpush.xpose.msra.mxu0 0.0
    %6283 = vmatpush.xpose.msra.mxu0 0.0
    %6284 = vmatpush.xpose.msra.mxu0 0.0
    %6285 = vmatpush.xpose.msra.mxu0 0.0
    %6286 = vmatpush.xpose.msra.mxu0 0.0
    %6287 = vmatpush.xpose.msra.mxu0 0.0
    %6288 = vmatpush.xpose.msra.mxu0 0.0
    %6289 = vmatpush.xpose.msra.mxu0 0.0
    %6290 = vmatpush.xpose.msra.mxu0 0.0
    %6291 = vmatpush.xpose.msra.mxu0 %v6274
    %6292 = vmatmul.f32.gmra.mxu0 %v6272
    %v6293 = vpop.f32.mrf.mxu0
    %v6294 = vadd.f32 0.0, %v6293
    %6295 = vdwg.mxu0
    %v6296 = vmul.f32 %v6294, 0.35355338
    %v6297 = vsel %vm238, %v6296, -inf
    %6298 = vmax.xlane.f32.xlu0 %v6297
    %v6299 = vpop.xlane.xlu0 %6298
    %v6300 = vsub.f32 %v6296, %v6299
    %v6301 = vmul.f32 %v6300, 1.442695
    %v6302 = vpow.pop %v6301
    %v6303 = vsel %vm238, %v6302, 0.0
    %6304 = vadd.xlane.f32.xlu0 %v6303
    %v6305 = vpop.xlane.xlu0 %6304
    %v6306 = vrcp.pop %v6305
    %v6307 = vmul.f32 %v6305, %v6306
    %v6308 = vsub.f32 1.0, %v6307
    %v6309 = vmul.f32 %v6306, %v6308
    %v6310 = vadd.f32 %v6306, %v6309
    %vm6311 = vweird.f32 %v6305
    %vm6312 = vweird.f32 %v6306
    %vm6313 = vmor %vm6311, %vm6312
    %v6314 = vsel %vm6313, %v6306, %v6310
    %v6315 = vand.u32 2147483647, %v6305
    %vm6316 = vcmp.eq.f32.partialorder %v6315, 8.507059e+37
    %v6317 = vand.u32 %v6305, 2147483648
    %v6318 = vor.u32 1.1754944e-38, %v6317
    %v6319 = vsel %vm6316, %v6318, %v6314
    %v6320 = vmul.f32 %v6302, %v6319
    %6321 = vrot.lane.b32.xlu0 %v6188, 56
    %v6322 = vpop.permute.xlu0 %6321
    %v6325 = vsel %vm238, %v6320, 0
    %6327 = vmatpush.msra.mxu0 0.0
    %6328 = vmatpush.msra.mxu0 0.0
    %6329 = vmatpush.msra.mxu0 0.0
    %6330 = vmatpush.msra.mxu0 0.0
    %6331 = vmatpush.msra.mxu0 0.0
    %6332 = vmatpush.msra.mxu0 0.0
    %6333 = vmatpush.msra.mxu0 0.0
    %6334 = vmatpush.msra.mxu0 0.0
    %6335 = vmatpush.msra.mxu0 0.0
    %6336 = vmatpush.msra.mxu0 0.0
    %6337 = vmatpush.msra.mxu0 0.0
    %6338 = vmatpush.msra.mxu0 0.0
    %6339 = vmatpush.msra.mxu0 0.0
    %6340 = vmatpush.msra.mxu0 0.0
    %6341 = vmatpush.msra.mxu0 0.0
    %6342 = vmatpush.msra.mxu0 %v6322
    %6343 = vmatmul.f32.gmra.mxu0 %v6325
    %v6344 = vpop.f32.mrf.mxu0
    %v6345 = vadd.f32 0.0, %v6344
    %6346 = vdwg.mxu0
    %v6348 = vsel %vm238, %v6345, 0
    %6350 = vmatpush.msra.mxu0 0.0
    %6351 = vmatpush.msra.mxu0 0.0
    %6352 = vmatpush.msra.mxu0 0.0
    %6353 = vmatpush.msra.mxu0 0.0
    %6354 = vmatpush.msra.mxu0 0.0
    %6355 = vmatpush.msra.mxu0 0.0
    %6356 = vmatpush.msra.mxu0 0.0
    %6357 = vmatpush.msra.mxu0 0.0
    %6358 = vmatpush.msra.mxu0 0.0
    %6359 = vmatpush.msra.mxu0 0.0
    %6360 = vmatpush.msra.mxu0 0.0
    %6361 = vmatpush.msra.mxu0 0.0
    %6362 = vmatpush.msra.mxu0 0.0
    %6363 = vmatpush.msra.mxu0 0.0
    %6364 = vmatpush.msra.mxu0 0.0
    %6365 = vmatpush.msra.mxu0 %v6159
    %6366 = vmatmul.f32.gmra.mxu0 %v6348
    %v6367 = vpop.f32.mrf.mxu0
    %v6368 = vadd.f32 0.0, %v6367
    %6369 = vdwg.mxu0
    %v6371 = vsel %vm238, %v6266, 0
    %6373 = vmatpush.msra.mxu0 0.0
    %6374 = vmatpush.msra.mxu0 0.0
    %6375 = vmatpush.msra.mxu0 0.0
    %6376 = vmatpush.msra.mxu0 0.0
    %6377 = vmatpush.msra.mxu0 0.0
    %6378 = vmatpush.msra.mxu0 0.0
    %6379 = vmatpush.msra.mxu0 0.0
    %6380 = vmatpush.msra.mxu0 0.0
    %6381 = vmatpush.msra.mxu0 0.0
    %6382 = vmatpush.msra.mxu0 0.0
    %6383 = vmatpush.msra.mxu0 0.0
    %6384 = vmatpush.msra.mxu0 0.0
    %6385 = vmatpush.msra.mxu0 0.0
    %6386 = vmatpush.msra.mxu0 0.0
    %6387 = vmatpush.msra.mxu0 0.0
    %6388 = vmatpush.msra.mxu0 %v6158
    %6389 = vmatmul.f32.gmra.mxu0 %v6371
    %v6390 = vpop.f32.mrf.mxu0
    %v6391 = vadd.f32 %v6368, %v6390
    %6392 = vdwg.mxu0
    %6393 = vrot.lane.b32.xlu0 %v6188, 112
    %v6394 = vpop.permute.xlu0 %6393
    %6395 = vrot.lane.b32.xlu0 %v6188, 80
    %v6396 = vpop.permute.xlu0 %6395
    %v6397 = vsel %vm238, %v6394, 0
    %v6399 = vsel %vm238, %v6396, 0
    %6401 = vmatpush.xpose.msra.mxu0 0.0
    %6402 = vmatpush.xpose.msra.mxu0 0.0
    %6403 = vmatpush.xpose.msra.mxu0 0.0
    %6404 = vmatpush.xpose.msra.mxu0 0.0
    %6405 = vmatpush.xpose.msra.mxu0 0.0
    %6406 = vmatpush.xpose.msra.mxu0 0.0
    %6407 = vmatpush.xpose.msra.mxu0 0.0
    %6408 = vmatpush.xpose.msra.mxu0 0.0
    %6409 = vmatpush.xpose.msra.mxu0 0.0
    %6410 = vmatpush.xpose.msra.mxu0 0.0
    %6411 = vmatpush.xpose.msra.mxu0 0.0
    %6412 = vmatpush.xpose.msra.mxu0 0.0
    %6413 = vmatpush.xpose.msra.mxu0 0.0
    %6414 = vmatpush.xpose.msra.mxu0 0.0
    %6415 = vmatpush.xpose.msra.mxu0 0.0
    %6416 = vmatpush.xpose.msra.mxu0 %v6399
    %6417 = vmatmul.f32.gmra.mxu0 %v6397
    %v6418 = vpop.f32.mrf.mxu0
    %v6419 = vadd.f32 0.0, %v6418
    %6420 = vdwg.mxu0
    %v6421 = vmul.f32 %v6419, 0.35355338
    %v6422 = vsel %vm238, %v6421, -inf
    %6423 = vmax.xlane.f32.xlu0 %v6422
    %v6424 = vpop.xlane.xlu0 %6423
    %v6425 = vsub.f32 %v6421, %v6424
    %v6426 = vmul.f32 %v6425, 1.442695
    %v6427 = vpow.pop %v6426
    %v6428 = vsel %vm238, %v6427, 0.0
    %6429 = vadd.xlane.f32.xlu0 %v6428
    %v6430 = vpop.xlane.xlu0 %6429
    %v6431 = vrcp.pop %v6430
    %v6432 = vmul.f32 %v6430, %v6431
    %v6433 = vsub.f32 1.0, %v6432
    %v6434 = vmul.f32 %v6431, %v6433
    %v6435 = vadd.f32 %v6431, %v6434
    %vm6436 = vweird.f32 %v6430
    %vm6437 = vweird.f32 %v6431
    %vm6438 = vmor %vm6436, %vm6437
    %v6439 = vsel %vm6438, %v6431, %v6435
    %v6440 = vand.u32 2147483647, %v6430
    %vm6441 = vcmp.eq.f32.partialorder %v6440, 8.507059e+37
    %v6442 = vand.u32 %v6430, 2147483648
    %v6443 = vor.u32 1.1754944e-38, %v6442
    %v6444 = vsel %vm6441, %v6443, %v6439
    %v6445 = vmul.f32 %v6427, %v6444
    %6446 = vrot.lane.b32.xlu0 %v6188, 48
    %v6447 = vpop.permute.xlu0 %6446
    %v6450 = vsel %vm238, %v6445, 0
    %6452 = vmatpush.msra.mxu0 0.0
    %6453 = vmatpush.msra.mxu0 0.0
    %6454 = vmatpush.msra.mxu0 0.0
    %6455 = vmatpush.msra.mxu0 0.0
    %6456 = vmatpush.msra.mxu0 0.0
    %6457 = vmatpush.msra.mxu0 0.0
    %6458 = vmatpush.msra.mxu0 0.0
    %6459 = vmatpush.msra.mxu0 0.0
    %6460 = vmatpush.msra.mxu0 0.0
    %6461 = vmatpush.msra.mxu0 0.0
    %6462 = vmatpush.msra.mxu0 0.0
    %6463 = vmatpush.msra.mxu0 0.0
    %6464 = vmatpush.msra.mxu0 0.0
    %6465 = vmatpush.msra.mxu0 0.0
    %6466 = vmatpush.msra.mxu0 0.0
    %6467 = vmatpush.msra.mxu0 %v6447
    %6468 = vmatmul.f32.gmra.mxu0 %v6450
    %v6469 = vpop.f32.mrf.mxu0
    %v6470 = vadd.f32 0.0, %v6469
    %6471 = vdwg.mxu0
    %v6473 = vsel %vm238, %v6470, 0
    %6475 = vmatpush.msra.mxu0 0.0
    %6476 = vmatpush.msra.mxu0 0.0
    %6477 = vmatpush.msra.mxu0 0.0
    %6478 = vmatpush.msra.mxu0 0.0
    %6479 = vmatpush.msra.mxu0 0.0
    %6480 = vmatpush.msra.mxu0 0.0
    %6481 = vmatpush.msra.mxu0 0.0
    %6482 = vmatpush.msra.mxu0 0.0
    %6483 = vmatpush.msra.mxu0 0.0
    %6484 = vmatpush.msra.mxu0 0.0
    %6485 = vmatpush.msra.mxu0 0.0
    %6486 = vmatpush.msra.mxu0 0.0
    %6487 = vmatpush.msra.mxu0 0.0
    %6488 = vmatpush.msra.mxu0 0.0
    %6489 = vmatpush.msra.mxu0 0.0
    %6490 = vmatpush.msra.mxu0 %v6160
    %6491 = vmatmul.f32.gmra.mxu0 %v6473
    %v6492 = vpop.f32.mrf.mxu0
    %v6493 = vadd.f32 0.0, %v6492
    %6494 = vdwg.mxu0
    %v6495 = vadd.f32 %v6391, %v6493
    %6496 = vrot.lane.b32.xlu0 %v6188, 104
    %v6497 = vpop.permute.xlu0 %6496
    %6498 = vrot.lane.b32.xlu0 %v6188, 72
    %v6499 = vpop.permute.xlu0 %6498
    %v6500 = vsel %vm238, %v6497, 0
    %v6502 = vsel %vm238, %v6499, 0
    %6504 = vmatpush.xpose.msra.mxu0 0.0
    %6505 = vmatpush.xpose.msra.mxu0 0.0
    %6506 = vmatpush.xpose.msra.mxu0 0.0
    %6507 = vmatpush.xpose.msra.mxu0 0.0
    %6508 = vmatpush.xpose.msra.mxu0 0.0
    %6509 = vmatpush.xpose.msra.mxu0 0.0
    %6510 = vmatpush.xpose.msra.mxu0 0.0
    %6511 = vmatpush.xpose.msra.mxu0 0.0
    %6512 = vmatpush.xpose.msra.mxu0 0.0
    %6513 = vmatpush.xpose.msra.mxu0 0.0
    %6514 = vmatpush.xpose.msra.mxu0 0.0
    %6515 = vmatpush.xpose.msra.mxu0 0.0
    %6516 = vmatpush.xpose.msra.mxu0 0.0
    %6517 = vmatpush.xpose.msra.mxu0 0.0
    %6518 = vmatpush.xpose.msra.mxu0 0.0
    %6519 = vmatpush.xpose.msra.mxu0 %v6502
    %6520 = vmatmul.f32.gmra.mxu0 %v6500
    %v6521 = vpop.f32.mrf.mxu0
    %v6522 = vadd.f32 0.0, %v6521
    %6523 = vdwg.mxu0
    %v6524 = vmul.f32 %v6522, 0.35355338
    %v6525 = vsel %vm238, %v6524, -inf
    %6526 = vmax.xlane.f32.xlu0 %v6525
    %v6527 = vpop.xlane.xlu0 %6526
    %v6528 = vsub.f32 %v6524, %v6527
    %v6529 = vmul.f32 %v6528, 1.442695
    %v6530 = vpow.pop %v6529
    %v6531 = vsel %vm238, %v6530, 0.0
    %6532 = vadd.xlane.f32.xlu0 %v6531
    %v6533 = vpop.xlane.xlu0 %6532
    %v6534 = vrcp.pop %v6533
    %v6535 = vmul.f32 %v6533, %v6534
    %v6536 = vsub.f32 1.0, %v6535
    %v6537 = vmul.f32 %v6534, %v6536
    %v6538 = vadd.f32 %v6534, %v6537
    %vm6539 = vweird.f32 %v6533
    %vm6540 = vweird.f32 %v6534
    %vm6541 = vmor %vm6539, %vm6540
    %v6542 = vsel %vm6541, %v6534, %v6538
    %v6543 = vand.u32 2147483647, %v6533
    %vm6544 = vcmp.eq.f32.partialorder %v6543, 8.507059e+37
    %v6545 = vand.u32 %v6533, 2147483648
    %v6546 = vor.u32 1.1754944e-38, %v6545
    %v6547 = vsel %vm6544, %v6546, %v6542
    %v6548 = vmul.f32 %v6530, %v6547
    %6549 = vrot.lane.b32.xlu0 %v6188, 40
    %v6550 = vpop.permute.xlu0 %6549
    %v6553 = vsel %vm238, %v6548, 0
    %6555 = vmatpush.msra.mxu0 0.0
    %6556 = vmatpush.msra.mxu0 0.0
    %6557 = vmatpush.msra.mxu0 0.0
    %6558 = vmatpush.msra.mxu0 0.0
    %6559 = vmatpush.msra.mxu0 0.0
    %6560 = vmatpush.msra.mxu0 0.0
    %6561 = vmatpush.msra.mxu0 0.0
    %6562 = vmatpush.msra.mxu0 0.0
    %6563 = vmatpush.msra.mxu0 0.0
    %6564 = vmatpush.msra.mxu0 0.0
    %6565 = vmatpush.msra.mxu0 0.0
    %6566 = vmatpush.msra.mxu0 0.0
    %6567 = vmatpush.msra.mxu0 0.0
    %6568 = vmatpush.msra.mxu0 0.0
    %6569 = vmatpush.msra.mxu0 0.0
    %6570 = vmatpush.msra.mxu0 %v6550
    %6571 = vmatmul.f32.gmra.mxu0 %v6553
    %v6572 = vpop.f32.mrf.mxu0
    %v6573 = vadd.f32 0.0, %v6572
    %6574 = vdwg.mxu0
    %v6576 = vsel %vm238, %v6573, 0
    %6578 = vmatpush.msra.mxu0 0.0
    %6579 = vmatpush.msra.mxu0 0.0
    %6580 = vmatpush.msra.mxu0 0.0
    %6581 = vmatpush.msra.mxu0 0.0
    %6582 = vmatpush.msra.mxu0 0.0
    %6583 = vmatpush.msra.mxu0 0.0
    %6584 = vmatpush.msra.mxu0 0.0
    %6585 = vmatpush.msra.mxu0 0.0
    %6586 = vmatpush.msra.mxu0 0.0
    %6587 = vmatpush.msra.mxu0 0.0
    %6588 = vmatpush.msra.mxu0 0.0
    %6589 = vmatpush.msra.mxu0 0.0
    %6590 = vmatpush.msra.mxu0 0.0
    %6591 = vmatpush.msra.mxu0 0.0
    %6592 = vmatpush.msra.mxu0 0.0
    %6593 = vmatpush.msra.mxu0 %v6161
    %6594 = vmatmul.f32.gmra.mxu0 %v6576
    %v6595 = vpop.f32.mrf.mxu0
    %v6596 = vadd.f32 0.0, %v6595
    %6597 = vdwg.mxu0
    %v6598 = vadd.f32 %v6495, %v6596
    %v6600 = vperm.slane %v6163, 0
    %v6602 = vadd.f32 %v6598, %v6600
    %v6603 = vadd.f32 %v6149, %v6602
    %v6604 = vld [vmem:[#allocation16 + $0x8] sm:$0x1]
    %v6605 = vld [vmem:[#allocation17 + $0x8] sm:$0x1]
    %v6606 = vsel %vm211, %v6603, 0.0
    %6607 = vadd.xlane.f32.xlu0 %v6606
    %v6608 = vpop.xlane.xlu0 %6607
    %v6609 = vmul.f32 %v6608, %v661
    %v6610 = vmul.f32 %v6603, %v6603
    %v6611 = vsel %vm211, %v6610, 0.0
    %6612 = vadd.xlane.f32.xlu0 %v6611
    %v6613 = vpop.xlane.xlu0 %6612
    %v6614 = vmul.f32 %v6613, %v661
    %v6615 = vmul.f32 %v6609, %v6609
    %v6616 = vsub.f32 %v6614, %v6615
    %v6617 = vsub.f32 %v6603, %v6609
    %v6618 = vadd.f32 %v6616, 1e-05
    %v6619 = vrsqrt.pop %v6618
    %v6620 = vmul.f32 %v6619, %v6618
    %v6621 = vmul.f32 %v6620, %v6619
    %v6622 = vmul.f32 0.5, %v6621
    %v6623 = vsub.f32 1.5, %v6622
    %v6624 = vmul.f32 %v6619, %v6623
    %vm6625 = vweird.f32 %v6618
    %vm6626 = vweird.f32 %v6619
    %vm6627 = vmor %vm6625, %vm6626
    %v6628 = vsel %vm6627, %v6619, %v6624
    %v6629 = vmul.f32 %v6617, %v6628
    %v6630 = vperm.slane %v6604, 0
    %v6631 = vmul.f32 %v6629, %v6630
    %v6632 = vperm.slane %v6605, 0
    %v6633 = vadd.f32 %v6631, %v6632
    %s6634 = scalar_lea.vmem [#allocation5], 160
    %v6635 = vld [vmem:[%s6634] sm:$0xff]
    %v6636 = vld [vmem:[%s6634 + $0x8] sm:$0xff]
    %v6637 = vld [vmem:[%s6634 + $0x10] sm:$0xff]
    %v6638 = vld [vmem:[%s6634 + $0x18] sm:$0xff]
    %s6639 = scalar_lea.vmem [#allocation7], 5
    %v6640 = vld [vmem:[%s6639] sm:$0x1]
    %s6641 = scalar_lea.vmem [#allocation8], 160
    %v6642 = vld [vmem:[%s6641] sm:$0xff]
    %v6643 = vld [vmem:[%s6641 + $0x8] sm:$0xff]
    %v6644 = vld [vmem:[%s6641 + $0x10] sm:$0xff]
    %v6645 = vld [vmem:[%s6641 + $0x18] sm:$0xff]
    %s6646 = scalar_lea.vmem [#allocation10], 5
    %v6647 = vld [vmem:[%s6646] sm:$0x1]
    %v6649 = vperm.slane %v6640, 0
    %v6652 = vsel %vm211, %v6633, 0
    %6654 = vmatpush.msra.mxu0 0.0
    %6655 = vmatpush.msra.mxu0 0.0
    %6656 = vmatpush.msra.mxu0 0.0
    %6657 = vmatpush.msra.mxu0 0.0
    %6658 = vmatpush.msra.mxu0 0.0
    %6659 = vmatpush.msra.mxu0 0.0
    %6660 = vmatpush.msra.mxu0 0.0
    %6661 = vmatpush.msra.mxu0 0.0
    %6662 = vmatpush.msra.mxu0 0.0
    %6663 = vmatpush.msra.mxu0 0.0
    %6664 = vmatpush.msra.mxu0 0.0
    %6665 = vmatpush.msra.mxu0 0.0
    %6666 = vmatpush.msra.mxu0 %v6638
    %6667 = vmatpush.msra.mxu0 %v6637
    %6668 = vmatpush.msra.mxu0 %v6636
    %6669 = vmatpush.msra.mxu0 %v6635
    %6670 = vmatmul.f32.gmra.mxu0 %v6652
    %v6671 = vpop.f32.mrf.mxu0
    %v6672 = vadd.f32 %v6649, %v6671
    %6673 = vdwg.mxu0
    %6678 = vrot.lane.b32.xlu0 %v6635, 96
    %v6679 = vpop.permute.xlu0 %6678
    %6680 = vrot.lane.b32.xlu0 %v6636, 96
    %v6681 = vpop.permute.xlu0 %6680
    %6682 = vrot.lane.b32.xlu0 %v6637, 96
    %v6683 = vpop.permute.xlu0 %6682
    %6684 = vrot.lane.b32.xlu0 %v6638, 96
    %v6685 = vpop.permute.xlu0 %6684
    %6690 = vrot.lane.b32.xlu0 %v6649, 96
    %v6691 = vpop.permute.xlu0 %6690
    %6693 = vmatpush.msra.mxu0 0.0
    %6694 = vmatpush.msra.mxu0 0.0
    %6695 = vmatpush.msra.mxu0 0.0
    %6696 = vmatpush.msra.mxu0 0.0
    %6697 = vmatpush.msra.mxu0 0.0
    %6698 = vmatpush.msra.mxu0 0.0
    %6699 = vmatpush.msra.mxu0 0.0
    %6700 = vmatpush.msra.mxu0 0.0
    %6701 = vmatpush.msra.mxu0 0.0
    %6702 = vmatpush.msra.mxu0 0.0
    %6703 = vmatpush.msra.mxu0 0.0
    %6704 = vmatpush.msra.mxu0 0.0
    %6705 = vmatpush.msra.mxu0 %v6685
    %6706 = vmatpush.msra.mxu0 %v6683
    %6707 = vmatpush.msra.mxu0 %v6681
    %6708 = vmatpush.msra.mxu0 %v6679
    %6709 = vmatmul.f32.gmra.mxu0 %v4583
    %v6710 = vpop.f32.mrf.mxu0
    %v6711 = vadd.f32 %v6691, %v6710
    %6712 = vdwg.mxu0
    %v6714 = vsel %vm238, %v6672, 0
    %v6717 = vsel %vm238, %v6711, 0
    %6719 = vmatpush.xpose.msra.mxu0 0.0
    %6720 = vmatpush.xpose.msra.mxu0 0.0
    %6721 = vmatpush.xpose.msra.mxu0 0.0
    %6722 = vmatpush.xpose.msra.mxu0 0.0
    %6723 = vmatpush.xpose.msra.mxu0 0.0
    %6724 = vmatpush.xpose.msra.mxu0 0.0
    %6725 = vmatpush.xpose.msra.mxu0 0.0
    %6726 = vmatpush.xpose.msra.mxu0 0.0
    %6727 = vmatpush.xpose.msra.mxu0 0.0
    %6728 = vmatpush.xpose.msra.mxu0 0.0
    %6729 = vmatpush.xpose.msra.mxu0 0.0
    %6730 = vmatpush.xpose.msra.mxu0 0.0
    %6731 = vmatpush.xpose.msra.mxu0 0.0
    %6732 = vmatpush.xpose.msra.mxu0 0.0
    %6733 = vmatpush.xpose.msra.mxu0 0.0
    %6734 = vmatpush.xpose.msra.mxu0 %v6717
    %6735 = vmatmul.f32.gmra.mxu0 %v6714
    %v6736 = vpop.f32.mrf.mxu0
    %v6737 = vadd.f32 0.0, %v6736
    %6738 = vdwg.mxu0
    %v6739 = vmul.f32 %v6737, 0.35355338
    %v6740 = vsel %vm238, %v6739, -inf
    %6741 = vmax.xlane.f32.xlu0 %v6740
    %v6742 = vpop.xlane.xlu0 %6741
    %v6743 = vsub.f32 %v6739, %v6742
    %v6744 = vmul.f32 %v6743, 1.442695
    %v6745 = vpow.pop %v6744
    %v6746 = vsel %vm238, %v6745, 0.0
    %6747 = vadd.xlane.f32.xlu0 %v6746
    %v6748 = vpop.xlane.xlu0 %6747
    %v6749 = vrcp.pop %v6748
    %v6750 = vmul.f32 %v6748, %v6749
    %v6751 = vsub.f32 1.0, %v6750
    %v6752 = vmul.f32 %v6749, %v6751
    %v6753 = vadd.f32 %v6749, %v6752
    %vm6754 = vweird.f32 %v6748
    %vm6755 = vweird.f32 %v6749
    %vm6756 = vmor %vm6754, %vm6755
    %v6757 = vsel %vm6756, %v6749, %v6753
    %v6758 = vand.u32 2147483647, %v6748
    %vm6759 = vcmp.eq.f32.partialorder %v6758, 8.507059e+37
    %v6760 = vand.u32 %v6748, 2147483648
    %v6761 = vor.u32 1.1754944e-38, %v6760
    %v6762 = vsel %vm6759, %v6761, %v6757
    %v6763 = vmul.f32 %v6745, %v6762
    %6764 = vrot.lane.b32.xlu0 %v6711, 96
    %v6765 = vpop.permute.xlu0 %6764
    %v6768 = vsel %vm238, %v6763, 0
    %6770 = vmatpush.msra.mxu0 0.0
    %6771 = vmatpush.msra.mxu0 0.0
    %6772 = vmatpush.msra.mxu0 0.0
    %6773 = vmatpush.msra.mxu0 0.0
    %6774 = vmatpush.msra.mxu0 0.0
    %6775 = vmatpush.msra.mxu0 0.0
    %6776 = vmatpush.msra.mxu0 0.0
    %6777 = vmatpush.msra.mxu0 0.0
    %6778 = vmatpush.msra.mxu0 0.0
    %6779 = vmatpush.msra.mxu0 0.0
    %6780 = vmatpush.msra.mxu0 0.0
    %6781 = vmatpush.msra.mxu0 0.0
    %6782 = vmatpush.msra.mxu0 0.0
    %6783 = vmatpush.msra.mxu0 0.0
    %6784 = vmatpush.msra.mxu0 0.0
    %6785 = vmatpush.msra.mxu0 %v6765
    %6786 = vmatmul.f32.gmra.mxu0 %v6768
    %v6787 = vpop.f32.mrf.mxu0
    %v6788 = vadd.f32 0.0, %v6787
    %6789 = vdwg.mxu0
    %6790 = vrot.lane.b32.xlu0 %v6672, 120
    %v6791 = vpop.permute.xlu0 %6790
    %6792 = vrot.lane.b32.xlu0 %v6711, 120
    %v6793 = vpop.permute.xlu0 %6792
    %v6794 = vsel %vm238, %v6791, 0
    %v6796 = vsel %vm238, %v6793, 0
    %6798 = vmatpush.xpose.msra.mxu0 0.0
    %6799 = vmatpush.xpose.msra.mxu0 0.0
    %6800 = vmatpush.xpose.msra.mxu0 0.0
    %6801 = vmatpush.xpose.msra.mxu0 0.0
    %6802 = vmatpush.xpose.msra.mxu0 0.0
    %6803 = vmatpush.xpose.msra.mxu0 0.0
    %6804 = vmatpush.xpose.msra.mxu0 0.0
    %6805 = vmatpush.xpose.msra.mxu0 0.0
    %6806 = vmatpush.xpose.msra.mxu0 0.0
    %6807 = vmatpush.xpose.msra.mxu0 0.0
    %6808 = vmatpush.xpose.msra.mxu0 0.0
    %6809 = vmatpush.xpose.msra.mxu0 0.0
    %6810 = vmatpush.xpose.msra.mxu0 0.0
    %6811 = vmatpush.xpose.msra.mxu0 0.0
    %6812 = vmatpush.xpose.msra.mxu0 0.0
    %6813 = vmatpush.xpose.msra.mxu0 %v6796
    %6814 = vmatmul.f32.gmra.mxu0 %v6794
    %v6815 = vpop.f32.mrf.mxu0
    %v6816 = vadd.f32 0.0, %v6815
    %6817 = vdwg.mxu0
    %v6818 = vmul.f32 %v6816, 0.35355338
    %v6819 = vsel %vm238, %v6818, -inf
    %6820 = vmax.xlane.f32.xlu0 %v6819
    %v6821 = vpop.xlane.xlu0 %6820
    %v6822 = vsub.f32 %v6818, %v6821
    %v6823 = vmul.f32 %v6822, 1.442695
    %v6824 = vpow.pop %v6823
    %v6825 = vsel %vm238, %v6824, 0.0
    %6826 = vadd.xlane.f32.xlu0 %v6825
    %v6827 = vpop.xlane.xlu0 %6826
    %v6828 = vrcp.pop %v6827
    %v6829 = vmul.f32 %v6827, %v6828
    %v6830 = vsub.f32 1.0, %v6829
    %v6831 = vmul.f32 %v6828, %v6830
    %v6832 = vadd.f32 %v6828, %v6831
    %vm6833 = vweird.f32 %v6827
    %vm6834 = vweird.f32 %v6828
    %vm6835 = vmor %vm6833, %vm6834
    %v6836 = vsel %vm6835, %v6828, %v6832
    %v6837 = vand.u32 2147483647, %v6827
    %vm6838 = vcmp.eq.f32.partialorder %v6837, 8.507059e+37
    %v6839 = vand.u32 %v6827, 2147483648
    %v6840 = vor.u32 1.1754944e-38, %v6839
    %v6841 = vsel %vm6838, %v6840, %v6836
    %v6842 = vmul.f32 %v6824, %v6841
    %6843 = vrot.lane.b32.xlu0 %v6711, 88
    %v6844 = vpop.permute.xlu0 %6843
    %v6847 = vsel %vm238, %v6842, 0
    %6849 = vmatpush.msra.mxu0 0.0
    %6850 = vmatpush.msra.mxu0 0.0
    %6851 = vmatpush.msra.mxu0 0.0
    %6852 = vmatpush.msra.mxu0 0.0
    %6853 = vmatpush.msra.mxu0 0.0
    %6854 = vmatpush.msra.mxu0 0.0
    %6855 = vmatpush.msra.mxu0 0.0
    %6856 = vmatpush.msra.mxu0 0.0
    %6857 = vmatpush.msra.mxu0 0.0
    %6858 = vmatpush.msra.mxu0 0.0
    %6859 = vmatpush.msra.mxu0 0.0
    %6860 = vmatpush.msra.mxu0 0.0
    %6861 = vmatpush.msra.mxu0 0.0
    %6862 = vmatpush.msra.mxu0 0.0
    %6863 = vmatpush.msra.mxu0 0.0
    %6864 = vmatpush.msra.mxu0 %v6844
    %6865 = vmatmul.f32.gmra.mxu0 %v6847
    %v6866 = vpop.f32.mrf.mxu0
    %v6867 = vadd.f32 0.0, %v6866
    %6868 = vdwg.mxu0
    %v6870 = vsel %vm238, %v6867, 0
    %6872 = vmatpush.msra.mxu0 0.0
    %6873 = vmatpush.msra.mxu0 0.0
    %6874 = vmatpush.msra.mxu0 0.0
    %6875 = vmatpush.msra.mxu0 0.0
    %6876 = vmatpush.msra.mxu0 0.0
    %6877 = vmatpush.msra.mxu0 0.0
    %6878 = vmatpush.msra.mxu0 0.0
    %6879 = vmatpush.msra.mxu0 0.0
    %6880 = vmatpush.msra.mxu0 0.0
    %6881 = vmatpush.msra.mxu0 0.0
    %6882 = vmatpush.msra.mxu0 0.0
    %6883 = vmatpush.msra.mxu0 0.0
    %6884 = vmatpush.msra.mxu0 0.0
    %6885 = vmatpush.msra.mxu0 0.0
    %6886 = vmatpush.msra.mxu0 0.0
    %6887 = vmatpush.msra.mxu0 %v6643
    %6888 = vmatmul.f32.gmra.mxu0 %v6870
    %v6889 = vpop.f32.mrf.mxu0
    %v6890 = vadd.f32 0.0, %v6889
    %6891 = vdwg.mxu0
    %v6893 = vsel %vm238, %v6788, 0
    %6895 = vmatpush.msra.mxu0 0.0
    %6896 = vmatpush.msra.mxu0 0.0
    %6897 = vmatpush.msra.mxu0 0.0
    %6898 = vmatpush.msra.mxu0 0.0
    %6899 = vmatpush.msra.mxu0 0.0
    %6900 = vmatpush.msra.mxu0 0.0
    %6901 = vmatpush.msra.mxu0 0.0
    %6902 = vmatpush.msra.mxu0 0.0
    %6903 = vmatpush.msra.mxu0 0.0
    %6904 = vmatpush.msra.mxu0 0.0
    %6905 = vmatpush.msra.mxu0 0.0
    %6906 = vmatpush.msra.mxu0 0.0
    %6907 = vmatpush.msra.mxu0 0.0
    %6908 = vmatpush.msra.mxu0 0.0
    %6909 = vmatpush.msra.mxu0 0.0
    %6910 = vmatpush.msra.mxu0 %v6642
    %6911 = vmatmul.f32.gmra.mxu0 %v6893
    %v6912 = vpop.f32.mrf.mxu0
    %v6913 = vadd.f32 %v6890, %v6912
    %6914 = vdwg.mxu0
    %6915 = vrot.lane.b32.xlu0 %v6672, 112
    %v6916 = vpop.permute.xlu0 %6915
    %6917 = vrot.lane.b32.xlu0 %v6711, 112
    %v6918 = vpop.permute.xlu0 %6917
    %v6919 = vsel %vm238, %v6916, 0
    %v6921 = vsel %vm238, %v6918, 0
    %6923 = vmatpush.xpose.msra.mxu0 0.0
    %6924 = vmatpush.xpose.msra.mxu0 0.0
    %6925 = vmatpush.xpose.msra.mxu0 0.0
    %6926 = vmatpush.xpose.msra.mxu0 0.0
    %6927 = vmatpush.xpose.msra.mxu0 0.0
    %6928 = vmatpush.xpose.msra.mxu0 0.0
    %6929 = vmatpush.xpose.msra.mxu0 0.0
    %6930 = vmatpush.xpose.msra.mxu0 0.0
    %6931 = vmatpush.xpose.msra.mxu0 0.0
    %6932 = vmatpush.xpose.msra.mxu0 0.0
    %6933 = vmatpush.xpose.msra.mxu0 0.0
    %6934 = vmatpush.xpose.msra.mxu0 0.0
    %6935 = vmatpush.xpose.msra.mxu0 0.0
    %6936 = vmatpush.xpose.msra.mxu0 0.0
    %6937 = vmatpush.xpose.msra.mxu0 0.0
    %6938 = vmatpush.xpose.msra.mxu0 %v6921
    %6939 = vmatmul.f32.gmra.mxu0 %v6919
    %v6940 = vpop.f32.mrf.mxu0
    %v6941 = vadd.f32 0.0, %v6940
    %6942 = vdwg.mxu0
    %v6943 = vmul.f32 %v6941, 0.35355338
    %v6944 = vsel %vm238, %v6943, -inf
    %6945 = vmax.xlane.f32.xlu0 %v6944
    %v6946 = vpop.xlane.xlu0 %6945
    %v6947 = vsub.f32 %v6943, %v6946
    %v6948 = vmul.f32 %v6947, 1.442695
    %v6949 = vpow.pop %v6948
    %v6950 = vsel %vm238, %v6949, 0.0
    %6951 = vadd.xlane.f32.xlu0 %v6950
    %v6952 = vpop.xlane.xlu0 %6951
    %v6953 = vrcp.pop %v6952
    %v6954 = vmul.f32 %v6952, %v6953
    %v6955 = vsub.f32 1.0, %v6954
    %v6956 = vmul.f32 %v6953, %v6955
    %v6957 = vadd.f32 %v6953, %v6956
    %vm6958 = vweird.f32 %v6952
    %vm6959 = vweird.f32 %v6953
    %vm6960 = vmor %vm6958, %vm6959
    %v6961 = vsel %vm6960, %v6953, %v6957
    %v6962 = vand.u32 2147483647, %v6952
    %vm6963 = vcmp.eq.f32.partialorder %v6962, 8.507059e+37
    %v6964 = vand.u32 %v6952, 2147483648
    %v6965 = vor.u32 1.1754944e-38, %v6964
    %v6966 = vsel %vm6963, %v6965, %v6961
    %v6967 = vmul.f32 %v6949, %v6966
    %6968 = vrot.lane.b32.xlu0 %v6711, 80
    %v6969 = vpop.permute.xlu0 %6968
    %v6972 = vsel %vm238, %v6967, 0
    %6974 = vmatpush.msra.mxu0 0.0
    %6975 = vmatpush.msra.mxu0 0.0
    %6976 = vmatpush.msra.mxu0 0.0
    %6977 = vmatpush.msra.mxu0 0.0
    %6978 = vmatpush.msra.mxu0 0.0
    %6979 = vmatpush.msra.mxu0 0.0
    %6980 = vmatpush.msra.mxu0 0.0
    %6981 = vmatpush.msra.mxu0 0.0
    %6982 = vmatpush.msra.mxu0 0.0
    %6983 = vmatpush.msra.mxu0 0.0
    %6984 = vmatpush.msra.mxu0 0.0
    %6985 = vmatpush.msra.mxu0 0.0
    %6986 = vmatpush.msra.mxu0 0.0
    %6987 = vmatpush.msra.mxu0 0.0
    %6988 = vmatpush.msra.mxu0 0.0
    %6989 = vmatpush.msra.mxu0 %v6969
    %6990 = vmatmul.f32.gmra.mxu0 %v6972
    %v6991 = vpop.f32.mrf.mxu0
    %v6992 = vadd.f32 0.0, %v6991
    %6993 = vdwg.mxu0
    %v6995 = vsel %vm238, %v6992, 0
    %6997 = vmatpush.msra.mxu0 0.0
    %6998 = vmatpush.msra.mxu0 0.0
    %6999 = vmatpush.msra.mxu0 0.0
    %7000 = vmatpush.msra.mxu0 0.0
    %7001 = vmatpush.msra.mxu0 0.0
    %7002 = vmatpush.msra.mxu0 0.0
    %7003 = vmatpush.msra.mxu0 0.0
    %7004 = vmatpush.msra.mxu0 0.0
    %7005 = vmatpush.msra.mxu0 0.0
    %7006 = vmatpush.msra.mxu0 0.0
    %7007 = vmatpush.msra.mxu0 0.0
    %7008 = vmatpush.msra.mxu0 0.0
    %7009 = vmatpush.msra.mxu0 0.0
    %7010 = vmatpush.msra.mxu0 0.0
    %7011 = vmatpush.msra.mxu0 0.0
    %7012 = vmatpush.msra.mxu0 %v6644
    %7013 = vmatmul.f32.gmra.mxu0 %v6995
    %v7014 = vpop.f32.mrf.mxu0
    %v7015 = vadd.f32 0.0, %v7014
    %7016 = vdwg.mxu0
    %v7017 = vadd.f32 %v6913, %v7015
    %7018 = vrot.lane.b32.xlu0 %v6672, 104
    %v7019 = vpop.permute.xlu0 %7018
    %7020 = vrot.lane.b32.xlu0 %v6711, 104
    %v7021 = vpop.permute.xlu0 %7020
    %v7022 = vsel %vm238, %v7019, 0
    %v7024 = vsel %vm238, %v7021, 0
    %7026 = vmatpush.xpose.msra.mxu0 0.0
    %7027 = vmatpush.xpose.msra.mxu0 0.0
    %7028 = vmatpush.xpose.msra.mxu0 0.0
    %7029 = vmatpush.xpose.msra.mxu0 0.0
    %7030 = vmatpush.xpose.msra.mxu0 0.0
    %7031 = vmatpush.xpose.msra.mxu0 0.0
    %7032 = vmatpush.xpose.msra.mxu0 0.0
    %7033 = vmatpush.xpose.msra.mxu0 0.0
    %7034 = vmatpush.xpose.msra.mxu0 0.0
    %7035 = vmatpush.xpose.msra.mxu0 0.0
    %7036 = vmatpush.xpose.msra.mxu0 0.0
    %7037 = vmatpush.xpose.msra.mxu0 0.0
    %7038 = vmatpush.xpose.msra.mxu0 0.0
    %7039 = vmatpush.xpose.msra.mxu0 0.0
    %7040 = vmatpush.xpose.msra.mxu0 0.0
    %7041 = vmatpush.xpose.msra.mxu0 %v7024
    %7042 = vmatmul.f32.gmra.mxu0 %v7022
    %v7043 = vpop.f32.mrf.mxu0
    %v7044 = vadd.f32 0.0, %v7043
    %7045 = vdwg.mxu0
    %v7046 = vmul.f32 %v7044, 0.35355338
    %v7047 = vsel %vm238, %v7046, -inf
    %7048 = vmax.xlane.f32.xlu0 %v7047
    %v7049 = vpop.xlane.xlu0 %7048
    %v7050 = vsub.f32 %v7046, %v7049
    %v7051 = vmul.f32 %v7050, 1.442695
    %v7052 = vpow.pop %v7051
    %v7053 = vsel %vm238, %v7052, 0.0
    %7054 = vadd.xlane.f32.xlu0 %v7053
    %v7055 = vpop.xlane.xlu0 %7054
    %v7056 = vrcp.pop %v7055
    %v7057 = vmul.f32 %v7055, %v7056
    %v7058 = vsub.f32 1.0, %v7057
    %v7059 = vmul.f32 %v7056, %v7058
    %v7060 = vadd.f32 %v7056, %v7059
    %vm7061 = vweird.f32 %v7055
    %vm7062 = vweird.f32 %v7056
    %vm7063 = vmor %vm7061, %vm7062
    %v7064 = vsel %vm7063, %v7056, %v7060
    %v7065 = vand.u32 2147483647, %v7055
    %vm7066 = vcmp.eq.f32.partialorder %v7065, 8.507059e+37
    %v7067 = vand.u32 %v7055, 2147483648
    %v7068 = vor.u32 1.1754944e-38, %v7067
    %v7069 = vsel %vm7066, %v7068, %v7064
    %v7070 = vmul.f32 %v7052, %v7069
    %7071 = vrot.lane.b32.xlu0 %v6711, 72
    %v7072 = vpop.permute.xlu0 %7071
    %v7075 = vsel %vm238, %v7070, 0
    %7077 = vmatpush.msra.mxu0 0.0
    %7078 = vmatpush.msra.mxu0 0.0
    %7079 = vmatpush.msra.mxu0 0.0
    %7080 = vmatpush.msra.mxu0 0.0
    %7081 = vmatpush.msra.mxu0 0.0
    %7082 = vmatpush.msra.mxu0 0.0
    %7083 = vmatpush.msra.mxu0 0.0
    %7084 = vmatpush.msra.mxu0 0.0
    %7085 = vmatpush.msra.mxu0 0.0
    %7086 = vmatpush.msra.mxu0 0.0
    %7087 = vmatpush.msra.mxu0 0.0
    %7088 = vmatpush.msra.mxu0 0.0
    %7089 = vmatpush.msra.mxu0 0.0
    %7090 = vmatpush.msra.mxu0 0.0
    %7091 = vmatpush.msra.mxu0 0.0
    %7092 = vmatpush.msra.mxu0 %v7072
    %7093 = vmatmul.f32.gmra.mxu0 %v7075
    %v7094 = vpop.f32.mrf.mxu0
    %v7095 = vadd.f32 0.0, %v7094
    %7096 = vdwg.mxu0
    %v7098 = vsel %vm238, %v7095, 0
    %7100 = vmatpush.msra.mxu0 0.0
    %7101 = vmatpush.msra.mxu0 0.0
    %7102 = vmatpush.msra.mxu0 0.0
    %7103 = vmatpush.msra.mxu0 0.0
    %7104 = vmatpush.msra.mxu0 0.0
    %7105 = vmatpush.msra.mxu0 0.0
    %7106 = vmatpush.msra.mxu0 0.0
    %7107 = vmatpush.msra.mxu0 0.0
    %7108 = vmatpush.msra.mxu0 0.0
    %7109 = vmatpush.msra.mxu0 0.0
    %7110 = vmatpush.msra.mxu0 0.0
    %7111 = vmatpush.msra.mxu0 0.0
    %7112 = vmatpush.msra.mxu0 0.0
    %7113 = vmatpush.msra.mxu0 0.0
    %7114 = vmatpush.msra.mxu0 0.0
    %7115 = vmatpush.msra.mxu0 %v6645
    %7116 = vmatmul.f32.gmra.mxu0 %v7098
    %v7117 = vpop.f32.mrf.mxu0
    %v7118 = vadd.f32 0.0, %v7117
    %7119 = vdwg.mxu0
    %v7120 = vadd.f32 %v7017, %v7118
    %v7122 = vperm.slane %v6647, 0
    %v7124 = vadd.f32 %v7120, %v7122
    %v7125 = vadd.f32 %v6633, %v7124
    %v7126 = vld [vmem:[#allocation16 + $0x9] sm:$0x1]
    %v7127 = vld [vmem:[#allocation17 + $0x9] sm:$0x1]
    %v7128 = vsel %vm211, %v7125, 0.0
    %7129 = vadd.xlane.f32.xlu0 %v7128
    %v7130 = vpop.xlane.xlu0 %7129
    %v7131 = vmul.f32 %v7130, %v661
    %v7132 = vmul.f32 %v7125, %v7125
    %v7133 = vsel %vm211, %v7132, 0.0
    %7134 = vadd.xlane.f32.xlu0 %v7133
    %v7135 = vpop.xlane.xlu0 %7134
    %v7136 = vmul.f32 %v7135, %v661
    %v7137 = vmul.f32 %v7131, %v7131
    %v7138 = vsub.f32 %v7136, %v7137
    %v7139 = vsub.f32 %v7125, %v7131
    %v7140 = vadd.f32 %v7138, 1e-05
    %v7141 = vrsqrt.pop %v7140
    %v7142 = vmul.f32 %v7141, %v7140
    %v7143 = vmul.f32 %v7142, %v7141
    %v7144 = vmul.f32 0.5, %v7143
    %v7145 = vsub.f32 1.5, %v7144
    %v7146 = vmul.f32 %v7141, %v7145
    %vm7147 = vweird.f32 %v7140
    %vm7148 = vweird.f32 %v7141
    %vm7149 = vmor %vm7147, %vm7148
    %v7150 = vsel %vm7149, %v7141, %v7146
    %v7151 = vmul.f32 %v7139, %v7150
    %v7152 = vperm.slane %v7126, 0
    %v7153 = vmul.f32 %v7151, %v7152
    %v7154 = vperm.slane %v7127, 0
    %v7155 = vadd.f32 %v7153, %v7154
    %s7156 = scalar_lea.vmem [#allocation11], 768
    %v7157 = vld [vmem:[%s7156] sm:$0xff]
    %v7158 = vld [vmem:[%s7156 + $0x8] sm:$0xff]
    %v7159 = vld [vmem:[%s7156 + $0x10] sm:$0xff]
    %v7160 = vld [vmem:[%s7156 + $0x18] sm:$0xff]
    %v7161 = vld [vmem:[%s7156 + $0x20] sm:$0xff]
    %v7162 = vld [vmem:[%s7156 + $0x28] sm:$0xff]
    %v7163 = vld [vmem:[%s7156 + $0x30] sm:$0xff]
    %v7164 = vld [vmem:[%s7156 + $0x38] sm:$0xff]
    %v7165 = vld [vmem:[%s7156 + $0x40] sm:$0xff]
    %v7166 = vld [vmem:[%s7156 + $0x48] sm:$0xff]
    %v7167 = vld [vmem:[%s7156 + $0x50] sm:$0xff]
    %v7168 = vld [vmem:[%s7156 + $0x58] sm:$0xff]
    %v7169 = vld [vmem:[%s7156 + $0x60] sm:$0xff]
    %v7170 = vld [vmem:[%s7156 + $0x68] sm:$0xff]
    %v7171 = vld [vmem:[%s7156 + $0x70] sm:$0xff]
    %v7172 = vld [vmem:[%s7156 + $0x78] sm:$0xff]
    %v7173 = vld [vmem:[%s7156 + $0x80] sm:$0xff]
    %v7174 = vld [vmem:[%s7156 + $0x88] sm:$0xff]
    %v7175 = vld [vmem:[%s7156 + $0x90] sm:$0xff]
    %v7176 = vld [vmem:[%s7156 + $0x98] sm:$0xff]
    %v7177 = vld [vmem:[%s7156 + $0xa0] sm:$0xff]
    %v7178 = vld [vmem:[%s7156 + $0xa8] sm:$0xff]
    %v7179 = vld [vmem:[%s7156 + $0xb0] sm:$0xff]
    %v7180 = vld [vmem:[%s7156 + $0xb8] sm:$0xff]
    %v7181 = vld [vmem:[%s7156 + $0xc0] sm:$0xff]
    %v7182 = vld [vmem:[%s7156 + $0xc8] sm:$0xff]
    %v7183 = vld [vmem:[%s7156 + $0xd0] sm:$0xff]
    %v7184 = vld [vmem:[%s7156 + $0xd8] sm:$0xff]
    %v7185 = vld [vmem:[%s7156 + $0xe0] sm:$0xff]
    %v7186 = vld [vmem:[%s7156 + $0xe8] sm:$0xff]
    %v7187 = vld [vmem:[%s7156 + $0xf0] sm:$0xff]
    %v7188 = vld [vmem:[%s7156 + $0xf8] sm:$0xff]
    %s7189 = scalar_lea.vmem [#allocation13], 48
    %v7190 = vld [vmem:[%s7189] sm:$0xff]
    %v7191 = vld [vmem:[%s7189 + $0x8] sm:$0xff]
    %s7192 = scalar_lea.vmem %s8, 3
    %v7193 = vld [vmem:[%s7192] sm:$0x1]
    %v7194 = vpack.c.bf16 %v7155, %v7155
    %v7197 = vperm.slane %v7190, 0
    %v7198 = vperm.slane %v7190, 1
    %v7199 = vperm.slane %v7190, 2
    %v7200 = vperm.slane %v7190, 3
    %v7201 = vperm.slane %v7190, 4
    %v7202 = vperm.slane %v7190, 5
    %v7203 = vperm.slane %v7190, 6
    %v7204 = vperm.slane %v7190, 7
    %v7205 = vperm.slane %v7191, 0
    %v7206 = vperm.slane %v7191, 1
    %v7207 = vperm.slane %v7191, 2
    %v7208 = vperm.slane %v7191, 3
    %v7209 = vperm.slane %v7191, 4
    %v7210 = vperm.slane %v7191, 5
    %v7211 = vperm.slane %v7191, 6
    %v7212 = vperm.slane %v7191, 7
    %v7261 = vunpack.c.l.b16 %v7157
    %v7262 = vunpack.c.h.b16 %v7157
    %v7263 = vunpack.c.l.b16 %v7158
    %v7264 = vunpack.c.h.b16 %v7158
    %v7265 = vunpack.c.l.b16 %v7159
    %v7266 = vunpack.c.h.b16 %v7159
    %v7267 = vunpack.c.l.b16 %v7160
    %v7268 = vunpack.c.h.b16 %v7160
    %v7269 = vunpack.c.l.b16 %v7161
    %v7270 = vunpack.c.h.b16 %v7161
    %v7271 = vunpack.c.l.b16 %v7162
    %v7272 = vunpack.c.h.b16 %v7162
    %v7273 = vunpack.c.l.b16 %v7163
    %v7274 = vunpack.c.h.b16 %v7163
    %v7275 = vunpack.c.l.b16 %v7164
    %v7276 = vunpack.c.h.b16 %v7164
    %v7277 = vunpack.c.l.b16 %v7165
    %v7278 = vunpack.c.h.b16 %v7165
    %v7279 = vunpack.c.l.b16 %v7166
    %v7280 = vunpack.c.h.b16 %v7166
    %v7281 = vunpack.c.l.b16 %v7167
    %v7282 = vunpack.c.h.b16 %v7167
    %v7283 = vunpack.c.l.b16 %v7168
    %v7284 = vunpack.c.h.b16 %v7168
    %v7285 = vunpack.c.l.b16 %v7169
    %v7286 = vunpack.c.h.b16 %v7169
    %v7287 = vunpack.c.l.b16 %v7170
    %v7288 = vunpack.c.h.b16 %v7170
    %v7289 = vunpack.c.l.b16 %v7171
    %v7290 = vunpack.c.h.b16 %v7171
    %v7291 = vunpack.c.l.b16 %v7172
    %v7292 = vunpack.c.h.b16 %v7172
    %v7293 = vunpack.c.l.b16 %v7173
    %v7294 = vunpack.c.h.b16 %v7173
    %v7295 = vunpack.c.l.b16 %v7174
    %v7296 = vunpack.c.h.b16 %v7174
    %v7297 = vunpack.c.l.b16 %v7175
    %v7298 = vunpack.c.h.b16 %v7175
    %v7299 = vunpack.c.l.b16 %v7176
    %v7300 = vunpack.c.h.b16 %v7176
    %v7301 = vunpack.c.l.b16 %v7177
    %v7302 = vunpack.c.h.b16 %v7177
    %v7303 = vunpack.c.l.b16 %v7178
    %v7304 = vunpack.c.h.b16 %v7178
    %v7305 = vunpack.c.l.b16 %v7179
    %v7306 = vunpack.c.h.b16 %v7179
    %v7307 = vunpack.c.l.b16 %v7180
    %v7308 = vunpack.c.h.b16 %v7180
    %v7309 = vunpack.c.l.b16 %v7181
    %v7310 = vunpack.c.h.b16 %v7181
    %v7311 = vunpack.c.l.b16 %v7182
    %v7312 = vunpack.c.h.b16 %v7182
    %v7313 = vunpack.c.l.b16 %v7183
    %v7314 = vunpack.c.h.b16 %v7183
    %v7315 = vunpack.c.l.b16 %v7184
    %v7316 = vunpack.c.h.b16 %v7184
    %v7317 = vunpack.c.l.b16 %v7185
    %v7318 = vunpack.c.h.b16 %v7185
    %v7319 = vunpack.c.l.b16 %v7186
    %v7320 = vunpack.c.h.b16 %v7186
    %v7321 = vunpack.c.l.b16 %v7187
    %v7322 = vunpack.c.h.b16 %v7187
    %v7323 = vunpack.c.l.b16 %v7188
    %v7324 = vunpack.c.h.b16 %v7188
    %v7325 = vpack.c.b16 %v7277, %v7261
    %v7326 = vpack.c.b16 %v7278, %v7262
    %v7327 = vpack.c.b16 %v7279, %v7263
    %v7328 = vpack.c.b16 %v7280, %v7264
    %v7329 = vpack.c.b16 %v7281, %v7265
    %v7330 = vpack.c.b16 %v7282, %v7266
    %v7331 = vpack.c.b16 %v7283, %v7267
    %v7332 = vpack.c.b16 %v7284, %v7268
    %v7333 = vpack.c.b16 %v7285, %v7269
    %v7334 = vpack.c.b16 %v7286, %v7270
    %v7335 = vpack.c.b16 %v7287, %v7271
    %v7336 = vpack.c.b16 %v7288, %v7272
    %v7337 = vpack.c.b16 %v7289, %v7273
    %v7338 = vpack.c.b16 %v7290, %v7274
    %v7339 = vpack.c.b16 %v7291, %v7275
    %v7340 = vpack.c.b16 %v7292, %v7276
    %v7341 = vpack.c.b16 %v7309, %v7293
    %v7342 = vpack.c.b16 %v7310, %v7294
    %v7343 = vpack.c.b16 %v7311, %v7295
    %v7344 = vpack.c.b16 %v7312, %v7296
    %v7345 = vpack.c.b16 %v7313, %v7297
    %v7346 = vpack.c.b16 %v7314, %v7298
    %v7347 = vpack.c.b16 %v7315, %v7299
    %v7348 = vpack.c.b16 %v7316, %v7300
    %v7349 = vpack.c.b16 %v7317, %v7301
    %v7350 = vpack.c.b16 %v7318, %v7302
    %v7351 = vpack.c.b16 %v7319, %v7303
    %v7352 = vpack.c.b16 %v7320, %v7304
    %v7353 = vpack.c.b16 %v7321, %v7305
    %v7354 = vpack.c.b16 %v7322, %v7306
    %v7355 = vpack.c.b16 %v7323, %v7307
    %v7356 = vpack.c.b16 %v7324, %v7308
    %v7390 = vsel %vm211, %v7194, 0
    %7392 = vmatpush.bf16.msra.mxu0 0
    %7393 = vmatpush.bf16.msra.mxu0 0
    %7394 = vmatpush.bf16.msra.mxu0 0
    %7395 = vmatpush.bf16.msra.mxu0 0
    %7396 = vmatpush.bf16.msra.mxu0 0
    %7397 = vmatpush.bf16.msra.mxu0 0
    %7398 = vmatpush.bf16.msra.mxu0 %v7341
    %7399 = vmatpush.bf16.msra.mxu0 %v7325
    %7400 = vmatmul.bf16.gmra.mxu0 %v7390
    %v7401 = vpop.f32.mrf.mxu0
    %v7402 = vadd.f32 %v7197, %v7401
    %v7403 = vpop.f32.mrf.mxu0
    %7404 = vdwg.mxu0
    %7405 = vmatpush.bf16.msra.mxu0 0
    %7406 = vmatpush.bf16.msra.mxu0 0
    %7407 = vmatpush.bf16.msra.mxu0 0
    %7408 = vmatpush.bf16.msra.mxu0 0
    %7409 = vmatpush.bf16.msra.mxu0 0
    %7410 = vmatpush.bf16.msra.mxu0 0
    %7411 = vmatpush.bf16.msra.mxu0 %v7342
    %7412 = vmatpush.bf16.msra.mxu0 %v7326
    %7413 = vmatmul.bf16.gmra.mxu0 %v7390
    %v7414 = vpop.f32.mrf.mxu0
    %v7415 = vadd.f32 %v7198, %v7414
    %v7416 = vpop.f32.mrf.mxu0
    %7417 = vdwg.mxu0
    %7418 = vmatpush.bf16.msra.mxu0 0
    %7419 = vmatpush.bf16.msra.mxu0 0
    %7420 = vmatpush.bf16.msra.mxu0 0
    %7421 = vmatpush.bf16.msra.mxu0 0
    %7422 = vmatpush.bf16.msra.mxu0 0
    %7423 = vmatpush.bf16.msra.mxu0 0
    %7424 = vmatpush.bf16.msra.mxu0 %v7343
    %7425 = vmatpush.bf16.msra.mxu0 %v7327
    %7426 = vmatmul.bf16.gmra.mxu0 %v7390
    %v7427 = vpop.f32.mrf.mxu0
    %v7428 = vadd.f32 %v7199, %v7427
    %v7429 = vpop.f32.mrf.mxu0
    %7430 = vdwg.mxu0
    %7431 = vmatpush.bf16.msra.mxu0 0
    %7432 = vmatpush.bf16.msra.mxu0 0
    %7433 = vmatpush.bf16.msra.mxu0 0
    %7434 = vmatpush.bf16.msra.mxu0 0
    %7435 = vmatpush.bf16.msra.mxu0 0
    %7436 = vmatpush.bf16.msra.mxu0 0
    %7437 = vmatpush.bf16.msra.mxu0 %v7344
    %7438 = vmatpush.bf16.msra.mxu0 %v7328
    %7439 = vmatmul.bf16.gmra.mxu0 %v7390
    %v7440 = vpop.f32.mrf.mxu0
    %v7441 = vadd.f32 %v7200, %v7440
    %v7442 = vpop.f32.mrf.mxu0
    %7443 = vdwg.mxu0
    %7444 = vmatpush.bf16.msra.mxu0 0
    %7445 = vmatpush.bf16.msra.mxu0 0
    %7446 = vmatpush.bf16.msra.mxu0 0
    %7447 = vmatpush.bf16.msra.mxu0 0
    %7448 = vmatpush.bf16.msra.mxu0 0
    %7449 = vmatpush.bf16.msra.mxu0 0
    %7450 = vmatpush.bf16.msra.mxu0 %v7345
    %7451 = vmatpush.bf16.msra.mxu0 %v7329
    %7452 = vmatmul.bf16.gmra.mxu0 %v7390
    %v7453 = vpop.f32.mrf.mxu0
    %v7454 = vadd.f32 %v7201, %v7453
    %v7455 = vpop.f32.mrf.mxu0
    %7456 = vdwg.mxu0
    %7457 = vmatpush.bf16.msra.mxu0 0
    %7458 = vmatpush.bf16.msra.mxu0 0
    %7459 = vmatpush.bf16.msra.mxu0 0
    %7460 = vmatpush.bf16.msra.mxu0 0
    %7461 = vmatpush.bf16.msra.mxu0 0
    %7462 = vmatpush.bf16.msra.mxu0 0
    %7463 = vmatpush.bf16.msra.mxu0 %v7346
    %7464 = vmatpush.bf16.msra.mxu0 %v7330
    %7465 = vmatmul.bf16.gmra.mxu0 %v7390
    %v7466 = vpop.f32.mrf.mxu0
    %v7467 = vadd.f32 %v7202, %v7466
    %v7468 = vpop.f32.mrf.mxu0
    %7469 = vdwg.mxu0
    %7470 = vmatpush.bf16.msra.mxu0 0
    %7471 = vmatpush.bf16.msra.mxu0 0
    %7472 = vmatpush.bf16.msra.mxu0 0
    %7473 = vmatpush.bf16.msra.mxu0 0
    %7474 = vmatpush.bf16.msra.mxu0 0
    %7475 = vmatpush.bf16.msra.mxu0 0
    %7476 = vmatpush.bf16.msra.mxu0 %v7347
    %7477 = vmatpush.bf16.msra.mxu0 %v7331
    %7478 = vmatmul.bf16.gmra.mxu0 %v7390
    %v7479 = vpop.f32.mrf.mxu0
    %v7480 = vadd.f32 %v7203, %v7479
    %v7481 = vpop.f32.mrf.mxu0
    %7482 = vdwg.mxu0
    %7483 = vmatpush.bf16.msra.mxu0 0
    %7484 = vmatpush.bf16.msra.mxu0 0
    %7485 = vmatpush.bf16.msra.mxu0 0
    %7486 = vmatpush.bf16.msra.mxu0 0
    %7487 = vmatpush.bf16.msra.mxu0 0
    %7488 = vmatpush.bf16.msra.mxu0 0
    %7489 = vmatpush.bf16.msra.mxu0 %v7348
    %7490 = vmatpush.bf16.msra.mxu0 %v7332
    %7491 = vmatmul.bf16.gmra.mxu0 %v7390
    %v7492 = vpop.f32.mrf.mxu0
    %v7493 = vadd.f32 %v7204, %v7492
    %v7494 = vpop.f32.mrf.mxu0
    %7495 = vdwg.mxu0
    %7496 = vmatpush.bf16.msra.mxu0 0
    %7497 = vmatpush.bf16.msra.mxu0 0
    %7498 = vmatpush.bf16.msra.mxu0 0
    %7499 = vmatpush.bf16.msra.mxu0 0
    %7500 = vmatpush.bf16.msra.mxu0 0
    %7501 = vmatpush.bf16.msra.mxu0 0
    %7502 = vmatpush.bf16.msra.mxu0 %v7349
    %7503 = vmatpush.bf16.msra.mxu0 %v7333
    %7504 = vmatmul.bf16.gmra.mxu0 %v7390
    %v7505 = vpop.f32.mrf.mxu0
    %v7506 = vadd.f32 %v7205, %v7505
    %v7507 = vpop.f32.mrf.mxu0
    %7508 = vdwg.mxu0
    %7509 = vmatpush.bf16.msra.mxu0 0
    %7510 = vmatpush.bf16.msra.mxu0 0
    %7511 = vmatpush.bf16.msra.mxu0 0
    %7512 = vmatpush.bf16.msra.mxu0 0
    %7513 = vmatpush.bf16.msra.mxu0 0
    %7514 = vmatpush.bf16.msra.mxu0 0
    %7515 = vmatpush.bf16.msra.mxu0 %v7350
    %7516 = vmatpush.bf16.msra.mxu0 %v7334
    %7517 = vmatmul.bf16.gmra.mxu0 %v7390
    %v7518 = vpop.f32.mrf.mxu0
    %v7519 = vadd.f32 %v7206, %v7518
    %v7520 = vpop.f32.mrf.mxu0
    %7521 = vdwg.mxu0
    %7522 = vmatpush.bf16.msra.mxu0 0
    %7523 = vmatpush.bf16.msra.mxu0 0
    %7524 = vmatpush.bf16.msra.mxu0 0
    %7525 = vmatpush.bf16.msra.mxu0 0
    %7526 = vmatpush.bf16.msra.mxu0 0
    %7527 = vmatpush.bf16.msra.mxu0 0
    %7528 = vmatpush.bf16.msra.mxu0 %v7351
    %7529 = vmatpush.bf16.msra.mxu0 %v7335
    %7530 = vmatmul.bf16.gmra.mxu0 %v7390
    %v7531 = vpop.f32.mrf.mxu0
    %v7532 = vadd.f32 %v7207, %v7531
    %v7533 = vpop.f32.mrf.mxu0
    %7534 = vdwg.mxu0
    %7535 = vmatpush.bf16.msra.mxu0 0
    %7536 = vmatpush.bf16.msra.mxu0 0
    %7537 = vmatpush.bf16.msra.mxu0 0
    %7538 = vmatpush.bf16.msra.mxu0 0
    %7539 = vmatpush.bf16.msra.mxu0 0
    %7540 = vmatpush.bf16.msra.mxu0 0
    %7541 = vmatpush.bf16.msra.mxu0 %v7352
    %7542 = vmatpush.bf16.msra.mxu0 %v7336
    %7543 = vmatmul.bf16.gmra.mxu0 %v7390
    %v7544 = vpop.f32.mrf.mxu0
    %v7545 = vadd.f32 %v7208, %v7544
    %v7546 = vpop.f32.mrf.mxu0
    %7547 = vdwg.mxu0
    %7548 = vmatpush.bf16.msra.mxu0 0
    %7549 = vmatpush.bf16.msra.mxu0 0
    %7550 = vmatpush.bf16.msra.mxu0 0
    %7551 = vmatpush.bf16.msra.mxu0 0
    %7552 = vmatpush.bf16.msra.mxu0 0
    %7553 = vmatpush.bf16.msra.mxu0 0
    %7554 = vmatpush.bf16.msra.mxu0 %v7353
    %7555 = vmatpush.bf16.msra.mxu0 %v7337
    %7556 = vmatmul.bf16.gmra.mxu0 %v7390
    %v7557 = vpop.f32.mrf.mxu0
    %v7558 = vadd.f32 %v7209, %v7557
    %v7559 = vpop.f32.mrf.mxu0
    %7560 = vdwg.mxu0
    %7561 = vmatpush.bf16.msra.mxu0 0
    %7562 = vmatpush.bf16.msra.mxu0 0
    %7563 = vmatpush.bf16.msra.mxu0 0
    %7564 = vmatpush.bf16.msra.mxu0 0
    %7565 = vmatpush.bf16.msra.mxu0 0
    %7566 = vmatpush.bf16.msra.mxu0 0
    %7567 = vmatpush.bf16.msra.mxu0 %v7354
    %7568 = vmatpush.bf16.msra.mxu0 %v7338
    %7569 = vmatmul.bf16.gmra.mxu0 %v7390
    %v7570 = vpop.f32.mrf.mxu0
    %v7571 = vadd.f32 %v7210, %v7570
    %v7572 = vpop.f32.mrf.mxu0
    %7573 = vdwg.mxu0
    %7574 = vmatpush.bf16.msra.mxu0 0
    %7575 = vmatpush.bf16.msra.mxu0 0
    %7576 = vmatpush.bf16.msra.mxu0 0
    %7577 = vmatpush.bf16.msra.mxu0 0
    %7578 = vmatpush.bf16.msra.mxu0 0
    %7579 = vmatpush.bf16.msra.mxu0 0
    %7580 = vmatpush.bf16.msra.mxu0 %v7355
    %7581 = vmatpush.bf16.msra.mxu0 %v7339
    %7582 = vmatmul.bf16.gmra.mxu0 %v7390
    %v7583 = vpop.f32.mrf.mxu0
    %v7584 = vadd.f32 %v7211, %v7583
    %v7585 = vpop.f32.mrf.mxu0
    %7586 = vdwg.mxu0
    %7587 = vmatpush.bf16.msra.mxu0 0
    %7588 = vmatpush.bf16.msra.mxu0 0
    %7589 = vmatpush.bf16.msra.mxu0 0
    %7590 = vmatpush.bf16.msra.mxu0 0
    %7591 = vmatpush.bf16.msra.mxu0 0
    %7592 = vmatpush.bf16.msra.mxu0 0
    %7593 = vmatpush.bf16.msra.mxu0 %v7356
    %7594 = vmatpush.bf16.msra.mxu0 %v7340
    %7595 = vmatmul.bf16.gmra.mxu0 %v7390
    %v7596 = vpop.f32.mrf.mxu0
    %v7597 = vadd.f32 %v7212, %v7596
    %v7598 = vpop.f32.mrf.mxu0
    %7599 = vdwg.mxu0
    %v7600 = vmax.f32 %v7402, 0.0
    %v7601 = vmax.f32 %v7415, 0.0
    %v7602 = vmax.f32 %v7428, 0.0
    %v7603 = vmax.f32 %v7441, 0.0
    %v7604 = vmax.f32 %v7454, 0.0
    %v7605 = vmax.f32 %v7467, 0.0
    %v7606 = vmax.f32 %v7480, 0.0
    %v7607 = vmax.f32 %v7493, 0.0
    %v7608 = vmax.f32 %v7506, 0.0
    %v7609 = vmax.f32 %v7519, 0.0
    %v7610 = vmax.f32 %v7532, 0.0
    %v7611 = vmax.f32 %v7545, 0.0
    %v7612 = vmax.f32 %v7558, 0.0
    %v7613 = vmax.f32 %v7571, 0.0
    %v7614 = vmax.f32 %v7584, 0.0
    %v7615 = vmax.f32 %v7597, 0.0
    %v7616 = vpack.c.bf16 %v7600, %v7600
    %v7617 = vpack.c.bf16 %v7601, %v7601
    %v7618 = vpack.c.bf16 %v7602, %v7602
    %v7619 = vpack.c.bf16 %v7603, %v7603
    %v7620 = vpack.c.bf16 %v7604, %v7604
    %v7621 = vpack.c.bf16 %v7605, %v7605
    %v7622 = vpack.c.bf16 %v7606, %v7606
    %v7623 = vpack.c.bf16 %v7607, %v7607
    %v7624 = vpack.c.bf16 %v7608, %v7608
    %v7625 = vpack.c.bf16 %v7609, %v7609
    %v7626 = vpack.c.bf16 %v7610, %v7610
    %v7627 = vpack.c.bf16 %v7611, %v7611
    %v7628 = vpack.c.bf16 %v7612, %v7612
    %v7629 = vpack.c.bf16 %v7613, %v7613
    %v7630 = vpack.c.bf16 %v7614, %v7614
    %v7631 = vpack.c.bf16 %v7615, %v7615
    %v7633 = vperm.slane %v7193, 0
    %7635 = vrot.lane.b32.xlu0 %v1931, 32
    %v7636 = vpop.permute.xlu0 %7635
    %7637 = vrot.lane.b32.xlu0 %v1932, 32
    %v7638 = vpop.permute.xlu0 %7637
    %7639 = vrot.lane.b32.xlu0 %v1933, 32
    %v7640 = vpop.permute.xlu0 %7639
    %7641 = vrot.lane.b32.xlu0 %v1934, 32
    %v7642 = vpop.permute.xlu0 %7641
    %7643 = vrot.lane.b32.xlu0 %v1935, 32
    %v7644 = vpop.permute.xlu0 %7643
    %7645 = vrot.lane.b32.xlu0 %v1936, 32
    %v7646 = vpop.permute.xlu0 %7645
    %7647 = vrot.lane.b32.xlu0 %v1937, 32
    %v7648 = vpop.permute.xlu0 %7647
    %7649 = vrot.lane.b32.xlu0 %v1938, 32
    %v7650 = vpop.permute.xlu0 %7649
    %7651 = vrot.lane.b32.xlu0 %v1939, 32
    %v7652 = vpop.permute.xlu0 %7651
    %7653 = vrot.lane.b32.xlu0 %v1940, 32
    %v7654 = vpop.permute.xlu0 %7653
    %7655 = vrot.lane.b32.xlu0 %v1941, 32
    %v7656 = vpop.permute.xlu0 %7655
    %7657 = vrot.lane.b32.xlu0 %v1942, 32
    %v7658 = vpop.permute.xlu0 %7657
    %7659 = vrot.lane.b32.xlu0 %v1943, 32
    %v7660 = vpop.permute.xlu0 %7659
    %7661 = vrot.lane.b32.xlu0 %v1944, 32
    %v7662 = vpop.permute.xlu0 %7661
    %7663 = vrot.lane.b32.xlu0 %v1945, 32
    %v7664 = vpop.permute.xlu0 %7663
    %7665 = vrot.lane.b32.xlu0 %v1946, 32
    %v7666 = vpop.permute.xlu0 %7665
    %7667 = vrot.lane.b32.xlu0 %v1947, 32
    %v7668 = vpop.permute.xlu0 %7667
    %7669 = vrot.lane.b32.xlu0 %v1948, 32
    %v7670 = vpop.permute.xlu0 %7669
    %7671 = vrot.lane.b32.xlu0 %v1949, 32
    %v7672 = vpop.permute.xlu0 %7671
    %7673 = vrot.lane.b32.xlu0 %v1950, 32
    %v7674 = vpop.permute.xlu0 %7673
    %7675 = vrot.lane.b32.xlu0 %v1951, 32
    %v7676 = vpop.permute.xlu0 %7675
    %7677 = vrot.lane.b32.xlu0 %v1952, 32
    %v7678 = vpop.permute.xlu0 %7677
    %7679 = vrot.lane.b32.xlu0 %v1953, 32
    %v7680 = vpop.permute.xlu0 %7679
    %7681 = vrot.lane.b32.xlu0 %v1954, 32
    %v7682 = vpop.permute.xlu0 %7681
    %7683 = vrot.lane.b32.xlu0 %v1955, 32
    %v7684 = vpop.permute.xlu0 %7683
    %7685 = vrot.lane.b32.xlu0 %v1956, 32
    %v7686 = vpop.permute.xlu0 %7685
    %7687 = vrot.lane.b32.xlu0 %v1957, 32
    %v7688 = vpop.permute.xlu0 %7687
    %7689 = vrot.lane.b32.xlu0 %v1958, 32
    %v7690 = vpop.permute.xlu0 %7689
    %7691 = vrot.lane.b32.xlu0 %v1959, 32
    %v7692 = vpop.permute.xlu0 %7691
    %7693 = vrot.lane.b32.xlu0 %v1960, 32
    %v7694 = vpop.permute.xlu0 %7693
    %7695 = vrot.lane.b32.xlu0 %v1961, 32
    %v7696 = vpop.permute.xlu0 %7695
    %7697 = vrot.lane.b32.xlu0 %v1962, 32
    %v7698 = vpop.permute.xlu0 %7697
    %7699 = vrot.lane.b32.xlu0 %v1963, 32
    %v7700 = vpop.permute.xlu0 %7699
    %7701 = vrot.lane.b32.xlu0 %v1964, 32
    %v7702 = vpop.permute.xlu0 %7701
    %7703 = vrot.lane.b32.xlu0 %v1965, 32
    %v7704 = vpop.permute.xlu0 %7703
    %7705 = vrot.lane.b32.xlu0 %v1966, 32
    %v7706 = vpop.permute.xlu0 %7705
    %7707 = vrot.lane.b32.xlu0 %v1967, 32
    %v7708 = vpop.permute.xlu0 %7707
    %7709 = vrot.lane.b32.xlu0 %v1968, 32
    %v7710 = vpop.permute.xlu0 %7709
    %7711 = vrot.lane.b32.xlu0 %v1969, 32
    %v7712 = vpop.permute.xlu0 %7711
    %7713 = vrot.lane.b32.xlu0 %v1970, 32
    %v7714 = vpop.permute.xlu0 %7713
    %7715 = vrot.lane.b32.xlu0 %v1971, 32
    %v7716 = vpop.permute.xlu0 %7715
    %7717 = vrot.lane.b32.xlu0 %v1972, 32
    %v7718 = vpop.permute.xlu0 %7717
    %7719 = vrot.lane.b32.xlu0 %v1973, 32
    %v7720 = vpop.permute.xlu0 %7719
    %7721 = vrot.lane.b32.xlu0 %v1974, 32
    %v7722 = vpop.permute.xlu0 %7721
    %7723 = vrot.lane.b32.xlu0 %v1975, 32
    %v7724 = vpop.permute.xlu0 %7723
    %7725 = vrot.lane.b32.xlu0 %v1976, 32
    %v7726 = vpop.permute.xlu0 %7725
    %7727 = vrot.lane.b32.xlu0 %v1977, 32
    %v7728 = vpop.permute.xlu0 %7727
    %7729 = vrot.lane.b32.xlu0 %v1978, 32
    %v7730 = vpop.permute.xlu0 %7729
    %7731 = vrot.lane.b32.xlu0 %v1979, 32
    %v7732 = vpop.permute.xlu0 %7731
    %7733 = vrot.lane.b32.xlu0 %v1980, 32
    %v7734 = vpop.permute.xlu0 %7733
    %7735 = vrot.lane.b32.xlu0 %v1981, 32
    %v7736 = vpop.permute.xlu0 %7735
    %7737 = vrot.lane.b32.xlu0 %v1982, 32
    %v7738 = vpop.permute.xlu0 %7737
    %7739 = vrot.lane.b32.xlu0 %v1983, 32
    %v7740 = vpop.permute.xlu0 %7739
    %7741 = vrot.lane.b32.xlu0 %v1984, 32
    %v7742 = vpop.permute.xlu0 %7741
    %7743 = vrot.lane.b32.xlu0 %v1985, 32
    %v7744 = vpop.permute.xlu0 %7743
    %7745 = vrot.lane.b32.xlu0 %v1986, 32
    %v7746 = vpop.permute.xlu0 %7745
    %7747 = vrot.lane.b32.xlu0 %v1987, 32
    %v7748 = vpop.permute.xlu0 %7747
    %7749 = vrot.lane.b32.xlu0 %v1988, 32
    %v7750 = vpop.permute.xlu0 %7749
    %7751 = vrot.lane.b32.xlu0 %v1989, 32
    %v7752 = vpop.permute.xlu0 %7751
    %7753 = vrot.lane.b32.xlu0 %v1990, 32
    %v7754 = vpop.permute.xlu0 %7753
    %7755 = vrot.lane.b32.xlu0 %v1991, 32
    %v7756 = vpop.permute.xlu0 %7755
    %7757 = vrot.lane.b32.xlu0 %v1992, 32
    %v7758 = vpop.permute.xlu0 %7757
    %7759 = vrot.lane.b32.xlu0 %v1993, 32
    %v7760 = vpop.permute.xlu0 %7759
    %7761 = vrot.lane.b32.xlu0 %v1994, 32
    %v7762 = vpop.permute.xlu0 %7761
    %7763 = vrot.lane.b32.xlu0 %v1995, 32
    %v7764 = vpop.permute.xlu0 %7763
    %7765 = vrot.lane.b32.xlu0 %v1996, 32
    %v7766 = vpop.permute.xlu0 %7765
    %7767 = vrot.lane.b32.xlu0 %v1997, 32
    %v7768 = vpop.permute.xlu0 %7767
    %7769 = vrot.lane.b32.xlu0 %v1998, 32
    %v7770 = vpop.permute.xlu0 %7769
    %7771 = vrot.lane.b32.xlu0 %v1999, 32
    %v7772 = vpop.permute.xlu0 %7771
    %7773 = vrot.lane.b32.xlu0 %v2000, 32
    %v7774 = vpop.permute.xlu0 %7773
    %7775 = vrot.lane.b32.xlu0 %v2001, 32
    %v7776 = vpop.permute.xlu0 %7775
    %7777 = vrot.lane.b32.xlu0 %v2002, 32
    %v7778 = vpop.permute.xlu0 %7777
    %7779 = vrot.lane.b32.xlu0 %v2003, 32
    %v7780 = vpop.permute.xlu0 %7779
    %7781 = vrot.lane.b32.xlu0 %v2004, 32
    %v7782 = vpop.permute.xlu0 %7781
    %7783 = vrot.lane.b32.xlu0 %v2005, 32
    %v7784 = vpop.permute.xlu0 %7783
    %7785 = vrot.lane.b32.xlu0 %v2006, 32
    %v7786 = vpop.permute.xlu0 %7785
    %7787 = vrot.lane.b32.xlu0 %v2007, 32
    %v7788 = vpop.permute.xlu0 %7787
    %7789 = vrot.lane.b32.xlu0 %v2008, 32
    %v7790 = vpop.permute.xlu0 %7789
    %7791 = vrot.lane.b32.xlu0 %v2009, 32
    %v7792 = vpop.permute.xlu0 %7791
    %7793 = vrot.lane.b32.xlu0 %v2010, 32
    %v7794 = vpop.permute.xlu0 %7793
    %7795 = vrot.lane.b32.xlu0 %v2011, 32
    %v7796 = vpop.permute.xlu0 %7795
    %7797 = vrot.lane.b32.xlu0 %v2012, 32
    %v7798 = vpop.permute.xlu0 %7797
    %7799 = vrot.lane.b32.xlu0 %v2013, 32
    %v7800 = vpop.permute.xlu0 %7799
    %7801 = vrot.lane.b32.xlu0 %v2014, 32
    %v7802 = vpop.permute.xlu0 %7801
    %7803 = vrot.lane.b32.xlu0 %v2015, 32
    %v7804 = vpop.permute.xlu0 %7803
    %7805 = vrot.lane.b32.xlu0 %v2016, 32
    %v7806 = vpop.permute.xlu0 %7805
    %7807 = vrot.lane.b32.xlu0 %v2017, 32
    %v7808 = vpop.permute.xlu0 %7807
    %7809 = vrot.lane.b32.xlu0 %v2018, 32
    %v7810 = vpop.permute.xlu0 %7809
    %7811 = vrot.lane.b32.xlu0 %v2019, 32
    %v7812 = vpop.permute.xlu0 %7811
    %7813 = vrot.lane.b32.xlu0 %v2020, 32
    %v7814 = vpop.permute.xlu0 %7813
    %7815 = vrot.lane.b32.xlu0 %v2021, 32
    %v7816 = vpop.permute.xlu0 %7815
    %7817 = vrot.lane.b32.xlu0 %v2022, 32
    %v7818 = vpop.permute.xlu0 %7817
    %7819 = vrot.lane.b32.xlu0 %v2023, 32
    %v7820 = vpop.permute.xlu0 %7819
    %7821 = vrot.lane.b32.xlu0 %v2024, 32
    %v7822 = vpop.permute.xlu0 %7821
    %7823 = vrot.lane.b32.xlu0 %v2025, 32
    %v7824 = vpop.permute.xlu0 %7823
    %7825 = vrot.lane.b32.xlu0 %v2026, 32
    %v7826 = vpop.permute.xlu0 %7825
    %7827 = vrot.lane.b32.xlu0 %v2027, 32
    %v7828 = vpop.permute.xlu0 %7827
    %7829 = vrot.lane.b32.xlu0 %v2028, 32
    %v7830 = vpop.permute.xlu0 %7829
    %7831 = vrot.lane.b32.xlu0 %v2029, 32
    %v7832 = vpop.permute.xlu0 %7831
    %7833 = vrot.lane.b32.xlu0 %v2030, 32
    %v7834 = vpop.permute.xlu0 %7833
    %7835 = vrot.lane.b32.xlu0 %v2031, 32
    %v7836 = vpop.permute.xlu0 %7835
    %7837 = vrot.lane.b32.xlu0 %v2032, 32
    %v7838 = vpop.permute.xlu0 %7837
    %7839 = vrot.lane.b32.xlu0 %v2033, 32
    %v7840 = vpop.permute.xlu0 %7839
    %7841 = vrot.lane.b32.xlu0 %v2034, 32
    %v7842 = vpop.permute.xlu0 %7841
    %7843 = vrot.lane.b32.xlu0 %v2035, 32
    %v7844 = vpop.permute.xlu0 %7843
    %7845 = vrot.lane.b32.xlu0 %v2036, 32
    %v7846 = vpop.permute.xlu0 %7845
    %7847 = vrot.lane.b32.xlu0 %v2037, 32
    %v7848 = vpop.permute.xlu0 %7847
    %7849 = vrot.lane.b32.xlu0 %v2038, 32
    %v7850 = vpop.permute.xlu0 %7849
    %7851 = vrot.lane.b32.xlu0 %v2039, 32
    %v7852 = vpop.permute.xlu0 %7851
    %7853 = vrot.lane.b32.xlu0 %v2040, 32
    %v7854 = vpop.permute.xlu0 %7853
    %7855 = vrot.lane.b32.xlu0 %v2041, 32
    %v7856 = vpop.permute.xlu0 %7855
    %7857 = vrot.lane.b32.xlu0 %v2042, 32
    %v7858 = vpop.permute.xlu0 %7857
    %7859 = vrot.lane.b32.xlu0 %v2043, 32
    %v7860 = vpop.permute.xlu0 %7859
    %7861 = vrot.lane.b32.xlu0 %v2044, 32
    %v7862 = vpop.permute.xlu0 %7861
    %7863 = vrot.lane.b32.xlu0 %v2045, 32
    %v7864 = vpop.permute.xlu0 %7863
    %7865 = vrot.lane.b32.xlu0 %v2046, 32
    %v7866 = vpop.permute.xlu0 %7865
    %7867 = vrot.lane.b32.xlu0 %v2047, 32
    %v7868 = vpop.permute.xlu0 %7867
    %7869 = vrot.lane.b32.xlu0 %v2048, 32
    %v7870 = vpop.permute.xlu0 %7869
    %7871 = vrot.lane.b32.xlu0 %v2049, 32
    %v7872 = vpop.permute.xlu0 %7871
    %7873 = vrot.lane.b32.xlu0 %v2050, 32
    %v7874 = vpop.permute.xlu0 %7873
    %7875 = vrot.lane.b32.xlu0 %v2051, 32
    %v7876 = vpop.permute.xlu0 %7875
    %7877 = vrot.lane.b32.xlu0 %v2052, 32
    %v7878 = vpop.permute.xlu0 %7877
    %7879 = vrot.lane.b32.xlu0 %v2053, 32
    %v7880 = vpop.permute.xlu0 %7879
    %7881 = vrot.lane.b32.xlu0 %v2054, 32
    %v7882 = vpop.permute.xlu0 %7881
    %7883 = vrot.lane.b32.xlu0 %v2055, 32
    %v7884 = vpop.permute.xlu0 %7883
    %7885 = vrot.lane.b32.xlu0 %v2056, 32
    %v7886 = vpop.permute.xlu0 %7885
    %7887 = vrot.lane.b32.xlu0 %v2057, 32
    %v7888 = vpop.permute.xlu0 %7887
    %7889 = vrot.lane.b32.xlu0 %v2058, 32
    %v7890 = vpop.permute.xlu0 %7889
    %8019 = vmatpush.bf16.msra.mxu0 %v7650
    %8020 = vmatpush.bf16.msra.mxu0 %v7648
    %8021 = vmatpush.bf16.msra.mxu0 %v7646
    %8022 = vmatpush.bf16.msra.mxu0 %v7644
    %8023 = vmatpush.bf16.msra.mxu0 %v7642
    %8024 = vmatpush.bf16.msra.mxu0 %v7640
    %8025 = vmatpush.bf16.msra.mxu0 %v7638
    %8026 = vmatpush.bf16.msra.mxu0 %v7636
    %8027 = vmatmul.bf16.gmra.mxu0 %v7616
    %v8028 = vpop.f32.mrf.mxu0
    %v8029 = vadd.f32 %v7633, %v8028
    %v8030 = vpop.f32.mrf.mxu0
    %8031 = vdwg.mxu0
    %8032 = vmatpush.bf16.msra.mxu0 %v7666
    %8033 = vmatpush.bf16.msra.mxu0 %v7664
    %8034 = vmatpush.bf16.msra.mxu0 %v7662
    %8035 = vmatpush.bf16.msra.mxu0 %v7660
    %8036 = vmatpush.bf16.msra.mxu0 %v7658
    %8037 = vmatpush.bf16.msra.mxu0 %v7656
    %8038 = vmatpush.bf16.msra.mxu0 %v7654
    %8039 = vmatpush.bf16.msra.mxu0 %v7652
    %8040 = vmatmul.bf16.gmra.mxu0 %v7617
    %v8041 = vpop.f32.mrf.mxu0
    %v8042 = vadd.f32 %v8029, %v8041
    %v8043 = vpop.f32.mrf.mxu0
    %8044 = vdwg.mxu0
    %8045 = vmatpush.bf16.msra.mxu0 %v7682
    %8046 = vmatpush.bf16.msra.mxu0 %v7680
    %8047 = vmatpush.bf16.msra.mxu0 %v7678
    %8048 = vmatpush.bf16.msra.mxu0 %v7676
    %8049 = vmatpush.bf16.msra.mxu0 %v7674
    %8050 = vmatpush.bf16.msra.mxu0 %v7672
    %8051 = vmatpush.bf16.msra.mxu0 %v7670
    %8052 = vmatpush.bf16.msra.mxu0 %v7668
    %8053 = vmatmul.bf16.gmra.mxu0 %v7618
    %v8054 = vpop.f32.mrf.mxu0
    %v8055 = vadd.f32 %v8042, %v8054
    %v8056 = vpop.f32.mrf.mxu0
    %8057 = vdwg.mxu0
    %8058 = vmatpush.bf16.msra.mxu0 %v7698
    %8059 = vmatpush.bf16.msra.mxu0 %v7696
    %8060 = vmatpush.bf16.msra.mxu0 %v7694
    %8061 = vmatpush.bf16.msra.mxu0 %v7692
    %8062 = vmatpush.bf16.msra.mxu0 %v7690
    %8063 = vmatpush.bf16.msra.mxu0 %v7688
    %8064 = vmatpush.bf16.msra.mxu0 %v7686
    %8065 = vmatpush.bf16.msra.mxu0 %v7684
    %8066 = vmatmul.bf16.gmra.mxu0 %v7619
    %v8067 = vpop.f32.mrf.mxu0
    %v8068 = vadd.f32 %v8055, %v8067
    %v8069 = vpop.f32.mrf.mxu0
    %8070 = vdwg.mxu0
    %8071 = vmatpush.bf16.msra.mxu0 %v7714
    %8072 = vmatpush.bf16.msra.mxu0 %v7712
    %8073 = vmatpush.bf16.msra.mxu0 %v7710
    %8074 = vmatpush.bf16.msra.mxu0 %v7708
    %8075 = vmatpush.bf16.msra.mxu0 %v7706
    %8076 = vmatpush.bf16.msra.mxu0 %v7704
    %8077 = vmatpush.bf16.msra.mxu0 %v7702
    %8078 = vmatpush.bf16.msra.mxu0 %v7700
    %8079 = vmatmul.bf16.gmra.mxu0 %v7620
    %v8080 = vpop.f32.mrf.mxu0
    %v8081 = vadd.f32 %v8068, %v8080
    %v8082 = vpop.f32.mrf.mxu0
    %8083 = vdwg.mxu0
    %8084 = vmatpush.bf16.msra.mxu0 %v7730
    %8085 = vmatpush.bf16.msra.mxu0 %v7728
    %8086 = vmatpush.bf16.msra.mxu0 %v7726
    %8087 = vmatpush.bf16.msra.mxu0 %v7724
    %8088 = vmatpush.bf16.msra.mxu0 %v7722
    %8089 = vmatpush.bf16.msra.mxu0 %v7720
    %8090 = vmatpush.bf16.msra.mxu0 %v7718
    %8091 = vmatpush.bf16.msra.mxu0 %v7716
    %8092 = vmatmul.bf16.gmra.mxu0 %v7621
    %v8093 = vpop.f32.mrf.mxu0
    %v8094 = vadd.f32 %v8081, %v8093
    %v8095 = vpop.f32.mrf.mxu0
    %8096 = vdwg.mxu0
    %8097 = vmatpush.bf16.msra.mxu0 %v7746
    %8098 = vmatpush.bf16.msra.mxu0 %v7744
    %8099 = vmatpush.bf16.msra.mxu0 %v7742
    %8100 = vmatpush.bf16.msra.mxu0 %v7740
    %8101 = vmatpush.bf16.msra.mxu0 %v7738
    %8102 = vmatpush.bf16.msra.mxu0 %v7736
    %8103 = vmatpush.bf16.msra.mxu0 %v7734
    %8104 = vmatpush.bf16.msra.mxu0 %v7732
    %8105 = vmatmul.bf16.gmra.mxu0 %v7622
    %v8106 = vpop.f32.mrf.mxu0
    %v8107 = vadd.f32 %v8094, %v8106
    %v8108 = vpop.f32.mrf.mxu0
    %8109 = vdwg.mxu0
    %8110 = vmatpush.bf16.msra.mxu0 %v7762
    %8111 = vmatpush.bf16.msra.mxu0 %v7760
    %8112 = vmatpush.bf16.msra.mxu0 %v7758
    %8113 = vmatpush.bf16.msra.mxu0 %v7756
    %8114 = vmatpush.bf16.msra.mxu0 %v7754
    %8115 = vmatpush.bf16.msra.mxu0 %v7752
    %8116 = vmatpush.bf16.msra.mxu0 %v7750
    %8117 = vmatpush.bf16.msra.mxu0 %v7748
    %8118 = vmatmul.bf16.gmra.mxu0 %v7623
    %v8119 = vpop.f32.mrf.mxu0
    %v8120 = vadd.f32 %v8107, %v8119
    %v8121 = vpop.f32.mrf.mxu0
    %8122 = vdwg.mxu0
    %8123 = vmatpush.bf16.msra.mxu0 %v7778
    %8124 = vmatpush.bf16.msra.mxu0 %v7776
    %8125 = vmatpush.bf16.msra.mxu0 %v7774
    %8126 = vmatpush.bf16.msra.mxu0 %v7772
    %8127 = vmatpush.bf16.msra.mxu0 %v7770
    %8128 = vmatpush.bf16.msra.mxu0 %v7768
    %8129 = vmatpush.bf16.msra.mxu0 %v7766
    %8130 = vmatpush.bf16.msra.mxu0 %v7764
    %8131 = vmatmul.bf16.gmra.mxu0 %v7624
    %v8132 = vpop.f32.mrf.mxu0
    %v8133 = vadd.f32 %v8120, %v8132
    %v8134 = vpop.f32.mrf.mxu0
    %8135 = vdwg.mxu0
    %8136 = vmatpush.bf16.msra.mxu0 %v7794
    %8137 = vmatpush.bf16.msra.mxu0 %v7792
    %8138 = vmatpush.bf16.msra.mxu0 %v7790
    %8139 = vmatpush.bf16.msra.mxu0 %v7788
    %8140 = vmatpush.bf16.msra.mxu0 %v7786
    %8141 = vmatpush.bf16.msra.mxu0 %v7784
    %8142 = vmatpush.bf16.msra.mxu0 %v7782
    %8143 = vmatpush.bf16.msra.mxu0 %v7780
    %8144 = vmatmul.bf16.gmra.mxu0 %v7625
    %v8145 = vpop.f32.mrf.mxu0
    %v8146 = vadd.f32 %v8133, %v8145
    %v8147 = vpop.f32.mrf.mxu0
    %8148 = vdwg.mxu0
    %8149 = vmatpush.bf16.msra.mxu0 %v7810
    %8150 = vmatpush.bf16.msra.mxu0 %v7808
    %8151 = vmatpush.bf16.msra.mxu0 %v7806
    %8152 = vmatpush.bf16.msra.mxu0 %v7804
    %8153 = vmatpush.bf16.msra.mxu0 %v7802
    %8154 = vmatpush.bf16.msra.mxu0 %v7800
    %8155 = vmatpush.bf16.msra.mxu0 %v7798
    %8156 = vmatpush.bf16.msra.mxu0 %v7796
    %8157 = vmatmul.bf16.gmra.mxu0 %v7626
    %v8158 = vpop.f32.mrf.mxu0
    %v8159 = vadd.f32 %v8146, %v8158
    %v8160 = vpop.f32.mrf.mxu0
    %8161 = vdwg.mxu0
    %8162 = vmatpush.bf16.msra.mxu0 %v7826
    %8163 = vmatpush.bf16.msra.mxu0 %v7824
    %8164 = vmatpush.bf16.msra.mxu0 %v7822
    %8165 = vmatpush.bf16.msra.mxu0 %v7820
    %8166 = vmatpush.bf16.msra.mxu0 %v7818
    %8167 = vmatpush.bf16.msra.mxu0 %v7816
    %8168 = vmatpush.bf16.msra.mxu0 %v7814
    %8169 = vmatpush.bf16.msra.mxu0 %v7812
    %8170 = vmatmul.bf16.gmra.mxu0 %v7627
    %v8171 = vpop.f32.mrf.mxu0
    %v8172 = vadd.f32 %v8159, %v8171
    %v8173 = vpop.f32.mrf.mxu0
    %8174 = vdwg.mxu0
    %8175 = vmatpush.bf16.msra.mxu0 %v7842
    %8176 = vmatpush.bf16.msra.mxu0 %v7840
    %8177 = vmatpush.bf16.msra.mxu0 %v7838
    %8178 = vmatpush.bf16.msra.mxu0 %v7836
    %8179 = vmatpush.bf16.msra.mxu0 %v7834
    %8180 = vmatpush.bf16.msra.mxu0 %v7832
    %8181 = vmatpush.bf16.msra.mxu0 %v7830
    %8182 = vmatpush.bf16.msra.mxu0 %v7828
    %8183 = vmatmul.bf16.gmra.mxu0 %v7628
    %v8184 = vpop.f32.mrf.mxu0
    %v8185 = vadd.f32 %v8172, %v8184
    %v8186 = vpop.f32.mrf.mxu0
    %8187 = vdwg.mxu0
    %8188 = vmatpush.bf16.msra.mxu0 %v7858
    %8189 = vmatpush.bf16.msra.mxu0 %v7856
    %8190 = vmatpush.bf16.msra.mxu0 %v7854
    %8191 = vmatpush.bf16.msra.mxu0 %v7852
    %8192 = vmatpush.bf16.msra.mxu0 %v7850
    %8193 = vmatpush.bf16.msra.mxu0 %v7848
    %8194 = vmatpush.bf16.msra.mxu0 %v7846
    %8195 = vmatpush.bf16.msra.mxu0 %v7844
    %8196 = vmatmul.bf16.gmra.mxu0 %v7629
    %v8197 = vpop.f32.mrf.mxu0
    %v8198 = vadd.f32 %v8185, %v8197
    %v8199 = vpop.f32.mrf.mxu0
    %8200 = vdwg.mxu0
    %8201 = vmatpush.bf16.msra.mxu0 %v7874
    %8202 = vmatpush.bf16.msra.mxu0 %v7872
    %8203 = vmatpush.bf16.msra.mxu0 %v7870
    %8204 = vmatpush.bf16.msra.mxu0 %v7868
    %8205 = vmatpush.bf16.msra.mxu0 %v7866
    %8206 = vmatpush.bf16.msra.mxu0 %v7864
    %8207 = vmatpush.bf16.msra.mxu0 %v7862
    %8208 = vmatpush.bf16.msra.mxu0 %v7860
    %8209 = vmatmul.bf16.gmra.mxu0 %v7630
    %v8210 = vpop.f32.mrf.mxu0
    %v8211 = vadd.f32 %v8198, %v8210
    %v8212 = vpop.f32.mrf.mxu0
    %8213 = vdwg.mxu0
    %8214 = vmatpush.bf16.msra.mxu0 %v7890
    %8215 = vmatpush.bf16.msra.mxu0 %v7888
    %8216 = vmatpush.bf16.msra.mxu0 %v7886
    %8217 = vmatpush.bf16.msra.mxu0 %v7884
    %8218 = vmatpush.bf16.msra.mxu0 %v7882
    %8219 = vmatpush.bf16.msra.mxu0 %v7880
    %8220 = vmatpush.bf16.msra.mxu0 %v7878
    %8221 = vmatpush.bf16.msra.mxu0 %v7876
    %8222 = vmatmul.bf16.gmra.mxu0 %v7631
    %v8223 = vpop.f32.mrf.mxu0
    %v8224 = vadd.f32 %v8211, %v8223
    %v8225 = vpop.f32.mrf.mxu0
    %8226 = vdwg.mxu0
    %v8227 = vadd.f32 %v7155, %v8224
    %v8228 = vld [vmem:[#allocation16 + $0xa] sm:$0x1]
    %v8229 = vld [vmem:[#allocation17 + $0xa] sm:$0x1]
    %v8230 = vsel %vm211, %v8227, 0.0
    %8231 = vadd.xlane.f32.xlu0 %v8230
    %v8232 = vpop.xlane.xlu0 %8231
    %v8233 = vmul.f32 %v8232, %v661
    %v8234 = vmul.f32 %v8227, %v8227
    %v8235 = vsel %vm211, %v8234, 0.0
    %8236 = vadd.xlane.f32.xlu0 %v8235
    %v8237 = vpop.xlane.xlu0 %8236
    %v8238 = vmul.f32 %v8237, %v661
    %v8239 = vmul.f32 %v8233, %v8233
    %v8240 = vsub.f32 %v8238, %v8239
    %v8241 = vsub.f32 %v8227, %v8233
    %v8242 = vadd.f32 %v8240, 1e-05
    %v8243 = vrsqrt.pop %v8242
    %v8244 = vmul.f32 %v8243, %v8242
    %v8245 = vmul.f32 %v8244, %v8243
    %v8246 = vmul.f32 0.5, %v8245
    %v8247 = vsub.f32 1.5, %v8246
    %v8248 = vmul.f32 %v8243, %v8247
    %vm8249 = vweird.f32 %v8242
    %vm8250 = vweird.f32 %v8243
    %vm8251 = vmor %vm8249, %vm8250
    %v8252 = vsel %vm8251, %v8243, %v8248
    %v8253 = vmul.f32 %v8241, %v8252
    %v8254 = vperm.slane %v8228, 0
    %v8255 = vmul.f32 %v8253, %v8254
    %v8256 = vperm.slane %v8229, 0
    %v8257 = vadd.f32 %v8255, %v8256
    %v8258 = vld [vmem:[#allocation16 + $0xb] sm:$0x1]
    %v8259 = vld [vmem:[#allocation17 + $0xb] sm:$0x1]
    %v8260 = vsel %vm211, %v8257, 0.0
    %8261 = vadd.xlane.f32.xlu0 %v8260
    %v8262 = vpop.xlane.xlu0 %8261
    %v8263 = vmul.f32 %v8262, %v661
    %v8264 = vmul.f32 %v8257, %v8257
    %v8265 = vsel %vm211, %v8264, 0.0
    %8266 = vadd.xlane.f32.xlu0 %v8265
    %v8267 = vpop.xlane.xlu0 %8266
    %v8268 = vmul.f32 %v8267, %v661
    %v8269 = vmul.f32 %v8263, %v8263
    %v8270 = vsub.f32 %v8268, %v8269
    %v8271 = vsub.f32 %v8257, %v8263
    %v8272 = vadd.f32 %v8270, 1e-05
    %v8273 = vrsqrt.pop %v8272
    %v8274 = vmul.f32 %v8273, %v8272
    %v8275 = vmul.f32 %v8274, %v8273
    %v8276 = vmul.f32 0.5, %v8275
    %v8277 = vsub.f32 1.5, %v8276
    %v8278 = vmul.f32 %v8273, %v8277
    %vm8279 = vweird.f32 %v8272
    %vm8280 = vweird.f32 %v8273
    %vm8281 = vmor %vm8279, %vm8280
    %v8282 = vsel %vm8281, %v8273, %v8278
    %v8283 = vmul.f32 %v8271, %v8282
    %v8284 = vperm.slane %v8258, 0
    %v8285 = vmul.f32 %v8283, %v8284
    %v8286 = vperm.slane %v8259, 0
    %v8287 = vadd.f32 %v8285, %v8286
    %8288 = vst.msk [vmem:[#allocation20] sm:$0xff] %vm211, %v8287
    %v8289 = vmul.f32 %v8287, %v8287
    %v8290 = vsel %vm211, %v8289, 0.0
    %8291 = vadd.xlane.f32.xlu0 %v8290
    %v8292 = vpop.xlane.xlu0 %8291
    %v8293 = vrsqrt.pop %v8292
    %v8294 = vmul.f32 %v8293, %v8292
    %v8295 = vmul.f32 %v8294, %v8293
    %v8296 = vmul.f32 0.5, %v8295
    %v8297 = vsub.f32 1.5, %v8296
    %v8298 = vmul.f32 %v8293, %v8297
    %vm8299 = vweird.f32 %v8292
    %vm8300 = vweird.f32 %v8293
    %vm8301 = vmor %vm8299, %vm8300
    %v8302 = vsel %vm8301, %v8293, %v8298
    %v8303 = vmul.f32 %v8287, %v8302
    %v8305 = vsel %vm211, %v8303, 0
    %8307 = vmatpush.xpose.msra.mxu0 0.0
    %8308 = vmatpush.xpose.msra.mxu0 0.0
    %8309 = vmatpush.xpose.msra.mxu0 0.0
    %8310 = vmatpush.xpose.msra.mxu0 0.0
    %8311 = vmatpush.xpose.msra.mxu0 0.0
    %8312 = vmatpush.xpose.msra.mxu0 0.0
    %8313 = vmatpush.xpose.msra.mxu0 0.0
    %8314 = vmatpush.xpose.msra.mxu0 0.0
    %8315 = vmatpush.xpose.msra.mxu0 0.0
    %8316 = vmatpush.xpose.msra.mxu0 0.0
    %8317 = vmatpush.xpose.msra.mxu0 0.0
    %8318 = vmatpush.xpose.msra.mxu0 0.0
    %8319 = vmatpush.xpose.msra.mxu0 0.0
    %8320 = vmatpush.xpose.msra.mxu0 0.0
    %8321 = vmatpush.xpose.msra.mxu0 0.0
    %8322 = vmatpush.xpose.msra.mxu0 %v8305
    %8323 = vmatmul.f32.gmra.mxu0 %v8305
    %v8324 = vpop.f32.mrf.mxu0
    %v8325 = vadd.f32 0.0, %v8324
    %8326 = vdwg.mxu0
    %8327 = vst.msk [vmem:[#allocation19] sm:$0xff] %vm238, %v8325
    // Predicated region
    $region86: #{my_transformer_forward.1} parent=1 // pred_check
      _
    $region87: #{my_transformer_forward.1} parent=1 // pred_check_branch
      %8329 = sbr.rel (0) target = $region89
    $region88: #{my_transformer_forward.1} parent=1 // pred_region
      %8331 = vsyncadd [#allocation4], 0
      %s8333 = sshll.u32 [#allocation19], 4
      %s8334 = int_to_ptr.vmem [resolvable:$true] %s8333
      %s8335 = sshll.u32 %s11, 4
      %s8336 = int_to_ptr.hbm [resolvable:$true] %s8335
      %8338 = dma.vmem_to_hbm [thread:$0]  %s8334, 128, %s8336, [#allocation4]
    $region89: #{my_transformer_forward.1} parent=1 // pred_fallthru
      _
    // Predicated region
    $region90: #{my_transformer_forward.1} parent=1 // pred_check
      _
    $region91: #{my_transformer_forward.1} parent=1 // pred_check_branch
      %8340 = sbr.rel (0) target = $region93
    $region92: #{my_transformer_forward.1} parent=1 // pred_region
      %8342 = vsyncadd [#allocation21], 0
      %s8344 = sshll.u32 [#allocation20], 4
      %s8345 = int_to_ptr.vmem [resolvable:$true] %s8344
      %s8346 = sshll.u32 %s12, 4
      %s8347 = int_to_ptr.hbm [resolvable:$true] %s8346
      %8349 = dma.vmem_to_hbm [thread:$0]  %s8345, 128, %s8347, [#allocation21]
    $region93: #{my_transformer_forward.1} parent=1 // pred_fallthru
      _
    // Predicated region
    $region94: #{my_transformer_forward.1} parent=1 // pred_check
      _
    $region95: #{my_transformer_forward.1} parent=1 // pred_check_branch
      %8351 = sbr.rel (0) target = $region97
    $region96: #{my_transformer_forward.1} parent=1 // pred_region
      %8353 = dma.done [#allocation4], 128
    $region97: #{my_transformer_forward.1} parent=1 // pred_fallthru
      _
    // Predicated region
    $region98: #{my_transformer_forward.1} parent=1 // pred_check
      _
    $region99: #{my_transformer_forward.1} parent=1 // pred_check_branch
      %8355 = sbr.rel (0) target = $region101
    $region100: #{my_transformer_forward.1} parent=1 // pred_region
      %8357 = dma.done [#allocation21], 128
    $region101: #{my_transformer_forward.1} parent=1 // pred_fallthru
      _
    %8358 = vsyncpa [#allocation3], 1
    %8359 = vsyncpa [#allocation6], 1
    %8360 = vsyncpa [#allocation9], 1
    %8361 = vsyncpa [#allocation12], 1
    %8362 = vsyncpa [#allocation15], 1
    %8363 = vsyncpa [#allocation18], 1
    %8364 = vsyncpa [#allocation4], 1
    %8365 = vsyncpa [#allocation21], 1

</llo_original>
